<compile_context>
chip_gen: v7x
topology: tpu7x:2x2x1
jax: 0.10.0
libtpu: 0.0.40
codegen_flags: <defaults>
</compile_context>

<pallas_src>
import functools

import numpy as np
import jax
import jax.numpy as jnp
from jax import lax
from jax.experimental import pallas as pl
from jax.experimental.pallas import tpu as pltpu


C1_PAD = 128   # conv1 output channels zero-padded 64 -> 128 (lane-dense K for conv2)


def _round_up(x, m):
    return (x + m - 1) // m * m


def _net_dims(H, W):
    Ho1, Wo1 = H - 2, W - 2            # conv1 output
    Hp1, Wp1 = Ho1 // 3, Wo1 // 3      # pool1 output (floor mode)
    Ho2, Wo2 = Hp1 - 2, Wp1 - 2        # conv2 output
    Hp2, Wp2 = Ho2 // 3, Wo2 // 3      # pool2 output (floor mode)
    return Ho1, Wo1, Hp1, Wp1, Ho2, Wo2, Hp2, Wp2


# ------------------------------ fused kernel --------------------------------

def _make_kernel(B, CELLS, M2P, F1, C1P, C2, D1, OUTP, Wo2, Hp2, Wp2):
    """B images per call; all spatial/feature dims static."""
    BM = B * M2P

    def kernel(p_ref, sel_ref, w1_ref, b1_ref, w2_ref, b2_ref,
               f1w_ref, f1b_ref, f2w_ref, f2b_ref, o_ref):
        f32 = jnp.float32

        # ---- conv1 + bias + relu: one (9*B*CELLS, F1) x (F1, C1P) dot.
        p = p_ref[...].reshape(9 * B * CELLS, F1)
        a1 = jnp.dot(p, w1_ref[...], preferred_element_type=f32) + b1_ref[...]
        a1 = jnp.maximum(a1, 0.0)

        # ---- pool1 (3x3/s3): max over the 9 within-window positions, which the
        #      wrapper placed on the leading axis -> pure elementwise maxes.
        pool1 = jnp.max(a1.reshape(9, B * CELLS, C1P), axis=0)      # (B*CELLS, C1P)

        # ---- conv2 im2col gather as a single selection matmul (MXU as gather).
        g = jnp.dot(sel_ref[...], pool1, preferred_element_type=f32)  # (9*BM, C1P)

        # ---- conv2: 9 accumulated per-tap dots with M = B*M2P (aligned slices).
        acc2 = jnp.dot(g[0:BM, :], w2_ref[0], preferred_element_type=f32)
        for t in range(1, 9):
            acc2 = acc2 + jnp.dot(g[t * BM:(t + 1) * BM, :], w2_ref[t],
                                  preferred_element_type=f32)
        c2 = (acc2 + b2_ref[...]).reshape(B, M2P, C2)    # rows (b, oh*Wo2 + ow)

        # ---- pool2 (3x3/s3) fused with fc1: per pooled position, a few
        #      vectorized slices + maxes and one (B, C2) x (C2, D1) dot.
        accf = jnp.zeros((B, D1), f32)
        for ph in range(Hp2):
            for pw in range(Wp2):
                win = None
                for di in range(3):
                    base = (3 * ph + di) * Wo2 + 3 * pw
                    s = c2[:, base:base + 3, :]
                    win = s if win is None else jnp.maximum(win, s)
                pooled = jnp.max(win, axis=1)                        # (B, C2)
                accf = accf + jnp.dot(pooled, f1w_ref[ph * Wp2 + pw],
                                      preferred_element_type=f32)
        h1 = jnp.maximum(accf + f1b_ref[...], 0.0)                   # (B, D1)

        # ---- fc2 + LeakyReLU(0.01); output lanes padded to OUTP (128-dense).
        out = jnp.dot(h1, f2w_ref[...], preferred_element_type=f32) + f2b_ref[...]
        o_ref[...] = jnp.where(out >= 0.0, out, 0.01 * out)

    return kernel


# -------------------------- one-time param repack ----------------------------

def prepare_params(params, H, W):
    """Repack torch-layout params into kernel layouts (one-time cost)."""
    _, _, _, _, _, _, Hp2, Wp2 = _net_dims(H, W)

    conv1_w = params["conv1_w"]                      # (64, Cin, 3, 3)  OIHW
    C1, Cin, KH, KW = conv1_w.shape
    F1 = KH * KW * Cin
    w1 = jnp.transpose(conv1_w, (2, 3, 1, 0)).reshape(F1, C1)
    w1 = jnp.pad(w1, ((0, 0), (0, C1_PAD - C1)))
    b1 = jnp.pad(params["conv1_b"], (0, C1_PAD - C1)).reshape(1, C1_PAD)

    conv2_w = params["conv2_w"]                      # (128, 64, 3, 3)
    C2 = conv2_w.shape[0]
    w2 = jnp.transpose(conv2_w, (2, 3, 1, 0)).reshape(KH * KW, C1, C2)
    w2 = jnp.pad(w2, ((0, 0), (0, C1_PAD - C1), (0, 0)))   # pad K (in-ch) to 128
    b2 = params["conv2_b"].reshape(1, C2)

    fc1_w = params["fc1_w"]                          # (C2*Hp2*Wp2, 256), rows (c, ph, pw)
    D1 = fc1_w.shape[1]
    fc1_w = (fc1_w.reshape(C2, Hp2, Wp2, D1)
             .transpose(1, 2, 0, 3)                  # -> (ph, pw, c) row order
             .reshape(Hp2 * Wp2, C2, D1))
    b_fc1 = params["fc1_b"].reshape(1, D1)

    fc2_w = params["fc2_w"]                          # (256, out_dim)
    out_dim = fc2_w.shape[1]
    OUTP = _round_up(out_dim, 128)
    fc2_w = jnp.pad(fc2_w, ((0, 0), (0, OUTP - out_dim)))
    b_fc2 = jnp.pad(params["fc2_b"], (0, OUTP - out_dim)).reshape(1, OUTP)

    return {"w1": w1, "b1": b1, "w2": w2, "b2": b2,
            "fc1_w": fc1_w, "b_fc1": b_fc1, "fc2_w": fc2_w, "b_fc2": b_fc2,
            "out_dim": out_dim}


# ---------------------- wrapper-side layout construction ---------------------

def _build_patches(x_nchw, Hp1, Wp1, CELLS):
    """conv1 im2col grouped by pool1 window: (9, N*CELLS, 9*Cin).
    dim0 = position inside the 3x3 pooling window, dim1 = (image, pool cell)."""
    N, Cin, H, W = x_nchw.shape
    Ho1, Wo1 = H - 2, W - 2
    F1 = 9 * Cin
    xh = jnp.transpose(x_nchw, (0, 2, 3, 1))                       # (N, H, W, Cin)
    taps = [xh[:, di:di + Ho1, dj:dj + Wo1, :]
            for di in range(3) for dj in range(3)]
    cp = jnp.concatenate(taps, axis=-1)                            # (N, Ho1, Wo1, F1)
    cp = cp[:, :3 * Hp1, :3 * Wp1, :]                              # floor-mode crop
    cp = cp.reshape(N, Hp1, 3, Wp1, 3, F1)
    cp = cp.transpose(2, 4, 0, 1, 3, 5)                            # (3, 3, N, Hp1, Wp1, F1)
    cp = cp.reshape(9, N, Hp1 * Wp1, F1)
    cp = jnp.pad(cp, ((0, 0), (0, 0), (0, CELLS - Hp1 * Wp1), (0, 0)))
    return cp.reshape(9, N * CELLS, F1)


def _build_sel(B, CELLS, M2P, Wp1, Ho2, Wo2):
    """Block-diagonal 0/1 matrix that gathers conv2's im2col rows on the MXU.
    Row (t*B + b)*M2P + (oh*Wo2 + ow) selects pool1 cell (oh+di, ow+dj) of image b."""
    sel = np.zeros((9 * B * M2P, B * CELLS), np.float32)
    for t in range(9):
        di, dj = divmod(t, 3)
        for b in range(B):
            for oh in range(Ho2):
                for ow in range(Wo2):
                    m = oh * Wo2 + ow
                    cell = (oh + di) * Wp1 + (ow + dj)
                    sel[(t * B + b) * M2P + m, b * CELLS + cell] = 1.0
    return jnp.asarray(sel)


# --------------------------------- forward -----------------------------------

@functools.partial(jax.jit, static_argnames=("block_b",))
def _forward_padded(x_nchw, w, block_b):
    N, Cin, H, W = x_nchw.shape
    Ho1, Wo1, Hp1, Wp1, Ho2, Wo2, Hp2, Wp2 = _net_dims(H, W)

    F1 = w["w1"].shape[0]
    C1P = w["w1"].shape[1]
    C2 = w["w2"].shape[2]
    D1 = w["fc1_w"].shape[2]
    OUTP = w["fc2_w"].shape[1]

    # batch block: full batch if small, otherwise a sublane-aligned block
    if N <= block_b:
        B = N
    else:
        B = _round_up(block_b, 8)
    Npad = _round_up(N, B)
    if Npad != N:
        x_nchw = jnp.pad(x_nchw, ((0, Npad - N), (0, 0), (0, 0), (0, 0)))

    CELLS = _round_up(Hp1 * Wp1, 8)    # pool1 cells per image (sublane-padded)
    M2P = _round_up(Ho2 * Wo2, 8)      # conv2 output pixels per image (padded)

    patches = _build_patches(x_nchw, Hp1, Wp1, CELLS)    # (9, Npad*CELLS, F1)
    sel = _build_sel(B, CELLS, M2P, Wp1, Ho2, Wo2)       # (9*B*M2P, B*CELLS)

    kernel = _make_kernel(B, CELLS, M2P, F1, C1P, C2, D1, OUTP, Wo2, Hp2, Wp2)

    out = pl.pallas_call(
        kernel,
        out_shape=jax.ShapeDtypeStruct((Npad, OUTP), jnp.float32),
        grid=(Npad // B,),
        in_specs=[
            pl.BlockSpec((9, B * CELLS, F1), lambda n: (0, n, 0)),       # conv1 patches
            pl.BlockSpec((9 * B * M2P, B * CELLS), lambda n: (0, 0)),    # conv2 gather Sel
            pl.BlockSpec((F1, C1P), lambda n: (0, 0)),                   # conv1 w
            pl.BlockSpec((1, C1P), lambda n: (0, 0)),                    # conv1 b
            pl.BlockSpec((9, C1P, C2), lambda n: (0, 0, 0)),             # conv2 w
            pl.BlockSpec((1, C2), lambda n: (0, 0)),                     # conv2 b
            pl.BlockSpec((Hp2 * Wp2, C2, D1), lambda n: (0, 0, 0)),      # fc1 w
            pl.BlockSpec((1, D1), lambda n: (0, 0)),                     # fc1 b
            pl.BlockSpec((D1, OUTP), lambda n: (0, 0)),                  # fc2 w
            pl.BlockSpec((1, OUTP), lambda n: (0, 0)),                   # fc2 b
        ],
        out_specs=pl.BlockSpec((B, OUTP), lambda n: (n, 0)),
        compiler_params=pltpu.CompilerParams(
            dimension_semantics=("parallel",),          # batch blocks over TCs (v7x)
            vmem_limit_bytes=40 * 1024 * 1024,          # headroom incl. v5e default
        ),
    )(patches, sel, w["w1"], w["b1"], w["w2"], w["b2"],
      w["fc1_w"], w["b_fc1"], w["fc2_w"], w["b_fc2"])

    return out


def autocalibration3_forward(x_nchw, prepared, block_b=8):
    """Fused Pallas forward pass.  Input NCHW float32 (PyTorch convention)."""
    out_dim = prepared["out_dim"]
    weights = {k: v for k, v in prepared.items() if k != "out_dim"}
    padded = _forward_padded(x_nchw, weights, block_b)
    return padded[:x_nchw.shape[0], :out_dim]


# --------------------------- pure-JAX reference ------------------------------

def _maxpool3_ref_nchw(x):
    N, C, H, W = x.shape
    Hp, Wp = H // 3, W // 3
    x = x[:, :, :Hp * 3, :Wp * 3].reshape(N, C, Hp, 3, Wp, 3)
    return jnp.max(x, axis=(3, 5))


def reference_forward(x_nchw, params):
    hp = lax.Precision.HIGHEST
    y = lax.conv_general_dilated(
        x_nchw, params["conv1_w"], (1, 1), "VALID",
        dimension_numbers=("NCHW", "OIHW", "NCHW"), precision=hp)
    y = jnp.maximum(y + params["conv1_b"][None, :, None, None], 0.0)
    y = _maxpool3_ref_nchw(y)
    y = lax.conv_general_dilated(
        y, params["conv2_w"], (1, 1), "VALID",
        dimension_numbers=("NCHW", "OIHW", "NCHW"), precision=hp)
    y = y + params["conv2_b"][None, :, None, None]
    y = _maxpool3_ref_nchw(y)
    y = y.reshape(y.shape[0], -1)
    y = jnp.maximum(jnp.dot(y, params["fc1_w"], precision=hp) + params["fc1_b"], 0.0)
    z = jnp.dot(y, params["fc2_w"], precision=hp) + params["fc2_b"]
    return jnp.where(z >= 0.0, z, 0.01 * z)


# ------------------------------ parameters -----------------------------------

def init_params(key, in_channels, cnn_output_dim, output_dim):
    """Deterministic synthetic init (uniform +/- 1/sqrt(fan_in), like torch).
    Conv weights in torch OIHW layout; FC weights as (in, out)."""
    ks = jax.random.split(key, 8)

    def u(k, shape, fan_in):
        bound = 1.0 / float(fan_in) ** 0.5
        return jax.random.uniform(k, shape, jnp.float32, -bound, bound)

    return {
        "conv1_w": u(ks[0], (64, in_channels, 3, 3), in_channels * 9),
        "conv1_b": u(ks[1], (64,), in_channels * 9),
        "conv2_w": u(ks[2], (128, 64, 3, 3), 64 * 9),
        "conv2_b": u(ks[3], (128,), 64 * 9),
        "fc1_w": u(ks[4], (cnn_output_dim, 256), cnn_output_dim),
        "fc1_b": u(ks[5], (256,), cnn_output_dim),
        "fc2_w": u(ks[6], (256, output_dim), 256),
        "fc2_b": u(ks[7], (output_dim,), 256),
    }


if __name__ == "__main__":
    # input_shape = (C, H, W) = (4, 20, 20):
    # conv1 -> 18x18, pool3 -> 6x6, conv2 -> 4x4, pool3 -> 1x1  => cnn_output_dim = 128
    N, C, H, W = 16, 4, 20, 20        # B=8 per grid step -> grid=(2,), both v7x TCs busy
    output_dim = 8
    _, _, _, _, _, _, hp_, wp_ = _net_dims(H, W)
    cnn_output_dim = 128 * hp_ * wp_

    key = jax.random.PRNGKey(0)
    kx, kp = jax.random.split(key)
    x = jax.random.normal(kx, (N, C, H, W), jnp.float32)
    params = init_params(kp, C, cnn_output_dim, output_dim)
    prepared = prepare_params(params, H, W)

    out = jax.block_until_ready(autocalibration3_forward(x, prepared, block_b=8))
    ref = jax.block_until_ready(reference_forward(x, params))

    assert out.shape == (N, output_dim), out.shape
    assert jnp.allclose(out, ref, rtol=1e-2, atol=1e-2), (out, ref)
    print("KERNEL_OK")
</pallas_src>

<mosaic_0001>
module attributes {stable_mosaic.version = 11 : i64} {
  func.func @kernel(%arg0: i32, %arg1: memref<9x320x36xf32, #tpu.memory_space<vmem>>, %arg2: memref<1152x320xf32, #tpu.memory_space<vmem>>, %arg3: memref<36x128xf32, #tpu.memory_space<vmem>>, %arg4: memref<1x128xf32, #tpu.memory_space<vmem>>, %arg5: memref<9x128x128xf32, #tpu.memory_space<vmem>>, %arg6: memref<1x128xf32, #tpu.memory_space<vmem>>, %arg7: memref<1x128x256xf32, #tpu.memory_space<vmem>>, %arg8: memref<1x256xf32, #tpu.memory_space<vmem>>, %arg9: memref<256x128xf32, #tpu.memory_space<vmem>>, %arg10: memref<1x128xf32, #tpu.memory_space<vmem>>, %arg11: memref<8x128xf32, #tpu.memory_space<vmem>>) attributes {dimension_semantics = [#tpu.dimension_semantics<parallel>], iteration_bounds = array<i64: 2>, scalar_prefetch = 0 : i64, scratch_operands = 0 : i64, tpu.core_type = #tpu.core_type<tc>, window_params = [{transform_indices = @transform_0, window_bounds = array<i64: 9, 320, 36>}, {pipeline_mode = #tpu.pipeline_mode<synchronous>, transform_indices = @transform_1, window_bounds = array<i64: 1152, 320>}, {pipeline_mode = #tpu.pipeline_mode<synchronous>, transform_indices = @transform_2, window_bounds = array<i64: 36, 128>}, {pipeline_mode = #tpu.pipeline_mode<synchronous>, transform_indices = @transform_3, window_bounds = array<i64: 1, 128>}, {pipeline_mode = #tpu.pipeline_mode<synchronous>, transform_indices = @transform_4, window_bounds = array<i64: 9, 128, 128>}, {pipeline_mode = #tpu.pipeline_mode<synchronous>, transform_indices = @transform_5, window_bounds = array<i64: 1, 128>}, {pipeline_mode = #tpu.pipeline_mode<synchronous>, transform_indices = @transform_6, window_bounds = array<i64: 1, 128, 256>}, {pipeline_mode = #tpu.pipeline_mode<synchronous>, transform_indices = @transform_7, window_bounds = array<i64: 1, 256>}, {pipeline_mode = #tpu.pipeline_mode<synchronous>, transform_indices = @transform_8, window_bounds = array<i64: 256, 128>}, {pipeline_mode = #tpu.pipeline_mode<synchronous>, transform_indices = @transform_9, window_bounds = array<i64: 1, 128>}, {transform_indices = @transform_10, window_bounds = array<i64: 8, 128>}]} {
    %c0 = arith.constant 0 : index
    %c0_0 = arith.constant 0 : index
    %c0_1 = arith.constant 0 : index
    %0 = vector.load %arg1[%c0, %c0_0, %c0_1] : memref<9x320x36xf32, #tpu.memory_space<vmem>>, vector<9x320x36xf32>
    %1 = vector.shape_cast %0 : vector<9x320x36xf32> to vector<2880x36xf32>
    %c0_2 = arith.constant 0 : index
    %c0_3 = arith.constant 0 : index
    %2 = vector.load %arg3[%c0_2, %c0_3] : memref<36x128xf32, #tpu.memory_space<vmem>>, vector<36x128xf32>
    %cst = arith.constant dense<0.000000e+00> : vector<2880x128xf32>
    %3 = tpu.matmul %1, %2, %cst {dimension_numbers = #tpu.dot_dimension_numbers<[1], [0], [0], [1], [0, 0, 1, 1], [], []>} : vector<2880x36xf32>, vector<36x128xf32>, vector<2880x128xf32> -> vector<2880x128xf32>
    %c0_4 = arith.constant 0 : index
    %c0_5 = arith.constant 0 : index
    %4 = vector.load %arg4[%c0_4, %c0_5] : memref<1x128xf32, #tpu.memory_space<vmem>>, vector<1x128xf32>
    %5 = vector.broadcast %4 : vector<1x128xf32> to vector<2880x128xf32>
    %6 = arith.addf %3, %5 : vector<2880x128xf32>
    %cst_6 = arith.constant 0.000000e+00 : f32
    %7 = vector.broadcast %cst_6 : f32 to vector<2880x128xf32>
    %8 = arith.maximumf %6, %7 : vector<2880x128xf32>
    %9 = vector.shape_cast %8 : vector<2880x128xf32> to vector<9x320x128xf32>
    %cst_7 = arith.constant dense<0xFF800000> : vector<320x128xf32>
    %10 = vector.multi_reduction <maximumf>, %9, %cst_7 [0] : vector<9x320x128xf32> to vector<320x128xf32>
    %c0_8 = arith.constant 0 : index
    %c0_9 = arith.constant 0 : index
    %11 = vector.load %arg2[%c0_8, %c0_9] : memref<1152x320xf32, #tpu.memory_space<vmem>>, vector<1152x320xf32>
    %cst_10 = arith.constant dense<0.000000e+00> : vector<1152x128xf32>
    %12 = tpu.matmul %11, %10, %cst_10 {dimension_numbers = #tpu.dot_dimension_numbers<[1], [0], [0], [1], [0, 0, 1, 1], [], []>} : vector<1152x320xf32>, vector<320x128xf32>, vector<1152x128xf32> -> vector<1152x128xf32>
    %13 = vector.extract_strided_slice %12 {offsets = [0, 0], sizes = [128, 128], strides = [1, 1]} : vector<1152x128xf32> to vector<128x128xf32>
    %c0_11 = arith.constant 0 : index
    %c0_12 = arith.constant 0 : index
    %c0_13 = arith.constant 0 : index
    %14 = vector.load %arg5[%c0_11, %c0_12, %c0_13] : memref<9x128x128xf32, #tpu.memory_space<vmem>>, vector<1x128x128xf32>
    %15 = vector.shape_cast %14 : vector<1x128x128xf32> to vector<128x128xf32>
    %cst_14 = arith.constant dense<0.000000e+00> : vector<128x128xf32>
    %16 = tpu.matmul %13, %15, %cst_14 {dimension_numbers = #tpu.dot_dimension_numbers<[1], [0], [0], [1], [0, 0, 1, 1], [], []>} : vector<128x128xf32>, vector<128x128xf32>, vector<128x128xf32> -> vector<128x128xf32>
    %17 = vector.extract_strided_slice %12 {offsets = [128, 0], sizes = [128, 128], strides = [1, 1]} : vector<1152x128xf32> to vector<128x128xf32>
    %c1 = arith.constant 1 : index
    %c0_15 = arith.constant 0 : index
    %c0_16 = arith.constant 0 : index
    %18 = vector.load %arg5[%c1, %c0_15, %c0_16] : memref<9x128x128xf32, #tpu.memory_space<vmem>>, vector<1x128x128xf32>
    %19 = vector.shape_cast %18 : vector<1x128x128xf32> to vector<128x128xf32>
    %cst_17 = arith.constant dense<0.000000e+00> : vector<128x128xf32>
    %20 = tpu.matmul %17, %19, %cst_17 {dimension_numbers = #tpu.dot_dimension_numbers<[1], [0], [0], [1], [0, 0, 1, 1], [], []>} : vector<128x128xf32>, vector<128x128xf32>, vector<128x128xf32> -> vector<128x128xf32>
    %21 = arith.addf %16, %20 : vector<128x128xf32>
    %22 = vector.extract_strided_slice %12 {offsets = [256, 0], sizes = [128, 128], strides = [1, 1]} : vector<1152x128xf32> to vector<128x128xf32>
    %c2 = arith.constant 2 : index
    %c0_18 = arith.constant 0 : index
    %c0_19 = arith.constant 0 : index
    %23 = vector.load %arg5[%c2, %c0_18, %c0_19] : memref<9x128x128xf32, #tpu.memory_space<vmem>>, vector<1x128x128xf32>
    %24 = vector.shape_cast %23 : vector<1x128x128xf32> to vector<128x128xf32>
    %cst_20 = arith.constant dense<0.000000e+00> : vector<128x128xf32>
    %25 = tpu.matmul %22, %24, %cst_20 {dimension_numbers = #tpu.dot_dimension_numbers<[1], [0], [0], [1], [0, 0, 1, 1], [], []>} : vector<128x128xf32>, vector<128x128xf32>, vector<128x128xf32> -> vector<128x128xf32>
    %26 = arith.addf %21, %25 : vector<128x128xf32>
    %27 = vector.extract_strided_slice %12 {offsets = [384, 0], sizes = [128, 128], strides = [1, 1]} : vector<1152x128xf32> to vector<128x128xf32>
    %c3 = arith.constant 3 : index
    %c0_21 = arith.constant 0 : index
    %c0_22 = arith.constant 0 : index
    %28 = vector.load %arg5[%c3, %c0_21, %c0_22] : memref<9x128x128xf32, #tpu.memory_space<vmem>>, vector<1x128x128xf32>
    %29 = vector.shape_cast %28 : vector<1x128x128xf32> to vector<128x128xf32>
    %cst_23 = arith.constant dense<0.000000e+00> : vector<128x128xf32>
    %30 = tpu.matmul %27, %29, %cst_23 {dimension_numbers = #tpu.dot_dimension_numbers<[1], [0], [0], [1], [0, 0, 1, 1], [], []>} : vector<128x128xf32>, vector<128x128xf32>, vector<128x128xf32> -> vector<128x128xf32>
    %31 = arith.addf %26, %30 : vector<128x128xf32>
    %32 = vector.extract_strided_slice %12 {offsets = [512, 0], sizes = [128, 128], strides = [1, 1]} : vector<1152x128xf32> to vector<128x128xf32>
    %c4 = arith.constant 4 : index
    %c0_24 = arith.constant 0 : index
    %c0_25 = arith.constant 0 : index
    %33 = vector.load %arg5[%c4, %c0_24, %c0_25] : memref<9x128x128xf32, #tpu.memory_space<vmem>>, vector<1x128x128xf32>
    %34 = vector.shape_cast %33 : vector<1x128x128xf32> to vector<128x128xf32>
    %cst_26 = arith.constant dense<0.000000e+00> : vector<128x128xf32>
    %35 = tpu.matmul %32, %34, %cst_26 {dimension_numbers = #tpu.dot_dimension_numbers<[1], [0], [0], [1], [0, 0, 1, 1], [], []>} : vector<128x128xf32>, vector<128x128xf32>, vector<128x128xf32> -> vector<128x128xf32>
    %36 = arith.addf %31, %35 : vector<128x128xf32>
    %37 = vector.extract_strided_slice %12 {offsets = [640, 0], sizes = [128, 128], strides = [1, 1]} : vector<1152x128xf32> to vector<128x128xf32>
    %c5 = arith.constant 5 : index
    %c0_27 = arith.constant 0 : index
    %c0_28 = arith.constant 0 : index
    %38 = vector.load %arg5[%c5, %c0_27, %c0_28] : memref<9x128x128xf32, #tpu.memory_space<vmem>>, vector<1x128x128xf32>
    %39 = vector.shape_cast %38 : vector<1x128x128xf32> to vector<128x128xf32>
    %cst_29 = arith.constant dense<0.000000e+00> : vector<128x128xf32>
    %40 = tpu.matmul %37, %39, %cst_29 {dimension_numbers = #tpu.dot_dimension_numbers<[1], [0], [0], [1], [0, 0, 1, 1], [], []>} : vector<128x128xf32>, vector<128x128xf32>, vector<128x128xf32> -> vector<128x128xf32>
    %41 = arith.addf %36, %40 : vector<128x128xf32>
    %42 = vector.extract_strided_slice %12 {offsets = [768, 0], sizes = [128, 128], strides = [1, 1]} : vector<1152x128xf32> to vector<128x128xf32>
    %c6 = arith.constant 6 : index
    %c0_30 = arith.constant 0 : index
    %c0_31 = arith.constant 0 : index
    %43 = vector.load %arg5[%c6, %c0_30, %c0_31] : memref<9x128x128xf32, #tpu.memory_space<vmem>>, vector<1x128x128xf32>
    %44 = vector.shape_cast %43 : vector<1x128x128xf32> to vector<128x128xf32>
    %cst_32 = arith.constant dense<0.000000e+00> : vector<128x128xf32>
    %45 = tpu.matmul %42, %44, %cst_32 {dimension_numbers = #tpu.dot_dimension_numbers<[1], [0], [0], [1], [0, 0, 1, 1], [], []>} : vector<128x128xf32>, vector<128x128xf32>, vector<128x128xf32> -> vector<128x128xf32>
    %46 = arith.addf %41, %45 : vector<128x128xf32>
    %47 = vector.extract_strided_slice %12 {offsets = [896, 0], sizes = [128, 128], strides = [1, 1]} : vector<1152x128xf32> to vector<128x128xf32>
    %c7 = arith.constant 7 : index
    %c0_33 = arith.constant 0 : index
    %c0_34 = arith.constant 0 : index
    %48 = vector.load %arg5[%c7, %c0_33, %c0_34] : memref<9x128x128xf32, #tpu.memory_space<vmem>>, vector<1x128x128xf32>
    %49 = vector.shape_cast %48 : vector<1x128x128xf32> to vector<128x128xf32>
    %cst_35 = arith.constant dense<0.000000e+00> : vector<128x128xf32>
    %50 = tpu.matmul %47, %49, %cst_35 {dimension_numbers = #tpu.dot_dimension_numbers<[1], [0], [0], [1], [0, 0, 1, 1], [], []>} : vector<128x128xf32>, vector<128x128xf32>, vector<128x128xf32> -> vector<128x128xf32>
    %51 = arith.addf %46, %50 : vector<128x128xf32>
    %52 = vector.extract_strided_slice %12 {offsets = [1024, 0], sizes = [128, 128], strides = [1, 1]} : vector<1152x128xf32> to vector<128x128xf32>
    %c8 = arith.constant 8 : index
    %c0_36 = arith.constant 0 : index
    %c0_37 = arith.constant 0 : index
    %53 = vector.load %arg5[%c8, %c0_36, %c0_37] : memref<9x128x128xf32, #tpu.memory_space<vmem>>, vector<1x128x128xf32>
    %54 = vector.shape_cast %53 : vector<1x128x128xf32> to vector<128x128xf32>
    %cst_38 = arith.constant dense<0.000000e+00> : vector<128x128xf32>
    %55 = tpu.matmul %52, %54, %cst_38 {dimension_numbers = #tpu.dot_dimension_numbers<[1], [0], [0], [1], [0, 0, 1, 1], [], []>} : vector<128x128xf32>, vector<128x128xf32>, vector<128x128xf32> -> vector<128x128xf32>
    %56 = arith.addf %51, %55 : vector<128x128xf32>
    %c0_39 = arith.constant 0 : index
    %c0_40 = arith.constant 0 : index
    %57 = vector.load %arg6[%c0_39, %c0_40] : memref<1x128xf32, #tpu.memory_space<vmem>>, vector<1x128xf32>
    %58 = vector.broadcast %57 : vector<1x128xf32> to vector<128x128xf32>
    %59 = arith.addf %56, %58 : vector<128x128xf32>
    %60 = vector.shape_cast %59 : vector<128x128xf32> to vector<8x16x128xf32>
    %cst_41 = arith.constant 0.000000e+00 : f32
    %61 = vector.broadcast %cst_41 : f32 to vector<8x256xf32>
    %62 = vector.extract_strided_slice %60 {offsets = [0, 0, 0], sizes = [8, 3, 128], strides = [1, 1, 1]} : vector<8x16x128xf32> to vector<8x3x128xf32>
    %63 = vector.extract_strided_slice %60 {offsets = [0, 4, 0], sizes = [8, 3, 128], strides = [1, 1, 1]} : vector<8x16x128xf32> to vector<8x3x128xf32>
    %64 = arith.maximumf %62, %63 : vector<8x3x128xf32>
    %65 = vector.extract_strided_slice %60 {offsets = [0, 8, 0], sizes = [8, 3, 128], strides = [1, 1, 1]} : vector<8x16x128xf32> to vector<8x3x128xf32>
    %66 = arith.maximumf %64, %65 : vector<8x3x128xf32>
    %cst_42 = arith.constant dense<0xFF800000> : vector<8x128xf32>
    %67 = vector.multi_reduction <maximumf>, %66, %cst_42 [1] : vector<8x3x128xf32> to vector<8x128xf32>
    %c0_43 = arith.constant 0 : index
    %c0_44 = arith.constant 0 : index
    %c0_45 = arith.constant 0 : index
    %68 = vector.load %arg7[%c0_43, %c0_44, %c0_45] : memref<1x128x256xf32, #tpu.memory_space<vmem>>, vector<1x128x256xf32>
    %69 = vector.shape_cast %68 : vector<1x128x256xf32> to vector<128x256xf32>
    %cst_46 = arith.constant dense<0.000000e+00> : vector<8x256xf32>
    %70 = tpu.matmul %67, %69, %cst_46 {dimension_numbers = #tpu.dot_dimension_numbers<[1], [0], [0], [1], [0, 0, 1, 1], [], []>} : vector<8x128xf32>, vector<128x256xf32>, vector<8x256xf32> -> vector<8x256xf32>
    %71 = arith.addf %61, %70 : vector<8x256xf32>
    %c0_47 = arith.constant 0 : index
    %c0_48 = arith.constant 0 : index
    %72 = vector.load %arg8[%c0_47, %c0_48] : memref<1x256xf32, #tpu.memory_space<vmem>>, vector<1x256xf32>
    %73 = vector.broadcast %72 : vector<1x256xf32> to vector<8x256xf32>
    %74 = arith.addf %71, %73 : vector<8x256xf32>
    %cst_49 = arith.constant 0.000000e+00 : f32
    %75 = vector.broadcast %cst_49 : f32 to vector<8x256xf32>
    %76 = arith.maximumf %74, %75 : vector<8x256xf32>
    %c0_50 = arith.constant 0 : index
    %c0_51 = arith.constant 0 : index
    %77 = vector.load %arg9[%c0_50, %c0_51] : memref<256x128xf32, #tpu.memory_space<vmem>>, vector<256x128xf32>
    %cst_52 = arith.constant dense<0.000000e+00> : vector<8x128xf32>
    %78 = tpu.matmul %76, %77, %cst_52 {dimension_numbers = #tpu.dot_dimension_numbers<[1], [0], [0], [1], [0, 0, 1, 1], [], []>} : vector<8x256xf32>, vector<256x128xf32>, vector<8x128xf32> -> vector<8x128xf32>
    %c0_53 = arith.constant 0 : index
    %c0_54 = arith.constant 0 : index
    %79 = vector.load %arg10[%c0_53, %c0_54] : memref<1x128xf32, #tpu.memory_space<vmem>>, vector<1x128xf32>
    %80 = vector.broadcast %79 : vector<1x128xf32> to vector<8x128xf32>
    %81 = arith.addf %78, %80 : vector<8x128xf32>
    %cst_55 = arith.constant 0.000000e+00 : f32
    %82 = vector.broadcast %cst_55 : f32 to vector<8x128xf32>
    %83 = arith.cmpf oge, %81, %82 : vector<8x128xf32>
    %cst_56 = arith.constant 0.00999999977 : f32
    %84 = vector.broadcast %cst_56 : f32 to vector<8x128xf32>
    %85 = arith.mulf %84, %81 : vector<8x128xf32>
    %86 = arith.select %83, %81, %85 : vector<8x128xi1>, vector<8x128xf32>
    %c0_57 = arith.constant 0 : index
    %c0_58 = arith.constant 0 : index
    %87 = vector.load %arg11[%c0_57, %c0_58] : memref<8x128xf32, #tpu.memory_space<vmem>>, vector<8x128xf32>
    tpu.vector_store %arg11[%c0_57, %c0_58], %86 {strides = array<i32>} : memref<8x128xf32, #tpu.memory_space<vmem>>, vector<8x128xf32>,
    return
  }
  func.func @transform_0(%arg0: i32) -> (i32, i32, i32) {
    %c0_i32 = arith.constant 0 : i32
    %c0_i32_0 = arith.constant 0 : i32
    %c0_i32_1 = arith.constant 0 : i32
    return %c0_i32, %arg0, %c0_i32_0 : i32, i32, i32
  }
  func.func @transform_1(%arg0: i32) -> (i32, i32) {
    %c0_i32 = arith.constant 0 : i32
    %c0_i32_0 = arith.constant 0 : i32
    %c0_i32_1 = arith.constant 0 : i32
    return %c0_i32, %c0_i32_0 : i32, i32
  }
  func.func @transform_2(%arg0: i32) -> (i32, i32) {
    %c0_i32 = arith.constant 0 : i32
    %c0_i32_0 = arith.constant 0 : i32
    %c0_i32_1 = arith.constant 0 : i32
    return %c0_i32, %c0_i32_0 : i32, i32
  }
  func.func @transform_3(%arg0: i32) -> (i32, i32) {
    %c0_i32 = arith.constant 0 : i32
    %c0_i32_0 = arith.constant 0 : i32
    %c0_i32_1 = arith.constant 0 : i32
    return %c0_i32, %c0_i32_0 : i32, i32
  }
  func.func @transform_4(%arg0: i32) -> (i32, i32, i32) {
    %c0_i32 = arith.constant 0 : i32
    %c0_i32_0 = arith.constant 0 : i32
    %c0_i32_1 = arith.constant 0 : i32
    %c0_i32_2 = arith.constant 0 : i32
    return %c0_i32, %c0_i32_0, %c0_i32_1 : i32, i32, i32
  }
  func.func @transform_5(%arg0: i32) -> (i32, i32) {
    %c0_i32 = arith.constant 0 : i32
    %c0_i32_0 = arith.constant 0 : i32
    %c0_i32_1 = arith.constant 0 : i32
    return %c0_i32, %c0_i32_0 : i32, i32
  }
  func.func @transform_6(%arg0: i32) -> (i32, i32, i32) {
    %c0_i32 = arith.constant 0 : i32
    %c0_i32_0 = arith.constant 0 : i32
    %c0_i32_1 = arith.constant 0 : i32
    %c0_i32_2 = arith.constant 0 : i32
    return %c0_i32, %c0_i32_0, %c0_i32_1 : i32, i32, i32
  }
  func.func @transform_7(%arg0: i32) -> (i32, i32) {
    %c0_i32 = arith.constant 0 : i32
    %c0_i32_0 = arith.constant 0 : i32
    %c0_i32_1 = arith.constant 0 : i32
    return %c0_i32, %c0_i32_0 : i32, i32
  }
  func.func @transform_8(%arg0: i32) -> (i32, i32) {
    %c0_i32 = arith.constant 0 : i32
    %c0_i32_0 = arith.constant 0 : i32
    %c0_i32_1 = arith.constant 0 : i32
    return %c0_i32, %c0_i32_0 : i32, i32
  }
  func.func @transform_9(%arg0: i32) -> (i32, i32) {
    %c0_i32 = arith.constant 0 : i32
    %c0_i32_0 = arith.constant 0 : i32
    %c0_i32_1 = arith.constant 0 : i32
    return %c0_i32, %c0_i32_0 : i32, i32
  }
  func.func @transform_10(%arg0: i32) -> (i32, i32) {
    %c0_i32 = arith.constant 0 : i32
    %c0_i32_0 = arith.constant 0 : i32
    return %arg0, %c0_i32 : i32, i32
  }
}

</mosaic_0001>

<llo_original>
// kernel: _forward_padded.1
$region0: #{_forward_padded.1}
  #allocation0 [shape = 'u32[]', space=smem, size = 0x4, offset = 0x4, fixed_abs, tag = 'smem constant byte address 0x4 - core index']
  #allocation1 [shape = 'u32[144,128]{1,0:T(1,128)}', space=vmem, size = 0x12000, scoped, tag = 'internal scratch']
  %s0 = inlined_call_operand.vmem [shape: f32[9,640,36], index: 0, kind: input, shape index: {}]
  %s1 = inlined_call_operand.vmem [shape: f32[1152,320], index: 1, kind: input, shape index: {}]
  %s2 = inlined_call_operand.vmem [shape: f32[36,128], index: 2, kind: input, shape index: {}]
  %s3 = inlined_call_operand.vmem [shape: f32[1,128], index: 3, kind: input, shape index: {}]
  %s4 = inlined_call_operand.vmem [shape: f32[9,128,128], index: 4, kind: input, shape index: {}]
  %s5 = inlined_call_operand.vmem [shape: f32[1,128], index: 5, kind: input, shape index: {}]
  %s6 = inlined_call_operand.vmem [shape: f32[1,128,256], index: 6, kind: input, shape index: {}]
  %s7 = inlined_call_operand.vmem [shape: f32[1,256], index: 7, kind: input, shape index: {}]
  %s8 = inlined_call_operand.vmem [shape: f32[256,128], index: 8, kind: input, shape index: {}]
  %s9 = inlined_call_operand.vmem [shape: f32[1,128], index: 9, kind: input, shape index: {}]
  %s10 = inlined_call_operand.hbm [shape: f32[16,128], index: 10, kind: output, shape index: {}]
  %s11 = sld [smem:[#allocation0]]
  $region111: #{_forward_padded.1} parent=0
    _
  %s13 = ssub.s32 1, %s11
  %s14 = scalar_select 0, %s13, %s11
  $region1: #{_forward_padded.1} parent=0
    #allocation2 [shape = 'u8[2949120]{0}', space=vmem, size = 0x2d0000, scoped, tag = 'input window, operand 0']
    #allocation3 [shape = 'u8[8192]{0}', space=vmem, size = 0x2000, scoped, tag = 'output window, operand 0']
    #allocation4 [shape = 's32[2]{0}', space=sflag, size = 0x8, scoped, tag = 'scoped memory for _forward_padded.1']
    %15 = vsyncpa [#allocation4], 0
    %s16 = scalar_lea.sflag [#allocation4], 1
    %17 = vsyncpa %s16, 0
    loop: start=0, step=1, limit=4
    $region2: #{_forward_padded.1} parent=1 // loop_pre_header
      _
    $region3: #{_forward_padded.1} parent=1 // loop_header
      %s19 = sphi 0, %s23
      %p20 = scmp.ge.s32.totalorder %s19, 4
      %s29 = sphi 0, %s31
      %s32 = sphi 0, %s29
      %s33 = sphi 0, %s32
      %s49 = sphi 0, %s33
      %s53 = sphi 0, %s53
      %s55 = sphi 0, %s53
      %s56 = sphi 0, %s55
      %s70 = sphi 0, %s56
      %s74 = sphi 0, %s74
      %s76 = sphi 0, %s74
      %s77 = sphi 0, %s76
      %s91 = sphi 0, %s77
      %s95 = sphi 0, %s95
      %s97 = sphi 0, %s95
      %s98 = sphi 0, %s97
      %s112 = sphi 0, %s98
      %s116 = sphi 0, %s116
      %s118 = sphi 0, %s116
      %s119 = sphi 0, %s118
      %s133 = sphi 0, %s119
      %s137 = sphi 0, %s137
      %s139 = sphi 0, %s137
      %s140 = sphi 0, %s139
      %s154 = sphi 0, %s140
      %s158 = sphi 0, %s158
      %s160 = sphi 0, %s158
      %s161 = sphi 0, %s160
      %s175 = sphi 0, %s161
      %s179 = sphi 0, %s179
      %s181 = sphi 0, %s179
      %s182 = sphi 0, %s181
      %s196 = sphi 0, %s182
      %s200 = sphi 0, %s200
      %s202 = sphi 0, %s200
      %s203 = sphi 0, %s202
      %s217 = sphi 0, %s203
      %s221 = sphi 0, %s221
      %s223 = sphi 0, %s221
      %s224 = sphi 0, %s223
      %s238 = sphi 0, %s224
      %s244 = sphi 0, %s246
      %s247 = sphi 0, %s244
      %s248 = sphi 0, %s247
      %s264 = sphi 0, %s248
    $region4: #{_forward_padded.1} parent=1 // loop_header_branch
      %22 = sbr.rel (%p20) target = $region8
    $region5: #{_forward_padded.1} parent=1 // loop_body
      %s24 = ssub.s32 %s19, 1
      %s25 = ssub.s32 %s19, 2
      %s26 = sadd.s32 %s19, 1
      %s27 = ssub.s32 %s19, %s26
      %p28 = scmp.eq.s32.totalorder %s27, 0
      %s30 = sadd.s32 %s29, 1
      %s31 = scalar_select %p28, %s29, %s30
      %p34 = pneg %p28
      %p35 = scmp.eq.s32.totalorder %s19, 1
      %p36 = por %p34, %p35
      %p37 = scmp.ne.s32.totalorder %s29, %s32
      %p38 = scmp.eq.s32.totalorder %s19, 0
      %p39 = por %p37, %p38
      %p40 = scmp.ne.s32.totalorder %s29, %s32
      %p41 = scmp.eq.s32.totalorder %s24, 1
      %p42 = por %p40, %p41
      %p43 = scmp.ne.s32.totalorder %s32, %s33
      %p44 = scmp.eq.s32.totalorder %s24, 0
      %p45 = por %p43, %p44
      %p46 = scmp.ne.s32.totalorder %s32, %s33
      %p47 = scmp.eq.s32.totalorder %s25, 1
      %p48 = por %p46, %p47
      %p50 = scmp.ne.s32.totalorder %s33, %s49
      %p51 = scmp.eq.s32.totalorder %s25, 0
      %p52 = por %p50, %p51
      %s54 = sadd.s32 %s53, 1
      %p57 = scmp.eq.s32.totalorder %s19, 1
      %p58 = scmp.ne.s32.totalorder %s53, %s55
      %p59 = scmp.eq.s32.totalorder %s19, 0
      %p60 = por %p58, %p59
      %p61 = scmp.ne.s32.totalorder %s53, %s55
      %p62 = scmp.eq.s32.totalorder %s24, 1
      %p63 = por %p61, %p62
      %p64 = scmp.ne.s32.totalorder %s55, %s56
      %p65 = scmp.eq.s32.totalorder %s24, 0
      %p66 = por %p64, %p65
      %p67 = scmp.ne.s32.totalorder %s55, %s56
      %p68 = scmp.eq.s32.totalorder %s25, 1
      %p69 = por %p67, %p68
      %p71 = scmp.ne.s32.totalorder %s56, %s70
      %p72 = scmp.eq.s32.totalorder %s25, 0
      %p73 = por %p71, %p72
      %s75 = sadd.s32 %s74, 1
      %p78 = scmp.eq.s32.totalorder %s19, 1
      %p79 = scmp.ne.s32.totalorder %s74, %s76
      %p80 = scmp.eq.s32.totalorder %s19, 0
      %p81 = por %p79, %p80
      %p82 = scmp.ne.s32.totalorder %s74, %s76
      %p83 = scmp.eq.s32.totalorder %s24, 1
      %p84 = por %p82, %p83
      %p85 = scmp.ne.s32.totalorder %s76, %s77
      %p86 = scmp.eq.s32.totalorder %s24, 0
      %p87 = por %p85, %p86
      %p88 = scmp.ne.s32.totalorder %s76, %s77
      %p89 = scmp.eq.s32.totalorder %s25, 1
      %p90 = por %p88, %p89
      %p92 = scmp.ne.s32.totalorder %s77, %s91
      %p93 = scmp.eq.s32.totalorder %s25, 0
      %p94 = por %p92, %p93
      %s96 = sadd.s32 %s95, 1
      %p99 = scmp.eq.s32.totalorder %s19, 1
      %p100 = scmp.ne.s32.totalorder %s95, %s97
      %p101 = scmp.eq.s32.totalorder %s19, 0
      %p102 = por %p100, %p101
      %p103 = scmp.ne.s32.totalorder %s95, %s97
      %p104 = scmp.eq.s32.totalorder %s24, 1
      %p105 = por %p103, %p104
      %p106 = scmp.ne.s32.totalorder %s97, %s98
      %p107 = scmp.eq.s32.totalorder %s24, 0
      %p108 = por %p106, %p107
      %p109 = scmp.ne.s32.totalorder %s97, %s98
      %p110 = scmp.eq.s32.totalorder %s25, 1
      %p111 = por %p109, %p110
      %p113 = scmp.ne.s32.totalorder %s98, %s112
      %p114 = scmp.eq.s32.totalorder %s25, 0
      %p115 = por %p113, %p114
      %s117 = sadd.s32 %s116, 1
      %p120 = scmp.eq.s32.totalorder %s19, 1
      %p121 = scmp.ne.s32.totalorder %s116, %s118
      %p122 = scmp.eq.s32.totalorder %s19, 0
      %p123 = por %p121, %p122
      %p124 = scmp.ne.s32.totalorder %s116, %s118
      %p125 = scmp.eq.s32.totalorder %s24, 1
      %p126 = por %p124, %p125
      %p127 = scmp.ne.s32.totalorder %s118, %s119
      %p128 = scmp.eq.s32.totalorder %s24, 0
      %p129 = por %p127, %p128
      %p130 = scmp.ne.s32.totalorder %s118, %s119
      %p131 = scmp.eq.s32.totalorder %s25, 1
      %p132 = por %p130, %p131
      %p134 = scmp.ne.s32.totalorder %s119, %s133
      %p135 = scmp.eq.s32.totalorder %s25, 0
      %p136 = por %p134, %p135
      %s138 = sadd.s32 %s137, 1
      %p141 = scmp.eq.s32.totalorder %s19, 1
      %p142 = scmp.ne.s32.totalorder %s137, %s139
      %p143 = scmp.eq.s32.totalorder %s19, 0
      %p144 = por %p142, %p143
      %p145 = scmp.ne.s32.totalorder %s137, %s139
      %p146 = scmp.eq.s32.totalorder %s24, 1
      %p147 = por %p145, %p146
      %p148 = scmp.ne.s32.totalorder %s139, %s140
      %p149 = scmp.eq.s32.totalorder %s24, 0
      %p150 = por %p148, %p149
      %p151 = scmp.ne.s32.totalorder %s139, %s140
      %p152 = scmp.eq.s32.totalorder %s25, 1
      %p153 = por %p151, %p152
      %p155 = scmp.ne.s32.totalorder %s140, %s154
      %p156 = scmp.eq.s32.totalorder %s25, 0
      %p157 = por %p155, %p156
      %s159 = sadd.s32 %s158, 1
      %p162 = scmp.eq.s32.totalorder %s19, 1
      %p163 = scmp.ne.s32.totalorder %s158, %s160
      %p164 = scmp.eq.s32.totalorder %s19, 0
      %p165 = por %p163, %p164
      %p166 = scmp.ne.s32.totalorder %s158, %s160
      %p167 = scmp.eq.s32.totalorder %s24, 1
      %p168 = por %p166, %p167
      %p169 = scmp.ne.s32.totalorder %s160, %s161
      %p170 = scmp.eq.s32.totalorder %s24, 0
      %p171 = por %p169, %p170
      %p172 = scmp.ne.s32.totalorder %s160, %s161
      %p173 = scmp.eq.s32.totalorder %s25, 1
      %p174 = por %p172, %p173
      %p176 = scmp.ne.s32.totalorder %s161, %s175
      %p177 = scmp.eq.s32.totalorder %s25, 0
      %p178 = por %p176, %p177
      %s180 = sadd.s32 %s179, 1
      %p183 = scmp.eq.s32.totalorder %s19, 1
      %p184 = scmp.ne.s32.totalorder %s179, %s181
      %p185 = scmp.eq.s32.totalorder %s19, 0
      %p186 = por %p184, %p185
      %p187 = scmp.ne.s32.totalorder %s179, %s181
      %p188 = scmp.eq.s32.totalorder %s24, 1
      %p189 = por %p187, %p188
      %p190 = scmp.ne.s32.totalorder %s181, %s182
      %p191 = scmp.eq.s32.totalorder %s24, 0
      %p192 = por %p190, %p191
      %p193 = scmp.ne.s32.totalorder %s181, %s182
      %p194 = scmp.eq.s32.totalorder %s25, 1
      %p195 = por %p193, %p194
      %p197 = scmp.ne.s32.totalorder %s182, %s196
      %p198 = scmp.eq.s32.totalorder %s25, 0
      %p199 = por %p197, %p198
      %s201 = sadd.s32 %s200, 1
      %p204 = scmp.eq.s32.totalorder %s19, 1
      %p205 = scmp.ne.s32.totalorder %s200, %s202
      %p206 = scmp.eq.s32.totalorder %s19, 0
      %p207 = por %p205, %p206
      %p208 = scmp.ne.s32.totalorder %s200, %s202
      %p209 = scmp.eq.s32.totalorder %s24, 1
      %p210 = por %p208, %p209
      %p211 = scmp.ne.s32.totalorder %s202, %s203
      %p212 = scmp.eq.s32.totalorder %s24, 0
      %p213 = por %p211, %p212
      %p214 = scmp.ne.s32.totalorder %s202, %s203
      %p215 = scmp.eq.s32.totalorder %s25, 1
      %p216 = por %p214, %p215
      %p218 = scmp.ne.s32.totalorder %s203, %s217
      %p219 = scmp.eq.s32.totalorder %s25, 0
      %p220 = por %p218, %p219
      %s222 = sadd.s32 %s221, 1
      %p225 = scmp.eq.s32.totalorder %s19, 1
      %p226 = scmp.ne.s32.totalorder %s221, %s223
      %p227 = scmp.eq.s32.totalorder %s19, 0
      %p228 = por %p226, %p227
      %p229 = scmp.ne.s32.totalorder %s221, %s223
      %p230 = scmp.eq.s32.totalorder %s24, 1
      %p231 = por %p229, %p230
      %p232 = scmp.ne.s32.totalorder %s223, %s224
      %p233 = scmp.eq.s32.totalorder %s24, 0
      %p234 = por %p232, %p233
      %p235 = scmp.ne.s32.totalorder %s223, %s224
      %p236 = scmp.eq.s32.totalorder %s25, 1
      %p237 = por %p235, %p236
      %p239 = scmp.ne.s32.totalorder %s224, %s238
      %p240 = scmp.eq.s32.totalorder %s25, 0
      %p241 = por %p239, %p240
      %s242 = ssub.s32 %s19, %s26
      %p243 = scmp.eq.s32.totalorder %s242, 0
      %s245 = sadd.s32 %s244, 1
      %s246 = scalar_select %p243, %s244, %s245
      %p249 = pneg %p243
      %p250 = scmp.eq.s32.totalorder %s19, 1
      %p251 = por %p249, %p250
      %p252 = scmp.ne.s32.totalorder %s244, %s247
      %p253 = scmp.eq.s32.totalorder %s19, 0
      %p254 = por %p252, %p253
      %p255 = scmp.ne.s32.totalorder %s244, %s247
      %p256 = scmp.eq.s32.totalorder %s24, 1
      %p257 = por %p255, %p256
      %p258 = scmp.ne.s32.totalorder %s247, %s248
      %p259 = scmp.eq.s32.totalorder %s24, 0
      %p260 = por %p258, %p259
      %p261 = scmp.ne.s32.totalorder %s247, %s248
      %p262 = scmp.eq.s32.totalorder %s25, 1
      %p263 = por %p261, %p262
      %p265 = scmp.ne.s32.totalorder %s248, %s264
      %p266 = scmp.eq.s32.totalorder %s25, 0
      %p267 = por %p265, %p266
      %p268 = scmp.le.s32.totalorder 1, %s19
      %p269 = scmp.lt.s32.totalorder %s19, 3
      %p270 = pnand %p268, %p269
      %p271 = pneg %p270
      // Predicated region
      $region9: #{_forward_padded.1} parent=5 // pred_check
        _
      $region10: #{_forward_padded.1} parent=5 // pred_check_branch
        %273 = sbr.rel (%p270) target = $region12
      $region11: #{_forward_padded.1} parent=5 // pred_region
        %s274 = ssub.s32 %s19, 1
        // Predicated region
        $region13: #{_forward_padded.1} parent=11 // pred_check
          %p275 = pneg %p66
        $region14: #{_forward_padded.1} parent=11 // pred_check_branch
          %277 = sbr.rel (%p275) target = $region16
        $region15: #{_forward_padded.1} parent=11 // pred_region
          _
        $region16: #{_forward_padded.1} parent=11 // pred_fallthru
          _
        // Predicated region
        $region17: #{_forward_padded.1} parent=11 // pred_check
          %p278 = pneg %p87
        $region18: #{_forward_padded.1} parent=11 // pred_check_branch
          %280 = sbr.rel (%p278) target = $region20
        $region19: #{_forward_padded.1} parent=11 // pred_region
          _
        $region20: #{_forward_padded.1} parent=11 // pred_fallthru
          _
        // Predicated region
        $region21: #{_forward_padded.1} parent=11 // pred_check
          %p281 = pneg %p108
        $region22: #{_forward_padded.1} parent=11 // pred_check_branch
          %283 = sbr.rel (%p281) target = $region24
        $region23: #{_forward_padded.1} parent=11 // pred_region
          _
        $region24: #{_forward_padded.1} parent=11 // pred_fallthru
          _
        // Predicated region
        $region25: #{_forward_padded.1} parent=11 // pred_check
          %p284 = pneg %p129
        $region26: #{_forward_padded.1} parent=11 // pred_check_branch
          %286 = sbr.rel (%p284) target = $region28
        $region27: #{_forward_padded.1} parent=11 // pred_region
          _
        $region28: #{_forward_padded.1} parent=11 // pred_fallthru
          _
        // Predicated region
        $region29: #{_forward_padded.1} parent=11 // pred_check
          %p287 = pneg %p150
        $region30: #{_forward_padded.1} parent=11 // pred_check_branch
          %289 = sbr.rel (%p287) target = $region32
        $region31: #{_forward_padded.1} parent=11 // pred_region
          _
        $region32: #{_forward_padded.1} parent=11 // pred_fallthru
          _
        // Predicated region
        $region33: #{_forward_padded.1} parent=11 // pred_check
          %p290 = pneg %p171
        $region34: #{_forward_padded.1} parent=11 // pred_check_branch
          %292 = sbr.rel (%p290) target = $region36
        $region35: #{_forward_padded.1} parent=11 // pred_region
          _
        $region36: #{_forward_padded.1} parent=11 // pred_fallthru
          _
        // Predicated region
        $region37: #{_forward_padded.1} parent=11 // pred_check
          %p293 = pneg %p192
        $region38: #{_forward_padded.1} parent=11 // pred_check_branch
          %295 = sbr.rel (%p293) target = $region40
        $region39: #{_forward_padded.1} parent=11 // pred_region
          _
        $region40: #{_forward_padded.1} parent=11 // pred_fallthru
          _
        // Predicated region
        $region41: #{_forward_padded.1} parent=11 // pred_check
          %p296 = pneg %p213
        $region42: #{_forward_padded.1} parent=11 // pred_check_branch
          %298 = sbr.rel (%p296) target = $region44
        $region43: #{_forward_padded.1} parent=11 // pred_region
          _
        $region44: #{_forward_padded.1} parent=11 // pred_fallthru
          _
        // Predicated region
        $region45: #{_forward_padded.1} parent=11 // pred_check
          %p299 = pneg %p234
        $region46: #{_forward_padded.1} parent=11 // pred_check_branch
          %301 = sbr.rel (%p299) target = $region48
        $region47: #{_forward_padded.1} parent=11 // pred_region
          _
        $region48: #{_forward_padded.1} parent=11 // pred_fallthru
          _
      $region12: #{_forward_padded.1} parent=5 // pred_fallthru
        _
      %p302 = scmp.lt.s32.totalorder %s19, 2
      // Predicated region
      $region49: #{_forward_padded.1} parent=5 // pred_check
        %p303 = pneg %p302
      $region50: #{_forward_padded.1} parent=5 // pred_check_branch
        %305 = sbr.rel (%p303) target = $region52
      $region51: #{_forward_padded.1} parent=5 // pred_region
        // Predicated region
        $region53: #{_forward_padded.1} parent=51 // pred_check
          %p306 = pneg %p39
        $region54: #{_forward_padded.1} parent=51 // pred_check_branch
          %308 = sbr.rel (%p306) target = $region56
        $region55: #{_forward_padded.1} parent=51 // pred_region
          %s309 = sand.u32 %s29, 1
          %s310 = sand.u32 %s29, 1
          %s311 = smul.addr %s310, 2880
          %s312 = scalar_lea.vmem [#allocation2], %s311
          %s313 = smul.u32 40, %s19
          %s314 = smul.addr %s313, 8
          %s315 = scalar_lea.vmem %s0, %s314
          // Predicated region
          $region57: #{_forward_padded.1} parent=55 // pred_check
            _
          $region58: #{_forward_padded.1} parent=55 // pred_check_branch
            %317 = sbr.rel (0) target = $region60
          $region59: #{_forward_padded.1} parent=55 // pred_region
            // Predicated region
            $region61: #{_forward_padded.1} parent=59 // pred_check
              _
            $region62: #{_forward_padded.1} parent=59 // pred_check_branch
              %319 = sbr.rel (0) target = $region64
            $region63: #{_forward_padded.1} parent=59 // pred_region
              // Predicated region
              $region76: #{_forward_padded.1} parent=63 // pred_check
                _
              $region77: #{_forward_padded.1} parent=63 // pred_check_branch
                %1052 = sbr.rel (0) target = $region79
              $region78: #{_forward_padded.1} parent=63 // pred_region
                loop: start=0, step=1, limit=1
                $region80: #{_forward_padded.1} parent=78 // loop_pre_header
                  _
                $region81: #{_forward_padded.1} parent=78 // loop_header
                  %s1054 = sphi 0, %s1058
                  %p1055 = scmp.ge.s32.totalorder %s1054, 1
                  %s1059 = sphi %s315, %s315
                  %s1060 = sphi %s312, %s312
                $region82: #{_forward_padded.1} parent=78 // loop_header_branch
                  %1057 = sbr.rel (%p1055) target = $region86
                $region83: #{_forward_padded.1} parent=78 // loop_body
                  %v1061 = vld [vmem:[%s1059] sm:$0xff]
                  %1062 = vst [vmem:[%s1060] sm:$0xff] %v1061
                  %v1063 = vld [vmem:[%s1059 + $0x8] sm:$0xff]
                  %1064 = vst [vmem:[%s1060 + $0x8] sm:$0xff] %v1063
                  %v1065 = vld [vmem:[%s1059 + $0x10] sm:$0xff]
                  %1066 = vst [vmem:[%s1060 + $0x10] sm:$0xff] %v1065
                  %v1067 = vld [vmem:[%s1059 + $0x18] sm:$0xff]
                  %1068 = vst [vmem:[%s1060 + $0x18] sm:$0xff] %v1067
                  %v1069 = vld [vmem:[%s1059 + $0x20] sm:$0xff]
                  %1070 = vst [vmem:[%s1060 + $0x20] sm:$0xff] %v1069
                  %v1071 = vld [vmem:[%s1059 + $0x28] sm:$0xff]
                  %1072 = vst [vmem:[%s1060 + $0x28] sm:$0xff] %v1071
                  %v1073 = vld [vmem:[%s1059 + $0x30] sm:$0xff]
                  %1074 = vst [vmem:[%s1060 + $0x30] sm:$0xff] %v1073
                  %v1075 = vld [vmem:[%s1059 + $0x38] sm:$0xff]
                  %1076 = vst [vmem:[%s1060 + $0x38] sm:$0xff] %v1075
                  %v1077 = vld [vmem:[%s1059 + $0x40] sm:$0xff]
                  %1078 = vst [vmem:[%s1060 + $0x40] sm:$0xff] %v1077
                  %v1079 = vld [vmem:[%s1059 + $0x48] sm:$0xff]
                  %1080 = vst [vmem:[%s1060 + $0x48] sm:$0xff] %v1079
                  %v1081 = vld [vmem:[%s1059 + $0x50] sm:$0xff]
                  %1082 = vst [vmem:[%s1060 + $0x50] sm:$0xff] %v1081
                  %v1083 = vld [vmem:[%s1059 + $0x58] sm:$0xff]
                  %1084 = vst [vmem:[%s1060 + $0x58] sm:$0xff] %v1083
                  %v1085 = vld [vmem:[%s1059 + $0x60] sm:$0xff]
                  %1086 = vst [vmem:[%s1060 + $0x60] sm:$0xff] %v1085
                  %v1087 = vld [vmem:[%s1059 + $0x68] sm:$0xff]
                  %1088 = vst [vmem:[%s1060 + $0x68] sm:$0xff] %v1087
                  %v1089 = vld [vmem:[%s1059 + $0x70] sm:$0xff]
                  %1090 = vst [vmem:[%s1060 + $0x70] sm:$0xff] %v1089
                  %v1091 = vld [vmem:[%s1059 + $0x78] sm:$0xff]
                  %1092 = vst [vmem:[%s1060 + $0x78] sm:$0xff] %v1091
                  %v1093 = vld [vmem:[%s1059 + $0x80] sm:$0xff]
                  %1094 = vst [vmem:[%s1060 + $0x80] sm:$0xff] %v1093
                  %v1095 = vld [vmem:[%s1059 + $0x88] sm:$0xff]
                  %1096 = vst [vmem:[%s1060 + $0x88] sm:$0xff] %v1095
                  %v1097 = vld [vmem:[%s1059 + $0x90] sm:$0xff]
                  %1098 = vst [vmem:[%s1060 + $0x90] sm:$0xff] %v1097
                  %v1099 = vld [vmem:[%s1059 + $0x98] sm:$0xff]
                  %1100 = vst [vmem:[%s1060 + $0x98] sm:$0xff] %v1099
                  %v1101 = vld [vmem:[%s1059 + $0xa0] sm:$0xff]
                  %1102 = vst [vmem:[%s1060 + $0xa0] sm:$0xff] %v1101
                  %v1103 = vld [vmem:[%s1059 + $0xa8] sm:$0xff]
                  %1104 = vst [vmem:[%s1060 + $0xa8] sm:$0xff] %v1103
                  %v1105 = vld [vmem:[%s1059 + $0xb0] sm:$0xff]
                  %1106 = vst [vmem:[%s1060 + $0xb0] sm:$0xff] %v1105
                  %v1107 = vld [vmem:[%s1059 + $0xb8] sm:$0xff]
                  %1108 = vst [vmem:[%s1060 + $0xb8] sm:$0xff] %v1107
                  %v1109 = vld [vmem:[%s1059 + $0xc0] sm:$0xff]
                  %1110 = vst [vmem:[%s1060 + $0xc0] sm:$0xff] %v1109
                  %v1111 = vld [vmem:[%s1059 + $0xc8] sm:$0xff]
                  %1112 = vst [vmem:[%s1060 + $0xc8] sm:$0xff] %v1111
                  %v1113 = vld [vmem:[%s1059 + $0xd0] sm:$0xff]
                  %1114 = vst [vmem:[%s1060 + $0xd0] sm:$0xff] %v1113
                  %v1115 = vld [vmem:[%s1059 + $0xd8] sm:$0xff]
                  %1116 = vst [vmem:[%s1060 + $0xd8] sm:$0xff] %v1115
                  %v1117 = vld [vmem:[%s1059 + $0xe0] sm:$0xff]
                  %1118 = vst [vmem:[%s1060 + $0xe0] sm:$0xff] %v1117
                  %v1119 = vld [vmem:[%s1059 + $0xe8] sm:$0xff]
                  %1120 = vst [vmem:[%s1060 + $0xe8] sm:$0xff] %v1119
                  %v1121 = vld [vmem:[%s1059 + $0xf0] sm:$0xff]
                  %1122 = vst [vmem:[%s1060 + $0xf0] sm:$0xff] %v1121
                  %v1123 = vld [vmem:[%s1059 + $0xf8] sm:$0xff]
                  %1124 = vst [vmem:[%s1060 + $0xf8] sm:$0xff] %v1123
                  %v1125 = vld [vmem:[%s1059 + $0x100] sm:$0xff]
                  %1126 = vst [vmem:[%s1060 + $0x100] sm:$0xff] %v1125
                  %v1127 = vld [vmem:[%s1059 + $0x108] sm:$0xff]
                  %1128 = vst [vmem:[%s1060 + $0x108] sm:$0xff] %v1127
                  %v1129 = vld [vmem:[%s1059 + $0x110] sm:$0xff]
                  %1130 = vst [vmem:[%s1060 + $0x110] sm:$0xff] %v1129
                  %v1131 = vld [vmem:[%s1059 + $0x118] sm:$0xff]
                  %1132 = vst [vmem:[%s1060 + $0x118] sm:$0xff] %v1131
                  %v1133 = vld [vmem:[%s1059 + $0x120] sm:$0xff]
                  %1134 = vst [vmem:[%s1060 + $0x120] sm:$0xff] %v1133
                  %v1135 = vld [vmem:[%s1059 + $0x128] sm:$0xff]
                  %1136 = vst [vmem:[%s1060 + $0x128] sm:$0xff] %v1135
                  %v1137 = vld [vmem:[%s1059 + $0x130] sm:$0xff]
                  %1138 = vst [vmem:[%s1060 + $0x130] sm:$0xff] %v1137
                  %v1139 = vld [vmem:[%s1059 + $0x138] sm:$0xff]
                  %1140 = vst [vmem:[%s1060 + $0x138] sm:$0xff] %v1139
                  %v1141 = vld [vmem:[%s1059 + $0x280] sm:$0xff]
                  %1142 = vst [vmem:[%s1060 + $0x140] sm:$0xff] %v1141
                  %v1143 = vld [vmem:[%s1059 + $0x288] sm:$0xff]
                  %1144 = vst [vmem:[%s1060 + $0x148] sm:$0xff] %v1143
                  %v1145 = vld [vmem:[%s1059 + $0x290] sm:$0xff]
                  %1146 = vst [vmem:[%s1060 + $0x150] sm:$0xff] %v1145
                  %v1147 = vld [vmem:[%s1059 + $0x298] sm:$0xff]
                  %1148 = vst [vmem:[%s1060 + $0x158] sm:$0xff] %v1147
                  %v1149 = vld [vmem:[%s1059 + $0x2a0] sm:$0xff]
                  %1150 = vst [vmem:[%s1060 + $0x160] sm:$0xff] %v1149
                  %v1151 = vld [vmem:[%s1059 + $0x2a8] sm:$0xff]
                  %1152 = vst [vmem:[%s1060 + $0x168] sm:$0xff] %v1151
                  %v1153 = vld [vmem:[%s1059 + $0x2b0] sm:$0xff]
                  %1154 = vst [vmem:[%s1060 + $0x170] sm:$0xff] %v1153
                  %v1155 = vld [vmem:[%s1059 + $0x2b8] sm:$0xff]
                  %1156 = vst [vmem:[%s1060 + $0x178] sm:$0xff] %v1155
                  %v1157 = vld [vmem:[%s1059 + $0x2c0] sm:$0xff]
                  %1158 = vst [vmem:[%s1060 + $0x180] sm:$0xff] %v1157
                  %v1159 = vld [vmem:[%s1059 + $0x2c8] sm:$0xff]
                  %1160 = vst [vmem:[%s1060 + $0x188] sm:$0xff] %v1159
                  %v1161 = vld [vmem:[%s1059 + $0x2d0] sm:$0xff]
                  %1162 = vst [vmem:[%s1060 + $0x190] sm:$0xff] %v1161
                  %v1163 = vld [vmem:[%s1059 + $0x2d8] sm:$0xff]
                  %1164 = vst [vmem:[%s1060 + $0x198] sm:$0xff] %v1163
                  %v1165 = vld [vmem:[%s1059 + $0x2e0] sm:$0xff]
                  %1166 = vst [vmem:[%s1060 + $0x1a0] sm:$0xff] %v1165
                  %v1167 = vld [vmem:[%s1059 + $0x2e8] sm:$0xff]
                  %1168 = vst [vmem:[%s1060 + $0x1a8] sm:$0xff] %v1167
                  %v1169 = vld [vmem:[%s1059 + $0x2f0] sm:$0xff]
                  %1170 = vst [vmem:[%s1060 + $0x1b0] sm:$0xff] %v1169
                  %v1171 = vld [vmem:[%s1059 + $0x2f8] sm:$0xff]
                  %1172 = vst [vmem:[%s1060 + $0x1b8] sm:$0xff] %v1171
                  %v1173 = vld [vmem:[%s1059 + $0x300] sm:$0xff]
                  %1174 = vst [vmem:[%s1060 + $0x1c0] sm:$0xff] %v1173
                  %v1175 = vld [vmem:[%s1059 + $0x308] sm:$0xff]
                  %1176 = vst [vmem:[%s1060 + $0x1c8] sm:$0xff] %v1175
                  %v1177 = vld [vmem:[%s1059 + $0x310] sm:$0xff]
                  %1178 = vst [vmem:[%s1060 + $0x1d0] sm:$0xff] %v1177
                  %v1179 = vld [vmem:[%s1059 + $0x318] sm:$0xff]
                  %1180 = vst [vmem:[%s1060 + $0x1d8] sm:$0xff] %v1179
                  %v1181 = vld [vmem:[%s1059 + $0x320] sm:$0xff]
                  %1182 = vst [vmem:[%s1060 + $0x1e0] sm:$0xff] %v1181
                  %v1183 = vld [vmem:[%s1059 + $0x328] sm:$0xff]
                  %1184 = vst [vmem:[%s1060 + $0x1e8] sm:$0xff] %v1183
                  %v1185 = vld [vmem:[%s1059 + $0x330] sm:$0xff]
                  %1186 = vst [vmem:[%s1060 + $0x1f0] sm:$0xff] %v1185
                  %v1187 = vld [vmem:[%s1059 + $0x338] sm:$0xff]
                  %1188 = vst [vmem:[%s1060 + $0x1f8] sm:$0xff] %v1187
                  %v1189 = vld [vmem:[%s1059 + $0x340] sm:$0xff]
                  %1190 = vst [vmem:[%s1060 + $0x200] sm:$0xff] %v1189
                  %v1191 = vld [vmem:[%s1059 + $0x348] sm:$0xff]
                  %1192 = vst [vmem:[%s1060 + $0x208] sm:$0xff] %v1191
                  %v1193 = vld [vmem:[%s1059 + $0x350] sm:$0xff]
                  %1194 = vst [vmem:[%s1060 + $0x210] sm:$0xff] %v1193
                  %v1195 = vld [vmem:[%s1059 + $0x358] sm:$0xff]
                  %1196 = vst [vmem:[%s1060 + $0x218] sm:$0xff] %v1195
                  %v1197 = vld [vmem:[%s1059 + $0x360] sm:$0xff]
                  %1198 = vst [vmem:[%s1060 + $0x220] sm:$0xff] %v1197
                  %v1199 = vld [vmem:[%s1059 + $0x368] sm:$0xff]
                  %1200 = vst [vmem:[%s1060 + $0x228] sm:$0xff] %v1199
                  %v1201 = vld [vmem:[%s1059 + $0x370] sm:$0xff]
                  %1202 = vst [vmem:[%s1060 + $0x230] sm:$0xff] %v1201
                  %v1203 = vld [vmem:[%s1059 + $0x378] sm:$0xff]
                  %1204 = vst [vmem:[%s1060 + $0x238] sm:$0xff] %v1203
                  %v1205 = vld [vmem:[%s1059 + $0x380] sm:$0xff]
                  %1206 = vst [vmem:[%s1060 + $0x240] sm:$0xff] %v1205
                  %v1207 = vld [vmem:[%s1059 + $0x388] sm:$0xff]
                  %1208 = vst [vmem:[%s1060 + $0x248] sm:$0xff] %v1207
                  %v1209 = vld [vmem:[%s1059 + $0x390] sm:$0xff]
                  %1210 = vst [vmem:[%s1060 + $0x250] sm:$0xff] %v1209
                  %v1211 = vld [vmem:[%s1059 + $0x398] sm:$0xff]
                  %1212 = vst [vmem:[%s1060 + $0x258] sm:$0xff] %v1211
                  %v1213 = vld [vmem:[%s1059 + $0x3a0] sm:$0xff]
                  %1214 = vst [vmem:[%s1060 + $0x260] sm:$0xff] %v1213
                  %v1215 = vld [vmem:[%s1059 + $0x3a8] sm:$0xff]
                  %1216 = vst [vmem:[%s1060 + $0x268] sm:$0xff] %v1215
                  %v1217 = vld [vmem:[%s1059 + $0x3b0] sm:$0xff]
                  %1218 = vst [vmem:[%s1060 + $0x270] sm:$0xff] %v1217
                  %v1219 = vld [vmem:[%s1059 + $0x3b8] sm:$0xff]
                  %1220 = vst [vmem:[%s1060 + $0x278] sm:$0xff] %v1219
                  %v1221 = vld [vmem:[%s1059 + $0x500] sm:$0xff]
                  %1222 = vst [vmem:[%s1060 + $0x280] sm:$0xff] %v1221
                  %v1223 = vld [vmem:[%s1059 + $0x508] sm:$0xff]
                  %1224 = vst [vmem:[%s1060 + $0x288] sm:$0xff] %v1223
                  %v1225 = vld [vmem:[%s1059 + $0x510] sm:$0xff]
                  %1226 = vst [vmem:[%s1060 + $0x290] sm:$0xff] %v1225
                  %v1227 = vld [vmem:[%s1059 + $0x518] sm:$0xff]
                  %1228 = vst [vmem:[%s1060 + $0x298] sm:$0xff] %v1227
                  %v1229 = vld [vmem:[%s1059 + $0x520] sm:$0xff]
                  %1230 = vst [vmem:[%s1060 + $0x2a0] sm:$0xff] %v1229
                  %v1231 = vld [vmem:[%s1059 + $0x528] sm:$0xff]
                  %1232 = vst [vmem:[%s1060 + $0x2a8] sm:$0xff] %v1231
                  %v1233 = vld [vmem:[%s1059 + $0x530] sm:$0xff]
                  %1234 = vst [vmem:[%s1060 + $0x2b0] sm:$0xff] %v1233
                  %v1235 = vld [vmem:[%s1059 + $0x538] sm:$0xff]
                  %1236 = vst [vmem:[%s1060 + $0x2b8] sm:$0xff] %v1235
                  %v1237 = vld [vmem:[%s1059 + $0x540] sm:$0xff]
                  %1238 = vst [vmem:[%s1060 + $0x2c0] sm:$0xff] %v1237
                  %v1239 = vld [vmem:[%s1059 + $0x548] sm:$0xff]
                  %1240 = vst [vmem:[%s1060 + $0x2c8] sm:$0xff] %v1239
                  %v1241 = vld [vmem:[%s1059 + $0x550] sm:$0xff]
                  %1242 = vst [vmem:[%s1060 + $0x2d0] sm:$0xff] %v1241
                  %v1243 = vld [vmem:[%s1059 + $0x558] sm:$0xff]
                  %1244 = vst [vmem:[%s1060 + $0x2d8] sm:$0xff] %v1243
                  %v1245 = vld [vmem:[%s1059 + $0x560] sm:$0xff]
                  %1246 = vst [vmem:[%s1060 + $0x2e0] sm:$0xff] %v1245
                  %v1247 = vld [vmem:[%s1059 + $0x568] sm:$0xff]
                  %1248 = vst [vmem:[%s1060 + $0x2e8] sm:$0xff] %v1247
                  %v1249 = vld [vmem:[%s1059 + $0x570] sm:$0xff]
                  %1250 = vst [vmem:[%s1060 + $0x2f0] sm:$0xff] %v1249
                  %v1251 = vld [vmem:[%s1059 + $0x578] sm:$0xff]
                  %1252 = vst [vmem:[%s1060 + $0x2f8] sm:$0xff] %v1251
                  %v1253 = vld [vmem:[%s1059 + $0x580] sm:$0xff]
                  %1254 = vst [vmem:[%s1060 + $0x300] sm:$0xff] %v1253
                  %v1255 = vld [vmem:[%s1059 + $0x588] sm:$0xff]
                  %1256 = vst [vmem:[%s1060 + $0x308] sm:$0xff] %v1255
                  %v1257 = vld [vmem:[%s1059 + $0x590] sm:$0xff]
                  %1258 = vst [vmem:[%s1060 + $0x310] sm:$0xff] %v1257
                  %v1259 = vld [vmem:[%s1059 + $0x598] sm:$0xff]
                  %1260 = vst [vmem:[%s1060 + $0x318] sm:$0xff] %v1259
                  %v1261 = vld [vmem:[%s1059 + $0x5a0] sm:$0xff]
                  %1262 = vst [vmem:[%s1060 + $0x320] sm:$0xff] %v1261
                  %v1263 = vld [vmem:[%s1059 + $0x5a8] sm:$0xff]
                  %1264 = vst [vmem:[%s1060 + $0x328] sm:$0xff] %v1263
                  %v1265 = vld [vmem:[%s1059 + $0x5b0] sm:$0xff]
                  %1266 = vst [vmem:[%s1060 + $0x330] sm:$0xff] %v1265
                  %v1267 = vld [vmem:[%s1059 + $0x5b8] sm:$0xff]
                  %1268 = vst [vmem:[%s1060 + $0x338] sm:$0xff] %v1267
                  %v1269 = vld [vmem:[%s1059 + $0x5c0] sm:$0xff]
                  %1270 = vst [vmem:[%s1060 + $0x340] sm:$0xff] %v1269
                  %v1271 = vld [vmem:[%s1059 + $0x5c8] sm:$0xff]
                  %1272 = vst [vmem:[%s1060 + $0x348] sm:$0xff] %v1271
                  %v1273 = vld [vmem:[%s1059 + $0x5d0] sm:$0xff]
                  %1274 = vst [vmem:[%s1060 + $0x350] sm:$0xff] %v1273
                  %v1275 = vld [vmem:[%s1059 + $0x5d8] sm:$0xff]
                  %1276 = vst [vmem:[%s1060 + $0x358] sm:$0xff] %v1275
                  %v1277 = vld [vmem:[%s1059 + $0x5e0] sm:$0xff]
                  %1278 = vst [vmem:[%s1060 + $0x360] sm:$0xff] %v1277
                  %v1279 = vld [vmem:[%s1059 + $0x5e8] sm:$0xff]
                  %1280 = vst [vmem:[%s1060 + $0x368] sm:$0xff] %v1279
                  %v1281 = vld [vmem:[%s1059 + $0x5f0] sm:$0xff]
                  %1282 = vst [vmem:[%s1060 + $0x370] sm:$0xff] %v1281
                  %v1283 = vld [vmem:[%s1059 + $0x5f8] sm:$0xff]
                  %1284 = vst [vmem:[%s1060 + $0x378] sm:$0xff] %v1283
                  %v1285 = vld [vmem:[%s1059 + $0x600] sm:$0xff]
                  %1286 = vst [vmem:[%s1060 + $0x380] sm:$0xff] %v1285
                  %v1287 = vld [vmem:[%s1059 + $0x608] sm:$0xff]
                  %1288 = vst [vmem:[%s1060 + $0x388] sm:$0xff] %v1287
                  %v1289 = vld [vmem:[%s1059 + $0x610] sm:$0xff]
                  %1290 = vst [vmem:[%s1060 + $0x390] sm:$0xff] %v1289
                  %v1291 = vld [vmem:[%s1059 + $0x618] sm:$0xff]
                  %1292 = vst [vmem:[%s1060 + $0x398] sm:$0xff] %v1291
                  %v1293 = vld [vmem:[%s1059 + $0x620] sm:$0xff]
                  %1294 = vst [vmem:[%s1060 + $0x3a0] sm:$0xff] %v1293
                  %v1295 = vld [vmem:[%s1059 + $0x628] sm:$0xff]
                  %1296 = vst [vmem:[%s1060 + $0x3a8] sm:$0xff] %v1295
                  %v1297 = vld [vmem:[%s1059 + $0x630] sm:$0xff]
                  %1298 = vst [vmem:[%s1060 + $0x3b0] sm:$0xff] %v1297
                  %v1299 = vld [vmem:[%s1059 + $0x638] sm:$0xff]
                  %1300 = vst [vmem:[%s1060 + $0x3b8] sm:$0xff] %v1299
                  %v1301 = vld [vmem:[%s1059 + $0x780] sm:$0xff]
                  %1302 = vst [vmem:[%s1060 + $0x3c0] sm:$0xff] %v1301
                  %v1303 = vld [vmem:[%s1059 + $0x788] sm:$0xff]
                  %1304 = vst [vmem:[%s1060 + $0x3c8] sm:$0xff] %v1303
                  %v1305 = vld [vmem:[%s1059 + $0x790] sm:$0xff]
                  %1306 = vst [vmem:[%s1060 + $0x3d0] sm:$0xff] %v1305
                  %v1307 = vld [vmem:[%s1059 + $0x798] sm:$0xff]
                  %1308 = vst [vmem:[%s1060 + $0x3d8] sm:$0xff] %v1307
                  %v1309 = vld [vmem:[%s1059 + $0x7a0] sm:$0xff]
                  %1310 = vst [vmem:[%s1060 + $0x3e0] sm:$0xff] %v1309
                  %v1311 = vld [vmem:[%s1059 + $0x7a8] sm:$0xff]
                  %1312 = vst [vmem:[%s1060 + $0x3e8] sm:$0xff] %v1311
                  %v1313 = vld [vmem:[%s1059 + $0x7b0] sm:$0xff]
                  %1314 = vst [vmem:[%s1060 + $0x3f0] sm:$0xff] %v1313
                  %v1315 = vld [vmem:[%s1059 + $0x7b8] sm:$0xff]
                  %1316 = vst [vmem:[%s1060 + $0x3f8] sm:$0xff] %v1315
                  %v1317 = vld [vmem:[%s1059 + $0x7c0] sm:$0xff]
                  %1318 = vst [vmem:[%s1060 + $0x400] sm:$0xff] %v1317
                  %v1319 = vld [vmem:[%s1059 + $0x7c8] sm:$0xff]
                  %1320 = vst [vmem:[%s1060 + $0x408] sm:$0xff] %v1319
                  %v1321 = vld [vmem:[%s1059 + $0x7d0] sm:$0xff]
                  %1322 = vst [vmem:[%s1060 + $0x410] sm:$0xff] %v1321
                  %v1323 = vld [vmem:[%s1059 + $0x7d8] sm:$0xff]
                  %1324 = vst [vmem:[%s1060 + $0x418] sm:$0xff] %v1323
                  %v1325 = vld [vmem:[%s1059 + $0x7e0] sm:$0xff]
                  %1326 = vst [vmem:[%s1060 + $0x420] sm:$0xff] %v1325
                  %v1327 = vld [vmem:[%s1059 + $0x7e8] sm:$0xff]
                  %1328 = vst [vmem:[%s1060 + $0x428] sm:$0xff] %v1327
                  %v1329 = vld [vmem:[%s1059 + $0x7f0] sm:$0xff]
                  %1330 = vst [vmem:[%s1060 + $0x430] sm:$0xff] %v1329
                  %v1331 = vld [vmem:[%s1059 + $0x7f8] sm:$0xff]
                  %1332 = vst [vmem:[%s1060 + $0x438] sm:$0xff] %v1331
                  %v1333 = vld [vmem:[%s1059 + $0x800] sm:$0xff]
                  %1334 = vst [vmem:[%s1060 + $0x440] sm:$0xff] %v1333
                  %v1335 = vld [vmem:[%s1059 + $0x808] sm:$0xff]
                  %1336 = vst [vmem:[%s1060 + $0x448] sm:$0xff] %v1335
                  %v1337 = vld [vmem:[%s1059 + $0x810] sm:$0xff]
                  %1338 = vst [vmem:[%s1060 + $0x450] sm:$0xff] %v1337
                  %v1339 = vld [vmem:[%s1059 + $0x818] sm:$0xff]
                  %1340 = vst [vmem:[%s1060 + $0x458] sm:$0xff] %v1339
                  %v1341 = vld [vmem:[%s1059 + $0x820] sm:$0xff]
                  %1342 = vst [vmem:[%s1060 + $0x460] sm:$0xff] %v1341
                  %v1343 = vld [vmem:[%s1059 + $0x828] sm:$0xff]
                  %1344 = vst [vmem:[%s1060 + $0x468] sm:$0xff] %v1343
                  %v1345 = vld [vmem:[%s1059 + $0x830] sm:$0xff]
                  %1346 = vst [vmem:[%s1060 + $0x470] sm:$0xff] %v1345
                  %v1347 = vld [vmem:[%s1059 + $0x838] sm:$0xff]
                  %1348 = vst [vmem:[%s1060 + $0x478] sm:$0xff] %v1347
                  %v1349 = vld [vmem:[%s1059 + $0x840] sm:$0xff]
                  %1350 = vst [vmem:[%s1060 + $0x480] sm:$0xff] %v1349
                  %v1351 = vld [vmem:[%s1059 + $0x848] sm:$0xff]
                  %1352 = vst [vmem:[%s1060 + $0x488] sm:$0xff] %v1351
                  %v1353 = vld [vmem:[%s1059 + $0x850] sm:$0xff]
                  %1354 = vst [vmem:[%s1060 + $0x490] sm:$0xff] %v1353
                  %v1355 = vld [vmem:[%s1059 + $0x858] sm:$0xff]
                  %1356 = vst [vmem:[%s1060 + $0x498] sm:$0xff] %v1355
                  %v1357 = vld [vmem:[%s1059 + $0x860] sm:$0xff]
                  %1358 = vst [vmem:[%s1060 + $0x4a0] sm:$0xff] %v1357
                  %v1359 = vld [vmem:[%s1059 + $0x868] sm:$0xff]
                  %1360 = vst [vmem:[%s1060 + $0x4a8] sm:$0xff] %v1359
                  %v1361 = vld [vmem:[%s1059 + $0x870] sm:$0xff]
                  %1362 = vst [vmem:[%s1060 + $0x4b0] sm:$0xff] %v1361
                  %v1363 = vld [vmem:[%s1059 + $0x878] sm:$0xff]
                  %1364 = vst [vmem:[%s1060 + $0x4b8] sm:$0xff] %v1363
                  %v1365 = vld [vmem:[%s1059 + $0x880] sm:$0xff]
                  %1366 = vst [vmem:[%s1060 + $0x4c0] sm:$0xff] %v1365
                  %v1367 = vld [vmem:[%s1059 + $0x888] sm:$0xff]
                  %1368 = vst [vmem:[%s1060 + $0x4c8] sm:$0xff] %v1367
                  %v1369 = vld [vmem:[%s1059 + $0x890] sm:$0xff]
                  %1370 = vst [vmem:[%s1060 + $0x4d0] sm:$0xff] %v1369
                  %v1371 = vld [vmem:[%s1059 + $0x898] sm:$0xff]
                  %1372 = vst [vmem:[%s1060 + $0x4d8] sm:$0xff] %v1371
                  %v1373 = vld [vmem:[%s1059 + $0x8a0] sm:$0xff]
                  %1374 = vst [vmem:[%s1060 + $0x4e0] sm:$0xff] %v1373
                  %v1375 = vld [vmem:[%s1059 + $0x8a8] sm:$0xff]
                  %1376 = vst [vmem:[%s1060 + $0x4e8] sm:$0xff] %v1375
                  %v1377 = vld [vmem:[%s1059 + $0x8b0] sm:$0xff]
                  %1378 = vst [vmem:[%s1060 + $0x4f0] sm:$0xff] %v1377
                  %v1379 = vld [vmem:[%s1059 + $0x8b8] sm:$0xff]
                  %1380 = vst [vmem:[%s1060 + $0x4f8] sm:$0xff] %v1379
                  %v1381 = vld [vmem:[%s1059 + $0xa00] sm:$0xff]
                  %1382 = vst [vmem:[%s1060 + $0x500] sm:$0xff] %v1381
                  %v1383 = vld [vmem:[%s1059 + $0xa08] sm:$0xff]
                  %1384 = vst [vmem:[%s1060 + $0x508] sm:$0xff] %v1383
                  %v1385 = vld [vmem:[%s1059 + $0xa10] sm:$0xff]
                  %1386 = vst [vmem:[%s1060 + $0x510] sm:$0xff] %v1385
                  %v1387 = vld [vmem:[%s1059 + $0xa18] sm:$0xff]
                  %1388 = vst [vmem:[%s1060 + $0x518] sm:$0xff] %v1387
                  %v1389 = vld [vmem:[%s1059 + $0xa20] sm:$0xff]
                  %1390 = vst [vmem:[%s1060 + $0x520] sm:$0xff] %v1389
                  %v1391 = vld [vmem:[%s1059 + $0xa28] sm:$0xff]
                  %1392 = vst [vmem:[%s1060 + $0x528] sm:$0xff] %v1391
                  %v1393 = vld [vmem:[%s1059 + $0xa30] sm:$0xff]
                  %1394 = vst [vmem:[%s1060 + $0x530] sm:$0xff] %v1393
                  %v1395 = vld [vmem:[%s1059 + $0xa38] sm:$0xff]
                  %1396 = vst [vmem:[%s1060 + $0x538] sm:$0xff] %v1395
                  %v1397 = vld [vmem:[%s1059 + $0xa40] sm:$0xff]
                  %1398 = vst [vmem:[%s1060 + $0x540] sm:$0xff] %v1397
                  %v1399 = vld [vmem:[%s1059 + $0xa48] sm:$0xff]
                  %1400 = vst [vmem:[%s1060 + $0x548] sm:$0xff] %v1399
                  %v1401 = vld [vmem:[%s1059 + $0xa50] sm:$0xff]
                  %1402 = vst [vmem:[%s1060 + $0x550] sm:$0xff] %v1401
                  %v1403 = vld [vmem:[%s1059 + $0xa58] sm:$0xff]
                  %1404 = vst [vmem:[%s1060 + $0x558] sm:$0xff] %v1403
                  %v1405 = vld [vmem:[%s1059 + $0xa60] sm:$0xff]
                  %1406 = vst [vmem:[%s1060 + $0x560] sm:$0xff] %v1405
                  %v1407 = vld [vmem:[%s1059 + $0xa68] sm:$0xff]
                  %1408 = vst [vmem:[%s1060 + $0x568] sm:$0xff] %v1407
                  %v1409 = vld [vmem:[%s1059 + $0xa70] sm:$0xff]
                  %1410 = vst [vmem:[%s1060 + $0x570] sm:$0xff] %v1409
                  %v1411 = vld [vmem:[%s1059 + $0xa78] sm:$0xff]
                  %1412 = vst [vmem:[%s1060 + $0x578] sm:$0xff] %v1411
                  %v1413 = vld [vmem:[%s1059 + $0xa80] sm:$0xff]
                  %1414 = vst [vmem:[%s1060 + $0x580] sm:$0xff] %v1413
                  %v1415 = vld [vmem:[%s1059 + $0xa88] sm:$0xff]
                  %1416 = vst [vmem:[%s1060 + $0x588] sm:$0xff] %v1415
                  %v1417 = vld [vmem:[%s1059 + $0xa90] sm:$0xff]
                  %1418 = vst [vmem:[%s1060 + $0x590] sm:$0xff] %v1417
                  %v1419 = vld [vmem:[%s1059 + $0xa98] sm:$0xff]
                  %1420 = vst [vmem:[%s1060 + $0x598] sm:$0xff] %v1419
                  %v1421 = vld [vmem:[%s1059 + $0xaa0] sm:$0xff]
                  %1422 = vst [vmem:[%s1060 + $0x5a0] sm:$0xff] %v1421
                  %v1423 = vld [vmem:[%s1059 + $0xaa8] sm:$0xff]
                  %1424 = vst [vmem:[%s1060 + $0x5a8] sm:$0xff] %v1423
                  %v1425 = vld [vmem:[%s1059 + $0xab0] sm:$0xff]
                  %1426 = vst [vmem:[%s1060 + $0x5b0] sm:$0xff] %v1425
                  %v1427 = vld [vmem:[%s1059 + $0xab8] sm:$0xff]
                  %1428 = vst [vmem:[%s1060 + $0x5b8] sm:$0xff] %v1427
                  %v1429 = vld [vmem:[%s1059 + $0xac0] sm:$0xff]
                  %1430 = vst [vmem:[%s1060 + $0x5c0] sm:$0xff] %v1429
                  %v1431 = vld [vmem:[%s1059 + $0xac8] sm:$0xff]
                  %1432 = vst [vmem:[%s1060 + $0x5c8] sm:$0xff] %v1431
                  %v1433 = vld [vmem:[%s1059 + $0xad0] sm:$0xff]
                  %1434 = vst [vmem:[%s1060 + $0x5d0] sm:$0xff] %v1433
                  %v1435 = vld [vmem:[%s1059 + $0xad8] sm:$0xff]
                  %1436 = vst [vmem:[%s1060 + $0x5d8] sm:$0xff] %v1435
                  %v1437 = vld [vmem:[%s1059 + $0xae0] sm:$0xff]
                  %1438 = vst [vmem:[%s1060 + $0x5e0] sm:$0xff] %v1437
                  %v1439 = vld [vmem:[%s1059 + $0xae8] sm:$0xff]
                  %1440 = vst [vmem:[%s1060 + $0x5e8] sm:$0xff] %v1439
                  %v1441 = vld [vmem:[%s1059 + $0xaf0] sm:$0xff]
                  %1442 = vst [vmem:[%s1060 + $0x5f0] sm:$0xff] %v1441
                  %v1443 = vld [vmem:[%s1059 + $0xaf8] sm:$0xff]
                  %1444 = vst [vmem:[%s1060 + $0x5f8] sm:$0xff] %v1443
                  %v1445 = vld [vmem:[%s1059 + $0xb00] sm:$0xff]
                  %1446 = vst [vmem:[%s1060 + $0x600] sm:$0xff] %v1445
                  %v1447 = vld [vmem:[%s1059 + $0xb08] sm:$0xff]
                  %1448 = vst [vmem:[%s1060 + $0x608] sm:$0xff] %v1447
                  %v1449 = vld [vmem:[%s1059 + $0xb10] sm:$0xff]
                  %1450 = vst [vmem:[%s1060 + $0x610] sm:$0xff] %v1449
                  %v1451 = vld [vmem:[%s1059 + $0xb18] sm:$0xff]
                  %1452 = vst [vmem:[%s1060 + $0x618] sm:$0xff] %v1451
                  %v1453 = vld [vmem:[%s1059 + $0xb20] sm:$0xff]
                  %1454 = vst [vmem:[%s1060 + $0x620] sm:$0xff] %v1453
                  %v1455 = vld [vmem:[%s1059 + $0xb28] sm:$0xff]
                  %1456 = vst [vmem:[%s1060 + $0x628] sm:$0xff] %v1455
                  %v1457 = vld [vmem:[%s1059 + $0xb30] sm:$0xff]
                  %1458 = vst [vmem:[%s1060 + $0x630] sm:$0xff] %v1457
                  %v1459 = vld [vmem:[%s1059 + $0xb38] sm:$0xff]
                  %1460 = vst [vmem:[%s1060 + $0x638] sm:$0xff] %v1459
                  %v1461 = vld [vmem:[%s1059 + $0xc80] sm:$0xff]
                  %1462 = vst [vmem:[%s1060 + $0x640] sm:$0xff] %v1461
                  %v1463 = vld [vmem:[%s1059 + $0xc88] sm:$0xff]
                  %1464 = vst [vmem:[%s1060 + $0x648] sm:$0xff] %v1463
                  %v1465 = vld [vmem:[%s1059 + $0xc90] sm:$0xff]
                  %1466 = vst [vmem:[%s1060 + $0x650] sm:$0xff] %v1465
                  %v1467 = vld [vmem:[%s1059 + $0xc98] sm:$0xff]
                  %1468 = vst [vmem:[%s1060 + $0x658] sm:$0xff] %v1467
                  %v1469 = vld [vmem:[%s1059 + $0xca0] sm:$0xff]
                  %1470 = vst [vmem:[%s1060 + $0x660] sm:$0xff] %v1469
                  %v1471 = vld [vmem:[%s1059 + $0xca8] sm:$0xff]
                  %1472 = vst [vmem:[%s1060 + $0x668] sm:$0xff] %v1471
                  %v1473 = vld [vmem:[%s1059 + $0xcb0] sm:$0xff]
                  %1474 = vst [vmem:[%s1060 + $0x670] sm:$0xff] %v1473
                  %v1475 = vld [vmem:[%s1059 + $0xcb8] sm:$0xff]
                  %1476 = vst [vmem:[%s1060 + $0x678] sm:$0xff] %v1475
                  %v1477 = vld [vmem:[%s1059 + $0xcc0] sm:$0xff]
                  %1478 = vst [vmem:[%s1060 + $0x680] sm:$0xff] %v1477
                  %v1479 = vld [vmem:[%s1059 + $0xcc8] sm:$0xff]
                  %1480 = vst [vmem:[%s1060 + $0x688] sm:$0xff] %v1479
                  %v1481 = vld [vmem:[%s1059 + $0xcd0] sm:$0xff]
                  %1482 = vst [vmem:[%s1060 + $0x690] sm:$0xff] %v1481
                  %v1483 = vld [vmem:[%s1059 + $0xcd8] sm:$0xff]
                  %1484 = vst [vmem:[%s1060 + $0x698] sm:$0xff] %v1483
                  %v1485 = vld [vmem:[%s1059 + $0xce0] sm:$0xff]
                  %1486 = vst [vmem:[%s1060 + $0x6a0] sm:$0xff] %v1485
                  %v1487 = vld [vmem:[%s1059 + $0xce8] sm:$0xff]
                  %1488 = vst [vmem:[%s1060 + $0x6a8] sm:$0xff] %v1487
                  %v1489 = vld [vmem:[%s1059 + $0xcf0] sm:$0xff]
                  %1490 = vst [vmem:[%s1060 + $0x6b0] sm:$0xff] %v1489
                  %v1491 = vld [vmem:[%s1059 + $0xcf8] sm:$0xff]
                  %1492 = vst [vmem:[%s1060 + $0x6b8] sm:$0xff] %v1491
                  %v1493 = vld [vmem:[%s1059 + $0xd00] sm:$0xff]
                  %1494 = vst [vmem:[%s1060 + $0x6c0] sm:$0xff] %v1493
                  %v1495 = vld [vmem:[%s1059 + $0xd08] sm:$0xff]
                  %1496 = vst [vmem:[%s1060 + $0x6c8] sm:$0xff] %v1495
                  %v1497 = vld [vmem:[%s1059 + $0xd10] sm:$0xff]
                  %1498 = vst [vmem:[%s1060 + $0x6d0] sm:$0xff] %v1497
                  %v1499 = vld [vmem:[%s1059 + $0xd18] sm:$0xff]
                  %1500 = vst [vmem:[%s1060 + $0x6d8] sm:$0xff] %v1499
                  %v1501 = vld [vmem:[%s1059 + $0xd20] sm:$0xff]
                  %1502 = vst [vmem:[%s1060 + $0x6e0] sm:$0xff] %v1501
                  %v1503 = vld [vmem:[%s1059 + $0xd28] sm:$0xff]
                  %1504 = vst [vmem:[%s1060 + $0x6e8] sm:$0xff] %v1503
                  %v1505 = vld [vmem:[%s1059 + $0xd30] sm:$0xff]
                  %1506 = vst [vmem:[%s1060 + $0x6f0] sm:$0xff] %v1505
                  %v1507 = vld [vmem:[%s1059 + $0xd38] sm:$0xff]
                  %1508 = vst [vmem:[%s1060 + $0x6f8] sm:$0xff] %v1507
                  %v1509 = vld [vmem:[%s1059 + $0xd40] sm:$0xff]
                  %1510 = vst [vmem:[%s1060 + $0x700] sm:$0xff] %v1509
                  %v1511 = vld [vmem:[%s1059 + $0xd48] sm:$0xff]
                  %1512 = vst [vmem:[%s1060 + $0x708] sm:$0xff] %v1511
                  %v1513 = vld [vmem:[%s1059 + $0xd50] sm:$0xff]
                  %1514 = vst [vmem:[%s1060 + $0x710] sm:$0xff] %v1513
                  %v1515 = vld [vmem:[%s1059 + $0xd58] sm:$0xff]
                  %1516 = vst [vmem:[%s1060 + $0x718] sm:$0xff] %v1515
                  %v1517 = vld [vmem:[%s1059 + $0xd60] sm:$0xff]
                  %1518 = vst [vmem:[%s1060 + $0x720] sm:$0xff] %v1517
                  %v1519 = vld [vmem:[%s1059 + $0xd68] sm:$0xff]
                  %1520 = vst [vmem:[%s1060 + $0x728] sm:$0xff] %v1519
                  %v1521 = vld [vmem:[%s1059 + $0xd70] sm:$0xff]
                  %1522 = vst [vmem:[%s1060 + $0x730] sm:$0xff] %v1521
                  %v1523 = vld [vmem:[%s1059 + $0xd78] sm:$0xff]
                  %1524 = vst [vmem:[%s1060 + $0x738] sm:$0xff] %v1523
                  %v1525 = vld [vmem:[%s1059 + $0xd80] sm:$0xff]
                  %1526 = vst [vmem:[%s1060 + $0x740] sm:$0xff] %v1525
                  %v1527 = vld [vmem:[%s1059 + $0xd88] sm:$0xff]
                  %1528 = vst [vmem:[%s1060 + $0x748] sm:$0xff] %v1527
                  %v1529 = vld [vmem:[%s1059 + $0xd90] sm:$0xff]
                  %1530 = vst [vmem:[%s1060 + $0x750] sm:$0xff] %v1529
                  %v1531 = vld [vmem:[%s1059 + $0xd98] sm:$0xff]
                  %1532 = vst [vmem:[%s1060 + $0x758] sm:$0xff] %v1531
                  %v1533 = vld [vmem:[%s1059 + $0xda0] sm:$0xff]
                  %1534 = vst [vmem:[%s1060 + $0x760] sm:$0xff] %v1533
                  %v1535 = vld [vmem:[%s1059 + $0xda8] sm:$0xff]
                  %1536 = vst [vmem:[%s1060 + $0x768] sm:$0xff] %v1535
                  %v1537 = vld [vmem:[%s1059 + $0xdb0] sm:$0xff]
                  %1538 = vst [vmem:[%s1060 + $0x770] sm:$0xff] %v1537
                  %v1539 = vld [vmem:[%s1059 + $0xdb8] sm:$0xff]
                  %1540 = vst [vmem:[%s1060 + $0x778] sm:$0xff] %v1539
                  %v1541 = vld [vmem:[%s1059 + $0xf00] sm:$0xff]
                  %1542 = vst [vmem:[%s1060 + $0x780] sm:$0xff] %v1541
                  %v1543 = vld [vmem:[%s1059 + $0xf08] sm:$0xff]
                  %1544 = vst [vmem:[%s1060 + $0x788] sm:$0xff] %v1543
                  %v1545 = vld [vmem:[%s1059 + $0xf10] sm:$0xff]
                  %1546 = vst [vmem:[%s1060 + $0x790] sm:$0xff] %v1545
                  %v1547 = vld [vmem:[%s1059 + $0xf18] sm:$0xff]
                  %1548 = vst [vmem:[%s1060 + $0x798] sm:$0xff] %v1547
                  %v1549 = vld [vmem:[%s1059 + $0xf20] sm:$0xff]
                  %1550 = vst [vmem:[%s1060 + $0x7a0] sm:$0xff] %v1549
                  %v1551 = vld [vmem:[%s1059 + $0xf28] sm:$0xff]
                  %1552 = vst [vmem:[%s1060 + $0x7a8] sm:$0xff] %v1551
                  %v1553 = vld [vmem:[%s1059 + $0xf30] sm:$0xff]
                  %1554 = vst [vmem:[%s1060 + $0x7b0] sm:$0xff] %v1553
                  %v1555 = vld [vmem:[%s1059 + $0xf38] sm:$0xff]
                  %1556 = vst [vmem:[%s1060 + $0x7b8] sm:$0xff] %v1555
                  %v1557 = vld [vmem:[%s1059 + $0xf40] sm:$0xff]
                  %1558 = vst [vmem:[%s1060 + $0x7c0] sm:$0xff] %v1557
                  %v1559 = vld [vmem:[%s1059 + $0xf48] sm:$0xff]
                  %1560 = vst [vmem:[%s1060 + $0x7c8] sm:$0xff] %v1559
                  %v1561 = vld [vmem:[%s1059 + $0xf50] sm:$0xff]
                  %1562 = vst [vmem:[%s1060 + $0x7d0] sm:$0xff] %v1561
                  %v1563 = vld [vmem:[%s1059 + $0xf58] sm:$0xff]
                  %1564 = vst [vmem:[%s1060 + $0x7d8] sm:$0xff] %v1563
                  %v1565 = vld [vmem:[%s1059 + $0xf60] sm:$0xff]
                  %1566 = vst [vmem:[%s1060 + $0x7e0] sm:$0xff] %v1565
                  %v1567 = vld [vmem:[%s1059 + $0xf68] sm:$0xff]
                  %1568 = vst [vmem:[%s1060 + $0x7e8] sm:$0xff] %v1567
                  %v1569 = vld [vmem:[%s1059 + $0xf70] sm:$0xff]
                  %1570 = vst [vmem:[%s1060 + $0x7f0] sm:$0xff] %v1569
                  %v1571 = vld [vmem:[%s1059 + $0xf78] sm:$0xff]
                  %1572 = vst [vmem:[%s1060 + $0x7f8] sm:$0xff] %v1571
                  %v1573 = vld [vmem:[%s1059 + $0xf80] sm:$0xff]
                  %1574 = vst [vmem:[%s1060 + $0x800] sm:$0xff] %v1573
                  %v1575 = vld [vmem:[%s1059 + $0xf88] sm:$0xff]
                  %1576 = vst [vmem:[%s1060 + $0x808] sm:$0xff] %v1575
                  %v1577 = vld [vmem:[%s1059 + $0xf90] sm:$0xff]
                  %1578 = vst [vmem:[%s1060 + $0x810] sm:$0xff] %v1577
                  %v1579 = vld [vmem:[%s1059 + $0xf98] sm:$0xff]
                  %1580 = vst [vmem:[%s1060 + $0x818] sm:$0xff] %v1579
                  %v1581 = vld [vmem:[%s1059 + $0xfa0] sm:$0xff]
                  %1582 = vst [vmem:[%s1060 + $0x820] sm:$0xff] %v1581
                  %v1583 = vld [vmem:[%s1059 + $0xfa8] sm:$0xff]
                  %1584 = vst [vmem:[%s1060 + $0x828] sm:$0xff] %v1583
                  %v1585 = vld [vmem:[%s1059 + $0xfb0] sm:$0xff]
                  %1586 = vst [vmem:[%s1060 + $0x830] sm:$0xff] %v1585
                  %v1587 = vld [vmem:[%s1059 + $0xfb8] sm:$0xff]
                  %1588 = vst [vmem:[%s1060 + $0x838] sm:$0xff] %v1587
                  %v1589 = vld [vmem:[%s1059 + $0xfc0] sm:$0xff]
                  %1590 = vst [vmem:[%s1060 + $0x840] sm:$0xff] %v1589
                  %v1591 = vld [vmem:[%s1059 + $0xfc8] sm:$0xff]
                  %1592 = vst [vmem:[%s1060 + $0x848] sm:$0xff] %v1591
                  %v1593 = vld [vmem:[%s1059 + $0xfd0] sm:$0xff]
                  %1594 = vst [vmem:[%s1060 + $0x850] sm:$0xff] %v1593
                  %v1595 = vld [vmem:[%s1059 + $0xfd8] sm:$0xff]
                  %1596 = vst [vmem:[%s1060 + $0x858] sm:$0xff] %v1595
                  %v1597 = vld [vmem:[%s1059 + $0xfe0] sm:$0xff]
                  %1598 = vst [vmem:[%s1060 + $0x860] sm:$0xff] %v1597
                  %v1599 = vld [vmem:[%s1059 + $0xfe8] sm:$0xff]
                  %1600 = vst [vmem:[%s1060 + $0x868] sm:$0xff] %v1599
                  %v1601 = vld [vmem:[%s1059 + $0xff0] sm:$0xff]
                  %1602 = vst [vmem:[%s1060 + $0x870] sm:$0xff] %v1601
                  %v1603 = vld [vmem:[%s1059 + $0xff8] sm:$0xff]
                  %1604 = vst [vmem:[%s1060 + $0x878] sm:$0xff] %v1603
                  %v1605 = vld [vmem:[%s1059 + $0x1000] sm:$0xff]
                  %1606 = vst [vmem:[%s1060 + $0x880] sm:$0xff] %v1605
                  %v1607 = vld [vmem:[%s1059 + $0x1008] sm:$0xff]
                  %1608 = vst [vmem:[%s1060 + $0x888] sm:$0xff] %v1607
                  %v1609 = vld [vmem:[%s1059 + $0x1010] sm:$0xff]
                  %1610 = vst [vmem:[%s1060 + $0x890] sm:$0xff] %v1609
                  %v1611 = vld [vmem:[%s1059 + $0x1018] sm:$0xff]
                  %1612 = vst [vmem:[%s1060 + $0x898] sm:$0xff] %v1611
                  %v1613 = vld [vmem:[%s1059 + $0x1020] sm:$0xff]
                  %1614 = vst [vmem:[%s1060 + $0x8a0] sm:$0xff] %v1613
                  %v1615 = vld [vmem:[%s1059 + $0x1028] sm:$0xff]
                  %1616 = vst [vmem:[%s1060 + $0x8a8] sm:$0xff] %v1615
                  %v1617 = vld [vmem:[%s1059 + $0x1030] sm:$0xff]
                  %1618 = vst [vmem:[%s1060 + $0x8b0] sm:$0xff] %v1617
                  %v1619 = vld [vmem:[%s1059 + $0x1038] sm:$0xff]
                  %1620 = vst [vmem:[%s1060 + $0x8b8] sm:$0xff] %v1619
                  %v1621 = vld [vmem:[%s1059 + $0x1180] sm:$0xff]
                  %1622 = vst [vmem:[%s1060 + $0x8c0] sm:$0xff] %v1621
                  %v1623 = vld [vmem:[%s1059 + $0x1188] sm:$0xff]
                  %1624 = vst [vmem:[%s1060 + $0x8c8] sm:$0xff] %v1623
                  %v1625 = vld [vmem:[%s1059 + $0x1190] sm:$0xff]
                  %1626 = vst [vmem:[%s1060 + $0x8d0] sm:$0xff] %v1625
                  %v1627 = vld [vmem:[%s1059 + $0x1198] sm:$0xff]
                  %1628 = vst [vmem:[%s1060 + $0x8d8] sm:$0xff] %v1627
                  %v1629 = vld [vmem:[%s1059 + $0x11a0] sm:$0xff]
                  %1630 = vst [vmem:[%s1060 + $0x8e0] sm:$0xff] %v1629
                  %v1631 = vld [vmem:[%s1059 + $0x11a8] sm:$0xff]
                  %1632 = vst [vmem:[%s1060 + $0x8e8] sm:$0xff] %v1631
                  %v1633 = vld [vmem:[%s1059 + $0x11b0] sm:$0xff]
                  %1634 = vst [vmem:[%s1060 + $0x8f0] sm:$0xff] %v1633
                  %v1635 = vld [vmem:[%s1059 + $0x11b8] sm:$0xff]
                  %1636 = vst [vmem:[%s1060 + $0x8f8] sm:$0xff] %v1635
                  %v1637 = vld [vmem:[%s1059 + $0x11c0] sm:$0xff]
                  %1638 = vst [vmem:[%s1060 + $0x900] sm:$0xff] %v1637
                  %v1639 = vld [vmem:[%s1059 + $0x11c8] sm:$0xff]
                  %1640 = vst [vmem:[%s1060 + $0x908] sm:$0xff] %v1639
                  %v1641 = vld [vmem:[%s1059 + $0x11d0] sm:$0xff]
                  %1642 = vst [vmem:[%s1060 + $0x910] sm:$0xff] %v1641
                  %v1643 = vld [vmem:[%s1059 + $0x11d8] sm:$0xff]
                  %1644 = vst [vmem:[%s1060 + $0x918] sm:$0xff] %v1643
                  %v1645 = vld [vmem:[%s1059 + $0x11e0] sm:$0xff]
                  %1646 = vst [vmem:[%s1060 + $0x920] sm:$0xff] %v1645
                  %v1647 = vld [vmem:[%s1059 + $0x11e8] sm:$0xff]
                  %1648 = vst [vmem:[%s1060 + $0x928] sm:$0xff] %v1647
                  %v1649 = vld [vmem:[%s1059 + $0x11f0] sm:$0xff]
                  %1650 = vst [vmem:[%s1060 + $0x930] sm:$0xff] %v1649
                  %v1651 = vld [vmem:[%s1059 + $0x11f8] sm:$0xff]
                  %1652 = vst [vmem:[%s1060 + $0x938] sm:$0xff] %v1651
                  %v1653 = vld [vmem:[%s1059 + $0x1200] sm:$0xff]
                  %1654 = vst [vmem:[%s1060 + $0x940] sm:$0xff] %v1653
                  %v1655 = vld [vmem:[%s1059 + $0x1208] sm:$0xff]
                  %1656 = vst [vmem:[%s1060 + $0x948] sm:$0xff] %v1655
                  %v1657 = vld [vmem:[%s1059 + $0x1210] sm:$0xff]
                  %1658 = vst [vmem:[%s1060 + $0x950] sm:$0xff] %v1657
                  %v1659 = vld [vmem:[%s1059 + $0x1218] sm:$0xff]
                  %1660 = vst [vmem:[%s1060 + $0x958] sm:$0xff] %v1659
                  %v1661 = vld [vmem:[%s1059 + $0x1220] sm:$0xff]
                  %1662 = vst [vmem:[%s1060 + $0x960] sm:$0xff] %v1661
                  %v1663 = vld [vmem:[%s1059 + $0x1228] sm:$0xff]
                  %1664 = vst [vmem:[%s1060 + $0x968] sm:$0xff] %v1663
                  %v1665 = vld [vmem:[%s1059 + $0x1230] sm:$0xff]
                  %1666 = vst [vmem:[%s1060 + $0x970] sm:$0xff] %v1665
                  %v1667 = vld [vmem:[%s1059 + $0x1238] sm:$0xff]
                  %1668 = vst [vmem:[%s1060 + $0x978] sm:$0xff] %v1667
                  %v1669 = vld [vmem:[%s1059 + $0x1240] sm:$0xff]
                  %1670 = vst [vmem:[%s1060 + $0x980] sm:$0xff] %v1669
                  %v1671 = vld [vmem:[%s1059 + $0x1248] sm:$0xff]
                  %1672 = vst [vmem:[%s1060 + $0x988] sm:$0xff] %v1671
                  %v1673 = vld [vmem:[%s1059 + $0x1250] sm:$0xff]
                  %1674 = vst [vmem:[%s1060 + $0x990] sm:$0xff] %v1673
                  %v1675 = vld [vmem:[%s1059 + $0x1258] sm:$0xff]
                  %1676 = vst [vmem:[%s1060 + $0x998] sm:$0xff] %v1675
                  %v1677 = vld [vmem:[%s1059 + $0x1260] sm:$0xff]
                  %1678 = vst [vmem:[%s1060 + $0x9a0] sm:$0xff] %v1677
                  %v1679 = vld [vmem:[%s1059 + $0x1268] sm:$0xff]
                  %1680 = vst [vmem:[%s1060 + $0x9a8] sm:$0xff] %v1679
                  %v1681 = vld [vmem:[%s1059 + $0x1270] sm:$0xff]
                  %1682 = vst [vmem:[%s1060 + $0x9b0] sm:$0xff] %v1681
                  %v1683 = vld [vmem:[%s1059 + $0x1278] sm:$0xff]
                  %1684 = vst [vmem:[%s1060 + $0x9b8] sm:$0xff] %v1683
                  %v1685 = vld [vmem:[%s1059 + $0x1280] sm:$0xff]
                  %1686 = vst [vmem:[%s1060 + $0x9c0] sm:$0xff] %v1685
                  %v1687 = vld [vmem:[%s1059 + $0x1288] sm:$0xff]
                  %1688 = vst [vmem:[%s1060 + $0x9c8] sm:$0xff] %v1687
                  %v1689 = vld [vmem:[%s1059 + $0x1290] sm:$0xff]
                  %1690 = vst [vmem:[%s1060 + $0x9d0] sm:$0xff] %v1689
                  %v1691 = vld [vmem:[%s1059 + $0x1298] sm:$0xff]
                  %1692 = vst [vmem:[%s1060 + $0x9d8] sm:$0xff] %v1691
                  %v1693 = vld [vmem:[%s1059 + $0x12a0] sm:$0xff]
                  %1694 = vst [vmem:[%s1060 + $0x9e0] sm:$0xff] %v1693
                  %v1695 = vld [vmem:[%s1059 + $0x12a8] sm:$0xff]
                  %1696 = vst [vmem:[%s1060 + $0x9e8] sm:$0xff] %v1695
                  %v1697 = vld [vmem:[%s1059 + $0x12b0] sm:$0xff]
                  %1698 = vst [vmem:[%s1060 + $0x9f0] sm:$0xff] %v1697
                  %v1699 = vld [vmem:[%s1059 + $0x12b8] sm:$0xff]
                  %1700 = vst [vmem:[%s1060 + $0x9f8] sm:$0xff] %v1699
                  %v1701 = vld [vmem:[%s1059 + $0x1400] sm:$0xff]
                  %1702 = vst [vmem:[%s1060 + $0xa00] sm:$0xff] %v1701
                  %v1703 = vld [vmem:[%s1059 + $0x1408] sm:$0xff]
                  %1704 = vst [vmem:[%s1060 + $0xa08] sm:$0xff] %v1703
                  %v1705 = vld [vmem:[%s1059 + $0x1410] sm:$0xff]
                  %1706 = vst [vmem:[%s1060 + $0xa10] sm:$0xff] %v1705
                  %v1707 = vld [vmem:[%s1059 + $0x1418] sm:$0xff]
                  %1708 = vst [vmem:[%s1060 + $0xa18] sm:$0xff] %v1707
                  %v1709 = vld [vmem:[%s1059 + $0x1420] sm:$0xff]
                  %1710 = vst [vmem:[%s1060 + $0xa20] sm:$0xff] %v1709
                  %v1711 = vld [vmem:[%s1059 + $0x1428] sm:$0xff]
                  %1712 = vst [vmem:[%s1060 + $0xa28] sm:$0xff] %v1711
                  %v1713 = vld [vmem:[%s1059 + $0x1430] sm:$0xff]
                  %1714 = vst [vmem:[%s1060 + $0xa30] sm:$0xff] %v1713
                  %v1715 = vld [vmem:[%s1059 + $0x1438] sm:$0xff]
                  %1716 = vst [vmem:[%s1060 + $0xa38] sm:$0xff] %v1715
                  %v1717 = vld [vmem:[%s1059 + $0x1440] sm:$0xff]
                  %1718 = vst [vmem:[%s1060 + $0xa40] sm:$0xff] %v1717
                  %v1719 = vld [vmem:[%s1059 + $0x1448] sm:$0xff]
                  %1720 = vst [vmem:[%s1060 + $0xa48] sm:$0xff] %v1719
                  %v1721 = vld [vmem:[%s1059 + $0x1450] sm:$0xff]
                  %1722 = vst [vmem:[%s1060 + $0xa50] sm:$0xff] %v1721
                  %v1723 = vld [vmem:[%s1059 + $0x1458] sm:$0xff]
                  %1724 = vst [vmem:[%s1060 + $0xa58] sm:$0xff] %v1723
                  %v1725 = vld [vmem:[%s1059 + $0x1460] sm:$0xff]
                  %1726 = vst [vmem:[%s1060 + $0xa60] sm:$0xff] %v1725
                  %v1727 = vld [vmem:[%s1059 + $0x1468] sm:$0xff]
                  %1728 = vst [vmem:[%s1060 + $0xa68] sm:$0xff] %v1727
                  %v1729 = vld [vmem:[%s1059 + $0x1470] sm:$0xff]
                  %1730 = vst [vmem:[%s1060 + $0xa70] sm:$0xff] %v1729
                  %v1731 = vld [vmem:[%s1059 + $0x1478] sm:$0xff]
                  %1732 = vst [vmem:[%s1060 + $0xa78] sm:$0xff] %v1731
                  %v1733 = vld [vmem:[%s1059 + $0x1480] sm:$0xff]
                  %1734 = vst [vmem:[%s1060 + $0xa80] sm:$0xff] %v1733
                  %v1735 = vld [vmem:[%s1059 + $0x1488] sm:$0xff]
                  %1736 = vst [vmem:[%s1060 + $0xa88] sm:$0xff] %v1735
                  %v1737 = vld [vmem:[%s1059 + $0x1490] sm:$0xff]
                  %1738 = vst [vmem:[%s1060 + $0xa90] sm:$0xff] %v1737
                  %v1739 = vld [vmem:[%s1059 + $0x1498] sm:$0xff]
                  %1740 = vst [vmem:[%s1060 + $0xa98] sm:$0xff] %v1739
                  %v1741 = vld [vmem:[%s1059 + $0x14a0] sm:$0xff]
                  %1742 = vst [vmem:[%s1060 + $0xaa0] sm:$0xff] %v1741
                  %v1743 = vld [vmem:[%s1059 + $0x14a8] sm:$0xff]
                  %1744 = vst [vmem:[%s1060 + $0xaa8] sm:$0xff] %v1743
                  %v1745 = vld [vmem:[%s1059 + $0x14b0] sm:$0xff]
                  %1746 = vst [vmem:[%s1060 + $0xab0] sm:$0xff] %v1745
                  %v1747 = vld [vmem:[%s1059 + $0x14b8] sm:$0xff]
                  %1748 = vst [vmem:[%s1060 + $0xab8] sm:$0xff] %v1747
                  %v1749 = vld [vmem:[%s1059 + $0x14c0] sm:$0xff]
                  %1750 = vst [vmem:[%s1060 + $0xac0] sm:$0xff] %v1749
                  %v1751 = vld [vmem:[%s1059 + $0x14c8] sm:$0xff]
                  %1752 = vst [vmem:[%s1060 + $0xac8] sm:$0xff] %v1751
                  %v1753 = vld [vmem:[%s1059 + $0x14d0] sm:$0xff]
                  %1754 = vst [vmem:[%s1060 + $0xad0] sm:$0xff] %v1753
                  %v1755 = vld [vmem:[%s1059 + $0x14d8] sm:$0xff]
                  %1756 = vst [vmem:[%s1060 + $0xad8] sm:$0xff] %v1755
                  %v1757 = vld [vmem:[%s1059 + $0x14e0] sm:$0xff]
                  %1758 = vst [vmem:[%s1060 + $0xae0] sm:$0xff] %v1757
                  %v1759 = vld [vmem:[%s1059 + $0x14e8] sm:$0xff]
                  %1760 = vst [vmem:[%s1060 + $0xae8] sm:$0xff] %v1759
                  %v1761 = vld [vmem:[%s1059 + $0x14f0] sm:$0xff]
                  %1762 = vst [vmem:[%s1060 + $0xaf0] sm:$0xff] %v1761
                  %v1763 = vld [vmem:[%s1059 + $0x14f8] sm:$0xff]
                  %1764 = vst [vmem:[%s1060 + $0xaf8] sm:$0xff] %v1763
                  %v1765 = vld [vmem:[%s1059 + $0x1500] sm:$0xff]
                  %1766 = vst [vmem:[%s1060 + $0xb00] sm:$0xff] %v1765
                  %v1767 = vld [vmem:[%s1059 + $0x1508] sm:$0xff]
                  %1768 = vst [vmem:[%s1060 + $0xb08] sm:$0xff] %v1767
                  %v1769 = vld [vmem:[%s1059 + $0x1510] sm:$0xff]
                  %1770 = vst [vmem:[%s1060 + $0xb10] sm:$0xff] %v1769
                  %v1771 = vld [vmem:[%s1059 + $0x1518] sm:$0xff]
                  %1772 = vst [vmem:[%s1060 + $0xb18] sm:$0xff] %v1771
                  %v1773 = vld [vmem:[%s1059 + $0x1520] sm:$0xff]
                  %1774 = vst [vmem:[%s1060 + $0xb20] sm:$0xff] %v1773
                  %v1775 = vld [vmem:[%s1059 + $0x1528] sm:$0xff]
                  %1776 = vst [vmem:[%s1060 + $0xb28] sm:$0xff] %v1775
                  %v1777 = vld [vmem:[%s1059 + $0x1530] sm:$0xff]
                  %1778 = vst [vmem:[%s1060 + $0xb30] sm:$0xff] %v1777
                  %v1779 = vld [vmem:[%s1059 + $0x1538] sm:$0xff]
                  %1780 = vst [vmem:[%s1060 + $0xb38] sm:$0xff] %v1779
                $region84: #{_forward_padded.1} parent=78 // loop_footer
                  %s1058 = sadd.s32 1, %s1054
                $region85: #{_forward_padded.1} parent=78 // loop_footer_branch
                  %1053 = sbr.rel target = $region81
                $region86: #{_forward_padded.1} parent=78 // loop_exit
                  _
              $region79: #{_forward_padded.1} parent=63 // pred_fallthru
                _
              // Predicated region
              $region87: #{_forward_padded.1} parent=63 // pred_check
                _
              $region88: #{_forward_padded.1} parent=63 // pred_check_branch
                %1782 = sbr.rel target = $region90
              $region89: #{_forward_padded.1} parent=63 // pred_region
                _
              $region90: #{_forward_padded.1} parent=63 // pred_fallthru
                _
            $region64: #{_forward_padded.1} parent=59 // pred_fallthru
              _
            // Predicated region
            $region65: #{_forward_padded.1} parent=59 // pred_check
              _
            $region66: #{_forward_padded.1} parent=59 // pred_check_branch
              %321 = sbr.rel target = $region68
            $region67: #{_forward_padded.1} parent=59 // pred_region
              loop: start=0, step=1, limit=1
              $region69: #{_forward_padded.1} parent=67 // loop_pre_header
                _
              $region70: #{_forward_padded.1} parent=67 // loop_header
                %s324 = sphi 0, %s328
                %p325 = scmp.ge.s32.totalorder %s324, 1
                %s329 = sphi %s315, %s315
                %s330 = sphi %s312, %s312
              $region71: #{_forward_padded.1} parent=67 // loop_header_branch
                %327 = sbr.rel (%p325) target = $region75
              $region72: #{_forward_padded.1} parent=67 // loop_body
                %v331 = vld [vmem:[%s329] sm:$0xff]
                %332 = vst [vmem:[%s330] sm:$0xff] %v331
                %v333 = vld [vmem:[%s329 + $0x8] sm:$0xff]
                %334 = vst [vmem:[%s330 + $0x8] sm:$0xff] %v333
                %v335 = vld [vmem:[%s329 + $0x10] sm:$0xff]
                %336 = vst [vmem:[%s330 + $0x10] sm:$0xff] %v335
                %v337 = vld [vmem:[%s329 + $0x18] sm:$0xff]
                %338 = vst [vmem:[%s330 + $0x18] sm:$0xff] %v337
                %v339 = vld [vmem:[%s329 + $0x20] sm:$0xff]
                %340 = vst [vmem:[%s330 + $0x20] sm:$0xff] %v339
                %v341 = vld [vmem:[%s329 + $0x28] sm:$0xff]
                %342 = vst [vmem:[%s330 + $0x28] sm:$0xff] %v341
                %v343 = vld [vmem:[%s329 + $0x30] sm:$0xff]
                %344 = vst [vmem:[%s330 + $0x30] sm:$0xff] %v343
                %v345 = vld [vmem:[%s329 + $0x38] sm:$0xff]
                %346 = vst [vmem:[%s330 + $0x38] sm:$0xff] %v345
                %v347 = vld [vmem:[%s329 + $0x40] sm:$0xff]
                %348 = vst [vmem:[%s330 + $0x40] sm:$0xff] %v347
                %v349 = vld [vmem:[%s329 + $0x48] sm:$0xff]
                %350 = vst [vmem:[%s330 + $0x48] sm:$0xff] %v349
                %v351 = vld [vmem:[%s329 + $0x50] sm:$0xff]
                %352 = vst [vmem:[%s330 + $0x50] sm:$0xff] %v351
                %v353 = vld [vmem:[%s329 + $0x58] sm:$0xff]
                %354 = vst [vmem:[%s330 + $0x58] sm:$0xff] %v353
                %v355 = vld [vmem:[%s329 + $0x60] sm:$0xff]
                %356 = vst [vmem:[%s330 + $0x60] sm:$0xff] %v355
                %v357 = vld [vmem:[%s329 + $0x68] sm:$0xff]
                %358 = vst [vmem:[%s330 + $0x68] sm:$0xff] %v357
                %v359 = vld [vmem:[%s329 + $0x70] sm:$0xff]
                %360 = vst [vmem:[%s330 + $0x70] sm:$0xff] %v359
                %v361 = vld [vmem:[%s329 + $0x78] sm:$0xff]
                %362 = vst [vmem:[%s330 + $0x78] sm:$0xff] %v361
                %v363 = vld [vmem:[%s329 + $0x80] sm:$0xff]
                %364 = vst [vmem:[%s330 + $0x80] sm:$0xff] %v363
                %v365 = vld [vmem:[%s329 + $0x88] sm:$0xff]
                %366 = vst [vmem:[%s330 + $0x88] sm:$0xff] %v365
                %v367 = vld [vmem:[%s329 + $0x90] sm:$0xff]
                %368 = vst [vmem:[%s330 + $0x90] sm:$0xff] %v367
                %v369 = vld [vmem:[%s329 + $0x98] sm:$0xff]
                %370 = vst [vmem:[%s330 + $0x98] sm:$0xff] %v369
                %v371 = vld [vmem:[%s329 + $0xa0] sm:$0xff]
                %372 = vst [vmem:[%s330 + $0xa0] sm:$0xff] %v371
                %v373 = vld [vmem:[%s329 + $0xa8] sm:$0xff]
                %374 = vst [vmem:[%s330 + $0xa8] sm:$0xff] %v373
                %v375 = vld [vmem:[%s329 + $0xb0] sm:$0xff]
                %376 = vst [vmem:[%s330 + $0xb0] sm:$0xff] %v375
                %v377 = vld [vmem:[%s329 + $0xb8] sm:$0xff]
                %378 = vst [vmem:[%s330 + $0xb8] sm:$0xff] %v377
                %v379 = vld [vmem:[%s329 + $0xc0] sm:$0xff]
                %380 = vst [vmem:[%s330 + $0xc0] sm:$0xff] %v379
                %v381 = vld [vmem:[%s329 + $0xc8] sm:$0xff]
                %382 = vst [vmem:[%s330 + $0xc8] sm:$0xff] %v381
                %v383 = vld [vmem:[%s329 + $0xd0] sm:$0xff]
                %384 = vst [vmem:[%s330 + $0xd0] sm:$0xff] %v383
                %v385 = vld [vmem:[%s329 + $0xd8] sm:$0xff]
                %386 = vst [vmem:[%s330 + $0xd8] sm:$0xff] %v385
                %v387 = vld [vmem:[%s329 + $0xe0] sm:$0xff]
                %388 = vst [vmem:[%s330 + $0xe0] sm:$0xff] %v387
                %v389 = vld [vmem:[%s329 + $0xe8] sm:$0xff]
                %390 = vst [vmem:[%s330 + $0xe8] sm:$0xff] %v389
                %v391 = vld [vmem:[%s329 + $0xf0] sm:$0xff]
                %392 = vst [vmem:[%s330 + $0xf0] sm:$0xff] %v391
                %v393 = vld [vmem:[%s329 + $0xf8] sm:$0xff]
                %394 = vst [vmem:[%s330 + $0xf8] sm:$0xff] %v393
                %v395 = vld [vmem:[%s329 + $0x100] sm:$0xff]
                %396 = vst [vmem:[%s330 + $0x100] sm:$0xff] %v395
                %v397 = vld [vmem:[%s329 + $0x108] sm:$0xff]
                %398 = vst [vmem:[%s330 + $0x108] sm:$0xff] %v397
                %v399 = vld [vmem:[%s329 + $0x110] sm:$0xff]
                %400 = vst [vmem:[%s330 + $0x110] sm:$0xff] %v399
                %v401 = vld [vmem:[%s329 + $0x118] sm:$0xff]
                %402 = vst [vmem:[%s330 + $0x118] sm:$0xff] %v401
                %v403 = vld [vmem:[%s329 + $0x120] sm:$0xff]
                %404 = vst [vmem:[%s330 + $0x120] sm:$0xff] %v403
                %v405 = vld [vmem:[%s329 + $0x128] sm:$0xff]
                %406 = vst [vmem:[%s330 + $0x128] sm:$0xff] %v405
                %v407 = vld [vmem:[%s329 + $0x130] sm:$0xff]
                %408 = vst [vmem:[%s330 + $0x130] sm:$0xff] %v407
                %v409 = vld [vmem:[%s329 + $0x138] sm:$0xff]
                %410 = vst [vmem:[%s330 + $0x138] sm:$0xff] %v409
                %v411 = vld [vmem:[%s329 + $0x280] sm:$0xff]
                %412 = vst [vmem:[%s330 + $0x140] sm:$0xff] %v411
                %v413 = vld [vmem:[%s329 + $0x288] sm:$0xff]
                %414 = vst [vmem:[%s330 + $0x148] sm:$0xff] %v413
                %v415 = vld [vmem:[%s329 + $0x290] sm:$0xff]
                %416 = vst [vmem:[%s330 + $0x150] sm:$0xff] %v415
                %v417 = vld [vmem:[%s329 + $0x298] sm:$0xff]
                %418 = vst [vmem:[%s330 + $0x158] sm:$0xff] %v417
                %v419 = vld [vmem:[%s329 + $0x2a0] sm:$0xff]
                %420 = vst [vmem:[%s330 + $0x160] sm:$0xff] %v419
                %v421 = vld [vmem:[%s329 + $0x2a8] sm:$0xff]
                %422 = vst [vmem:[%s330 + $0x168] sm:$0xff] %v421
                %v423 = vld [vmem:[%s329 + $0x2b0] sm:$0xff]
                %424 = vst [vmem:[%s330 + $0x170] sm:$0xff] %v423
                %v425 = vld [vmem:[%s329 + $0x2b8] sm:$0xff]
                %426 = vst [vmem:[%s330 + $0x178] sm:$0xff] %v425
                %v427 = vld [vmem:[%s329 + $0x2c0] sm:$0xff]
                %428 = vst [vmem:[%s330 + $0x180] sm:$0xff] %v427
                %v429 = vld [vmem:[%s329 + $0x2c8] sm:$0xff]
                %430 = vst [vmem:[%s330 + $0x188] sm:$0xff] %v429
                %v431 = vld [vmem:[%s329 + $0x2d0] sm:$0xff]
                %432 = vst [vmem:[%s330 + $0x190] sm:$0xff] %v431
                %v433 = vld [vmem:[%s329 + $0x2d8] sm:$0xff]
                %434 = vst [vmem:[%s330 + $0x198] sm:$0xff] %v433
                %v435 = vld [vmem:[%s329 + $0x2e0] sm:$0xff]
                %436 = vst [vmem:[%s330 + $0x1a0] sm:$0xff] %v435
                %v437 = vld [vmem:[%s329 + $0x2e8] sm:$0xff]
                %438 = vst [vmem:[%s330 + $0x1a8] sm:$0xff] %v437
                %v439 = vld [vmem:[%s329 + $0x2f0] sm:$0xff]
                %440 = vst [vmem:[%s330 + $0x1b0] sm:$0xff] %v439
                %v441 = vld [vmem:[%s329 + $0x2f8] sm:$0xff]
                %442 = vst [vmem:[%s330 + $0x1b8] sm:$0xff] %v441
                %v443 = vld [vmem:[%s329 + $0x300] sm:$0xff]
                %444 = vst [vmem:[%s330 + $0x1c0] sm:$0xff] %v443
                %v445 = vld [vmem:[%s329 + $0x308] sm:$0xff]
                %446 = vst [vmem:[%s330 + $0x1c8] sm:$0xff] %v445
                %v447 = vld [vmem:[%s329 + $0x310] sm:$0xff]
                %448 = vst [vmem:[%s330 + $0x1d0] sm:$0xff] %v447
                %v449 = vld [vmem:[%s329 + $0x318] sm:$0xff]
                %450 = vst [vmem:[%s330 + $0x1d8] sm:$0xff] %v449
                %v451 = vld [vmem:[%s329 + $0x320] sm:$0xff]
                %452 = vst [vmem:[%s330 + $0x1e0] sm:$0xff] %v451
                %v453 = vld [vmem:[%s329 + $0x328] sm:$0xff]
                %454 = vst [vmem:[%s330 + $0x1e8] sm:$0xff] %v453
                %v455 = vld [vmem:[%s329 + $0x330] sm:$0xff]
                %456 = vst [vmem:[%s330 + $0x1f0] sm:$0xff] %v455
                %v457 = vld [vmem:[%s329 + $0x338] sm:$0xff]
                %458 = vst [vmem:[%s330 + $0x1f8] sm:$0xff] %v457
                %v459 = vld [vmem:[%s329 + $0x340] sm:$0xff]
                %460 = vst [vmem:[%s330 + $0x200] sm:$0xff] %v459
                %v461 = vld [vmem:[%s329 + $0x348] sm:$0xff]
                %462 = vst [vmem:[%s330 + $0x208] sm:$0xff] %v461
                %v463 = vld [vmem:[%s329 + $0x350] sm:$0xff]
                %464 = vst [vmem:[%s330 + $0x210] sm:$0xff] %v463
                %v465 = vld [vmem:[%s329 + $0x358] sm:$0xff]
                %466 = vst [vmem:[%s330 + $0x218] sm:$0xff] %v465
                %v467 = vld [vmem:[%s329 + $0x360] sm:$0xff]
                %468 = vst [vmem:[%s330 + $0x220] sm:$0xff] %v467
                %v469 = vld [vmem:[%s329 + $0x368] sm:$0xff]
                %470 = vst [vmem:[%s330 + $0x228] sm:$0xff] %v469
                %v471 = vld [vmem:[%s329 + $0x370] sm:$0xff]
                %472 = vst [vmem:[%s330 + $0x230] sm:$0xff] %v471
                %v473 = vld [vmem:[%s329 + $0x378] sm:$0xff]
                %474 = vst [vmem:[%s330 + $0x238] sm:$0xff] %v473
                %v475 = vld [vmem:[%s329 + $0x380] sm:$0xff]
                %476 = vst [vmem:[%s330 + $0x240] sm:$0xff] %v475
                %v477 = vld [vmem:[%s329 + $0x388] sm:$0xff]
                %478 = vst [vmem:[%s330 + $0x248] sm:$0xff] %v477
                %v479 = vld [vmem:[%s329 + $0x390] sm:$0xff]
                %480 = vst [vmem:[%s330 + $0x250] sm:$0xff] %v479
                %v481 = vld [vmem:[%s329 + $0x398] sm:$0xff]
                %482 = vst [vmem:[%s330 + $0x258] sm:$0xff] %v481
                %v483 = vld [vmem:[%s329 + $0x3a0] sm:$0xff]
                %484 = vst [vmem:[%s330 + $0x260] sm:$0xff] %v483
                %v485 = vld [vmem:[%s329 + $0x3a8] sm:$0xff]
                %486 = vst [vmem:[%s330 + $0x268] sm:$0xff] %v485
                %v487 = vld [vmem:[%s329 + $0x3b0] sm:$0xff]
                %488 = vst [vmem:[%s330 + $0x270] sm:$0xff] %v487
                %v489 = vld [vmem:[%s329 + $0x3b8] sm:$0xff]
                %490 = vst [vmem:[%s330 + $0x278] sm:$0xff] %v489
                %v491 = vld [vmem:[%s329 + $0x500] sm:$0xff]
                %492 = vst [vmem:[%s330 + $0x280] sm:$0xff] %v491
                %v493 = vld [vmem:[%s329 + $0x508] sm:$0xff]
                %494 = vst [vmem:[%s330 + $0x288] sm:$0xff] %v493
                %v495 = vld [vmem:[%s329 + $0x510] sm:$0xff]
                %496 = vst [vmem:[%s330 + $0x290] sm:$0xff] %v495
                %v497 = vld [vmem:[%s329 + $0x518] sm:$0xff]
                %498 = vst [vmem:[%s330 + $0x298] sm:$0xff] %v497
                %v499 = vld [vmem:[%s329 + $0x520] sm:$0xff]
                %500 = vst [vmem:[%s330 + $0x2a0] sm:$0xff] %v499
                %v501 = vld [vmem:[%s329 + $0x528] sm:$0xff]
                %502 = vst [vmem:[%s330 + $0x2a8] sm:$0xff] %v501
                %v503 = vld [vmem:[%s329 + $0x530] sm:$0xff]
                %504 = vst [vmem:[%s330 + $0x2b0] sm:$0xff] %v503
                %v505 = vld [vmem:[%s329 + $0x538] sm:$0xff]
                %506 = vst [vmem:[%s330 + $0x2b8] sm:$0xff] %v505
                %v507 = vld [vmem:[%s329 + $0x540] sm:$0xff]
                %508 = vst [vmem:[%s330 + $0x2c0] sm:$0xff] %v507
                %v509 = vld [vmem:[%s329 + $0x548] sm:$0xff]
                %510 = vst [vmem:[%s330 + $0x2c8] sm:$0xff] %v509
                %v511 = vld [vmem:[%s329 + $0x550] sm:$0xff]
                %512 = vst [vmem:[%s330 + $0x2d0] sm:$0xff] %v511
                %v513 = vld [vmem:[%s329 + $0x558] sm:$0xff]
                %514 = vst [vmem:[%s330 + $0x2d8] sm:$0xff] %v513
                %v515 = vld [vmem:[%s329 + $0x560] sm:$0xff]
                %516 = vst [vmem:[%s330 + $0x2e0] sm:$0xff] %v515
                %v517 = vld [vmem:[%s329 + $0x568] sm:$0xff]
                %518 = vst [vmem:[%s330 + $0x2e8] sm:$0xff] %v517
                %v519 = vld [vmem:[%s329 + $0x570] sm:$0xff]
                %520 = vst [vmem:[%s330 + $0x2f0] sm:$0xff] %v519
                %v521 = vld [vmem:[%s329 + $0x578] sm:$0xff]
                %522 = vst [vmem:[%s330 + $0x2f8] sm:$0xff] %v521
                %v523 = vld [vmem:[%s329 + $0x580] sm:$0xff]
                %524 = vst [vmem:[%s330 + $0x300] sm:$0xff] %v523
                %v525 = vld [vmem:[%s329 + $0x588] sm:$0xff]
                %526 = vst [vmem:[%s330 + $0x308] sm:$0xff] %v525
                %v527 = vld [vmem:[%s329 + $0x590] sm:$0xff]
                %528 = vst [vmem:[%s330 + $0x310] sm:$0xff] %v527
                %v529 = vld [vmem:[%s329 + $0x598] sm:$0xff]
                %530 = vst [vmem:[%s330 + $0x318] sm:$0xff] %v529
                %v531 = vld [vmem:[%s329 + $0x5a0] sm:$0xff]
                %532 = vst [vmem:[%s330 + $0x320] sm:$0xff] %v531
                %v533 = vld [vmem:[%s329 + $0x5a8] sm:$0xff]
                %534 = vst [vmem:[%s330 + $0x328] sm:$0xff] %v533
                %v535 = vld [vmem:[%s329 + $0x5b0] sm:$0xff]
                %536 = vst [vmem:[%s330 + $0x330] sm:$0xff] %v535
                %v537 = vld [vmem:[%s329 + $0x5b8] sm:$0xff]
                %538 = vst [vmem:[%s330 + $0x338] sm:$0xff] %v537
                %v539 = vld [vmem:[%s329 + $0x5c0] sm:$0xff]
                %540 = vst [vmem:[%s330 + $0x340] sm:$0xff] %v539
                %v541 = vld [vmem:[%s329 + $0x5c8] sm:$0xff]
                %542 = vst [vmem:[%s330 + $0x348] sm:$0xff] %v541
                %v543 = vld [vmem:[%s329 + $0x5d0] sm:$0xff]
                %544 = vst [vmem:[%s330 + $0x350] sm:$0xff] %v543
                %v545 = vld [vmem:[%s329 + $0x5d8] sm:$0xff]
                %546 = vst [vmem:[%s330 + $0x358] sm:$0xff] %v545
                %v547 = vld [vmem:[%s329 + $0x5e0] sm:$0xff]
                %548 = vst [vmem:[%s330 + $0x360] sm:$0xff] %v547
                %v549 = vld [vmem:[%s329 + $0x5e8] sm:$0xff]
                %550 = vst [vmem:[%s330 + $0x368] sm:$0xff] %v549
                %v551 = vld [vmem:[%s329 + $0x5f0] sm:$0xff]
                %552 = vst [vmem:[%s330 + $0x370] sm:$0xff] %v551
                %v553 = vld [vmem:[%s329 + $0x5f8] sm:$0xff]
                %554 = vst [vmem:[%s330 + $0x378] sm:$0xff] %v553
                %v555 = vld [vmem:[%s329 + $0x600] sm:$0xff]
                %556 = vst [vmem:[%s330 + $0x380] sm:$0xff] %v555
                %v557 = vld [vmem:[%s329 + $0x608] sm:$0xff]
                %558 = vst [vmem:[%s330 + $0x388] sm:$0xff] %v557
                %v559 = vld [vmem:[%s329 + $0x610] sm:$0xff]
                %560 = vst [vmem:[%s330 + $0x390] sm:$0xff] %v559
                %v561 = vld [vmem:[%s329 + $0x618] sm:$0xff]
                %562 = vst [vmem:[%s330 + $0x398] sm:$0xff] %v561
                %v563 = vld [vmem:[%s329 + $0x620] sm:$0xff]
                %564 = vst [vmem:[%s330 + $0x3a0] sm:$0xff] %v563
                %v565 = vld [vmem:[%s329 + $0x628] sm:$0xff]
                %566 = vst [vmem:[%s330 + $0x3a8] sm:$0xff] %v565
                %v567 = vld [vmem:[%s329 + $0x630] sm:$0xff]
                %568 = vst [vmem:[%s330 + $0x3b0] sm:$0xff] %v567
                %v569 = vld [vmem:[%s329 + $0x638] sm:$0xff]
                %570 = vst [vmem:[%s330 + $0x3b8] sm:$0xff] %v569
                %v571 = vld [vmem:[%s329 + $0x780] sm:$0xff]
                %572 = vst [vmem:[%s330 + $0x3c0] sm:$0xff] %v571
                %v573 = vld [vmem:[%s329 + $0x788] sm:$0xff]
                %574 = vst [vmem:[%s330 + $0x3c8] sm:$0xff] %v573
                %v575 = vld [vmem:[%s329 + $0x790] sm:$0xff]
                %576 = vst [vmem:[%s330 + $0x3d0] sm:$0xff] %v575
                %v577 = vld [vmem:[%s329 + $0x798] sm:$0xff]
                %578 = vst [vmem:[%s330 + $0x3d8] sm:$0xff] %v577
                %v579 = vld [vmem:[%s329 + $0x7a0] sm:$0xff]
                %580 = vst [vmem:[%s330 + $0x3e0] sm:$0xff] %v579
                %v581 = vld [vmem:[%s329 + $0x7a8] sm:$0xff]
                %582 = vst [vmem:[%s330 + $0x3e8] sm:$0xff] %v581
                %v583 = vld [vmem:[%s329 + $0x7b0] sm:$0xff]
                %584 = vst [vmem:[%s330 + $0x3f0] sm:$0xff] %v583
                %v585 = vld [vmem:[%s329 + $0x7b8] sm:$0xff]
                %586 = vst [vmem:[%s330 + $0x3f8] sm:$0xff] %v585
                %v587 = vld [vmem:[%s329 + $0x7c0] sm:$0xff]
                %588 = vst [vmem:[%s330 + $0x400] sm:$0xff] %v587
                %v589 = vld [vmem:[%s329 + $0x7c8] sm:$0xff]
                %590 = vst [vmem:[%s330 + $0x408] sm:$0xff] %v589
                %v591 = vld [vmem:[%s329 + $0x7d0] sm:$0xff]
                %592 = vst [vmem:[%s330 + $0x410] sm:$0xff] %v591
                %v593 = vld [vmem:[%s329 + $0x7d8] sm:$0xff]
                %594 = vst [vmem:[%s330 + $0x418] sm:$0xff] %v593
                %v595 = vld [vmem:[%s329 + $0x7e0] sm:$0xff]
                %596 = vst [vmem:[%s330 + $0x420] sm:$0xff] %v595
                %v597 = vld [vmem:[%s329 + $0x7e8] sm:$0xff]
                %598 = vst [vmem:[%s330 + $0x428] sm:$0xff] %v597
                %v599 = vld [vmem:[%s329 + $0x7f0] sm:$0xff]
                %600 = vst [vmem:[%s330 + $0x430] sm:$0xff] %v599
                %v601 = vld [vmem:[%s329 + $0x7f8] sm:$0xff]
                %602 = vst [vmem:[%s330 + $0x438] sm:$0xff] %v601
                %v603 = vld [vmem:[%s329 + $0x800] sm:$0xff]
                %604 = vst [vmem:[%s330 + $0x440] sm:$0xff] %v603
                %v605 = vld [vmem:[%s329 + $0x808] sm:$0xff]
                %606 = vst [vmem:[%s330 + $0x448] sm:$0xff] %v605
                %v607 = vld [vmem:[%s329 + $0x810] sm:$0xff]
                %608 = vst [vmem:[%s330 + $0x450] sm:$0xff] %v607
                %v609 = vld [vmem:[%s329 + $0x818] sm:$0xff]
                %610 = vst [vmem:[%s330 + $0x458] sm:$0xff] %v609
                %v611 = vld [vmem:[%s329 + $0x820] sm:$0xff]
                %612 = vst [vmem:[%s330 + $0x460] sm:$0xff] %v611
                %v613 = vld [vmem:[%s329 + $0x828] sm:$0xff]
                %614 = vst [vmem:[%s330 + $0x468] sm:$0xff] %v613
                %v615 = vld [vmem:[%s329 + $0x830] sm:$0xff]
                %616 = vst [vmem:[%s330 + $0x470] sm:$0xff] %v615
                %v617 = vld [vmem:[%s329 + $0x838] sm:$0xff]
                %618 = vst [vmem:[%s330 + $0x478] sm:$0xff] %v617
                %v619 = vld [vmem:[%s329 + $0x840] sm:$0xff]
                %620 = vst [vmem:[%s330 + $0x480] sm:$0xff] %v619
                %v621 = vld [vmem:[%s329 + $0x848] sm:$0xff]
                %622 = vst [vmem:[%s330 + $0x488] sm:$0xff] %v621
                %v623 = vld [vmem:[%s329 + $0x850] sm:$0xff]
                %624 = vst [vmem:[%s330 + $0x490] sm:$0xff] %v623
                %v625 = vld [vmem:[%s329 + $0x858] sm:$0xff]
                %626 = vst [vmem:[%s330 + $0x498] sm:$0xff] %v625
                %v627 = vld [vmem:[%s329 + $0x860] sm:$0xff]
                %628 = vst [vmem:[%s330 + $0x4a0] sm:$0xff] %v627
                %v629 = vld [vmem:[%s329 + $0x868] sm:$0xff]
                %630 = vst [vmem:[%s330 + $0x4a8] sm:$0xff] %v629
                %v631 = vld [vmem:[%s329 + $0x870] sm:$0xff]
                %632 = vst [vmem:[%s330 + $0x4b0] sm:$0xff] %v631
                %v633 = vld [vmem:[%s329 + $0x878] sm:$0xff]
                %634 = vst [vmem:[%s330 + $0x4b8] sm:$0xff] %v633
                %v635 = vld [vmem:[%s329 + $0x880] sm:$0xff]
                %636 = vst [vmem:[%s330 + $0x4c0] sm:$0xff] %v635
                %v637 = vld [vmem:[%s329 + $0x888] sm:$0xff]
                %638 = vst [vmem:[%s330 + $0x4c8] sm:$0xff] %v637
                %v639 = vld [vmem:[%s329 + $0x890] sm:$0xff]
                %640 = vst [vmem:[%s330 + $0x4d0] sm:$0xff] %v639
                %v641 = vld [vmem:[%s329 + $0x898] sm:$0xff]
                %642 = vst [vmem:[%s330 + $0x4d8] sm:$0xff] %v641
                %v643 = vld [vmem:[%s329 + $0x8a0] sm:$0xff]
                %644 = vst [vmem:[%s330 + $0x4e0] sm:$0xff] %v643
                %v645 = vld [vmem:[%s329 + $0x8a8] sm:$0xff]
                %646 = vst [vmem:[%s330 + $0x4e8] sm:$0xff] %v645
                %v647 = vld [vmem:[%s329 + $0x8b0] sm:$0xff]
                %648 = vst [vmem:[%s330 + $0x4f0] sm:$0xff] %v647
                %v649 = vld [vmem:[%s329 + $0x8b8] sm:$0xff]
                %650 = vst [vmem:[%s330 + $0x4f8] sm:$0xff] %v649
                %v651 = vld [vmem:[%s329 + $0xa00] sm:$0xff]
                %652 = vst [vmem:[%s330 + $0x500] sm:$0xff] %v651
                %v653 = vld [vmem:[%s329 + $0xa08] sm:$0xff]
                %654 = vst [vmem:[%s330 + $0x508] sm:$0xff] %v653
                %v655 = vld [vmem:[%s329 + $0xa10] sm:$0xff]
                %656 = vst [vmem:[%s330 + $0x510] sm:$0xff] %v655
                %v657 = vld [vmem:[%s329 + $0xa18] sm:$0xff]
                %658 = vst [vmem:[%s330 + $0x518] sm:$0xff] %v657
                %v659 = vld [vmem:[%s329 + $0xa20] sm:$0xff]
                %660 = vst [vmem:[%s330 + $0x520] sm:$0xff] %v659
                %v661 = vld [vmem:[%s329 + $0xa28] sm:$0xff]
                %662 = vst [vmem:[%s330 + $0x528] sm:$0xff] %v661
                %v663 = vld [vmem:[%s329 + $0xa30] sm:$0xff]
                %664 = vst [vmem:[%s330 + $0x530] sm:$0xff] %v663
                %v665 = vld [vmem:[%s329 + $0xa38] sm:$0xff]
                %666 = vst [vmem:[%s330 + $0x538] sm:$0xff] %v665
                %v667 = vld [vmem:[%s329 + $0xa40] sm:$0xff]
                %668 = vst [vmem:[%s330 + $0x540] sm:$0xff] %v667
                %v669 = vld [vmem:[%s329 + $0xa48] sm:$0xff]
                %670 = vst [vmem:[%s330 + $0x548] sm:$0xff] %v669
                %v671 = vld [vmem:[%s329 + $0xa50] sm:$0xff]
                %672 = vst [vmem:[%s330 + $0x550] sm:$0xff] %v671
                %v673 = vld [vmem:[%s329 + $0xa58] sm:$0xff]
                %674 = vst [vmem:[%s330 + $0x558] sm:$0xff] %v673
                %v675 = vld [vmem:[%s329 + $0xa60] sm:$0xff]
                %676 = vst [vmem:[%s330 + $0x560] sm:$0xff] %v675
                %v677 = vld [vmem:[%s329 + $0xa68] sm:$0xff]
                %678 = vst [vmem:[%s330 + $0x568] sm:$0xff] %v677
                %v679 = vld [vmem:[%s329 + $0xa70] sm:$0xff]
                %680 = vst [vmem:[%s330 + $0x570] sm:$0xff] %v679
                %v681 = vld [vmem:[%s329 + $0xa78] sm:$0xff]
                %682 = vst [vmem:[%s330 + $0x578] sm:$0xff] %v681
                %v683 = vld [vmem:[%s329 + $0xa80] sm:$0xff]
                %684 = vst [vmem:[%s330 + $0x580] sm:$0xff] %v683
                %v685 = vld [vmem:[%s329 + $0xa88] sm:$0xff]
                %686 = vst [vmem:[%s330 + $0x588] sm:$0xff] %v685
                %v687 = vld [vmem:[%s329 + $0xa90] sm:$0xff]
                %688 = vst [vmem:[%s330 + $0x590] sm:$0xff] %v687
                %v689 = vld [vmem:[%s329 + $0xa98] sm:$0xff]
                %690 = vst [vmem:[%s330 + $0x598] sm:$0xff] %v689
                %v691 = vld [vmem:[%s329 + $0xaa0] sm:$0xff]
                %692 = vst [vmem:[%s330 + $0x5a0] sm:$0xff] %v691
                %v693 = vld [vmem:[%s329 + $0xaa8] sm:$0xff]
                %694 = vst [vmem:[%s330 + $0x5a8] sm:$0xff] %v693
                %v695 = vld [vmem:[%s329 + $0xab0] sm:$0xff]
                %696 = vst [vmem:[%s330 + $0x5b0] sm:$0xff] %v695
                %v697 = vld [vmem:[%s329 + $0xab8] sm:$0xff]
                %698 = vst [vmem:[%s330 + $0x5b8] sm:$0xff] %v697
                %v699 = vld [vmem:[%s329 + $0xac0] sm:$0xff]
                %700 = vst [vmem:[%s330 + $0x5c0] sm:$0xff] %v699
                %v701 = vld [vmem:[%s329 + $0xac8] sm:$0xff]
                %702 = vst [vmem:[%s330 + $0x5c8] sm:$0xff] %v701
                %v703 = vld [vmem:[%s329 + $0xad0] sm:$0xff]
                %704 = vst [vmem:[%s330 + $0x5d0] sm:$0xff] %v703
                %v705 = vld [vmem:[%s329 + $0xad8] sm:$0xff]
                %706 = vst [vmem:[%s330 + $0x5d8] sm:$0xff] %v705
                %v707 = vld [vmem:[%s329 + $0xae0] sm:$0xff]
                %708 = vst [vmem:[%s330 + $0x5e0] sm:$0xff] %v707
                %v709 = vld [vmem:[%s329 + $0xae8] sm:$0xff]
                %710 = vst [vmem:[%s330 + $0x5e8] sm:$0xff] %v709
                %v711 = vld [vmem:[%s329 + $0xaf0] sm:$0xff]
                %712 = vst [vmem:[%s330 + $0x5f0] sm:$0xff] %v711
                %v713 = vld [vmem:[%s329 + $0xaf8] sm:$0xff]
                %714 = vst [vmem:[%s330 + $0x5f8] sm:$0xff] %v713
                %v715 = vld [vmem:[%s329 + $0xb00] sm:$0xff]
                %716 = vst [vmem:[%s330 + $0x600] sm:$0xff] %v715
                %v717 = vld [vmem:[%s329 + $0xb08] sm:$0xff]
                %718 = vst [vmem:[%s330 + $0x608] sm:$0xff] %v717
                %v719 = vld [vmem:[%s329 + $0xb10] sm:$0xff]
                %720 = vst [vmem:[%s330 + $0x610] sm:$0xff] %v719
                %v721 = vld [vmem:[%s329 + $0xb18] sm:$0xff]
                %722 = vst [vmem:[%s330 + $0x618] sm:$0xff] %v721
                %v723 = vld [vmem:[%s329 + $0xb20] sm:$0xff]
                %724 = vst [vmem:[%s330 + $0x620] sm:$0xff] %v723
                %v725 = vld [vmem:[%s329 + $0xb28] sm:$0xff]
                %726 = vst [vmem:[%s330 + $0x628] sm:$0xff] %v725
                %v727 = vld [vmem:[%s329 + $0xb30] sm:$0xff]
                %728 = vst [vmem:[%s330 + $0x630] sm:$0xff] %v727
                %v729 = vld [vmem:[%s329 + $0xb38] sm:$0xff]
                %730 = vst [vmem:[%s330 + $0x638] sm:$0xff] %v729
                %v731 = vld [vmem:[%s329 + $0xc80] sm:$0xff]
                %732 = vst [vmem:[%s330 + $0x640] sm:$0xff] %v731
                %v733 = vld [vmem:[%s329 + $0xc88] sm:$0xff]
                %734 = vst [vmem:[%s330 + $0x648] sm:$0xff] %v733
                %v735 = vld [vmem:[%s329 + $0xc90] sm:$0xff]
                %736 = vst [vmem:[%s330 + $0x650] sm:$0xff] %v735
                %v737 = vld [vmem:[%s329 + $0xc98] sm:$0xff]
                %738 = vst [vmem:[%s330 + $0x658] sm:$0xff] %v737
                %v739 = vld [vmem:[%s329 + $0xca0] sm:$0xff]
                %740 = vst [vmem:[%s330 + $0x660] sm:$0xff] %v739
                %v741 = vld [vmem:[%s329 + $0xca8] sm:$0xff]
                %742 = vst [vmem:[%s330 + $0x668] sm:$0xff] %v741
                %v743 = vld [vmem:[%s329 + $0xcb0] sm:$0xff]
                %744 = vst [vmem:[%s330 + $0x670] sm:$0xff] %v743
                %v745 = vld [vmem:[%s329 + $0xcb8] sm:$0xff]
                %746 = vst [vmem:[%s330 + $0x678] sm:$0xff] %v745
                %v747 = vld [vmem:[%s329 + $0xcc0] sm:$0xff]
                %748 = vst [vmem:[%s330 + $0x680] sm:$0xff] %v747
                %v749 = vld [vmem:[%s329 + $0xcc8] sm:$0xff]
                %750 = vst [vmem:[%s330 + $0x688] sm:$0xff] %v749
                %v751 = vld [vmem:[%s329 + $0xcd0] sm:$0xff]
                %752 = vst [vmem:[%s330 + $0x690] sm:$0xff] %v751
                %v753 = vld [vmem:[%s329 + $0xcd8] sm:$0xff]
                %754 = vst [vmem:[%s330 + $0x698] sm:$0xff] %v753
                %v755 = vld [vmem:[%s329 + $0xce0] sm:$0xff]
                %756 = vst [vmem:[%s330 + $0x6a0] sm:$0xff] %v755
                %v757 = vld [vmem:[%s329 + $0xce8] sm:$0xff]
                %758 = vst [vmem:[%s330 + $0x6a8] sm:$0xff] %v757
                %v759 = vld [vmem:[%s329 + $0xcf0] sm:$0xff]
                %760 = vst [vmem:[%s330 + $0x6b0] sm:$0xff] %v759
                %v761 = vld [vmem:[%s329 + $0xcf8] sm:$0xff]
                %762 = vst [vmem:[%s330 + $0x6b8] sm:$0xff] %v761
                %v763 = vld [vmem:[%s329 + $0xd00] sm:$0xff]
                %764 = vst [vmem:[%s330 + $0x6c0] sm:$0xff] %v763
                %v765 = vld [vmem:[%s329 + $0xd08] sm:$0xff]
                %766 = vst [vmem:[%s330 + $0x6c8] sm:$0xff] %v765
                %v767 = vld [vmem:[%s329 + $0xd10] sm:$0xff]
                %768 = vst [vmem:[%s330 + $0x6d0] sm:$0xff] %v767
                %v769 = vld [vmem:[%s329 + $0xd18] sm:$0xff]
                %770 = vst [vmem:[%s330 + $0x6d8] sm:$0xff] %v769
                %v771 = vld [vmem:[%s329 + $0xd20] sm:$0xff]
                %772 = vst [vmem:[%s330 + $0x6e0] sm:$0xff] %v771
                %v773 = vld [vmem:[%s329 + $0xd28] sm:$0xff]
                %774 = vst [vmem:[%s330 + $0x6e8] sm:$0xff] %v773
                %v775 = vld [vmem:[%s329 + $0xd30] sm:$0xff]
                %776 = vst [vmem:[%s330 + $0x6f0] sm:$0xff] %v775
                %v777 = vld [vmem:[%s329 + $0xd38] sm:$0xff]
                %778 = vst [vmem:[%s330 + $0x6f8] sm:$0xff] %v777
                %v779 = vld [vmem:[%s329 + $0xd40] sm:$0xff]
                %780 = vst [vmem:[%s330 + $0x700] sm:$0xff] %v779
                %v781 = vld [vmem:[%s329 + $0xd48] sm:$0xff]
                %782 = vst [vmem:[%s330 + $0x708] sm:$0xff] %v781
                %v783 = vld [vmem:[%s329 + $0xd50] sm:$0xff]
                %784 = vst [vmem:[%s330 + $0x710] sm:$0xff] %v783
                %v785 = vld [vmem:[%s329 + $0xd58] sm:$0xff]
                %786 = vst [vmem:[%s330 + $0x718] sm:$0xff] %v785
                %v787 = vld [vmem:[%s329 + $0xd60] sm:$0xff]
                %788 = vst [vmem:[%s330 + $0x720] sm:$0xff] %v787
                %v789 = vld [vmem:[%s329 + $0xd68] sm:$0xff]
                %790 = vst [vmem:[%s330 + $0x728] sm:$0xff] %v789
                %v791 = vld [vmem:[%s329 + $0xd70] sm:$0xff]
                %792 = vst [vmem:[%s330 + $0x730] sm:$0xff] %v791
                %v793 = vld [vmem:[%s329 + $0xd78] sm:$0xff]
                %794 = vst [vmem:[%s330 + $0x738] sm:$0xff] %v793
                %v795 = vld [vmem:[%s329 + $0xd80] sm:$0xff]
                %796 = vst [vmem:[%s330 + $0x740] sm:$0xff] %v795
                %v797 = vld [vmem:[%s329 + $0xd88] sm:$0xff]
                %798 = vst [vmem:[%s330 + $0x748] sm:$0xff] %v797
                %v799 = vld [vmem:[%s329 + $0xd90] sm:$0xff]
                %800 = vst [vmem:[%s330 + $0x750] sm:$0xff] %v799
                %v801 = vld [vmem:[%s329 + $0xd98] sm:$0xff]
                %802 = vst [vmem:[%s330 + $0x758] sm:$0xff] %v801
                %v803 = vld [vmem:[%s329 + $0xda0] sm:$0xff]
                %804 = vst [vmem:[%s330 + $0x760] sm:$0xff] %v803
                %v805 = vld [vmem:[%s329 + $0xda8] sm:$0xff]
                %806 = vst [vmem:[%s330 + $0x768] sm:$0xff] %v805
                %v807 = vld [vmem:[%s329 + $0xdb0] sm:$0xff]
                %808 = vst [vmem:[%s330 + $0x770] sm:$0xff] %v807
                %v809 = vld [vmem:[%s329 + $0xdb8] sm:$0xff]
                %810 = vst [vmem:[%s330 + $0x778] sm:$0xff] %v809
                %v811 = vld [vmem:[%s329 + $0xf00] sm:$0xff]
                %812 = vst [vmem:[%s330 + $0x780] sm:$0xff] %v811
                %v813 = vld [vmem:[%s329 + $0xf08] sm:$0xff]
                %814 = vst [vmem:[%s330 + $0x788] sm:$0xff] %v813
                %v815 = vld [vmem:[%s329 + $0xf10] sm:$0xff]
                %816 = vst [vmem:[%s330 + $0x790] sm:$0xff] %v815
                %v817 = vld [vmem:[%s329 + $0xf18] sm:$0xff]
                %818 = vst [vmem:[%s330 + $0x798] sm:$0xff] %v817
                %v819 = vld [vmem:[%s329 + $0xf20] sm:$0xff]
                %820 = vst [vmem:[%s330 + $0x7a0] sm:$0xff] %v819
                %v821 = vld [vmem:[%s329 + $0xf28] sm:$0xff]
                %822 = vst [vmem:[%s330 + $0x7a8] sm:$0xff] %v821
                %v823 = vld [vmem:[%s329 + $0xf30] sm:$0xff]
                %824 = vst [vmem:[%s330 + $0x7b0] sm:$0xff] %v823
                %v825 = vld [vmem:[%s329 + $0xf38] sm:$0xff]
                %826 = vst [vmem:[%s330 + $0x7b8] sm:$0xff] %v825
                %v827 = vld [vmem:[%s329 + $0xf40] sm:$0xff]
                %828 = vst [vmem:[%s330 + $0x7c0] sm:$0xff] %v827
                %v829 = vld [vmem:[%s329 + $0xf48] sm:$0xff]
                %830 = vst [vmem:[%s330 + $0x7c8] sm:$0xff] %v829
                %v831 = vld [vmem:[%s329 + $0xf50] sm:$0xff]
                %832 = vst [vmem:[%s330 + $0x7d0] sm:$0xff] %v831
                %v833 = vld [vmem:[%s329 + $0xf58] sm:$0xff]
                %834 = vst [vmem:[%s330 + $0x7d8] sm:$0xff] %v833
                %v835 = vld [vmem:[%s329 + $0xf60] sm:$0xff]
                %836 = vst [vmem:[%s330 + $0x7e0] sm:$0xff] %v835
                %v837 = vld [vmem:[%s329 + $0xf68] sm:$0xff]
                %838 = vst [vmem:[%s330 + $0x7e8] sm:$0xff] %v837
                %v839 = vld [vmem:[%s329 + $0xf70] sm:$0xff]
                %840 = vst [vmem:[%s330 + $0x7f0] sm:$0xff] %v839
                %v841 = vld [vmem:[%s329 + $0xf78] sm:$0xff]
                %842 = vst [vmem:[%s330 + $0x7f8] sm:$0xff] %v841
                %v843 = vld [vmem:[%s329 + $0xf80] sm:$0xff]
                %844 = vst [vmem:[%s330 + $0x800] sm:$0xff] %v843
                %v845 = vld [vmem:[%s329 + $0xf88] sm:$0xff]
                %846 = vst [vmem:[%s330 + $0x808] sm:$0xff] %v845
                %v847 = vld [vmem:[%s329 + $0xf90] sm:$0xff]
                %848 = vst [vmem:[%s330 + $0x810] sm:$0xff] %v847
                %v849 = vld [vmem:[%s329 + $0xf98] sm:$0xff]
                %850 = vst [vmem:[%s330 + $0x818] sm:$0xff] %v849
                %v851 = vld [vmem:[%s329 + $0xfa0] sm:$0xff]
                %852 = vst [vmem:[%s330 + $0x820] sm:$0xff] %v851
                %v853 = vld [vmem:[%s329 + $0xfa8] sm:$0xff]
                %854 = vst [vmem:[%s330 + $0x828] sm:$0xff] %v853
                %v855 = vld [vmem:[%s329 + $0xfb0] sm:$0xff]
                %856 = vst [vmem:[%s330 + $0x830] sm:$0xff] %v855
                %v857 = vld [vmem:[%s329 + $0xfb8] sm:$0xff]
                %858 = vst [vmem:[%s330 + $0x838] sm:$0xff] %v857
                %v859 = vld [vmem:[%s329 + $0xfc0] sm:$0xff]
                %860 = vst [vmem:[%s330 + $0x840] sm:$0xff] %v859
                %v861 = vld [vmem:[%s329 + $0xfc8] sm:$0xff]
                %862 = vst [vmem:[%s330 + $0x848] sm:$0xff] %v861
                %v863 = vld [vmem:[%s329 + $0xfd0] sm:$0xff]
                %864 = vst [vmem:[%s330 + $0x850] sm:$0xff] %v863
                %v865 = vld [vmem:[%s329 + $0xfd8] sm:$0xff]
                %866 = vst [vmem:[%s330 + $0x858] sm:$0xff] %v865
                %v867 = vld [vmem:[%s329 + $0xfe0] sm:$0xff]
                %868 = vst [vmem:[%s330 + $0x860] sm:$0xff] %v867
                %v869 = vld [vmem:[%s329 + $0xfe8] sm:$0xff]
                %870 = vst [vmem:[%s330 + $0x868] sm:$0xff] %v869
                %v871 = vld [vmem:[%s329 + $0xff0] sm:$0xff]
                %872 = vst [vmem:[%s330 + $0x870] sm:$0xff] %v871
                %v873 = vld [vmem:[%s329 + $0xff8] sm:$0xff]
                %874 = vst [vmem:[%s330 + $0x878] sm:$0xff] %v873
                %v875 = vld [vmem:[%s329 + $0x1000] sm:$0xff]
                %876 = vst [vmem:[%s330 + $0x880] sm:$0xff] %v875
                %v877 = vld [vmem:[%s329 + $0x1008] sm:$0xff]
                %878 = vst [vmem:[%s330 + $0x888] sm:$0xff] %v877
                %v879 = vld [vmem:[%s329 + $0x1010] sm:$0xff]
                %880 = vst [vmem:[%s330 + $0x890] sm:$0xff] %v879
                %v881 = vld [vmem:[%s329 + $0x1018] sm:$0xff]
                %882 = vst [vmem:[%s330 + $0x898] sm:$0xff] %v881
                %v883 = vld [vmem:[%s329 + $0x1020] sm:$0xff]
                %884 = vst [vmem:[%s330 + $0x8a0] sm:$0xff] %v883
                %v885 = vld [vmem:[%s329 + $0x1028] sm:$0xff]
                %886 = vst [vmem:[%s330 + $0x8a8] sm:$0xff] %v885
                %v887 = vld [vmem:[%s329 + $0x1030] sm:$0xff]
                %888 = vst [vmem:[%s330 + $0x8b0] sm:$0xff] %v887
                %v889 = vld [vmem:[%s329 + $0x1038] sm:$0xff]
                %890 = vst [vmem:[%s330 + $0x8b8] sm:$0xff] %v889
                %v891 = vld [vmem:[%s329 + $0x1180] sm:$0xff]
                %892 = vst [vmem:[%s330 + $0x8c0] sm:$0xff] %v891
                %v893 = vld [vmem:[%s329 + $0x1188] sm:$0xff]
                %894 = vst [vmem:[%s330 + $0x8c8] sm:$0xff] %v893
                %v895 = vld [vmem:[%s329 + $0x1190] sm:$0xff]
                %896 = vst [vmem:[%s330 + $0x8d0] sm:$0xff] %v895
                %v897 = vld [vmem:[%s329 + $0x1198] sm:$0xff]
                %898 = vst [vmem:[%s330 + $0x8d8] sm:$0xff] %v897
                %v899 = vld [vmem:[%s329 + $0x11a0] sm:$0xff]
                %900 = vst [vmem:[%s330 + $0x8e0] sm:$0xff] %v899
                %v901 = vld [vmem:[%s329 + $0x11a8] sm:$0xff]
                %902 = vst [vmem:[%s330 + $0x8e8] sm:$0xff] %v901
                %v903 = vld [vmem:[%s329 + $0x11b0] sm:$0xff]
                %904 = vst [vmem:[%s330 + $0x8f0] sm:$0xff] %v903
                %v905 = vld [vmem:[%s329 + $0x11b8] sm:$0xff]
                %906 = vst [vmem:[%s330 + $0x8f8] sm:$0xff] %v905
                %v907 = vld [vmem:[%s329 + $0x11c0] sm:$0xff]
                %908 = vst [vmem:[%s330 + $0x900] sm:$0xff] %v907
                %v909 = vld [vmem:[%s329 + $0x11c8] sm:$0xff]
                %910 = vst [vmem:[%s330 + $0x908] sm:$0xff] %v909
                %v911 = vld [vmem:[%s329 + $0x11d0] sm:$0xff]
                %912 = vst [vmem:[%s330 + $0x910] sm:$0xff] %v911
                %v913 = vld [vmem:[%s329 + $0x11d8] sm:$0xff]
                %914 = vst [vmem:[%s330 + $0x918] sm:$0xff] %v913
                %v915 = vld [vmem:[%s329 + $0x11e0] sm:$0xff]
                %916 = vst [vmem:[%s330 + $0x920] sm:$0xff] %v915
                %v917 = vld [vmem:[%s329 + $0x11e8] sm:$0xff]
                %918 = vst [vmem:[%s330 + $0x928] sm:$0xff] %v917
                %v919 = vld [vmem:[%s329 + $0x11f0] sm:$0xff]
                %920 = vst [vmem:[%s330 + $0x930] sm:$0xff] %v919
                %v921 = vld [vmem:[%s329 + $0x11f8] sm:$0xff]
                %922 = vst [vmem:[%s330 + $0x938] sm:$0xff] %v921
                %v923 = vld [vmem:[%s329 + $0x1200] sm:$0xff]
                %924 = vst [vmem:[%s330 + $0x940] sm:$0xff] %v923
                %v925 = vld [vmem:[%s329 + $0x1208] sm:$0xff]
                %926 = vst [vmem:[%s330 + $0x948] sm:$0xff] %v925
                %v927 = vld [vmem:[%s329 + $0x1210] sm:$0xff]
                %928 = vst [vmem:[%s330 + $0x950] sm:$0xff] %v927
                %v929 = vld [vmem:[%s329 + $0x1218] sm:$0xff]
                %930 = vst [vmem:[%s330 + $0x958] sm:$0xff] %v929
                %v931 = vld [vmem:[%s329 + $0x1220] sm:$0xff]
                %932 = vst [vmem:[%s330 + $0x960] sm:$0xff] %v931
                %v933 = vld [vmem:[%s329 + $0x1228] sm:$0xff]
                %934 = vst [vmem:[%s330 + $0x968] sm:$0xff] %v933
                %v935 = vld [vmem:[%s329 + $0x1230] sm:$0xff]
                %936 = vst [vmem:[%s330 + $0x970] sm:$0xff] %v935
                %v937 = vld [vmem:[%s329 + $0x1238] sm:$0xff]
                %938 = vst [vmem:[%s330 + $0x978] sm:$0xff] %v937
                %v939 = vld [vmem:[%s329 + $0x1240] sm:$0xff]
                %940 = vst [vmem:[%s330 + $0x980] sm:$0xff] %v939
                %v941 = vld [vmem:[%s329 + $0x1248] sm:$0xff]
                %942 = vst [vmem:[%s330 + $0x988] sm:$0xff] %v941
                %v943 = vld [vmem:[%s329 + $0x1250] sm:$0xff]
                %944 = vst [vmem:[%s330 + $0x990] sm:$0xff] %v943
                %v945 = vld [vmem:[%s329 + $0x1258] sm:$0xff]
                %946 = vst [vmem:[%s330 + $0x998] sm:$0xff] %v945
                %v947 = vld [vmem:[%s329 + $0x1260] sm:$0xff]
                %948 = vst [vmem:[%s330 + $0x9a0] sm:$0xff] %v947
                %v949 = vld [vmem:[%s329 + $0x1268] sm:$0xff]
                %950 = vst [vmem:[%s330 + $0x9a8] sm:$0xff] %v949
                %v951 = vld [vmem:[%s329 + $0x1270] sm:$0xff]
                %952 = vst [vmem:[%s330 + $0x9b0] sm:$0xff] %v951
                %v953 = vld [vmem:[%s329 + $0x1278] sm:$0xff]
                %954 = vst [vmem:[%s330 + $0x9b8] sm:$0xff] %v953
                %v955 = vld [vmem:[%s329 + $0x1280] sm:$0xff]
                %956 = vst [vmem:[%s330 + $0x9c0] sm:$0xff] %v955
                %v957 = vld [vmem:[%s329 + $0x1288] sm:$0xff]
                %958 = vst [vmem:[%s330 + $0x9c8] sm:$0xff] %v957
                %v959 = vld [vmem:[%s329 + $0x1290] sm:$0xff]
                %960 = vst [vmem:[%s330 + $0x9d0] sm:$0xff] %v959
                %v961 = vld [vmem:[%s329 + $0x1298] sm:$0xff]
                %962 = vst [vmem:[%s330 + $0x9d8] sm:$0xff] %v961
                %v963 = vld [vmem:[%s329 + $0x12a0] sm:$0xff]
                %964 = vst [vmem:[%s330 + $0x9e0] sm:$0xff] %v963
                %v965 = vld [vmem:[%s329 + $0x12a8] sm:$0xff]
                %966 = vst [vmem:[%s330 + $0x9e8] sm:$0xff] %v965
                %v967 = vld [vmem:[%s329 + $0x12b0] sm:$0xff]
                %968 = vst [vmem:[%s330 + $0x9f0] sm:$0xff] %v967
                %v969 = vld [vmem:[%s329 + $0x12b8] sm:$0xff]
                %970 = vst [vmem:[%s330 + $0x9f8] sm:$0xff] %v969
                %v971 = vld [vmem:[%s329 + $0x1400] sm:$0xff]
                %972 = vst [vmem:[%s330 + $0xa00] sm:$0xff] %v971
                %v973 = vld [vmem:[%s329 + $0x1408] sm:$0xff]
                %974 = vst [vmem:[%s330 + $0xa08] sm:$0xff] %v973
                %v975 = vld [vmem:[%s329 + $0x1410] sm:$0xff]
                %976 = vst [vmem:[%s330 + $0xa10] sm:$0xff] %v975
                %v977 = vld [vmem:[%s329 + $0x1418] sm:$0xff]
                %978 = vst [vmem:[%s330 + $0xa18] sm:$0xff] %v977
                %v979 = vld [vmem:[%s329 + $0x1420] sm:$0xff]
                %980 = vst [vmem:[%s330 + $0xa20] sm:$0xff] %v979
                %v981 = vld [vmem:[%s329 + $0x1428] sm:$0xff]
                %982 = vst [vmem:[%s330 + $0xa28] sm:$0xff] %v981
                %v983 = vld [vmem:[%s329 + $0x1430] sm:$0xff]
                %984 = vst [vmem:[%s330 + $0xa30] sm:$0xff] %v983
                %v985 = vld [vmem:[%s329 + $0x1438] sm:$0xff]
                %986 = vst [vmem:[%s330 + $0xa38] sm:$0xff] %v985
                %v987 = vld [vmem:[%s329 + $0x1440] sm:$0xff]
                %988 = vst [vmem:[%s330 + $0xa40] sm:$0xff] %v987
                %v989 = vld [vmem:[%s329 + $0x1448] sm:$0xff]
                %990 = vst [vmem:[%s330 + $0xa48] sm:$0xff] %v989
                %v991 = vld [vmem:[%s329 + $0x1450] sm:$0xff]
                %992 = vst [vmem:[%s330 + $0xa50] sm:$0xff] %v991
                %v993 = vld [vmem:[%s329 + $0x1458] sm:$0xff]
                %994 = vst [vmem:[%s330 + $0xa58] sm:$0xff] %v993
                %v995 = vld [vmem:[%s329 + $0x1460] sm:$0xff]
                %996 = vst [vmem:[%s330 + $0xa60] sm:$0xff] %v995
                %v997 = vld [vmem:[%s329 + $0x1468] sm:$0xff]
                %998 = vst [vmem:[%s330 + $0xa68] sm:$0xff] %v997
                %v999 = vld [vmem:[%s329 + $0x1470] sm:$0xff]
                %1000 = vst [vmem:[%s330 + $0xa70] sm:$0xff] %v999
                %v1001 = vld [vmem:[%s329 + $0x1478] sm:$0xff]
                %1002 = vst [vmem:[%s330 + $0xa78] sm:$0xff] %v1001
                %v1003 = vld [vmem:[%s329 + $0x1480] sm:$0xff]
                %1004 = vst [vmem:[%s330 + $0xa80] sm:$0xff] %v1003
                %v1005 = vld [vmem:[%s329 + $0x1488] sm:$0xff]
                %1006 = vst [vmem:[%s330 + $0xa88] sm:$0xff] %v1005
                %v1007 = vld [vmem:[%s329 + $0x1490] sm:$0xff]
                %1008 = vst [vmem:[%s330 + $0xa90] sm:$0xff] %v1007
                %v1009 = vld [vmem:[%s329 + $0x1498] sm:$0xff]
                %1010 = vst [vmem:[%s330 + $0xa98] sm:$0xff] %v1009
                %v1011 = vld [vmem:[%s329 + $0x14a0] sm:$0xff]
                %1012 = vst [vmem:[%s330 + $0xaa0] sm:$0xff] %v1011
                %v1013 = vld [vmem:[%s329 + $0x14a8] sm:$0xff]
                %1014 = vst [vmem:[%s330 + $0xaa8] sm:$0xff] %v1013
                %v1015 = vld [vmem:[%s329 + $0x14b0] sm:$0xff]
                %1016 = vst [vmem:[%s330 + $0xab0] sm:$0xff] %v1015
                %v1017 = vld [vmem:[%s329 + $0x14b8] sm:$0xff]
                %1018 = vst [vmem:[%s330 + $0xab8] sm:$0xff] %v1017
                %v1019 = vld [vmem:[%s329 + $0x14c0] sm:$0xff]
                %1020 = vst [vmem:[%s330 + $0xac0] sm:$0xff] %v1019
                %v1021 = vld [vmem:[%s329 + $0x14c8] sm:$0xff]
                %1022 = vst [vmem:[%s330 + $0xac8] sm:$0xff] %v1021
                %v1023 = vld [vmem:[%s329 + $0x14d0] sm:$0xff]
                %1024 = vst [vmem:[%s330 + $0xad0] sm:$0xff] %v1023
                %v1025 = vld [vmem:[%s329 + $0x14d8] sm:$0xff]
                %1026 = vst [vmem:[%s330 + $0xad8] sm:$0xff] %v1025
                %v1027 = vld [vmem:[%s329 + $0x14e0] sm:$0xff]
                %1028 = vst [vmem:[%s330 + $0xae0] sm:$0xff] %v1027
                %v1029 = vld [vmem:[%s329 + $0x14e8] sm:$0xff]
                %1030 = vst [vmem:[%s330 + $0xae8] sm:$0xff] %v1029
                %v1031 = vld [vmem:[%s329 + $0x14f0] sm:$0xff]
                %1032 = vst [vmem:[%s330 + $0xaf0] sm:$0xff] %v1031
                %v1033 = vld [vmem:[%s329 + $0x14f8] sm:$0xff]
                %1034 = vst [vmem:[%s330 + $0xaf8] sm:$0xff] %v1033
                %v1035 = vld [vmem:[%s329 + $0x1500] sm:$0xff]
                %1036 = vst [vmem:[%s330 + $0xb00] sm:$0xff] %v1035
                %v1037 = vld [vmem:[%s329 + $0x1508] sm:$0xff]
                %1038 = vst [vmem:[%s330 + $0xb08] sm:$0xff] %v1037
                %v1039 = vld [vmem:[%s329 + $0x1510] sm:$0xff]
                %1040 = vst [vmem:[%s330 + $0xb10] sm:$0xff] %v1039
                %v1041 = vld [vmem:[%s329 + $0x1518] sm:$0xff]
                %1042 = vst [vmem:[%s330 + $0xb18] sm:$0xff] %v1041
                %v1043 = vld [vmem:[%s329 + $0x1520] sm:$0xff]
                %1044 = vst [vmem:[%s330 + $0xb20] sm:$0xff] %v1043
                %v1045 = vld [vmem:[%s329 + $0x1528] sm:$0xff]
                %1046 = vst [vmem:[%s330 + $0xb28] sm:$0xff] %v1045
                %v1047 = vld [vmem:[%s329 + $0x1530] sm:$0xff]
                %1048 = vst [vmem:[%s330 + $0xb30] sm:$0xff] %v1047
                %v1049 = vld [vmem:[%s329 + $0x1538] sm:$0xff]
                %1050 = vst [vmem:[%s330 + $0xb38] sm:$0xff] %v1049
              $region73: #{_forward_padded.1} parent=67 // loop_footer
                %s328 = sadd.s32 1, %s324
              $region74: #{_forward_padded.1} parent=67 // loop_footer_branch
                %323 = sbr.rel target = $region70
              $region75: #{_forward_padded.1} parent=67 // loop_exit
                _
            $region68: #{_forward_padded.1} parent=59 // pred_fallthru
              _
          $region60: #{_forward_padded.1} parent=55 // pred_fallthru
            _
          %1783 = vnop
        $region56: #{_forward_padded.1} parent=51 // pred_fallthru
          _
      $region52: #{_forward_padded.1} parent=5 // pred_fallthru
        _
      %p1784 = scmp.le.s32.totalorder 1, %s19
      %p1785 = scmp.lt.s32.totalorder %s19, 3
      %p1786 = pnand %p1784, %p1785
      %p1787 = pneg %p1786
      // Predicated region
      $region91: #{_forward_padded.1} parent=5 // pred_check
        _
      $region92: #{_forward_padded.1} parent=5 // pred_check_branch
        %1789 = sbr.rel (%p1786) target = $region94
      $region93: #{_forward_padded.1} parent=5 // pred_region
        %s1790 = ssub.s32 %s19, 1
        %s1791 = sand.u32 %s32, 1
        %s1792 = sand.u32 %s32, 1
        %s1793 = smul.addr %s1792, 2880
        %s1794 = scalar_lea.vmem [#allocation2], %s1793
        // Predicated region
        $region95: #{_forward_padded.1} parent=93 // pred_check
          %p1795 = pneg %p45
        $region96: #{_forward_padded.1} parent=93 // pred_check_branch
          %1797 = sbr.rel (%p1795) target = $region98
        $region97: #{_forward_padded.1} parent=93 // pred_region
          _
        $region98: #{_forward_padded.1} parent=93 // pred_fallthru
          _
        %s1798 = sand.u32 %s32, 1
        %s1799 = sand.u32 %s32, 1
        %s1800 = smul.addr %s1799, 2880
        %s1801 = scalar_lea.vmem [#allocation2], %s1800
        %p1802 = pneg %p45
        %p1803 = pneg %p42
        %p1804 = pneg %p66
        %p1805 = pneg %p63
        %p1806 = pneg %p87
        %p1807 = pneg %p84
        %p1808 = pneg %p108
        %p1809 = pneg %p105
        %p1810 = pneg %p129
        %p1811 = pneg %p126
        %p1812 = pneg %p150
        %p1813 = pneg %p147
        %p1814 = pneg %p171
        %p1815 = pneg %p168
        %p1816 = pneg %p192
        %p1817 = pneg %p189
        %p1818 = pneg %p213
        %p1819 = pneg %p210
        %p1820 = pneg %p234
        %p1821 = pneg %p231
        %p1822 = pneg %p260
        %p1823 = pneg %p257
        %s1824 = sand.u32 %s247, 1
        %s1825 = scalar_lea.sflag [#allocation4], %s1824
        %s1826 = sand.u32 %s247, 1
        %s1827 = smul.addr %s1826, 8
        %s1828 = scalar_lea.vmem [#allocation3], %s1827
        %s1829 = smul.u32 40, %s24
        %v1830 = vld [vmem:[%s1794] sm:$0xff]
        %v1831 = vld [vmem:[%s1794 + $0x8] sm:$0xff]
        %v1832 = vld [vmem:[%s1794 + $0x10] sm:$0xff]
        %v1833 = vld [vmem:[%s1794 + $0x18] sm:$0xff]
        %v1834 = vld [vmem:[%s1794 + $0x20] sm:$0xff]
        %v1835 = vld [vmem:[%s1794 + $0x28] sm:$0xff]
        %v1836 = vld [vmem:[%s1794 + $0x30] sm:$0xff]
        %v1837 = vld [vmem:[%s1794 + $0x38] sm:$0xff]
        %v1838 = vld [vmem:[%s1794 + $0x40] sm:$0xff]
        %v1839 = vld [vmem:[%s1794 + $0x48] sm:$0xff]
        %v1840 = vld [vmem:[%s1794 + $0x50] sm:$0xff]
        %v1841 = vld [vmem:[%s1794 + $0x58] sm:$0xff]
        %v1842 = vld [vmem:[%s1794 + $0x60] sm:$0xff]
        %v1843 = vld [vmem:[%s1794 + $0x68] sm:$0xff]
        %v1844 = vld [vmem:[%s1794 + $0x70] sm:$0xff]
        %v1845 = vld [vmem:[%s1794 + $0x78] sm:$0xff]
        %v1846 = vld [vmem:[%s1794 + $0x80] sm:$0xff]
        %v1847 = vld [vmem:[%s1794 + $0x88] sm:$0xff]
        %v1848 = vld [vmem:[%s1794 + $0x90] sm:$0xff]
        %v1849 = vld [vmem:[%s1794 + $0x98] sm:$0xff]
        %v1850 = vld [vmem:[%s1794 + $0xa0] sm:$0xff]
        %v1851 = vld [vmem:[%s1794 + $0xa8] sm:$0xff]
        %v1852 = vld [vmem:[%s1794 + $0xb0] sm:$0xff]
        %v1853 = vld [vmem:[%s1794 + $0xb8] sm:$0xff]
        %v1854 = vld [vmem:[%s1794 + $0xc0] sm:$0xff]
        %v1855 = vld [vmem:[%s1794 + $0xc8] sm:$0xff]
        %v1856 = vld [vmem:[%s1794 + $0xd0] sm:$0xff]
        %v1857 = vld [vmem:[%s1794 + $0xd8] sm:$0xff]
        %v1858 = vld [vmem:[%s1794 + $0xe0] sm:$0xff]
        %v1859 = vld [vmem:[%s1794 + $0xe8] sm:$0xff]
        %v1860 = vld [vmem:[%s1794 + $0xf0] sm:$0xff]
        %v1861 = vld [vmem:[%s1794 + $0xf8] sm:$0xff]
        %v1862 = vld [vmem:[%s1794 + $0x100] sm:$0xff]
        %v1863 = vld [vmem:[%s1794 + $0x108] sm:$0xff]
        %v1864 = vld [vmem:[%s1794 + $0x110] sm:$0xff]
        %v1865 = vld [vmem:[%s1794 + $0x118] sm:$0xff]
        %v1866 = vld [vmem:[%s1794 + $0x120] sm:$0xff]
        %v1867 = vld [vmem:[%s1794 + $0x128] sm:$0xff]
        %v1868 = vld [vmem:[%s1794 + $0x130] sm:$0xff]
        %v1869 = vld [vmem:[%s1794 + $0x138] sm:$0xff]
        %v1870 = vld [vmem:[%s1794 + $0x140] sm:$0xff]
        %v1871 = vld [vmem:[%s1794 + $0x148] sm:$0xff]
        %v1872 = vld [vmem:[%s1794 + $0x150] sm:$0xff]
        %v1873 = vld [vmem:[%s1794 + $0x158] sm:$0xff]
        %v1874 = vld [vmem:[%s1794 + $0x160] sm:$0xff]
        %v1875 = vld [vmem:[%s1794 + $0x168] sm:$0xff]
        %v1876 = vld [vmem:[%s1794 + $0x170] sm:$0xff]
        %v1877 = vld [vmem:[%s1794 + $0x178] sm:$0xff]
        %v1878 = vld [vmem:[%s1794 + $0x180] sm:$0xff]
        %v1879 = vld [vmem:[%s1794 + $0x188] sm:$0xff]
        %v1880 = vld [vmem:[%s1794 + $0x190] sm:$0xff]
        %v1881 = vld [vmem:[%s1794 + $0x198] sm:$0xff]
        %v1882 = vld [vmem:[%s1794 + $0x1a0] sm:$0xff]
        %v1883 = vld [vmem:[%s1794 + $0x1a8] sm:$0xff]
        %v1884 = vld [vmem:[%s1794 + $0x1b0] sm:$0xff]
        %v1885 = vld [vmem:[%s1794 + $0x1b8] sm:$0xff]
        %v1886 = vld [vmem:[%s1794 + $0x1c0] sm:$0xff]
        %v1887 = vld [vmem:[%s1794 + $0x1c8] sm:$0xff]
        %v1888 = vld [vmem:[%s1794 + $0x1d0] sm:$0xff]
        %v1889 = vld [vmem:[%s1794 + $0x1d8] sm:$0xff]
        %v1890 = vld [vmem:[%s1794 + $0x1e0] sm:$0xff]
        %v1891 = vld [vmem:[%s1794 + $0x1e8] sm:$0xff]
        %v1892 = vld [vmem:[%s1794 + $0x1f0] sm:$0xff]
        %v1893 = vld [vmem:[%s1794 + $0x1f8] sm:$0xff]
        %v1894 = vld [vmem:[%s1794 + $0x200] sm:$0xff]
        %v1895 = vld [vmem:[%s1794 + $0x208] sm:$0xff]
        %v1896 = vld [vmem:[%s1794 + $0x210] sm:$0xff]
        %v1897 = vld [vmem:[%s1794 + $0x218] sm:$0xff]
        %v1898 = vld [vmem:[%s1794 + $0x220] sm:$0xff]
        %v1899 = vld [vmem:[%s1794 + $0x228] sm:$0xff]
        %v1900 = vld [vmem:[%s1794 + $0x230] sm:$0xff]
        %v1901 = vld [vmem:[%s1794 + $0x238] sm:$0xff]
        %v1902 = vld [vmem:[%s1794 + $0x240] sm:$0xff]
        %v1903 = vld [vmem:[%s1794 + $0x248] sm:$0xff]
        %v1904 = vld [vmem:[%s1794 + $0x250] sm:$0xff]
        %v1905 = vld [vmem:[%s1794 + $0x258] sm:$0xff]
        %v1906 = vld [vmem:[%s1794 + $0x260] sm:$0xff]
        %v1907 = vld [vmem:[%s1794 + $0x268] sm:$0xff]
        %v1908 = vld [vmem:[%s1794 + $0x270] sm:$0xff]
        %v1909 = vld [vmem:[%s1794 + $0x278] sm:$0xff]
        %v1910 = vld [vmem:[%s1794 + $0x280] sm:$0xff]
        %v1911 = vld [vmem:[%s1794 + $0x288] sm:$0xff]
        %v1912 = vld [vmem:[%s1794 + $0x290] sm:$0xff]
        %v1913 = vld [vmem:[%s1794 + $0x298] sm:$0xff]
        %v1914 = vld [vmem:[%s1794 + $0x2a0] sm:$0xff]
        %v1915 = vld [vmem:[%s1794 + $0x2a8] sm:$0xff]
        %v1916 = vld [vmem:[%s1794 + $0x2b0] sm:$0xff]
        %v1917 = vld [vmem:[%s1794 + $0x2b8] sm:$0xff]
        %v1918 = vld [vmem:[%s1794 + $0x2c0] sm:$0xff]
        %v1919 = vld [vmem:[%s1794 + $0x2c8] sm:$0xff]
        %v1920 = vld [vmem:[%s1794 + $0x2d0] sm:$0xff]
        %v1921 = vld [vmem:[%s1794 + $0x2d8] sm:$0xff]
        %v1922 = vld [vmem:[%s1794 + $0x2e0] sm:$0xff]
        %v1923 = vld [vmem:[%s1794 + $0x2e8] sm:$0xff]
        %v1924 = vld [vmem:[%s1794 + $0x2f0] sm:$0xff]
        %v1925 = vld [vmem:[%s1794 + $0x2f8] sm:$0xff]
        %v1926 = vld [vmem:[%s1794 + $0x300] sm:$0xff]
        %v1927 = vld [vmem:[%s1794 + $0x308] sm:$0xff]
        %v1928 = vld [vmem:[%s1794 + $0x310] sm:$0xff]
        %v1929 = vld [vmem:[%s1794 + $0x318] sm:$0xff]
        %v1930 = vld [vmem:[%s1794 + $0x320] sm:$0xff]
        %v1931 = vld [vmem:[%s1794 + $0x328] sm:$0xff]
        %v1932 = vld [vmem:[%s1794 + $0x330] sm:$0xff]
        %v1933 = vld [vmem:[%s1794 + $0x338] sm:$0xff]
        %v1934 = vld [vmem:[%s1794 + $0x340] sm:$0xff]
        %v1935 = vld [vmem:[%s1794 + $0x348] sm:$0xff]
        %v1936 = vld [vmem:[%s1794 + $0x350] sm:$0xff]
        %v1937 = vld [vmem:[%s1794 + $0x358] sm:$0xff]
        %v1938 = vld [vmem:[%s1794 + $0x360] sm:$0xff]
        %v1939 = vld [vmem:[%s1794 + $0x368] sm:$0xff]
        %v1940 = vld [vmem:[%s1794 + $0x370] sm:$0xff]
        %v1941 = vld [vmem:[%s1794 + $0x378] sm:$0xff]
        %v1942 = vld [vmem:[%s1794 + $0x380] sm:$0xff]
        %v1943 = vld [vmem:[%s1794 + $0x388] sm:$0xff]
        %v1944 = vld [vmem:[%s1794 + $0x390] sm:$0xff]
        %v1945 = vld [vmem:[%s1794 + $0x398] sm:$0xff]
        %v1946 = vld [vmem:[%s1794 + $0x3a0] sm:$0xff]
        %v1947 = vld [vmem:[%s1794 + $0x3a8] sm:$0xff]
        %v1948 = vld [vmem:[%s1794 + $0x3b0] sm:$0xff]
        %v1949 = vld [vmem:[%s1794 + $0x3b8] sm:$0xff]
        %v1950 = vld [vmem:[%s1794 + $0x3c0] sm:$0xff]
        %v1951 = vld [vmem:[%s1794 + $0x3c8] sm:$0xff]
        %v1952 = vld [vmem:[%s1794 + $0x3d0] sm:$0xff]
        %v1953 = vld [vmem:[%s1794 + $0x3d8] sm:$0xff]
        %v1954 = vld [vmem:[%s1794 + $0x3e0] sm:$0xff]
        %v1955 = vld [vmem:[%s1794 + $0x3e8] sm:$0xff]
        %v1956 = vld [vmem:[%s1794 + $0x3f0] sm:$0xff]
        %v1957 = vld [vmem:[%s1794 + $0x3f8] sm:$0xff]
        %v1958 = vld [vmem:[%s1794 + $0x400] sm:$0xff]
        %v1959 = vld [vmem:[%s1794 + $0x408] sm:$0xff]
        %v1960 = vld [vmem:[%s1794 + $0x410] sm:$0xff]
        %v1961 = vld [vmem:[%s1794 + $0x418] sm:$0xff]
        %v1962 = vld [vmem:[%s1794 + $0x420] sm:$0xff]
        %v1963 = vld [vmem:[%s1794 + $0x428] sm:$0xff]
        %v1964 = vld [vmem:[%s1794 + $0x430] sm:$0xff]
        %v1965 = vld [vmem:[%s1794 + $0x438] sm:$0xff]
        %v1966 = vld [vmem:[%s1794 + $0x440] sm:$0xff]
        %v1967 = vld [vmem:[%s1794 + $0x448] sm:$0xff]
        %v1968 = vld [vmem:[%s1794 + $0x450] sm:$0xff]
        %v1969 = vld [vmem:[%s1794 + $0x458] sm:$0xff]
        %v1970 = vld [vmem:[%s1794 + $0x460] sm:$0xff]
        %v1971 = vld [vmem:[%s1794 + $0x468] sm:$0xff]
        %v1972 = vld [vmem:[%s1794 + $0x470] sm:$0xff]
        %v1973 = vld [vmem:[%s1794 + $0x478] sm:$0xff]
        %v1974 = vld [vmem:[%s1794 + $0x480] sm:$0xff]
        %v1975 = vld [vmem:[%s1794 + $0x488] sm:$0xff]
        %v1976 = vld [vmem:[%s1794 + $0x490] sm:$0xff]
        %v1977 = vld [vmem:[%s1794 + $0x498] sm:$0xff]
        %v1978 = vld [vmem:[%s1794 + $0x4a0] sm:$0xff]
        %v1979 = vld [vmem:[%s1794 + $0x4a8] sm:$0xff]
        %v1980 = vld [vmem:[%s1794 + $0x4b0] sm:$0xff]
        %v1981 = vld [vmem:[%s1794 + $0x4b8] sm:$0xff]
        %v1982 = vld [vmem:[%s1794 + $0x4c0] sm:$0xff]
        %v1983 = vld [vmem:[%s1794 + $0x4c8] sm:$0xff]
        %v1984 = vld [vmem:[%s1794 + $0x4d0] sm:$0xff]
        %v1985 = vld [vmem:[%s1794 + $0x4d8] sm:$0xff]
        %v1986 = vld [vmem:[%s1794 + $0x4e0] sm:$0xff]
        %v1987 = vld [vmem:[%s1794 + $0x4e8] sm:$0xff]
        %v1988 = vld [vmem:[%s1794 + $0x4f0] sm:$0xff]
        %v1989 = vld [vmem:[%s1794 + $0x4f8] sm:$0xff]
        %v1990 = vld [vmem:[%s1794 + $0x500] sm:$0xff]
        %v1991 = vld [vmem:[%s1794 + $0x508] sm:$0xff]
        %v1992 = vld [vmem:[%s1794 + $0x510] sm:$0xff]
        %v1993 = vld [vmem:[%s1794 + $0x518] sm:$0xff]
        %v1994 = vld [vmem:[%s1794 + $0x520] sm:$0xff]
        %v1995 = vld [vmem:[%s1794 + $0x528] sm:$0xff]
        %v1996 = vld [vmem:[%s1794 + $0x530] sm:$0xff]
        %v1997 = vld [vmem:[%s1794 + $0x538] sm:$0xff]
        %v1998 = vld [vmem:[%s1794 + $0x540] sm:$0xff]
        %v1999 = vld [vmem:[%s1794 + $0x548] sm:$0xff]
        %v2000 = vld [vmem:[%s1794 + $0x550] sm:$0xff]
        %v2001 = vld [vmem:[%s1794 + $0x558] sm:$0xff]
        %v2002 = vld [vmem:[%s1794 + $0x560] sm:$0xff]
        %v2003 = vld [vmem:[%s1794 + $0x568] sm:$0xff]
        %v2004 = vld [vmem:[%s1794 + $0x570] sm:$0xff]
        %v2005 = vld [vmem:[%s1794 + $0x578] sm:$0xff]
        %v2006 = vld [vmem:[%s1794 + $0x580] sm:$0xff]
        %v2007 = vld [vmem:[%s1794 + $0x588] sm:$0xff]
        %v2008 = vld [vmem:[%s1794 + $0x590] sm:$0xff]
        %v2009 = vld [vmem:[%s1794 + $0x598] sm:$0xff]
        %v2010 = vld [vmem:[%s1794 + $0x5a0] sm:$0xff]
        %v2011 = vld [vmem:[%s1794 + $0x5a8] sm:$0xff]
        %v2012 = vld [vmem:[%s1794 + $0x5b0] sm:$0xff]
        %v2013 = vld [vmem:[%s1794 + $0x5b8] sm:$0xff]
        %v2014 = vld [vmem:[%s1794 + $0x5c0] sm:$0xff]
        %v2015 = vld [vmem:[%s1794 + $0x5c8] sm:$0xff]
        %v2016 = vld [vmem:[%s1794 + $0x5d0] sm:$0xff]
        %v2017 = vld [vmem:[%s1794 + $0x5d8] sm:$0xff]
        %v2018 = vld [vmem:[%s1794 + $0x5e0] sm:$0xff]
        %v2019 = vld [vmem:[%s1794 + $0x5e8] sm:$0xff]
        %v2020 = vld [vmem:[%s1794 + $0x5f0] sm:$0xff]
        %v2021 = vld [vmem:[%s1794 + $0x5f8] sm:$0xff]
        %v2022 = vld [vmem:[%s1794 + $0x600] sm:$0xff]
        %v2023 = vld [vmem:[%s1794 + $0x608] sm:$0xff]
        %v2024 = vld [vmem:[%s1794 + $0x610] sm:$0xff]
        %v2025 = vld [vmem:[%s1794 + $0x618] sm:$0xff]
        %v2026 = vld [vmem:[%s1794 + $0x620] sm:$0xff]
        %v2027 = vld [vmem:[%s1794 + $0x628] sm:$0xff]
        %v2028 = vld [vmem:[%s1794 + $0x630] sm:$0xff]
        %v2029 = vld [vmem:[%s1794 + $0x638] sm:$0xff]
        %v2030 = vld [vmem:[%s1794 + $0x640] sm:$0xff]
        %v2031 = vld [vmem:[%s1794 + $0x648] sm:$0xff]
        %v2032 = vld [vmem:[%s1794 + $0x650] sm:$0xff]
        %v2033 = vld [vmem:[%s1794 + $0x658] sm:$0xff]
        %v2034 = vld [vmem:[%s1794 + $0x660] sm:$0xff]
        %v2035 = vld [vmem:[%s1794 + $0x668] sm:$0xff]
        %v2036 = vld [vmem:[%s1794 + $0x670] sm:$0xff]
        %v2037 = vld [vmem:[%s1794 + $0x678] sm:$0xff]
        %v2038 = vld [vmem:[%s1794 + $0x680] sm:$0xff]
        %v2039 = vld [vmem:[%s1794 + $0x688] sm:$0xff]
        %v2040 = vld [vmem:[%s1794 + $0x690] sm:$0xff]
        %v2041 = vld [vmem:[%s1794 + $0x698] sm:$0xff]
        %v2042 = vld [vmem:[%s1794 + $0x6a0] sm:$0xff]
        %v2043 = vld [vmem:[%s1794 + $0x6a8] sm:$0xff]
        %v2044 = vld [vmem:[%s1794 + $0x6b0] sm:$0xff]
        %v2045 = vld [vmem:[%s1794 + $0x6b8] sm:$0xff]
        %v2046 = vld [vmem:[%s1794 + $0x6c0] sm:$0xff]
        %v2047 = vld [vmem:[%s1794 + $0x6c8] sm:$0xff]
        %v2048 = vld [vmem:[%s1794 + $0x6d0] sm:$0xff]
        %v2049 = vld [vmem:[%s1794 + $0x6d8] sm:$0xff]
        %v2050 = vld [vmem:[%s1794 + $0x6e0] sm:$0xff]
        %v2051 = vld [vmem:[%s1794 + $0x6e8] sm:$0xff]
        %v2052 = vld [vmem:[%s1794 + $0x6f0] sm:$0xff]
        %v2053 = vld [vmem:[%s1794 + $0x6f8] sm:$0xff]
        %v2054 = vld [vmem:[%s1794 + $0x700] sm:$0xff]
        %v2055 = vld [vmem:[%s1794 + $0x708] sm:$0xff]
        %v2056 = vld [vmem:[%s1794 + $0x710] sm:$0xff]
        %v2057 = vld [vmem:[%s1794 + $0x718] sm:$0xff]
        %v2058 = vld [vmem:[%s1794 + $0x720] sm:$0xff]
        %v2059 = vld [vmem:[%s1794 + $0x728] sm:$0xff]
        %v2060 = vld [vmem:[%s1794 + $0x730] sm:$0xff]
        %v2061 = vld [vmem:[%s1794 + $0x738] sm:$0xff]
        %v2062 = vld [vmem:[%s1794 + $0x740] sm:$0xff]
        %v2063 = vld [vmem:[%s1794 + $0x748] sm:$0xff]
        %v2064 = vld [vmem:[%s1794 + $0x750] sm:$0xff]
        %v2065 = vld [vmem:[%s1794 + $0x758] sm:$0xff]
        %v2066 = vld [vmem:[%s1794 + $0x760] sm:$0xff]
        %v2067 = vld [vmem:[%s1794 + $0x768] sm:$0xff]
        %v2068 = vld [vmem:[%s1794 + $0x770] sm:$0xff]
        %v2069 = vld [vmem:[%s1794 + $0x778] sm:$0xff]
        %v2070 = vld [vmem:[%s1794 + $0x780] sm:$0xff]
        %v2071 = vld [vmem:[%s1794 + $0x788] sm:$0xff]
        %v2072 = vld [vmem:[%s1794 + $0x790] sm:$0xff]
        %v2073 = vld [vmem:[%s1794 + $0x798] sm:$0xff]
        %v2074 = vld [vmem:[%s1794 + $0x7a0] sm:$0xff]
        %v2075 = vld [vmem:[%s1794 + $0x7a8] sm:$0xff]
        %v2076 = vld [vmem:[%s1794 + $0x7b0] sm:$0xff]
        %v2077 = vld [vmem:[%s1794 + $0x7b8] sm:$0xff]
        %v2078 = vld [vmem:[%s1794 + $0x7c0] sm:$0xff]
        %v2079 = vld [vmem:[%s1794 + $0x7c8] sm:$0xff]
        %v2080 = vld [vmem:[%s1794 + $0x7d0] sm:$0xff]
        %v2081 = vld [vmem:[%s1794 + $0x7d8] sm:$0xff]
        %v2082 = vld [vmem:[%s1794 + $0x7e0] sm:$0xff]
        %v2083 = vld [vmem:[%s1794 + $0x7e8] sm:$0xff]
        %v2084 = vld [vmem:[%s1794 + $0x7f0] sm:$0xff]
        %v2085 = vld [vmem:[%s1794 + $0x7f8] sm:$0xff]
        %v2086 = vld [vmem:[%s1794 + $0x800] sm:$0xff]
        %v2087 = vld [vmem:[%s1794 + $0x808] sm:$0xff]
        %v2088 = vld [vmem:[%s1794 + $0x810] sm:$0xff]
        %v2089 = vld [vmem:[%s1794 + $0x818] sm:$0xff]
        %v2090 = vld [vmem:[%s1794 + $0x820] sm:$0xff]
        %v2091 = vld [vmem:[%s1794 + $0x828] sm:$0xff]
        %v2092 = vld [vmem:[%s1794 + $0x830] sm:$0xff]
        %v2093 = vld [vmem:[%s1794 + $0x838] sm:$0xff]
        %v2094 = vld [vmem:[%s1794 + $0x840] sm:$0xff]
        %v2095 = vld [vmem:[%s1794 + $0x848] sm:$0xff]
        %v2096 = vld [vmem:[%s1794 + $0x850] sm:$0xff]
        %v2097 = vld [vmem:[%s1794 + $0x858] sm:$0xff]
        %v2098 = vld [vmem:[%s1794 + $0x860] sm:$0xff]
        %v2099 = vld [vmem:[%s1794 + $0x868] sm:$0xff]
        %v2100 = vld [vmem:[%s1794 + $0x870] sm:$0xff]
        %v2101 = vld [vmem:[%s1794 + $0x878] sm:$0xff]
        %v2102 = vld [vmem:[%s1794 + $0x880] sm:$0xff]
        %v2103 = vld [vmem:[%s1794 + $0x888] sm:$0xff]
        %v2104 = vld [vmem:[%s1794 + $0x890] sm:$0xff]
        %v2105 = vld [vmem:[%s1794 + $0x898] sm:$0xff]
        %v2106 = vld [vmem:[%s1794 + $0x8a0] sm:$0xff]
        %v2107 = vld [vmem:[%s1794 + $0x8a8] sm:$0xff]
        %v2108 = vld [vmem:[%s1794 + $0x8b0] sm:$0xff]
        %v2109 = vld [vmem:[%s1794 + $0x8b8] sm:$0xff]
        %v2110 = vld [vmem:[%s1794 + $0x8c0] sm:$0xff]
        %v2111 = vld [vmem:[%s1794 + $0x8c8] sm:$0xff]
        %v2112 = vld [vmem:[%s1794 + $0x8d0] sm:$0xff]
        %v2113 = vld [vmem:[%s1794 + $0x8d8] sm:$0xff]
        %v2114 = vld [vmem:[%s1794 + $0x8e0] sm:$0xff]
        %v2115 = vld [vmem:[%s1794 + $0x8e8] sm:$0xff]
        %v2116 = vld [vmem:[%s1794 + $0x8f0] sm:$0xff]
        %v2117 = vld [vmem:[%s1794 + $0x8f8] sm:$0xff]
        %v2118 = vld [vmem:[%s1794 + $0x900] sm:$0xff]
        %v2119 = vld [vmem:[%s1794 + $0x908] sm:$0xff]
        %v2120 = vld [vmem:[%s1794 + $0x910] sm:$0xff]
        %v2121 = vld [vmem:[%s1794 + $0x918] sm:$0xff]
        %v2122 = vld [vmem:[%s1794 + $0x920] sm:$0xff]
        %v2123 = vld [vmem:[%s1794 + $0x928] sm:$0xff]
        %v2124 = vld [vmem:[%s1794 + $0x930] sm:$0xff]
        %v2125 = vld [vmem:[%s1794 + $0x938] sm:$0xff]
        %v2126 = vld [vmem:[%s1794 + $0x940] sm:$0xff]
        %v2127 = vld [vmem:[%s1794 + $0x948] sm:$0xff]
        %v2128 = vld [vmem:[%s1794 + $0x950] sm:$0xff]
        %v2129 = vld [vmem:[%s1794 + $0x958] sm:$0xff]
        %v2130 = vld [vmem:[%s1794 + $0x960] sm:$0xff]
        %v2131 = vld [vmem:[%s1794 + $0x968] sm:$0xff]
        %v2132 = vld [vmem:[%s1794 + $0x970] sm:$0xff]
        %v2133 = vld [vmem:[%s1794 + $0x978] sm:$0xff]
        %v2134 = vld [vmem:[%s1794 + $0x980] sm:$0xff]
        %v2135 = vld [vmem:[%s1794 + $0x988] sm:$0xff]
        %v2136 = vld [vmem:[%s1794 + $0x990] sm:$0xff]
        %v2137 = vld [vmem:[%s1794 + $0x998] sm:$0xff]
        %v2138 = vld [vmem:[%s1794 + $0x9a0] sm:$0xff]
        %v2139 = vld [vmem:[%s1794 + $0x9a8] sm:$0xff]
        %v2140 = vld [vmem:[%s1794 + $0x9b0] sm:$0xff]
        %v2141 = vld [vmem:[%s1794 + $0x9b8] sm:$0xff]
        %v2142 = vld [vmem:[%s1794 + $0x9c0] sm:$0xff]
        %v2143 = vld [vmem:[%s1794 + $0x9c8] sm:$0xff]
        %v2144 = vld [vmem:[%s1794 + $0x9d0] sm:$0xff]
        %v2145 = vld [vmem:[%s1794 + $0x9d8] sm:$0xff]
        %v2146 = vld [vmem:[%s1794 + $0x9e0] sm:$0xff]
        %v2147 = vld [vmem:[%s1794 + $0x9e8] sm:$0xff]
        %v2148 = vld [vmem:[%s1794 + $0x9f0] sm:$0xff]
        %v2149 = vld [vmem:[%s1794 + $0x9f8] sm:$0xff]
        %v2150 = vld [vmem:[%s1794 + $0xa00] sm:$0xff]
        %v2151 = vld [vmem:[%s1794 + $0xa08] sm:$0xff]
        %v2152 = vld [vmem:[%s1794 + $0xa10] sm:$0xff]
        %v2153 = vld [vmem:[%s1794 + $0xa18] sm:$0xff]
        %v2154 = vld [vmem:[%s1794 + $0xa20] sm:$0xff]
        %v2155 = vld [vmem:[%s1794 + $0xa28] sm:$0xff]
        %v2156 = vld [vmem:[%s1794 + $0xa30] sm:$0xff]
        %v2157 = vld [vmem:[%s1794 + $0xa38] sm:$0xff]
        %v2158 = vld [vmem:[%s1794 + $0xa40] sm:$0xff]
        %v2159 = vld [vmem:[%s1794 + $0xa48] sm:$0xff]
        %v2160 = vld [vmem:[%s1794 + $0xa50] sm:$0xff]
        %v2161 = vld [vmem:[%s1794 + $0xa58] sm:$0xff]
        %v2162 = vld [vmem:[%s1794 + $0xa60] sm:$0xff]
        %v2163 = vld [vmem:[%s1794 + $0xa68] sm:$0xff]
        %v2164 = vld [vmem:[%s1794 + $0xa70] sm:$0xff]
        %v2165 = vld [vmem:[%s1794 + $0xa78] sm:$0xff]
        %v2166 = vld [vmem:[%s1794 + $0xa80] sm:$0xff]
        %v2167 = vld [vmem:[%s1794 + $0xa88] sm:$0xff]
        %v2168 = vld [vmem:[%s1794 + $0xa90] sm:$0xff]
        %v2169 = vld [vmem:[%s1794 + $0xa98] sm:$0xff]
        %v2170 = vld [vmem:[%s1794 + $0xaa0] sm:$0xff]
        %v2171 = vld [vmem:[%s1794 + $0xaa8] sm:$0xff]
        %v2172 = vld [vmem:[%s1794 + $0xab0] sm:$0xff]
        %v2173 = vld [vmem:[%s1794 + $0xab8] sm:$0xff]
        %v2174 = vld [vmem:[%s1794 + $0xac0] sm:$0xff]
        %v2175 = vld [vmem:[%s1794 + $0xac8] sm:$0xff]
        %v2176 = vld [vmem:[%s1794 + $0xad0] sm:$0xff]
        %v2177 = vld [vmem:[%s1794 + $0xad8] sm:$0xff]
        %v2178 = vld [vmem:[%s1794 + $0xae0] sm:$0xff]
        %v2179 = vld [vmem:[%s1794 + $0xae8] sm:$0xff]
        %v2180 = vld [vmem:[%s1794 + $0xaf0] sm:$0xff]
        %v2181 = vld [vmem:[%s1794 + $0xaf8] sm:$0xff]
        %v2182 = vld [vmem:[%s1794 + $0xb00] sm:$0xff]
        %v2183 = vld [vmem:[%s1794 + $0xb08] sm:$0xff]
        %v2184 = vld [vmem:[%s1794 + $0xb10] sm:$0xff]
        %v2185 = vld [vmem:[%s1794 + $0xb18] sm:$0xff]
        %v2186 = vld [vmem:[%s1794 + $0xb20] sm:$0xff]
        %v2187 = vld [vmem:[%s1794 + $0xb28] sm:$0xff]
        %v2188 = vld [vmem:[%s1794 + $0xb30] sm:$0xff]
        %v2189 = vld [vmem:[%s1794 + $0xb38] sm:$0xff]
        %v2190 = vld [vmem:[%s2] sm:$0xff]
        %v2191 = vld [vmem:[%s2 + $0x8] sm:$0xff]
        %v2192 = vld [vmem:[%s2 + $0x10] sm:$0xff]
        %v2193 = vld [vmem:[%s2 + $0x18] sm:$0xff]
        %v2194 = vld [vmem:[%s2 + $0x20] sm:$0xf]
        %v2195 = vld [vmem:[%s3] sm:$0x1]
        %v2197 = vlaneseq
        %v2198 = vshrl.u32 %v2197, 7
        %v2199 = vsub.s32 0, %v2198
        %v2200 = vrot.slane %v2195, %v2199
        %vm2202 = vcmask 293888
        %v2204 = vsel %vm2202, %v1830, 0
        %v2207 = vsel %vm2202, %v1831, 0
        %v2210 = vsel %vm2202, %v1832, 0
        %v2213 = vsel %vm2202, %v1833, 0
        %v2216 = vsel %vm2202, %v1834, 0
        %v2219 = vsel %vm2202, %v1835, 0
        %v2222 = vsel %vm2202, %v1836, 0
        %v2225 = vsel %vm2202, %v1837, 0
        %v2228 = vsel %vm2202, %v1838, 0
        %v2231 = vsel %vm2202, %v1839, 0
        %v2234 = vsel %vm2202, %v1840, 0
        %v2237 = vsel %vm2202, %v1841, 0
        %v2240 = vsel %vm2202, %v1842, 0
        %v2243 = vsel %vm2202, %v1843, 0
        %v2246 = vsel %vm2202, %v1844, 0
        %v2249 = vsel %vm2202, %v1845, 0
        %v2252 = vsel %vm2202, %v1846, 0
        %v2255 = vsel %vm2202, %v1847, 0
        %v2258 = vsel %vm2202, %v1848, 0
        %v2261 = vsel %vm2202, %v1849, 0
        %v2264 = vsel %vm2202, %v1850, 0
        %v2267 = vsel %vm2202, %v1851, 0
        %v2270 = vsel %vm2202, %v1852, 0
        %v2273 = vsel %vm2202, %v1853, 0
        %v2276 = vsel %vm2202, %v1854, 0
        %v2279 = vsel %vm2202, %v1855, 0
        %v2282 = vsel %vm2202, %v1856, 0
        %v2285 = vsel %vm2202, %v1857, 0
        %v2288 = vsel %vm2202, %v1858, 0
        %v2291 = vsel %vm2202, %v1859, 0
        %v2294 = vsel %vm2202, %v1860, 0
        %v2297 = vsel %vm2202, %v1861, 0
        %v2300 = vsel %vm2202, %v1862, 0
        %v2303 = vsel %vm2202, %v1863, 0
        %v2306 = vsel %vm2202, %v1864, 0
        %v2309 = vsel %vm2202, %v1865, 0
        %v2312 = vsel %vm2202, %v1866, 0
        %v2315 = vsel %vm2202, %v1867, 0
        %v2318 = vsel %vm2202, %v1868, 0
        %v2321 = vsel %vm2202, %v1869, 0
        %v2324 = vsel %vm2202, %v1870, 0
        %v2327 = vsel %vm2202, %v1871, 0
        %v2330 = vsel %vm2202, %v1872, 0
        %v2333 = vsel %vm2202, %v1873, 0
        %v2336 = vsel %vm2202, %v1874, 0
        %v2339 = vsel %vm2202, %v1875, 0
        %v2342 = vsel %vm2202, %v1876, 0
        %v2345 = vsel %vm2202, %v1877, 0
        %v2348 = vsel %vm2202, %v1878, 0
        %v2351 = vsel %vm2202, %v1879, 0
        %v2354 = vsel %vm2202, %v1880, 0
        %v2357 = vsel %vm2202, %v1881, 0
        %v2360 = vsel %vm2202, %v1882, 0
        %v2363 = vsel %vm2202, %v1883, 0
        %v2366 = vsel %vm2202, %v1884, 0
        %v2369 = vsel %vm2202, %v1885, 0
        %v2372 = vsel %vm2202, %v1886, 0
        %v2375 = vsel %vm2202, %v1887, 0
        %v2378 = vsel %vm2202, %v1888, 0
        %v2381 = vsel %vm2202, %v1889, 0
        %v2384 = vsel %vm2202, %v1890, 0
        %v2387 = vsel %vm2202, %v1891, 0
        %v2390 = vsel %vm2202, %v1892, 0
        %v2393 = vsel %vm2202, %v1893, 0
        %v2396 = vsel %vm2202, %v1894, 0
        %v2399 = vsel %vm2202, %v1895, 0
        %v2402 = vsel %vm2202, %v1896, 0
        %v2405 = vsel %vm2202, %v1897, 0
        %v2408 = vsel %vm2202, %v1898, 0
        %v2411 = vsel %vm2202, %v1899, 0
        %v2414 = vsel %vm2202, %v1900, 0
        %v2417 = vsel %vm2202, %v1901, 0
        %v2420 = vsel %vm2202, %v1902, 0
        %v2423 = vsel %vm2202, %v1903, 0
        %v2426 = vsel %vm2202, %v1904, 0
        %v2429 = vsel %vm2202, %v1905, 0
        %v2432 = vsel %vm2202, %v1906, 0
        %v2435 = vsel %vm2202, %v1907, 0
        %v2438 = vsel %vm2202, %v1908, 0
        %v2441 = vsel %vm2202, %v1909, 0
        %v2444 = vsel %vm2202, %v1910, 0
        %v2447 = vsel %vm2202, %v1911, 0
        %v2450 = vsel %vm2202, %v1912, 0
        %v2453 = vsel %vm2202, %v1913, 0
        %v2456 = vsel %vm2202, %v1914, 0
        %v2459 = vsel %vm2202, %v1915, 0
        %v2462 = vsel %vm2202, %v1916, 0
        %v2465 = vsel %vm2202, %v1917, 0
        %v2468 = vsel %vm2202, %v1918, 0
        %v2471 = vsel %vm2202, %v1919, 0
        %v2474 = vsel %vm2202, %v1920, 0
        %v2477 = vsel %vm2202, %v1921, 0
        %v2480 = vsel %vm2202, %v1922, 0
        %v2483 = vsel %vm2202, %v1923, 0
        %v2486 = vsel %vm2202, %v1924, 0
        %v2489 = vsel %vm2202, %v1925, 0
        %v2492 = vsel %vm2202, %v1926, 0
        %v2495 = vsel %vm2202, %v1927, 0
        %v2498 = vsel %vm2202, %v1928, 0
        %v2501 = vsel %vm2202, %v1929, 0
        %v2504 = vsel %vm2202, %v1930, 0
        %v2507 = vsel %vm2202, %v1931, 0
        %v2510 = vsel %vm2202, %v1932, 0
        %v2513 = vsel %vm2202, %v1933, 0
        %v2516 = vsel %vm2202, %v1934, 0
        %v2519 = vsel %vm2202, %v1935, 0
        %v2522 = vsel %vm2202, %v1936, 0
        %v2525 = vsel %vm2202, %v1937, 0
        %v2528 = vsel %vm2202, %v1938, 0
        %v2531 = vsel %vm2202, %v1939, 0
        %v2534 = vsel %vm2202, %v1940, 0
        %v2537 = vsel %vm2202, %v1941, 0
        %v2540 = vsel %vm2202, %v1942, 0
        %v2543 = vsel %vm2202, %v1943, 0
        %v2546 = vsel %vm2202, %v1944, 0
        %v2549 = vsel %vm2202, %v1945, 0
        %v2552 = vsel %vm2202, %v1946, 0
        %v2555 = vsel %vm2202, %v1947, 0
        %v2558 = vsel %vm2202, %v1948, 0
        %v2561 = vsel %vm2202, %v1949, 0
        %v2564 = vsel %vm2202, %v1950, 0
        %v2567 = vsel %vm2202, %v1951, 0
        %v2570 = vsel %vm2202, %v1952, 0
        %v2573 = vsel %vm2202, %v1953, 0
        %v2576 = vsel %vm2202, %v1954, 0
        %v2579 = vsel %vm2202, %v1955, 0
        %v2582 = vsel %vm2202, %v1956, 0
        %v2585 = vsel %vm2202, %v1957, 0
        %v2588 = vsel %vm2202, %v1958, 0
        %v2591 = vsel %vm2202, %v1959, 0
        %v2594 = vsel %vm2202, %v1960, 0
        %v2597 = vsel %vm2202, %v1961, 0
        %v2600 = vsel %vm2202, %v1962, 0
        %v2603 = vsel %vm2202, %v1963, 0
        %v2606 = vsel %vm2202, %v1964, 0
        %v2609 = vsel %vm2202, %v1965, 0
        %v2612 = vsel %vm2202, %v1966, 0
        %v2615 = vsel %vm2202, %v1967, 0
        %v2618 = vsel %vm2202, %v1968, 0
        %v2621 = vsel %vm2202, %v1969, 0
        %v2624 = vsel %vm2202, %v1970, 0
        %v2627 = vsel %vm2202, %v1971, 0
        %v2630 = vsel %vm2202, %v1972, 0
        %v2633 = vsel %vm2202, %v1973, 0
        %v2636 = vsel %vm2202, %v1974, 0
        %v2639 = vsel %vm2202, %v1975, 0
        %v2642 = vsel %vm2202, %v1976, 0
        %v2645 = vsel %vm2202, %v1977, 0
        %v2648 = vsel %vm2202, %v1978, 0
        %v2651 = vsel %vm2202, %v1979, 0
        %v2654 = vsel %vm2202, %v1980, 0
        %v2657 = vsel %vm2202, %v1981, 0
        %v2660 = vsel %vm2202, %v1982, 0
        %v2663 = vsel %vm2202, %v1983, 0
        %v2666 = vsel %vm2202, %v1984, 0
        %v2669 = vsel %vm2202, %v1985, 0
        %v2672 = vsel %vm2202, %v1986, 0
        %v2675 = vsel %vm2202, %v1987, 0
        %v2678 = vsel %vm2202, %v1988, 0
        %v2681 = vsel %vm2202, %v1989, 0
        %v2684 = vsel %vm2202, %v1990, 0
        %v2687 = vsel %vm2202, %v1991, 0
        %v2690 = vsel %vm2202, %v1992, 0
        %v2693 = vsel %vm2202, %v1993, 0
        %v2696 = vsel %vm2202, %v1994, 0
        %v2699 = vsel %vm2202, %v1995, 0
        %v2702 = vsel %vm2202, %v1996, 0
        %v2705 = vsel %vm2202, %v1997, 0
        %v2708 = vsel %vm2202, %v1998, 0
        %v2711 = vsel %vm2202, %v1999, 0
        %v2714 = vsel %vm2202, %v2000, 0
        %v2717 = vsel %vm2202, %v2001, 0
        %v2720 = vsel %vm2202, %v2002, 0
        %v2723 = vsel %vm2202, %v2003, 0
        %v2726 = vsel %vm2202, %v2004, 0
        %v2729 = vsel %vm2202, %v2005, 0
        %v2732 = vsel %vm2202, %v2006, 0
        %v2735 = vsel %vm2202, %v2007, 0
        %v2738 = vsel %vm2202, %v2008, 0
        %v2741 = vsel %vm2202, %v2009, 0
        %v2744 = vsel %vm2202, %v2010, 0
        %v2747 = vsel %vm2202, %v2011, 0
        %v2750 = vsel %vm2202, %v2012, 0
        %v2753 = vsel %vm2202, %v2013, 0
        %v2756 = vsel %vm2202, %v2014, 0
        %v2759 = vsel %vm2202, %v2015, 0
        %v2762 = vsel %vm2202, %v2016, 0
        %v2765 = vsel %vm2202, %v2017, 0
        %v2768 = vsel %vm2202, %v2018, 0
        %v2771 = vsel %vm2202, %v2019, 0
        %v2774 = vsel %vm2202, %v2020, 0
        %v2777 = vsel %vm2202, %v2021, 0
        %v2780 = vsel %vm2202, %v2022, 0
        %v2783 = vsel %vm2202, %v2023, 0
        %v2786 = vsel %vm2202, %v2024, 0
        %v2789 = vsel %vm2202, %v2025, 0
        %v2792 = vsel %vm2202, %v2026, 0
        %v2795 = vsel %vm2202, %v2027, 0
        %v2798 = vsel %vm2202, %v2028, 0
        %v2801 = vsel %vm2202, %v2029, 0
        %v2804 = vsel %vm2202, %v2030, 0
        %v2807 = vsel %vm2202, %v2031, 0
        %v2810 = vsel %vm2202, %v2032, 0
        %v2813 = vsel %vm2202, %v2033, 0
        %v2816 = vsel %vm2202, %v2034, 0
        %v2819 = vsel %vm2202, %v2035, 0
        %v2822 = vsel %vm2202, %v2036, 0
        %v2825 = vsel %vm2202, %v2037, 0
        %v2828 = vsel %vm2202, %v2038, 0
        %v2831 = vsel %vm2202, %v2039, 0
        %v2834 = vsel %vm2202, %v2040, 0
        %v2837 = vsel %vm2202, %v2041, 0
        %v2840 = vsel %vm2202, %v2042, 0
        %v2843 = vsel %vm2202, %v2043, 0
        %v2846 = vsel %vm2202, %v2044, 0
        %v2849 = vsel %vm2202, %v2045, 0
        %v2852 = vsel %vm2202, %v2046, 0
        %v2855 = vsel %vm2202, %v2047, 0
        %v2858 = vsel %vm2202, %v2048, 0
        %v2861 = vsel %vm2202, %v2049, 0
        %v2864 = vsel %vm2202, %v2050, 0
        %v2867 = vsel %vm2202, %v2051, 0
        %v2870 = vsel %vm2202, %v2052, 0
        %v2873 = vsel %vm2202, %v2053, 0
        %v2876 = vsel %vm2202, %v2054, 0
        %v2879 = vsel %vm2202, %v2055, 0
        %v2882 = vsel %vm2202, %v2056, 0
        %v2885 = vsel %vm2202, %v2057, 0
        %v2888 = vsel %vm2202, %v2058, 0
        %v2891 = vsel %vm2202, %v2059, 0
        %v2894 = vsel %vm2202, %v2060, 0
        %v2897 = vsel %vm2202, %v2061, 0
        %v2900 = vsel %vm2202, %v2062, 0
        %v2903 = vsel %vm2202, %v2063, 0
        %v2906 = vsel %vm2202, %v2064, 0
        %v2909 = vsel %vm2202, %v2065, 0
        %v2912 = vsel %vm2202, %v2066, 0
        %v2915 = vsel %vm2202, %v2067, 0
        %v2918 = vsel %vm2202, %v2068, 0
        %v2921 = vsel %vm2202, %v2069, 0
        %v2924 = vsel %vm2202, %v2070, 0
        %v2927 = vsel %vm2202, %v2071, 0
        %v2930 = vsel %vm2202, %v2072, 0
        %v2933 = vsel %vm2202, %v2073, 0
        %v2936 = vsel %vm2202, %v2074, 0
        %v2939 = vsel %vm2202, %v2075, 0
        %v2942 = vsel %vm2202, %v2076, 0
        %v2945 = vsel %vm2202, %v2077, 0
        %v2948 = vsel %vm2202, %v2078, 0
        %v2951 = vsel %vm2202, %v2079, 0
        %v2954 = vsel %vm2202, %v2080, 0
        %v2957 = vsel %vm2202, %v2081, 0
        %v2960 = vsel %vm2202, %v2082, 0
        %v2963 = vsel %vm2202, %v2083, 0
        %v2966 = vsel %vm2202, %v2084, 0
        %v2969 = vsel %vm2202, %v2085, 0
        %v2972 = vsel %vm2202, %v2086, 0
        %v2975 = vsel %vm2202, %v2087, 0
        %v2978 = vsel %vm2202, %v2088, 0
        %v2981 = vsel %vm2202, %v2089, 0
        %v2984 = vsel %vm2202, %v2090, 0
        %v2987 = vsel %vm2202, %v2091, 0
        %v2990 = vsel %vm2202, %v2092, 0
        %v2993 = vsel %vm2202, %v2093, 0
        %v2996 = vsel %vm2202, %v2094, 0
        %v2999 = vsel %vm2202, %v2095, 0
        %v3002 = vsel %vm2202, %v2096, 0
        %v3005 = vsel %vm2202, %v2097, 0
        %v3008 = vsel %vm2202, %v2098, 0
        %v3011 = vsel %vm2202, %v2099, 0
        %v3014 = vsel %vm2202, %v2100, 0
        %v3017 = vsel %vm2202, %v2101, 0
        %v3020 = vsel %vm2202, %v2102, 0
        %v3023 = vsel %vm2202, %v2103, 0
        %v3026 = vsel %vm2202, %v2104, 0
        %v3029 = vsel %vm2202, %v2105, 0
        %v3032 = vsel %vm2202, %v2106, 0
        %v3035 = vsel %vm2202, %v2107, 0
        %v3038 = vsel %vm2202, %v2108, 0
        %v3041 = vsel %vm2202, %v2109, 0
        %v3044 = vsel %vm2202, %v2110, 0
        %v3047 = vsel %vm2202, %v2111, 0
        %v3050 = vsel %vm2202, %v2112, 0
        %v3053 = vsel %vm2202, %v2113, 0
        %v3056 = vsel %vm2202, %v2114, 0
        %v3059 = vsel %vm2202, %v2115, 0
        %v3062 = vsel %vm2202, %v2116, 0
        %v3065 = vsel %vm2202, %v2117, 0
        %v3068 = vsel %vm2202, %v2118, 0
        %v3071 = vsel %vm2202, %v2119, 0
        %v3074 = vsel %vm2202, %v2120, 0
        %v3077 = vsel %vm2202, %v2121, 0
        %v3080 = vsel %vm2202, %v2122, 0
        %v3083 = vsel %vm2202, %v2123, 0
        %v3086 = vsel %vm2202, %v2124, 0
        %v3089 = vsel %vm2202, %v2125, 0
        %v3092 = vsel %vm2202, %v2126, 0
        %v3095 = vsel %vm2202, %v2127, 0
        %v3098 = vsel %vm2202, %v2128, 0
        %v3101 = vsel %vm2202, %v2129, 0
        %v3104 = vsel %vm2202, %v2130, 0
        %v3107 = vsel %vm2202, %v2131, 0
        %v3110 = vsel %vm2202, %v2132, 0
        %v3113 = vsel %vm2202, %v2133, 0
        %v3116 = vsel %vm2202, %v2134, 0
        %v3119 = vsel %vm2202, %v2135, 0
        %v3122 = vsel %vm2202, %v2136, 0
        %v3125 = vsel %vm2202, %v2137, 0
        %v3128 = vsel %vm2202, %v2138, 0
        %v3131 = vsel %vm2202, %v2139, 0
        %v3134 = vsel %vm2202, %v2140, 0
        %v3137 = vsel %vm2202, %v2141, 0
        %v3140 = vsel %vm2202, %v2142, 0
        %v3143 = vsel %vm2202, %v2143, 0
        %v3146 = vsel %vm2202, %v2144, 0
        %v3149 = vsel %vm2202, %v2145, 0
        %v3152 = vsel %vm2202, %v2146, 0
        %v3155 = vsel %vm2202, %v2147, 0
        %v3158 = vsel %vm2202, %v2148, 0
        %v3161 = vsel %vm2202, %v2149, 0
        %v3164 = vsel %vm2202, %v2150, 0
        %v3167 = vsel %vm2202, %v2151, 0
        %v3170 = vsel %vm2202, %v2152, 0
        %v3173 = vsel %vm2202, %v2153, 0
        %v3176 = vsel %vm2202, %v2154, 0
        %v3179 = vsel %vm2202, %v2155, 0
        %v3182 = vsel %vm2202, %v2156, 0
        %v3185 = vsel %vm2202, %v2157, 0
        %v3188 = vsel %vm2202, %v2158, 0
        %v3191 = vsel %vm2202, %v2159, 0
        %v3194 = vsel %vm2202, %v2160, 0
        %v3197 = vsel %vm2202, %v2161, 0
        %v3200 = vsel %vm2202, %v2162, 0
        %v3203 = vsel %vm2202, %v2163, 0
        %v3206 = vsel %vm2202, %v2164, 0
        %v3209 = vsel %vm2202, %v2165, 0
        %v3212 = vsel %vm2202, %v2166, 0
        %v3215 = vsel %vm2202, %v2167, 0
        %v3218 = vsel %vm2202, %v2168, 0
        %v3221 = vsel %vm2202, %v2169, 0
        %v3224 = vsel %vm2202, %v2170, 0
        %v3227 = vsel %vm2202, %v2171, 0
        %v3230 = vsel %vm2202, %v2172, 0
        %v3233 = vsel %vm2202, %v2173, 0
        %v3236 = vsel %vm2202, %v2174, 0
        %v3239 = vsel %vm2202, %v2175, 0
        %v3242 = vsel %vm2202, %v2176, 0
        %v3245 = vsel %vm2202, %v2177, 0
        %v3248 = vsel %vm2202, %v2178, 0
        %v3251 = vsel %vm2202, %v2179, 0
        %v3254 = vsel %vm2202, %v2180, 0
        %v3257 = vsel %vm2202, %v2181, 0
        %v3260 = vsel %vm2202, %v2182, 0
        %v3263 = vsel %vm2202, %v2183, 0
        %v3266 = vsel %vm2202, %v2184, 0
        %v3269 = vsel %vm2202, %v2185, 0
        %v3272 = vsel %vm2202, %v2186, 0
        %v3275 = vsel %vm2202, %v2187, 0
        %v3278 = vsel %vm2202, %v2188, 0
        %v3281 = vsel %vm2202, %v2189, 0
        %vm3283 = vcmask 1043456
        %v3285 = vsel %vm3283, %v2194, 0
        %3287 = vmatprep.subr.mxu0 0.0
        %3288 = vmatpush1.msra.mxu0 %v2190
        %3289 = vmatprep.subr.mxu0 0.0
        %3290 = vmatpush1.msra.mxu0 %v2191
        %3291 = vmatprep.subr.mxu0 0.0
        %3292 = vmatpush1.msra.mxu0 %v2192
        %3293 = vmatprep.subr.mxu0 0.0
        %3294 = vmatpush1.msra.mxu0 %v2193
        %3295 = vmatprep.subr.mxu0 0.0
        %3296 = vmatpush1.msra.mxu0 %v3285
        %3297 = vmatprep.subr.mxu0 0.0
        %3298 = vmatpush1.msra.mxu0 0.0
        %3299 = vmatprep.subr.mxu0 0.0
        %3300 = vmatpush1.msra.mxu0 0.0
        %3301 = vmatprep.subr.mxu0 0.0
        %3302 = vmatpush1.msra.mxu0 0.0
        %3303 = vmatprep.subr.mxu0 0.0
        %3304 = vmatpush1.msra.mxu0 0.0
        %3305 = vmatprep.subr.mxu0 0.0
        %3306 = vmatpush1.msra.mxu0 0.0
        %3307 = vmatprep.subr.mxu0 0.0
        %3308 = vmatpush1.msra.mxu0 0.0
        %3309 = vmatprep.subr.mxu0 0.0
        %3310 = vmatpush1.msra.mxu0 0.0
        %3311 = vmatprep.subr.mxu0 0.0
        %3312 = vmatpush1.msra.mxu0 0.0
        %3313 = vmatprep.subr.mxu0 0.0
        %3314 = vmatpush1.msra.mxu0 0.0
        %3315 = vmatprep.subr.mxu0 0.0
        %3316 = vmatpush1.msra.mxu0 0.0
        %3317 = vmatprep.subr.mxu0 0.0
        %3318 = vmatpush1.msra.mxu0 0.0
        %3319 = vmatprep.subr.mxu0 0.0
        %3320 = vmatpush1.msra.mxu0 0.0
        %3321 = vmatprep.subr.mxu0 0.0
        %3322 = vmatpush1.msra.mxu0 0.0
        %3323 = vmatprep.subr.mxu0 0.0
        %3324 = vmatpush1.msra.mxu0 0.0
        %3325 = vmatprep.subr.mxu0 0.0
        %3326 = vmatpush1.msra.mxu0 0.0
        %3327 = vmatprep.subr.mxu0 0.0
        %3328 = vmatpush1.msra.mxu0 0.0
        %3329 = vmatprep.subr.mxu0 0.0
        %3330 = vmatpush1.msra.mxu0 0.0
        %3331 = vmatprep.subr.mxu0 0.0
        %3332 = vmatpush1.msra.mxu0 0.0
        %3333 = vmatprep.subr.mxu0 0.0
        %3334 = vmatpush1.msra.mxu0 0.0
        %3335 = vmatprep.subr.mxu0 0.0
        %3336 = vmatpush1.msra.mxu0 0.0
        %3337 = vmatprep.subr.mxu0 0.0
        %3338 = vmatpush1.msra.mxu0 0.0
        %3339 = vmatprep.subr.mxu0 0.0
        %3340 = vmatpush1.msra.mxu0 0.0
        %3341 = vmatprep.subr.mxu0 0.0
        %3342 = vmatpush1.msra.mxu0 0.0
        %3343 = vmatprep.subr.mxu0 0.0
        %3344 = vmatpush1.msra.mxu0 0.0
        %3345 = vmatprep.subr.mxu0 0.0
        %3346 = vmatpush1.msra.mxu0 0.0
        %3347 = vmatprep.subr.mxu0 0.0
        %3348 = vmatpush1.msra.mxu0 0.0
        %3349 = vmatprep.subr.mxu0 0.0
        %3350 = vmatpush1.msra.mxu0 0.0
        %3351 = vmatprep.mubr.f32.mxu0 0.0
        %3352 = vmatmul.mubr.f32.gmra.mrb[0].mxu0 %v2204
        %v3353 = vpop.f32.mrb[0].mxu0
        %v3354 = vadd.f32 %v2200, %v3353
        %v3355 = vpop.f32.mrb[0].mxu0
        %3356 = vmatprep.mubr.f32.mxu0 0.0
        %3357 = vmatmul.mubr.f32.gmra.mrb[0].mxu0 %v2207
        %v3358 = vpop.f32.mrb[0].mxu0
        %v3359 = vadd.f32 %v2200, %v3358
        %v3360 = vpop.f32.mrb[0].mxu0
        %3361 = vmatprep.mubr.f32.mxu0 0.0
        %3362 = vmatmul.mubr.f32.gmra.mrb[0].mxu0 %v2210
        %v3363 = vpop.f32.mrb[0].mxu0
        %v3364 = vadd.f32 %v2200, %v3363
        %v3365 = vpop.f32.mrb[0].mxu0
        %3366 = vmatprep.mubr.f32.mxu0 0.0
        %3367 = vmatmul.mubr.f32.gmra.mrb[0].mxu0 %v2213
        %v3368 = vpop.f32.mrb[0].mxu0
        %v3369 = vadd.f32 %v2200, %v3368
        %v3370 = vpop.f32.mrb[0].mxu0
        %3371 = vmatprep.mubr.f32.mxu0 0.0
        %3372 = vmatmul.mubr.f32.gmra.mrb[0].mxu0 %v2216
        %v3373 = vpop.f32.mrb[0].mxu0
        %v3374 = vadd.f32 %v2200, %v3373
        %v3375 = vpop.f32.mrb[0].mxu0
        %3376 = vmatprep.mubr.f32.mxu0 0.0
        %3377 = vmatmul.mubr.f32.gmra.mrb[0].mxu0 %v2219
        %v3378 = vpop.f32.mrb[0].mxu0
        %v3379 = vadd.f32 %v2200, %v3378
        %v3380 = vpop.f32.mrb[0].mxu0
        %3381 = vmatprep.mubr.f32.mxu0 0.0
        %3382 = vmatmul.mubr.f32.gmra.mrb[0].mxu0 %v2222
        %v3383 = vpop.f32.mrb[0].mxu0
        %v3384 = vadd.f32 %v2200, %v3383
        %v3385 = vpop.f32.mrb[0].mxu0
        %3386 = vmatprep.mubr.f32.mxu0 0.0
        %3387 = vmatmul.mubr.f32.gmra.mrb[0].mxu0 %v2225
        %v3388 = vpop.f32.mrb[0].mxu0
        %v3389 = vadd.f32 %v2200, %v3388
        %v3390 = vpop.f32.mrb[0].mxu0
        %3391 = vmatprep.mubr.f32.mxu0 0.0
        %3392 = vmatmul.mubr.f32.gmra.mrb[0].mxu0 %v2228
        %v3393 = vpop.f32.mrb[0].mxu0
        %v3394 = vadd.f32 %v2200, %v3393
        %v3395 = vpop.f32.mrb[0].mxu0
        %3396 = vmatprep.mubr.f32.mxu0 0.0
        %3397 = vmatmul.mubr.f32.gmra.mrb[0].mxu0 %v2231
        %v3398 = vpop.f32.mrb[0].mxu0
        %v3399 = vadd.f32 %v2200, %v3398
        %v3400 = vpop.f32.mrb[0].mxu0
        %3401 = vmatprep.mubr.f32.mxu0 0.0
        %3402 = vmatmul.mubr.f32.gmra.mrb[0].mxu0 %v2234
        %v3403 = vpop.f32.mrb[0].mxu0
        %v3404 = vadd.f32 %v2200, %v3403
        %v3405 = vpop.f32.mrb[0].mxu0
        %3406 = vmatprep.mubr.f32.mxu0 0.0
        %3407 = vmatmul.mubr.f32.gmra.mrb[0].mxu0 %v2237
        %v3408 = vpop.f32.mrb[0].mxu0
        %v3409 = vadd.f32 %v2200, %v3408
        %v3410 = vpop.f32.mrb[0].mxu0
        %3411 = vmatprep.mubr.f32.mxu0 0.0
        %3412 = vmatmul.mubr.f32.gmra.mrb[0].mxu0 %v2240
        %v3413 = vpop.f32.mrb[0].mxu0
        %v3414 = vadd.f32 %v2200, %v3413
        %v3415 = vpop.f32.mrb[0].mxu0
        %3416 = vmatprep.mubr.f32.mxu0 0.0
        %3417 = vmatmul.mubr.f32.gmra.mrb[0].mxu0 %v2243
        %v3418 = vpop.f32.mrb[0].mxu0
        %v3419 = vadd.f32 %v2200, %v3418
        %v3420 = vpop.f32.mrb[0].mxu0
        %3421 = vmatprep.mubr.f32.mxu0 0.0
        %3422 = vmatmul.mubr.f32.gmra.mrb[0].mxu0 %v2246
        %v3423 = vpop.f32.mrb[0].mxu0
        %v3424 = vadd.f32 %v2200, %v3423
        %v3425 = vpop.f32.mrb[0].mxu0
        %3426 = vmatprep.mubr.f32.mxu0 0.0
        %3427 = vmatmul.mubr.f32.gmra.mrb[0].mxu0 %v2249
        %v3428 = vpop.f32.mrb[0].mxu0
        %v3429 = vadd.f32 %v2200, %v3428
        %v3430 = vpop.f32.mrb[0].mxu0
        %3431 = vmatprep.mubr.f32.mxu0 0.0
        %3432 = vmatmul.mubr.f32.gmra.mrb[0].mxu0 %v2252
        %v3433 = vpop.f32.mrb[0].mxu0
        %v3434 = vadd.f32 %v2200, %v3433
        %v3435 = vpop.f32.mrb[0].mxu0
        %3436 = vmatprep.mubr.f32.mxu0 0.0
        %3437 = vmatmul.mubr.f32.gmra.mrb[0].mxu0 %v2255
        %v3438 = vpop.f32.mrb[0].mxu0
        %v3439 = vadd.f32 %v2200, %v3438
        %v3440 = vpop.f32.mrb[0].mxu0
        %3441 = vmatprep.mubr.f32.mxu0 0.0
        %3442 = vmatmul.mubr.f32.gmra.mrb[0].mxu0 %v2258
        %v3443 = vpop.f32.mrb[0].mxu0
        %v3444 = vadd.f32 %v2200, %v3443
        %v3445 = vpop.f32.mrb[0].mxu0
        %3446 = vmatprep.mubr.f32.mxu0 0.0
        %3447 = vmatmul.mubr.f32.gmra.mrb[0].mxu0 %v2261
        %v3448 = vpop.f32.mrb[0].mxu0
        %v3449 = vadd.f32 %v2200, %v3448
        %v3450 = vpop.f32.mrb[0].mxu0
        %3451 = vmatprep.mubr.f32.mxu0 0.0
        %3452 = vmatmul.mubr.f32.gmra.mrb[0].mxu0 %v2264
        %v3453 = vpop.f32.mrb[0].mxu0
        %v3454 = vadd.f32 %v2200, %v3453
        %v3455 = vpop.f32.mrb[0].mxu0
        %3456 = vmatprep.mubr.f32.mxu0 0.0
        %3457 = vmatmul.mubr.f32.gmra.mrb[0].mxu0 %v2267
        %v3458 = vpop.f32.mrb[0].mxu0
        %v3459 = vadd.f32 %v2200, %v3458
        %v3460 = vpop.f32.mrb[0].mxu0
        %3461 = vmatprep.mubr.f32.mxu0 0.0
        %3462 = vmatmul.mubr.f32.gmra.mrb[0].mxu0 %v2270
        %v3463 = vpop.f32.mrb[0].mxu0
        %v3464 = vadd.f32 %v2200, %v3463
        %v3465 = vpop.f32.mrb[0].mxu0
        %3466 = vmatprep.mubr.f32.mxu0 0.0
        %3467 = vmatmul.mubr.f32.gmra.mrb[0].mxu0 %v2273
        %v3468 = vpop.f32.mrb[0].mxu0
        %v3469 = vadd.f32 %v2200, %v3468
        %v3470 = vpop.f32.mrb[0].mxu0
        %3471 = vmatprep.mubr.f32.mxu0 0.0
        %3472 = vmatmul.mubr.f32.gmra.mrb[0].mxu0 %v2276
        %v3473 = vpop.f32.mrb[0].mxu0
        %v3474 = vadd.f32 %v2200, %v3473
        %v3475 = vpop.f32.mrb[0].mxu0
        %3476 = vmatprep.mubr.f32.mxu0 0.0
        %3477 = vmatmul.mubr.f32.gmra.mrb[0].mxu0 %v2279
        %v3478 = vpop.f32.mrb[0].mxu0
        %v3479 = vadd.f32 %v2200, %v3478
        %v3480 = vpop.f32.mrb[0].mxu0
        %3481 = vmatprep.mubr.f32.mxu0 0.0
        %3482 = vmatmul.mubr.f32.gmra.mrb[0].mxu0 %v2282
        %v3483 = vpop.f32.mrb[0].mxu0
        %v3484 = vadd.f32 %v2200, %v3483
        %v3485 = vpop.f32.mrb[0].mxu0
        %3486 = vmatprep.mubr.f32.mxu0 0.0
        %3487 = vmatmul.mubr.f32.gmra.mrb[0].mxu0 %v2285
        %v3488 = vpop.f32.mrb[0].mxu0
        %v3489 = vadd.f32 %v2200, %v3488
        %v3490 = vpop.f32.mrb[0].mxu0
        %3491 = vmatprep.mubr.f32.mxu0 0.0
        %3492 = vmatmul.mubr.f32.gmra.mrb[0].mxu0 %v2288
        %v3493 = vpop.f32.mrb[0].mxu0
        %v3494 = vadd.f32 %v2200, %v3493
        %v3495 = vpop.f32.mrb[0].mxu0
        %3496 = vmatprep.mubr.f32.mxu0 0.0
        %3497 = vmatmul.mubr.f32.gmra.mrb[0].mxu0 %v2291
        %v3498 = vpop.f32.mrb[0].mxu0
        %v3499 = vadd.f32 %v2200, %v3498
        %v3500 = vpop.f32.mrb[0].mxu0
        %3501 = vmatprep.mubr.f32.mxu0 0.0
        %3502 = vmatmul.mubr.f32.gmra.mrb[0].mxu0 %v2294
        %v3503 = vpop.f32.mrb[0].mxu0
        %v3504 = vadd.f32 %v2200, %v3503
        %v3505 = vpop.f32.mrb[0].mxu0
        %3506 = vmatprep.mubr.f32.mxu0 0.0
        %3507 = vmatmul.mubr.f32.gmra.mrb[0].mxu0 %v2297
        %v3508 = vpop.f32.mrb[0].mxu0
        %v3509 = vadd.f32 %v2200, %v3508
        %v3510 = vpop.f32.mrb[0].mxu0
        %3511 = vmatprep.mubr.f32.mxu0 0.0
        %3512 = vmatmul.mubr.f32.gmra.mrb[0].mxu0 %v2300
        %v3513 = vpop.f32.mrb[0].mxu0
        %v3514 = vadd.f32 %v2200, %v3513
        %v3515 = vpop.f32.mrb[0].mxu0
        %3516 = vmatprep.mubr.f32.mxu0 0.0
        %3517 = vmatmul.mubr.f32.gmra.mrb[0].mxu0 %v2303
        %v3518 = vpop.f32.mrb[0].mxu0
        %v3519 = vadd.f32 %v2200, %v3518
        %v3520 = vpop.f32.mrb[0].mxu0
        %3521 = vmatprep.mubr.f32.mxu0 0.0
        %3522 = vmatmul.mubr.f32.gmra.mrb[0].mxu0 %v2306
        %v3523 = vpop.f32.mrb[0].mxu0
        %v3524 = vadd.f32 %v2200, %v3523
        %v3525 = vpop.f32.mrb[0].mxu0
        %3526 = vmatprep.mubr.f32.mxu0 0.0
        %3527 = vmatmul.mubr.f32.gmra.mrb[0].mxu0 %v2309
        %v3528 = vpop.f32.mrb[0].mxu0
        %v3529 = vadd.f32 %v2200, %v3528
        %v3530 = vpop.f32.mrb[0].mxu0
        %3531 = vmatprep.mubr.f32.mxu0 0.0
        %3532 = vmatmul.mubr.f32.gmra.mrb[0].mxu0 %v2312
        %v3533 = vpop.f32.mrb[0].mxu0
        %v3534 = vadd.f32 %v2200, %v3533
        %v3535 = vpop.f32.mrb[0].mxu0
        %3536 = vmatprep.mubr.f32.mxu0 0.0
        %3537 = vmatmul.mubr.f32.gmra.mrb[0].mxu0 %v2315
        %v3538 = vpop.f32.mrb[0].mxu0
        %v3539 = vadd.f32 %v2200, %v3538
        %v3540 = vpop.f32.mrb[0].mxu0
        %3541 = vmatprep.mubr.f32.mxu0 0.0
        %3542 = vmatmul.mubr.f32.gmra.mrb[0].mxu0 %v2318
        %v3543 = vpop.f32.mrb[0].mxu0
        %v3544 = vadd.f32 %v2200, %v3543
        %v3545 = vpop.f32.mrb[0].mxu0
        %3546 = vmatprep.mubr.f32.mxu0 0.0
        %3547 = vmatmul.mubr.f32.gmra.mrb[0].mxu0 %v2321
        %v3548 = vpop.f32.mrb[0].mxu0
        %v3549 = vadd.f32 %v2200, %v3548
        %v3550 = vpop.f32.mrb[0].mxu0
        %3551 = vmatprep.mubr.f32.mxu0 0.0
        %3552 = vmatmul.mubr.f32.gmra.mrb[0].mxu0 %v2324
        %v3553 = vpop.f32.mrb[0].mxu0
        %v3554 = vadd.f32 %v2200, %v3553
        %v3555 = vpop.f32.mrb[0].mxu0
        %3556 = vmatprep.mubr.f32.mxu0 0.0
        %3557 = vmatmul.mubr.f32.gmra.mrb[0].mxu0 %v2327
        %v3558 = vpop.f32.mrb[0].mxu0
        %v3559 = vadd.f32 %v2200, %v3558
        %v3560 = vpop.f32.mrb[0].mxu0
        %3561 = vmatprep.mubr.f32.mxu0 0.0
        %3562 = vmatmul.mubr.f32.gmra.mrb[0].mxu0 %v2330
        %v3563 = vpop.f32.mrb[0].mxu0
        %v3564 = vadd.f32 %v2200, %v3563
        %v3565 = vpop.f32.mrb[0].mxu0
        %3566 = vmatprep.mubr.f32.mxu0 0.0
        %3567 = vmatmul.mubr.f32.gmra.mrb[0].mxu0 %v2333
        %v3568 = vpop.f32.mrb[0].mxu0
        %v3569 = vadd.f32 %v2200, %v3568
        %v3570 = vpop.f32.mrb[0].mxu0
        %3571 = vmatprep.mubr.f32.mxu0 0.0
        %3572 = vmatmul.mubr.f32.gmra.mrb[0].mxu0 %v2336
        %v3573 = vpop.f32.mrb[0].mxu0
        %v3574 = vadd.f32 %v2200, %v3573
        %v3575 = vpop.f32.mrb[0].mxu0
        %3576 = vmatprep.mubr.f32.mxu0 0.0
        %3577 = vmatmul.mubr.f32.gmra.mrb[0].mxu0 %v2339
        %v3578 = vpop.f32.mrb[0].mxu0
        %v3579 = vadd.f32 %v2200, %v3578
        %v3580 = vpop.f32.mrb[0].mxu0
        %3581 = vmatprep.mubr.f32.mxu0 0.0
        %3582 = vmatmul.mubr.f32.gmra.mrb[0].mxu0 %v2342
        %v3583 = vpop.f32.mrb[0].mxu0
        %v3584 = vadd.f32 %v2200, %v3583
        %v3585 = vpop.f32.mrb[0].mxu0
        %3586 = vmatprep.mubr.f32.mxu0 0.0
        %3587 = vmatmul.mubr.f32.gmra.mrb[0].mxu0 %v2345
        %v3588 = vpop.f32.mrb[0].mxu0
        %v3589 = vadd.f32 %v2200, %v3588
        %v3590 = vpop.f32.mrb[0].mxu0
        %3591 = vmatprep.mubr.f32.mxu0 0.0
        %3592 = vmatmul.mubr.f32.gmra.mrb[0].mxu0 %v2348
        %v3593 = vpop.f32.mrb[0].mxu0
        %v3594 = vadd.f32 %v2200, %v3593
        %v3595 = vpop.f32.mrb[0].mxu0
        %3596 = vmatprep.mubr.f32.mxu0 0.0
        %3597 = vmatmul.mubr.f32.gmra.mrb[0].mxu0 %v2351
        %v3598 = vpop.f32.mrb[0].mxu0
        %v3599 = vadd.f32 %v2200, %v3598
        %v3600 = vpop.f32.mrb[0].mxu0
        %3601 = vmatprep.mubr.f32.mxu0 0.0
        %3602 = vmatmul.mubr.f32.gmra.mrb[0].mxu0 %v2354
        %v3603 = vpop.f32.mrb[0].mxu0
        %v3604 = vadd.f32 %v2200, %v3603
        %v3605 = vpop.f32.mrb[0].mxu0
        %3606 = vmatprep.mubr.f32.mxu0 0.0
        %3607 = vmatmul.mubr.f32.gmra.mrb[0].mxu0 %v2357
        %v3608 = vpop.f32.mrb[0].mxu0
        %v3609 = vadd.f32 %v2200, %v3608
        %v3610 = vpop.f32.mrb[0].mxu0
        %3611 = vmatprep.mubr.f32.mxu0 0.0
        %3612 = vmatmul.mubr.f32.gmra.mrb[0].mxu0 %v2360
        %v3613 = vpop.f32.mrb[0].mxu0
        %v3614 = vadd.f32 %v2200, %v3613
        %v3615 = vpop.f32.mrb[0].mxu0
        %3616 = vmatprep.mubr.f32.mxu0 0.0
        %3617 = vmatmul.mubr.f32.gmra.mrb[0].mxu0 %v2363
        %v3618 = vpop.f32.mrb[0].mxu0
        %v3619 = vadd.f32 %v2200, %v3618
        %v3620 = vpop.f32.mrb[0].mxu0
        %3621 = vmatprep.mubr.f32.mxu0 0.0
        %3622 = vmatmul.mubr.f32.gmra.mrb[0].mxu0 %v2366
        %v3623 = vpop.f32.mrb[0].mxu0
        %v3624 = vadd.f32 %v2200, %v3623
        %v3625 = vpop.f32.mrb[0].mxu0
        %3626 = vmatprep.mubr.f32.mxu0 0.0
        %3627 = vmatmul.mubr.f32.gmra.mrb[0].mxu0 %v2369
        %v3628 = vpop.f32.mrb[0].mxu0
        %v3629 = vadd.f32 %v2200, %v3628
        %v3630 = vpop.f32.mrb[0].mxu0
        %3631 = vmatprep.mubr.f32.mxu0 0.0
        %3632 = vmatmul.mubr.f32.gmra.mrb[0].mxu0 %v2372
        %v3633 = vpop.f32.mrb[0].mxu0
        %v3634 = vadd.f32 %v2200, %v3633
        %v3635 = vpop.f32.mrb[0].mxu0
        %3636 = vmatprep.mubr.f32.mxu0 0.0
        %3637 = vmatmul.mubr.f32.gmra.mrb[0].mxu0 %v2375
        %v3638 = vpop.f32.mrb[0].mxu0
        %v3639 = vadd.f32 %v2200, %v3638
        %v3640 = vpop.f32.mrb[0].mxu0
        %3641 = vmatprep.mubr.f32.mxu0 0.0
        %3642 = vmatmul.mubr.f32.gmra.mrb[0].mxu0 %v2378
        %v3643 = vpop.f32.mrb[0].mxu0
        %v3644 = vadd.f32 %v2200, %v3643
        %v3645 = vpop.f32.mrb[0].mxu0
        %3646 = vmatprep.mubr.f32.mxu0 0.0
        %3647 = vmatmul.mubr.f32.gmra.mrb[0].mxu0 %v2381
        %v3648 = vpop.f32.mrb[0].mxu0
        %v3649 = vadd.f32 %v2200, %v3648
        %v3650 = vpop.f32.mrb[0].mxu0
        %3651 = vmatprep.mubr.f32.mxu0 0.0
        %3652 = vmatmul.mubr.f32.gmra.mrb[0].mxu0 %v2384
        %v3653 = vpop.f32.mrb[0].mxu0
        %v3654 = vadd.f32 %v2200, %v3653
        %v3655 = vpop.f32.mrb[0].mxu0
        %3656 = vmatprep.mubr.f32.mxu0 0.0
        %3657 = vmatmul.mubr.f32.gmra.mrb[0].mxu0 %v2387
        %v3658 = vpop.f32.mrb[0].mxu0
        %v3659 = vadd.f32 %v2200, %v3658
        %v3660 = vpop.f32.mrb[0].mxu0
        %3661 = vmatprep.mubr.f32.mxu0 0.0
        %3662 = vmatmul.mubr.f32.gmra.mrb[0].mxu0 %v2390
        %v3663 = vpop.f32.mrb[0].mxu0
        %v3664 = vadd.f32 %v2200, %v3663
        %v3665 = vpop.f32.mrb[0].mxu0
        %3666 = vmatprep.mubr.f32.mxu0 0.0
        %3667 = vmatmul.mubr.f32.gmra.mrb[0].mxu0 %v2393
        %v3668 = vpop.f32.mrb[0].mxu0
        %v3669 = vadd.f32 %v2200, %v3668
        %v3670 = vpop.f32.mrb[0].mxu0
        %3671 = vmatprep.mubr.f32.mxu0 0.0
        %3672 = vmatmul.mubr.f32.gmra.mrb[0].mxu0 %v2396
        %v3673 = vpop.f32.mrb[0].mxu0
        %v3674 = vadd.f32 %v2200, %v3673
        %v3675 = vpop.f32.mrb[0].mxu0
        %3676 = vmatprep.mubr.f32.mxu0 0.0
        %3677 = vmatmul.mubr.f32.gmra.mrb[0].mxu0 %v2399
        %v3678 = vpop.f32.mrb[0].mxu0
        %v3679 = vadd.f32 %v2200, %v3678
        %v3680 = vpop.f32.mrb[0].mxu0
        %3681 = vmatprep.mubr.f32.mxu0 0.0
        %3682 = vmatmul.mubr.f32.gmra.mrb[0].mxu0 %v2402
        %v3683 = vpop.f32.mrb[0].mxu0
        %v3684 = vadd.f32 %v2200, %v3683
        %v3685 = vpop.f32.mrb[0].mxu0
        %3686 = vmatprep.mubr.f32.mxu0 0.0
        %3687 = vmatmul.mubr.f32.gmra.mrb[0].mxu0 %v2405
        %v3688 = vpop.f32.mrb[0].mxu0
        %v3689 = vadd.f32 %v2200, %v3688
        %v3690 = vpop.f32.mrb[0].mxu0
        %3691 = vmatprep.mubr.f32.mxu0 0.0
        %3692 = vmatmul.mubr.f32.gmra.mrb[0].mxu0 %v2408
        %v3693 = vpop.f32.mrb[0].mxu0
        %v3694 = vadd.f32 %v2200, %v3693
        %v3695 = vpop.f32.mrb[0].mxu0
        %3696 = vmatprep.mubr.f32.mxu0 0.0
        %3697 = vmatmul.mubr.f32.gmra.mrb[0].mxu0 %v2411
        %v3698 = vpop.f32.mrb[0].mxu0
        %v3699 = vadd.f32 %v2200, %v3698
        %v3700 = vpop.f32.mrb[0].mxu0
        %3701 = vmatprep.mubr.f32.mxu0 0.0
        %3702 = vmatmul.mubr.f32.gmra.mrb[0].mxu0 %v2414
        %v3703 = vpop.f32.mrb[0].mxu0
        %v3704 = vadd.f32 %v2200, %v3703
        %v3705 = vpop.f32.mrb[0].mxu0
        %3706 = vmatprep.mubr.f32.mxu0 0.0
        %3707 = vmatmul.mubr.f32.gmra.mrb[0].mxu0 %v2417
        %v3708 = vpop.f32.mrb[0].mxu0
        %v3709 = vadd.f32 %v2200, %v3708
        %v3710 = vpop.f32.mrb[0].mxu0
        %3711 = vmatprep.mubr.f32.mxu0 0.0
        %3712 = vmatmul.mubr.f32.gmra.mrb[0].mxu0 %v2420
        %v3713 = vpop.f32.mrb[0].mxu0
        %v3714 = vadd.f32 %v2200, %v3713
        %v3715 = vpop.f32.mrb[0].mxu0
        %3716 = vmatprep.mubr.f32.mxu0 0.0
        %3717 = vmatmul.mubr.f32.gmra.mrb[0].mxu0 %v2423
        %v3718 = vpop.f32.mrb[0].mxu0
        %v3719 = vadd.f32 %v2200, %v3718
        %v3720 = vpop.f32.mrb[0].mxu0
        %3721 = vmatprep.mubr.f32.mxu0 0.0
        %3722 = vmatmul.mubr.f32.gmra.mrb[0].mxu0 %v2426
        %v3723 = vpop.f32.mrb[0].mxu0
        %v3724 = vadd.f32 %v2200, %v3723
        %v3725 = vpop.f32.mrb[0].mxu0
        %3726 = vmatprep.mubr.f32.mxu0 0.0
        %3727 = vmatmul.mubr.f32.gmra.mrb[0].mxu0 %v2429
        %v3728 = vpop.f32.mrb[0].mxu0
        %v3729 = vadd.f32 %v2200, %v3728
        %v3730 = vpop.f32.mrb[0].mxu0
        %3731 = vmatprep.mubr.f32.mxu0 0.0
        %3732 = vmatmul.mubr.f32.gmra.mrb[0].mxu0 %v2432
        %v3733 = vpop.f32.mrb[0].mxu0
        %v3734 = vadd.f32 %v2200, %v3733
        %v3735 = vpop.f32.mrb[0].mxu0
        %3736 = vmatprep.mubr.f32.mxu0 0.0
        %3737 = vmatmul.mubr.f32.gmra.mrb[0].mxu0 %v2435
        %v3738 = vpop.f32.mrb[0].mxu0
        %v3739 = vadd.f32 %v2200, %v3738
        %v3740 = vpop.f32.mrb[0].mxu0
        %3741 = vmatprep.mubr.f32.mxu0 0.0
        %3742 = vmatmul.mubr.f32.gmra.mrb[0].mxu0 %v2438
        %v3743 = vpop.f32.mrb[0].mxu0
        %v3744 = vadd.f32 %v2200, %v3743
        %v3745 = vpop.f32.mrb[0].mxu0
        %3746 = vmatprep.mubr.f32.mxu0 0.0
        %3747 = vmatmul.mubr.f32.gmra.mrb[0].mxu0 %v2441
        %v3748 = vpop.f32.mrb[0].mxu0
        %v3749 = vadd.f32 %v2200, %v3748
        %v3750 = vpop.f32.mrb[0].mxu0
        %3751 = vmatprep.mubr.f32.mxu0 0.0
        %3752 = vmatmul.mubr.f32.gmra.mrb[0].mxu0 %v2444
        %v3753 = vpop.f32.mrb[0].mxu0
        %v3754 = vadd.f32 %v2200, %v3753
        %v3755 = vpop.f32.mrb[0].mxu0
        %3756 = vmatprep.mubr.f32.mxu0 0.0
        %3757 = vmatmul.mubr.f32.gmra.mrb[0].mxu0 %v2447
        %v3758 = vpop.f32.mrb[0].mxu0
        %v3759 = vadd.f32 %v2200, %v3758
        %v3760 = vpop.f32.mrb[0].mxu0
        %3761 = vmatprep.mubr.f32.mxu0 0.0
        %3762 = vmatmul.mubr.f32.gmra.mrb[0].mxu0 %v2450
        %v3763 = vpop.f32.mrb[0].mxu0
        %v3764 = vadd.f32 %v2200, %v3763
        %v3765 = vpop.f32.mrb[0].mxu0
        %3766 = vmatprep.mubr.f32.mxu0 0.0
        %3767 = vmatmul.mubr.f32.gmra.mrb[0].mxu0 %v2453
        %v3768 = vpop.f32.mrb[0].mxu0
        %v3769 = vadd.f32 %v2200, %v3768
        %v3770 = vpop.f32.mrb[0].mxu0
        %3771 = vmatprep.mubr.f32.mxu0 0.0
        %3772 = vmatmul.mubr.f32.gmra.mrb[0].mxu0 %v2456
        %v3773 = vpop.f32.mrb[0].mxu0
        %v3774 = vadd.f32 %v2200, %v3773
        %v3775 = vpop.f32.mrb[0].mxu0
        %3776 = vmatprep.mubr.f32.mxu0 0.0
        %3777 = vmatmul.mubr.f32.gmra.mrb[0].mxu0 %v2459
        %v3778 = vpop.f32.mrb[0].mxu0
        %v3779 = vadd.f32 %v2200, %v3778
        %v3780 = vpop.f32.mrb[0].mxu0
        %3781 = vmatprep.mubr.f32.mxu0 0.0
        %3782 = vmatmul.mubr.f32.gmra.mrb[0].mxu0 %v2462
        %v3783 = vpop.f32.mrb[0].mxu0
        %v3784 = vadd.f32 %v2200, %v3783
        %v3785 = vpop.f32.mrb[0].mxu0
        %3786 = vmatprep.mubr.f32.mxu0 0.0
        %3787 = vmatmul.mubr.f32.gmra.mrb[0].mxu0 %v2465
        %v3788 = vpop.f32.mrb[0].mxu0
        %v3789 = vadd.f32 %v2200, %v3788
        %v3790 = vpop.f32.mrb[0].mxu0
        %3791 = vmatprep.mubr.f32.mxu0 0.0
        %3792 = vmatmul.mubr.f32.gmra.mrb[0].mxu0 %v2468
        %v3793 = vpop.f32.mrb[0].mxu0
        %v3794 = vadd.f32 %v2200, %v3793
        %v3795 = vpop.f32.mrb[0].mxu0
        %3796 = vmatprep.mubr.f32.mxu0 0.0
        %3797 = vmatmul.mubr.f32.gmra.mrb[0].mxu0 %v2471
        %v3798 = vpop.f32.mrb[0].mxu0
        %v3799 = vadd.f32 %v2200, %v3798
        %v3800 = vpop.f32.mrb[0].mxu0
        %3801 = vmatprep.mubr.f32.mxu0 0.0
        %3802 = vmatmul.mubr.f32.gmra.mrb[0].mxu0 %v2474
        %v3803 = vpop.f32.mrb[0].mxu0
        %v3804 = vadd.f32 %v2200, %v3803
        %v3805 = vpop.f32.mrb[0].mxu0
        %3806 = vmatprep.mubr.f32.mxu0 0.0
        %3807 = vmatmul.mubr.f32.gmra.mrb[0].mxu0 %v2477
        %v3808 = vpop.f32.mrb[0].mxu0
        %v3809 = vadd.f32 %v2200, %v3808
        %v3810 = vpop.f32.mrb[0].mxu0
        %3811 = vmatprep.mubr.f32.mxu0 0.0
        %3812 = vmatmul.mubr.f32.gmra.mrb[0].mxu0 %v2480
        %v3813 = vpop.f32.mrb[0].mxu0
        %v3814 = vadd.f32 %v2200, %v3813
        %v3815 = vpop.f32.mrb[0].mxu0
        %3816 = vmatprep.mubr.f32.mxu0 0.0
        %3817 = vmatmul.mubr.f32.gmra.mrb[0].mxu0 %v2483
        %v3818 = vpop.f32.mrb[0].mxu0
        %v3819 = vadd.f32 %v2200, %v3818
        %v3820 = vpop.f32.mrb[0].mxu0
        %3821 = vmatprep.mubr.f32.mxu0 0.0
        %3822 = vmatmul.mubr.f32.gmra.mrb[0].mxu0 %v2486
        %v3823 = vpop.f32.mrb[0].mxu0
        %v3824 = vadd.f32 %v2200, %v3823
        %v3825 = vpop.f32.mrb[0].mxu0
        %3826 = vmatprep.mubr.f32.mxu0 0.0
        %3827 = vmatmul.mubr.f32.gmra.mrb[0].mxu0 %v2489
        %v3828 = vpop.f32.mrb[0].mxu0
        %v3829 = vadd.f32 %v2200, %v3828
        %v3830 = vpop.f32.mrb[0].mxu0
        %3831 = vmatprep.mubr.f32.mxu0 0.0
        %3832 = vmatmul.mubr.f32.gmra.mrb[0].mxu0 %v2492
        %v3833 = vpop.f32.mrb[0].mxu0
        %v3834 = vadd.f32 %v2200, %v3833
        %v3835 = vpop.f32.mrb[0].mxu0
        %3836 = vmatprep.mubr.f32.mxu0 0.0
        %3837 = vmatmul.mubr.f32.gmra.mrb[0].mxu0 %v2495
        %v3838 = vpop.f32.mrb[0].mxu0
        %v3839 = vadd.f32 %v2200, %v3838
        %v3840 = vpop.f32.mrb[0].mxu0
        %3841 = vmatprep.mubr.f32.mxu0 0.0
        %3842 = vmatmul.mubr.f32.gmra.mrb[0].mxu0 %v2498
        %v3843 = vpop.f32.mrb[0].mxu0
        %v3844 = vadd.f32 %v2200, %v3843
        %v3845 = vpop.f32.mrb[0].mxu0
        %3846 = vmatprep.mubr.f32.mxu0 0.0
        %3847 = vmatmul.mubr.f32.gmra.mrb[0].mxu0 %v2501
        %v3848 = vpop.f32.mrb[0].mxu0
        %v3849 = vadd.f32 %v2200, %v3848
        %v3850 = vpop.f32.mrb[0].mxu0
        %3851 = vmatprep.mubr.f32.mxu0 0.0
        %3852 = vmatmul.mubr.f32.gmra.mrb[0].mxu0 %v2504
        %v3853 = vpop.f32.mrb[0].mxu0
        %v3854 = vadd.f32 %v2200, %v3853
        %v3855 = vpop.f32.mrb[0].mxu0
        %3856 = vmatprep.mubr.f32.mxu0 0.0
        %3857 = vmatmul.mubr.f32.gmra.mrb[0].mxu0 %v2507
        %v3858 = vpop.f32.mrb[0].mxu0
        %v3859 = vadd.f32 %v2200, %v3858
        %v3860 = vpop.f32.mrb[0].mxu0
        %3861 = vmatprep.mubr.f32.mxu0 0.0
        %3862 = vmatmul.mubr.f32.gmra.mrb[0].mxu0 %v2510
        %v3863 = vpop.f32.mrb[0].mxu0
        %v3864 = vadd.f32 %v2200, %v3863
        %v3865 = vpop.f32.mrb[0].mxu0
        %3866 = vmatprep.mubr.f32.mxu0 0.0
        %3867 = vmatmul.mubr.f32.gmra.mrb[0].mxu0 %v2513
        %v3868 = vpop.f32.mrb[0].mxu0
        %v3869 = vadd.f32 %v2200, %v3868
        %v3870 = vpop.f32.mrb[0].mxu0
        %3871 = vmatprep.mubr.f32.mxu0 0.0
        %3872 = vmatmul.mubr.f32.gmra.mrb[0].mxu0 %v2516
        %v3873 = vpop.f32.mrb[0].mxu0
        %v3874 = vadd.f32 %v2200, %v3873
        %v3875 = vpop.f32.mrb[0].mxu0
        %3876 = vmatprep.mubr.f32.mxu0 0.0
        %3877 = vmatmul.mubr.f32.gmra.mrb[0].mxu0 %v2519
        %v3878 = vpop.f32.mrb[0].mxu0
        %v3879 = vadd.f32 %v2200, %v3878
        %v3880 = vpop.f32.mrb[0].mxu0
        %3881 = vmatprep.mubr.f32.mxu0 0.0
        %3882 = vmatmul.mubr.f32.gmra.mrb[0].mxu0 %v2522
        %v3883 = vpop.f32.mrb[0].mxu0
        %v3884 = vadd.f32 %v2200, %v3883
        %v3885 = vpop.f32.mrb[0].mxu0
        %3886 = vmatprep.mubr.f32.mxu0 0.0
        %3887 = vmatmul.mubr.f32.gmra.mrb[0].mxu0 %v2525
        %v3888 = vpop.f32.mrb[0].mxu0
        %v3889 = vadd.f32 %v2200, %v3888
        %v3890 = vpop.f32.mrb[0].mxu0
        %3891 = vmatprep.mubr.f32.mxu0 0.0
        %3892 = vmatmul.mubr.f32.gmra.mrb[0].mxu0 %v2528
        %v3893 = vpop.f32.mrb[0].mxu0
        %v3894 = vadd.f32 %v2200, %v3893
        %v3895 = vpop.f32.mrb[0].mxu0
        %3896 = vmatprep.mubr.f32.mxu0 0.0
        %3897 = vmatmul.mubr.f32.gmra.mrb[0].mxu0 %v2531
        %v3898 = vpop.f32.mrb[0].mxu0
        %v3899 = vadd.f32 %v2200, %v3898
        %v3900 = vpop.f32.mrb[0].mxu0
        %3901 = vmatprep.mubr.f32.mxu0 0.0
        %3902 = vmatmul.mubr.f32.gmra.mrb[0].mxu0 %v2534
        %v3903 = vpop.f32.mrb[0].mxu0
        %v3904 = vadd.f32 %v2200, %v3903
        %v3905 = vpop.f32.mrb[0].mxu0
        %3906 = vmatprep.mubr.f32.mxu0 0.0
        %3907 = vmatmul.mubr.f32.gmra.mrb[0].mxu0 %v2537
        %v3908 = vpop.f32.mrb[0].mxu0
        %v3909 = vadd.f32 %v2200, %v3908
        %v3910 = vpop.f32.mrb[0].mxu0
        %3911 = vmatprep.mubr.f32.mxu0 0.0
        %3912 = vmatmul.mubr.f32.gmra.mrb[0].mxu0 %v2540
        %v3913 = vpop.f32.mrb[0].mxu0
        %v3914 = vadd.f32 %v2200, %v3913
        %v3915 = vpop.f32.mrb[0].mxu0
        %3916 = vmatprep.mubr.f32.mxu0 0.0
        %3917 = vmatmul.mubr.f32.gmra.mrb[0].mxu0 %v2543
        %v3918 = vpop.f32.mrb[0].mxu0
        %v3919 = vadd.f32 %v2200, %v3918
        %v3920 = vpop.f32.mrb[0].mxu0
        %3921 = vmatprep.mubr.f32.mxu0 0.0
        %3922 = vmatmul.mubr.f32.gmra.mrb[0].mxu0 %v2546
        %v3923 = vpop.f32.mrb[0].mxu0
        %v3924 = vadd.f32 %v2200, %v3923
        %v3925 = vpop.f32.mrb[0].mxu0
        %3926 = vmatprep.mubr.f32.mxu0 0.0
        %3927 = vmatmul.mubr.f32.gmra.mrb[0].mxu0 %v2549
        %v3928 = vpop.f32.mrb[0].mxu0
        %v3929 = vadd.f32 %v2200, %v3928
        %v3930 = vpop.f32.mrb[0].mxu0
        %3931 = vmatprep.mubr.f32.mxu0 0.0
        %3932 = vmatmul.mubr.f32.gmra.mrb[0].mxu0 %v2552
        %v3933 = vpop.f32.mrb[0].mxu0
        %v3934 = vadd.f32 %v2200, %v3933
        %v3935 = vpop.f32.mrb[0].mxu0
        %3936 = vmatprep.mubr.f32.mxu0 0.0
        %3937 = vmatmul.mubr.f32.gmra.mrb[0].mxu0 %v2555
        %v3938 = vpop.f32.mrb[0].mxu0
        %v3939 = vadd.f32 %v2200, %v3938
        %v3940 = vpop.f32.mrb[0].mxu0
        %3941 = vmatprep.mubr.f32.mxu0 0.0
        %3942 = vmatmul.mubr.f32.gmra.mrb[0].mxu0 %v2558
        %v3943 = vpop.f32.mrb[0].mxu0
        %v3944 = vadd.f32 %v2200, %v3943
        %v3945 = vpop.f32.mrb[0].mxu0
        %3946 = vmatprep.mubr.f32.mxu0 0.0
        %3947 = vmatmul.mubr.f32.gmra.mrb[0].mxu0 %v2561
        %v3948 = vpop.f32.mrb[0].mxu0
        %v3949 = vadd.f32 %v2200, %v3948
        %v3950 = vpop.f32.mrb[0].mxu0
        %3951 = vmatprep.mubr.f32.mxu0 0.0
        %3952 = vmatmul.mubr.f32.gmra.mrb[0].mxu0 %v2564
        %v3953 = vpop.f32.mrb[0].mxu0
        %v3954 = vadd.f32 %v2200, %v3953
        %v3955 = vpop.f32.mrb[0].mxu0
        %3956 = vmatprep.mubr.f32.mxu0 0.0
        %3957 = vmatmul.mubr.f32.gmra.mrb[0].mxu0 %v2567
        %v3958 = vpop.f32.mrb[0].mxu0
        %v3959 = vadd.f32 %v2200, %v3958
        %v3960 = vpop.f32.mrb[0].mxu0
        %3961 = vmatprep.mubr.f32.mxu0 0.0
        %3962 = vmatmul.mubr.f32.gmra.mrb[0].mxu0 %v2570
        %v3963 = vpop.f32.mrb[0].mxu0
        %v3964 = vadd.f32 %v2200, %v3963
        %v3965 = vpop.f32.mrb[0].mxu0
        %3966 = vmatprep.mubr.f32.mxu0 0.0
        %3967 = vmatmul.mubr.f32.gmra.mrb[0].mxu0 %v2573
        %v3968 = vpop.f32.mrb[0].mxu0
        %v3969 = vadd.f32 %v2200, %v3968
        %v3970 = vpop.f32.mrb[0].mxu0
        %3971 = vmatprep.mubr.f32.mxu0 0.0
        %3972 = vmatmul.mubr.f32.gmra.mrb[0].mxu0 %v2576
        %v3973 = vpop.f32.mrb[0].mxu0
        %v3974 = vadd.f32 %v2200, %v3973
        %v3975 = vpop.f32.mrb[0].mxu0
        %3976 = vmatprep.mubr.f32.mxu0 0.0
        %3977 = vmatmul.mubr.f32.gmra.mrb[0].mxu0 %v2579
        %v3978 = vpop.f32.mrb[0].mxu0
        %v3979 = vadd.f32 %v2200, %v3978
        %v3980 = vpop.f32.mrb[0].mxu0
        %3981 = vmatprep.mubr.f32.mxu0 0.0
        %3982 = vmatmul.mubr.f32.gmra.mrb[0].mxu0 %v2582
        %v3983 = vpop.f32.mrb[0].mxu0
        %v3984 = vadd.f32 %v2200, %v3983
        %v3985 = vpop.f32.mrb[0].mxu0
        %3986 = vmatprep.mubr.f32.mxu0 0.0
        %3987 = vmatmul.mubr.f32.gmra.mrb[0].mxu0 %v2585
        %v3988 = vpop.f32.mrb[0].mxu0
        %v3989 = vadd.f32 %v2200, %v3988
        %v3990 = vpop.f32.mrb[0].mxu0
        %3991 = vmatprep.mubr.f32.mxu0 0.0
        %3992 = vmatmul.mubr.f32.gmra.mrb[0].mxu0 %v2588
        %v3993 = vpop.f32.mrb[0].mxu0
        %v3994 = vadd.f32 %v2200, %v3993
        %v3995 = vpop.f32.mrb[0].mxu0
        %3996 = vmatprep.mubr.f32.mxu0 0.0
        %3997 = vmatmul.mubr.f32.gmra.mrb[0].mxu0 %v2591
        %v3998 = vpop.f32.mrb[0].mxu0
        %v3999 = vadd.f32 %v2200, %v3998
        %v4000 = vpop.f32.mrb[0].mxu0
        %4001 = vmatprep.mubr.f32.mxu0 0.0
        %4002 = vmatmul.mubr.f32.gmra.mrb[0].mxu0 %v2594
        %v4003 = vpop.f32.mrb[0].mxu0
        %v4004 = vadd.f32 %v2200, %v4003
        %v4005 = vpop.f32.mrb[0].mxu0
        %4006 = vmatprep.mubr.f32.mxu0 0.0
        %4007 = vmatmul.mubr.f32.gmra.mrb[0].mxu0 %v2597
        %v4008 = vpop.f32.mrb[0].mxu0
        %v4009 = vadd.f32 %v2200, %v4008
        %v4010 = vpop.f32.mrb[0].mxu0
        %4011 = vmatprep.mubr.f32.mxu0 0.0
        %4012 = vmatmul.mubr.f32.gmra.mrb[0].mxu0 %v2600
        %v4013 = vpop.f32.mrb[0].mxu0
        %v4014 = vadd.f32 %v2200, %v4013
        %v4015 = vpop.f32.mrb[0].mxu0
        %4016 = vmatprep.mubr.f32.mxu0 0.0
        %4017 = vmatmul.mubr.f32.gmra.mrb[0].mxu0 %v2603
        %v4018 = vpop.f32.mrb[0].mxu0
        %v4019 = vadd.f32 %v2200, %v4018
        %v4020 = vpop.f32.mrb[0].mxu0
        %4021 = vmatprep.mubr.f32.mxu0 0.0
        %4022 = vmatmul.mubr.f32.gmra.mrb[0].mxu0 %v2606
        %v4023 = vpop.f32.mrb[0].mxu0
        %v4024 = vadd.f32 %v2200, %v4023
        %v4025 = vpop.f32.mrb[0].mxu0
        %4026 = vmatprep.mubr.f32.mxu0 0.0
        %4027 = vmatmul.mubr.f32.gmra.mrb[0].mxu0 %v2609
        %v4028 = vpop.f32.mrb[0].mxu0
        %v4029 = vadd.f32 %v2200, %v4028
        %v4030 = vpop.f32.mrb[0].mxu0
        %4031 = vmatprep.mubr.f32.mxu0 0.0
        %4032 = vmatmul.mubr.f32.gmra.mrb[0].mxu0 %v2612
        %v4033 = vpop.f32.mrb[0].mxu0
        %v4034 = vadd.f32 %v2200, %v4033
        %v4035 = vpop.f32.mrb[0].mxu0
        %4036 = vmatprep.mubr.f32.mxu0 0.0
        %4037 = vmatmul.mubr.f32.gmra.mrb[0].mxu0 %v2615
        %v4038 = vpop.f32.mrb[0].mxu0
        %v4039 = vadd.f32 %v2200, %v4038
        %v4040 = vpop.f32.mrb[0].mxu0
        %4041 = vmatprep.mubr.f32.mxu0 0.0
        %4042 = vmatmul.mubr.f32.gmra.mrb[0].mxu0 %v2618
        %v4043 = vpop.f32.mrb[0].mxu0
        %v4044 = vadd.f32 %v2200, %v4043
        %v4045 = vpop.f32.mrb[0].mxu0
        %4046 = vmatprep.mubr.f32.mxu0 0.0
        %4047 = vmatmul.mubr.f32.gmra.mrb[0].mxu0 %v2621
        %v4048 = vpop.f32.mrb[0].mxu0
        %v4049 = vadd.f32 %v2200, %v4048
        %v4050 = vpop.f32.mrb[0].mxu0
        %4051 = vmatprep.mubr.f32.mxu0 0.0
        %4052 = vmatmul.mubr.f32.gmra.mrb[0].mxu0 %v2624
        %v4053 = vpop.f32.mrb[0].mxu0
        %v4054 = vadd.f32 %v2200, %v4053
        %v4055 = vpop.f32.mrb[0].mxu0
        %4056 = vmatprep.mubr.f32.mxu0 0.0
        %4057 = vmatmul.mubr.f32.gmra.mrb[0].mxu0 %v2627
        %v4058 = vpop.f32.mrb[0].mxu0
        %v4059 = vadd.f32 %v2200, %v4058
        %v4060 = vpop.f32.mrb[0].mxu0
        %4061 = vmatprep.mubr.f32.mxu0 0.0
        %4062 = vmatmul.mubr.f32.gmra.mrb[0].mxu0 %v2630
        %v4063 = vpop.f32.mrb[0].mxu0
        %v4064 = vadd.f32 %v2200, %v4063
        %v4065 = vpop.f32.mrb[0].mxu0
        %4066 = vmatprep.mubr.f32.mxu0 0.0
        %4067 = vmatmul.mubr.f32.gmra.mrb[0].mxu0 %v2633
        %v4068 = vpop.f32.mrb[0].mxu0
        %v4069 = vadd.f32 %v2200, %v4068
        %v4070 = vpop.f32.mrb[0].mxu0
        %4071 = vmatprep.mubr.f32.mxu0 0.0
        %4072 = vmatmul.mubr.f32.gmra.mrb[0].mxu0 %v2636
        %v4073 = vpop.f32.mrb[0].mxu0
        %v4074 = vadd.f32 %v2200, %v4073
        %v4075 = vpop.f32.mrb[0].mxu0
        %4076 = vmatprep.mubr.f32.mxu0 0.0
        %4077 = vmatmul.mubr.f32.gmra.mrb[0].mxu0 %v2639
        %v4078 = vpop.f32.mrb[0].mxu0
        %v4079 = vadd.f32 %v2200, %v4078
        %v4080 = vpop.f32.mrb[0].mxu0
        %4081 = vmatprep.mubr.f32.mxu0 0.0
        %4082 = vmatmul.mubr.f32.gmra.mrb[0].mxu0 %v2642
        %v4083 = vpop.f32.mrb[0].mxu0
        %v4084 = vadd.f32 %v2200, %v4083
        %v4085 = vpop.f32.mrb[0].mxu0
        %4086 = vmatprep.mubr.f32.mxu0 0.0
        %4087 = vmatmul.mubr.f32.gmra.mrb[0].mxu0 %v2645
        %v4088 = vpop.f32.mrb[0].mxu0
        %v4089 = vadd.f32 %v2200, %v4088
        %v4090 = vpop.f32.mrb[0].mxu0
        %4091 = vmatprep.mubr.f32.mxu0 0.0
        %4092 = vmatmul.mubr.f32.gmra.mrb[0].mxu0 %v2648
        %v4093 = vpop.f32.mrb[0].mxu0
        %v4094 = vadd.f32 %v2200, %v4093
        %v4095 = vpop.f32.mrb[0].mxu0
        %4096 = vmatprep.mubr.f32.mxu0 0.0
        %4097 = vmatmul.mubr.f32.gmra.mrb[0].mxu0 %v2651
        %v4098 = vpop.f32.mrb[0].mxu0
        %v4099 = vadd.f32 %v2200, %v4098
        %v4100 = vpop.f32.mrb[0].mxu0
        %4101 = vmatprep.mubr.f32.mxu0 0.0
        %4102 = vmatmul.mubr.f32.gmra.mrb[0].mxu0 %v2654
        %v4103 = vpop.f32.mrb[0].mxu0
        %v4104 = vadd.f32 %v2200, %v4103
        %v4105 = vpop.f32.mrb[0].mxu0
        %4106 = vmatprep.mubr.f32.mxu0 0.0
        %4107 = vmatmul.mubr.f32.gmra.mrb[0].mxu0 %v2657
        %v4108 = vpop.f32.mrb[0].mxu0
        %v4109 = vadd.f32 %v2200, %v4108
        %v4110 = vpop.f32.mrb[0].mxu0
        %4111 = vmatprep.mubr.f32.mxu0 0.0
        %4112 = vmatmul.mubr.f32.gmra.mrb[0].mxu0 %v2660
        %v4113 = vpop.f32.mrb[0].mxu0
        %v4114 = vadd.f32 %v2200, %v4113
        %v4115 = vpop.f32.mrb[0].mxu0
        %4116 = vmatprep.mubr.f32.mxu0 0.0
        %4117 = vmatmul.mubr.f32.gmra.mrb[0].mxu0 %v2663
        %v4118 = vpop.f32.mrb[0].mxu0
        %v4119 = vadd.f32 %v2200, %v4118
        %v4120 = vpop.f32.mrb[0].mxu0
        %4121 = vmatprep.mubr.f32.mxu0 0.0
        %4122 = vmatmul.mubr.f32.gmra.mrb[0].mxu0 %v2666
        %v4123 = vpop.f32.mrb[0].mxu0
        %v4124 = vadd.f32 %v2200, %v4123
        %v4125 = vpop.f32.mrb[0].mxu0
        %4126 = vmatprep.mubr.f32.mxu0 0.0
        %4127 = vmatmul.mubr.f32.gmra.mrb[0].mxu0 %v2669
        %v4128 = vpop.f32.mrb[0].mxu0
        %v4129 = vadd.f32 %v2200, %v4128
        %v4130 = vpop.f32.mrb[0].mxu0
        %4131 = vmatprep.mubr.f32.mxu0 0.0
        %4132 = vmatmul.mubr.f32.gmra.mrb[0].mxu0 %v2672
        %v4133 = vpop.f32.mrb[0].mxu0
        %v4134 = vadd.f32 %v2200, %v4133
        %v4135 = vpop.f32.mrb[0].mxu0
        %4136 = vmatprep.mubr.f32.mxu0 0.0
        %4137 = vmatmul.mubr.f32.gmra.mrb[0].mxu0 %v2675
        %v4138 = vpop.f32.mrb[0].mxu0
        %v4139 = vadd.f32 %v2200, %v4138
        %v4140 = vpop.f32.mrb[0].mxu0
        %4141 = vmatprep.mubr.f32.mxu0 0.0
        %4142 = vmatmul.mubr.f32.gmra.mrb[0].mxu0 %v2678
        %v4143 = vpop.f32.mrb[0].mxu0
        %v4144 = vadd.f32 %v2200, %v4143
        %v4145 = vpop.f32.mrb[0].mxu0
        %4146 = vmatprep.mubr.f32.mxu0 0.0
        %4147 = vmatmul.mubr.f32.gmra.mrb[0].mxu0 %v2681
        %v4148 = vpop.f32.mrb[0].mxu0
        %v4149 = vadd.f32 %v2200, %v4148
        %v4150 = vpop.f32.mrb[0].mxu0
        %4151 = vmatprep.mubr.f32.mxu0 0.0
        %4152 = vmatmul.mubr.f32.gmra.mrb[0].mxu0 %v2684
        %v4153 = vpop.f32.mrb[0].mxu0
        %v4154 = vadd.f32 %v2200, %v4153
        %v4155 = vpop.f32.mrb[0].mxu0
        %4156 = vmatprep.mubr.f32.mxu0 0.0
        %4157 = vmatmul.mubr.f32.gmra.mrb[0].mxu0 %v2687
        %v4158 = vpop.f32.mrb[0].mxu0
        %v4159 = vadd.f32 %v2200, %v4158
        %v4160 = vpop.f32.mrb[0].mxu0
        %4161 = vmatprep.mubr.f32.mxu0 0.0
        %4162 = vmatmul.mubr.f32.gmra.mrb[0].mxu0 %v2690
        %v4163 = vpop.f32.mrb[0].mxu0
        %v4164 = vadd.f32 %v2200, %v4163
        %v4165 = vpop.f32.mrb[0].mxu0
        %4166 = vmatprep.mubr.f32.mxu0 0.0
        %4167 = vmatmul.mubr.f32.gmra.mrb[0].mxu0 %v2693
        %v4168 = vpop.f32.mrb[0].mxu0
        %v4169 = vadd.f32 %v2200, %v4168
        %v4170 = vpop.f32.mrb[0].mxu0
        %4171 = vmatprep.mubr.f32.mxu0 0.0
        %4172 = vmatmul.mubr.f32.gmra.mrb[0].mxu0 %v2696
        %v4173 = vpop.f32.mrb[0].mxu0
        %v4174 = vadd.f32 %v2200, %v4173
        %v4175 = vpop.f32.mrb[0].mxu0
        %4176 = vmatprep.mubr.f32.mxu0 0.0
        %4177 = vmatmul.mubr.f32.gmra.mrb[0].mxu0 %v2699
        %v4178 = vpop.f32.mrb[0].mxu0
        %v4179 = vadd.f32 %v2200, %v4178
        %v4180 = vpop.f32.mrb[0].mxu0
        %4181 = vmatprep.mubr.f32.mxu0 0.0
        %4182 = vmatmul.mubr.f32.gmra.mrb[0].mxu0 %v2702
        %v4183 = vpop.f32.mrb[0].mxu0
        %v4184 = vadd.f32 %v2200, %v4183
        %v4185 = vpop.f32.mrb[0].mxu0
        %4186 = vmatprep.mubr.f32.mxu0 0.0
        %4187 = vmatmul.mubr.f32.gmra.mrb[0].mxu0 %v2705
        %v4188 = vpop.f32.mrb[0].mxu0
        %v4189 = vadd.f32 %v2200, %v4188
        %v4190 = vpop.f32.mrb[0].mxu0
        %4191 = vmatprep.mubr.f32.mxu0 0.0
        %4192 = vmatmul.mubr.f32.gmra.mrb[0].mxu0 %v2708
        %v4193 = vpop.f32.mrb[0].mxu0
        %v4194 = vadd.f32 %v2200, %v4193
        %v4195 = vpop.f32.mrb[0].mxu0
        %4196 = vmatprep.mubr.f32.mxu0 0.0
        %4197 = vmatmul.mubr.f32.gmra.mrb[0].mxu0 %v2711
        %v4198 = vpop.f32.mrb[0].mxu0
        %v4199 = vadd.f32 %v2200, %v4198
        %v4200 = vpop.f32.mrb[0].mxu0
        %4201 = vmatprep.mubr.f32.mxu0 0.0
        %4202 = vmatmul.mubr.f32.gmra.mrb[0].mxu0 %v2714
        %v4203 = vpop.f32.mrb[0].mxu0
        %v4204 = vadd.f32 %v2200, %v4203
        %v4205 = vpop.f32.mrb[0].mxu0
        %4206 = vmatprep.mubr.f32.mxu0 0.0
        %4207 = vmatmul.mubr.f32.gmra.mrb[0].mxu0 %v2717
        %v4208 = vpop.f32.mrb[0].mxu0
        %v4209 = vadd.f32 %v2200, %v4208
        %v4210 = vpop.f32.mrb[0].mxu0
        %4211 = vmatprep.mubr.f32.mxu0 0.0
        %4212 = vmatmul.mubr.f32.gmra.mrb[0].mxu0 %v2720
        %v4213 = vpop.f32.mrb[0].mxu0
        %v4214 = vadd.f32 %v2200, %v4213
        %v4215 = vpop.f32.mrb[0].mxu0
        %4216 = vmatprep.mubr.f32.mxu0 0.0
        %4217 = vmatmul.mubr.f32.gmra.mrb[0].mxu0 %v2723
        %v4218 = vpop.f32.mrb[0].mxu0
        %v4219 = vadd.f32 %v2200, %v4218
        %v4220 = vpop.f32.mrb[0].mxu0
        %4221 = vmatprep.mubr.f32.mxu0 0.0
        %4222 = vmatmul.mubr.f32.gmra.mrb[0].mxu0 %v2726
        %v4223 = vpop.f32.mrb[0].mxu0
        %v4224 = vadd.f32 %v2200, %v4223
        %v4225 = vpop.f32.mrb[0].mxu0
        %4226 = vmatprep.mubr.f32.mxu0 0.0
        %4227 = vmatmul.mubr.f32.gmra.mrb[0].mxu0 %v2729
        %v4228 = vpop.f32.mrb[0].mxu0
        %v4229 = vadd.f32 %v2200, %v4228
        %v4230 = vpop.f32.mrb[0].mxu0
        %4231 = vmatprep.mubr.f32.mxu0 0.0
        %4232 = vmatmul.mubr.f32.gmra.mrb[0].mxu0 %v2732
        %v4233 = vpop.f32.mrb[0].mxu0
        %v4234 = vadd.f32 %v2200, %v4233
        %v4235 = vpop.f32.mrb[0].mxu0
        %4236 = vmatprep.mubr.f32.mxu0 0.0
        %4237 = vmatmul.mubr.f32.gmra.mrb[0].mxu0 %v2735
        %v4238 = vpop.f32.mrb[0].mxu0
        %v4239 = vadd.f32 %v2200, %v4238
        %v4240 = vpop.f32.mrb[0].mxu0
        %4241 = vmatprep.mubr.f32.mxu0 0.0
        %4242 = vmatmul.mubr.f32.gmra.mrb[0].mxu0 %v2738
        %v4243 = vpop.f32.mrb[0].mxu0
        %v4244 = vadd.f32 %v2200, %v4243
        %v4245 = vpop.f32.mrb[0].mxu0
        %4246 = vmatprep.mubr.f32.mxu0 0.0
        %4247 = vmatmul.mubr.f32.gmra.mrb[0].mxu0 %v2741
        %v4248 = vpop.f32.mrb[0].mxu0
        %v4249 = vadd.f32 %v2200, %v4248
        %v4250 = vpop.f32.mrb[0].mxu0
        %4251 = vmatprep.mubr.f32.mxu0 0.0
        %4252 = vmatmul.mubr.f32.gmra.mrb[0].mxu0 %v2744
        %v4253 = vpop.f32.mrb[0].mxu0
        %v4254 = vadd.f32 %v2200, %v4253
        %v4255 = vpop.f32.mrb[0].mxu0
        %4256 = vmatprep.mubr.f32.mxu0 0.0
        %4257 = vmatmul.mubr.f32.gmra.mrb[0].mxu0 %v2747
        %v4258 = vpop.f32.mrb[0].mxu0
        %v4259 = vadd.f32 %v2200, %v4258
        %v4260 = vpop.f32.mrb[0].mxu0
        %4261 = vmatprep.mubr.f32.mxu0 0.0
        %4262 = vmatmul.mubr.f32.gmra.mrb[0].mxu0 %v2750
        %v4263 = vpop.f32.mrb[0].mxu0
        %v4264 = vadd.f32 %v2200, %v4263
        %v4265 = vpop.f32.mrb[0].mxu0
        %4266 = vmatprep.mubr.f32.mxu0 0.0
        %4267 = vmatmul.mubr.f32.gmra.mrb[0].mxu0 %v2753
        %v4268 = vpop.f32.mrb[0].mxu0
        %v4269 = vadd.f32 %v2200, %v4268
        %v4270 = vpop.f32.mrb[0].mxu0
        %4271 = vmatprep.mubr.f32.mxu0 0.0
        %4272 = vmatmul.mubr.f32.gmra.mrb[0].mxu0 %v2756
        %v4273 = vpop.f32.mrb[0].mxu0
        %v4274 = vadd.f32 %v2200, %v4273
        %v4275 = vpop.f32.mrb[0].mxu0
        %4276 = vmatprep.mubr.f32.mxu0 0.0
        %4277 = vmatmul.mubr.f32.gmra.mrb[0].mxu0 %v2759
        %v4278 = vpop.f32.mrb[0].mxu0
        %v4279 = vadd.f32 %v2200, %v4278
        %v4280 = vpop.f32.mrb[0].mxu0
        %4281 = vmatprep.mubr.f32.mxu0 0.0
        %4282 = vmatmul.mubr.f32.gmra.mrb[0].mxu0 %v2762
        %v4283 = vpop.f32.mrb[0].mxu0
        %v4284 = vadd.f32 %v2200, %v4283
        %v4285 = vpop.f32.mrb[0].mxu0
        %4286 = vmatprep.mubr.f32.mxu0 0.0
        %4287 = vmatmul.mubr.f32.gmra.mrb[0].mxu0 %v2765
        %v4288 = vpop.f32.mrb[0].mxu0
        %v4289 = vadd.f32 %v2200, %v4288
        %v4290 = vpop.f32.mrb[0].mxu0
        %4291 = vmatprep.mubr.f32.mxu0 0.0
        %4292 = vmatmul.mubr.f32.gmra.mrb[0].mxu0 %v2768
        %v4293 = vpop.f32.mrb[0].mxu0
        %v4294 = vadd.f32 %v2200, %v4293
        %v4295 = vpop.f32.mrb[0].mxu0
        %4296 = vmatprep.mubr.f32.mxu0 0.0
        %4297 = vmatmul.mubr.f32.gmra.mrb[0].mxu0 %v2771
        %v4298 = vpop.f32.mrb[0].mxu0
        %v4299 = vadd.f32 %v2200, %v4298
        %v4300 = vpop.f32.mrb[0].mxu0
        %4301 = vmatprep.mubr.f32.mxu0 0.0
        %4302 = vmatmul.mubr.f32.gmra.mrb[0].mxu0 %v2774
        %v4303 = vpop.f32.mrb[0].mxu0
        %v4304 = vadd.f32 %v2200, %v4303
        %v4305 = vpop.f32.mrb[0].mxu0
        %4306 = vmatprep.mubr.f32.mxu0 0.0
        %4307 = vmatmul.mubr.f32.gmra.mrb[0].mxu0 %v2777
        %v4308 = vpop.f32.mrb[0].mxu0
        %v4309 = vadd.f32 %v2200, %v4308
        %v4310 = vpop.f32.mrb[0].mxu0
        %4311 = vmatprep.mubr.f32.mxu0 0.0
        %4312 = vmatmul.mubr.f32.gmra.mrb[0].mxu0 %v2780
        %v4313 = vpop.f32.mrb[0].mxu0
        %v4314 = vadd.f32 %v2200, %v4313
        %v4315 = vpop.f32.mrb[0].mxu0
        %4316 = vmatprep.mubr.f32.mxu0 0.0
        %4317 = vmatmul.mubr.f32.gmra.mrb[0].mxu0 %v2783
        %v4318 = vpop.f32.mrb[0].mxu0
        %v4319 = vadd.f32 %v2200, %v4318
        %v4320 = vpop.f32.mrb[0].mxu0
        %4321 = vmatprep.mubr.f32.mxu0 0.0
        %4322 = vmatmul.mubr.f32.gmra.mrb[0].mxu0 %v2786
        %v4323 = vpop.f32.mrb[0].mxu0
        %v4324 = vadd.f32 %v2200, %v4323
        %v4325 = vpop.f32.mrb[0].mxu0
        %4326 = vmatprep.mubr.f32.mxu0 0.0
        %4327 = vmatmul.mubr.f32.gmra.mrb[0].mxu0 %v2789
        %v4328 = vpop.f32.mrb[0].mxu0
        %v4329 = vadd.f32 %v2200, %v4328
        %v4330 = vpop.f32.mrb[0].mxu0
        %4331 = vmatprep.mubr.f32.mxu0 0.0
        %4332 = vmatmul.mubr.f32.gmra.mrb[0].mxu0 %v2792
        %v4333 = vpop.f32.mrb[0].mxu0
        %v4334 = vadd.f32 %v2200, %v4333
        %v4335 = vpop.f32.mrb[0].mxu0
        %4336 = vmatprep.mubr.f32.mxu0 0.0
        %4337 = vmatmul.mubr.f32.gmra.mrb[0].mxu0 %v2795
        %v4338 = vpop.f32.mrb[0].mxu0
        %v4339 = vadd.f32 %v2200, %v4338
        %v4340 = vpop.f32.mrb[0].mxu0
        %4341 = vmatprep.mubr.f32.mxu0 0.0
        %4342 = vmatmul.mubr.f32.gmra.mrb[0].mxu0 %v2798
        %v4343 = vpop.f32.mrb[0].mxu0
        %v4344 = vadd.f32 %v2200, %v4343
        %v4345 = vpop.f32.mrb[0].mxu0
        %4346 = vmatprep.mubr.f32.mxu0 0.0
        %4347 = vmatmul.mubr.f32.gmra.mrb[0].mxu0 %v2801
        %v4348 = vpop.f32.mrb[0].mxu0
        %v4349 = vadd.f32 %v2200, %v4348
        %v4350 = vpop.f32.mrb[0].mxu0
        %4351 = vmatprep.mubr.f32.mxu0 0.0
        %4352 = vmatmul.mubr.f32.gmra.mrb[0].mxu0 %v2804
        %v4353 = vpop.f32.mrb[0].mxu0
        %v4354 = vadd.f32 %v2200, %v4353
        %v4355 = vpop.f32.mrb[0].mxu0
        %4356 = vmatprep.mubr.f32.mxu0 0.0
        %4357 = vmatmul.mubr.f32.gmra.mrb[0].mxu0 %v2807
        %v4358 = vpop.f32.mrb[0].mxu0
        %v4359 = vadd.f32 %v2200, %v4358
        %v4360 = vpop.f32.mrb[0].mxu0
        %4361 = vmatprep.mubr.f32.mxu0 0.0
        %4362 = vmatmul.mubr.f32.gmra.mrb[0].mxu0 %v2810
        %v4363 = vpop.f32.mrb[0].mxu0
        %v4364 = vadd.f32 %v2200, %v4363
        %v4365 = vpop.f32.mrb[0].mxu0
        %4366 = vmatprep.mubr.f32.mxu0 0.0
        %4367 = vmatmul.mubr.f32.gmra.mrb[0].mxu0 %v2813
        %v4368 = vpop.f32.mrb[0].mxu0
        %v4369 = vadd.f32 %v2200, %v4368
        %v4370 = vpop.f32.mrb[0].mxu0
        %4371 = vmatprep.mubr.f32.mxu0 0.0
        %4372 = vmatmul.mubr.f32.gmra.mrb[0].mxu0 %v2816
        %v4373 = vpop.f32.mrb[0].mxu0
        %v4374 = vadd.f32 %v2200, %v4373
        %v4375 = vpop.f32.mrb[0].mxu0
        %4376 = vmatprep.mubr.f32.mxu0 0.0
        %4377 = vmatmul.mubr.f32.gmra.mrb[0].mxu0 %v2819
        %v4378 = vpop.f32.mrb[0].mxu0
        %v4379 = vadd.f32 %v2200, %v4378
        %v4380 = vpop.f32.mrb[0].mxu0
        %4381 = vmatprep.mubr.f32.mxu0 0.0
        %4382 = vmatmul.mubr.f32.gmra.mrb[0].mxu0 %v2822
        %v4383 = vpop.f32.mrb[0].mxu0
        %v4384 = vadd.f32 %v2200, %v4383
        %v4385 = vpop.f32.mrb[0].mxu0
        %4386 = vmatprep.mubr.f32.mxu0 0.0
        %4387 = vmatmul.mubr.f32.gmra.mrb[0].mxu0 %v2825
        %v4388 = vpop.f32.mrb[0].mxu0
        %v4389 = vadd.f32 %v2200, %v4388
        %v4390 = vpop.f32.mrb[0].mxu0
        %4391 = vmatprep.mubr.f32.mxu0 0.0
        %4392 = vmatmul.mubr.f32.gmra.mrb[0].mxu0 %v2828
        %v4393 = vpop.f32.mrb[0].mxu0
        %v4394 = vadd.f32 %v2200, %v4393
        %v4395 = vpop.f32.mrb[0].mxu0
        %4396 = vmatprep.mubr.f32.mxu0 0.0
        %4397 = vmatmul.mubr.f32.gmra.mrb[0].mxu0 %v2831
        %v4398 = vpop.f32.mrb[0].mxu0
        %v4399 = vadd.f32 %v2200, %v4398
        %v4400 = vpop.f32.mrb[0].mxu0
        %4401 = vmatprep.mubr.f32.mxu0 0.0
        %4402 = vmatmul.mubr.f32.gmra.mrb[0].mxu0 %v2834
        %v4403 = vpop.f32.mrb[0].mxu0
        %v4404 = vadd.f32 %v2200, %v4403
        %v4405 = vpop.f32.mrb[0].mxu0
        %4406 = vmatprep.mubr.f32.mxu0 0.0
        %4407 = vmatmul.mubr.f32.gmra.mrb[0].mxu0 %v2837
        %v4408 = vpop.f32.mrb[0].mxu0
        %v4409 = vadd.f32 %v2200, %v4408
        %v4410 = vpop.f32.mrb[0].mxu0
        %4411 = vmatprep.mubr.f32.mxu0 0.0
        %4412 = vmatmul.mubr.f32.gmra.mrb[0].mxu0 %v2840
        %v4413 = vpop.f32.mrb[0].mxu0
        %v4414 = vadd.f32 %v2200, %v4413
        %v4415 = vpop.f32.mrb[0].mxu0
        %4416 = vmatprep.mubr.f32.mxu0 0.0
        %4417 = vmatmul.mubr.f32.gmra.mrb[0].mxu0 %v2843
        %v4418 = vpop.f32.mrb[0].mxu0
        %v4419 = vadd.f32 %v2200, %v4418
        %v4420 = vpop.f32.mrb[0].mxu0
        %4421 = vmatprep.mubr.f32.mxu0 0.0
        %4422 = vmatmul.mubr.f32.gmra.mrb[0].mxu0 %v2846
        %v4423 = vpop.f32.mrb[0].mxu0
        %v4424 = vadd.f32 %v2200, %v4423
        %v4425 = vpop.f32.mrb[0].mxu0
        %4426 = vmatprep.mubr.f32.mxu0 0.0
        %4427 = vmatmul.mubr.f32.gmra.mrb[0].mxu0 %v2849
        %v4428 = vpop.f32.mrb[0].mxu0
        %v4429 = vadd.f32 %v2200, %v4428
        %v4430 = vpop.f32.mrb[0].mxu0
        %4431 = vmatprep.mubr.f32.mxu0 0.0
        %4432 = vmatmul.mubr.f32.gmra.mrb[0].mxu0 %v2852
        %v4433 = vpop.f32.mrb[0].mxu0
        %v4434 = vadd.f32 %v2200, %v4433
        %v4435 = vpop.f32.mrb[0].mxu0
        %4436 = vmatprep.mubr.f32.mxu0 0.0
        %4437 = vmatmul.mubr.f32.gmra.mrb[0].mxu0 %v2855
        %v4438 = vpop.f32.mrb[0].mxu0
        %v4439 = vadd.f32 %v2200, %v4438
        %v4440 = vpop.f32.mrb[0].mxu0
        %4441 = vmatprep.mubr.f32.mxu0 0.0
        %4442 = vmatmul.mubr.f32.gmra.mrb[0].mxu0 %v2858
        %v4443 = vpop.f32.mrb[0].mxu0
        %v4444 = vadd.f32 %v2200, %v4443
        %v4445 = vpop.f32.mrb[0].mxu0
        %4446 = vmatprep.mubr.f32.mxu0 0.0
        %4447 = vmatmul.mubr.f32.gmra.mrb[0].mxu0 %v2861
        %v4448 = vpop.f32.mrb[0].mxu0
        %v4449 = vadd.f32 %v2200, %v4448
        %v4450 = vpop.f32.mrb[0].mxu0
        %4451 = vmatprep.mubr.f32.mxu0 0.0
        %4452 = vmatmul.mubr.f32.gmra.mrb[0].mxu0 %v2864
        %v4453 = vpop.f32.mrb[0].mxu0
        %v4454 = vadd.f32 %v2200, %v4453
        %v4455 = vpop.f32.mrb[0].mxu0
        %4456 = vmatprep.mubr.f32.mxu0 0.0
        %4457 = vmatmul.mubr.f32.gmra.mrb[0].mxu0 %v2867
        %v4458 = vpop.f32.mrb[0].mxu0
        %v4459 = vadd.f32 %v2200, %v4458
        %v4460 = vpop.f32.mrb[0].mxu0
        %4461 = vmatprep.mubr.f32.mxu0 0.0
        %4462 = vmatmul.mubr.f32.gmra.mrb[0].mxu0 %v2870
        %v4463 = vpop.f32.mrb[0].mxu0
        %v4464 = vadd.f32 %v2200, %v4463
        %v4465 = vpop.f32.mrb[0].mxu0
        %4466 = vmatprep.mubr.f32.mxu0 0.0
        %4467 = vmatmul.mubr.f32.gmra.mrb[0].mxu0 %v2873
        %v4468 = vpop.f32.mrb[0].mxu0
        %v4469 = vadd.f32 %v2200, %v4468
        %v4470 = vpop.f32.mrb[0].mxu0
        %4471 = vmatprep.mubr.f32.mxu0 0.0
        %4472 = vmatmul.mubr.f32.gmra.mrb[0].mxu0 %v2876
        %v4473 = vpop.f32.mrb[0].mxu0
        %v4474 = vadd.f32 %v2200, %v4473
        %v4475 = vpop.f32.mrb[0].mxu0
        %4476 = vmatprep.mubr.f32.mxu0 0.0
        %4477 = vmatmul.mubr.f32.gmra.mrb[0].mxu0 %v2879
        %v4478 = vpop.f32.mrb[0].mxu0
        %v4479 = vadd.f32 %v2200, %v4478
        %v4480 = vpop.f32.mrb[0].mxu0
        %4481 = vmatprep.mubr.f32.mxu0 0.0
        %4482 = vmatmul.mubr.f32.gmra.mrb[0].mxu0 %v2882
        %v4483 = vpop.f32.mrb[0].mxu0
        %v4484 = vadd.f32 %v2200, %v4483
        %v4485 = vpop.f32.mrb[0].mxu0
        %4486 = vmatprep.mubr.f32.mxu0 0.0
        %4487 = vmatmul.mubr.f32.gmra.mrb[0].mxu0 %v2885
        %v4488 = vpop.f32.mrb[0].mxu0
        %v4489 = vadd.f32 %v2200, %v4488
        %v4490 = vpop.f32.mrb[0].mxu0
        %4491 = vmatprep.mubr.f32.mxu0 0.0
        %4492 = vmatmul.mubr.f32.gmra.mrb[0].mxu0 %v2888
        %v4493 = vpop.f32.mrb[0].mxu0
        %v4494 = vadd.f32 %v2200, %v4493
        %v4495 = vpop.f32.mrb[0].mxu0
        %4496 = vmatprep.mubr.f32.mxu0 0.0
        %4497 = vmatmul.mubr.f32.gmra.mrb[0].mxu0 %v2891
        %v4498 = vpop.f32.mrb[0].mxu0
        %v4499 = vadd.f32 %v2200, %v4498
        %v4500 = vpop.f32.mrb[0].mxu0
        %4501 = vmatprep.mubr.f32.mxu0 0.0
        %4502 = vmatmul.mubr.f32.gmra.mrb[0].mxu0 %v2894
        %v4503 = vpop.f32.mrb[0].mxu0
        %v4504 = vadd.f32 %v2200, %v4503
        %v4505 = vpop.f32.mrb[0].mxu0
        %4506 = vmatprep.mubr.f32.mxu0 0.0
        %4507 = vmatmul.mubr.f32.gmra.mrb[0].mxu0 %v2897
        %v4508 = vpop.f32.mrb[0].mxu0
        %v4509 = vadd.f32 %v2200, %v4508
        %v4510 = vpop.f32.mrb[0].mxu0
        %4511 = vmatprep.mubr.f32.mxu0 0.0
        %4512 = vmatmul.mubr.f32.gmra.mrb[0].mxu0 %v2900
        %v4513 = vpop.f32.mrb[0].mxu0
        %v4514 = vadd.f32 %v2200, %v4513
        %v4515 = vpop.f32.mrb[0].mxu0
        %4516 = vmatprep.mubr.f32.mxu0 0.0
        %4517 = vmatmul.mubr.f32.gmra.mrb[0].mxu0 %v2903
        %v4518 = vpop.f32.mrb[0].mxu0
        %v4519 = vadd.f32 %v2200, %v4518
        %v4520 = vpop.f32.mrb[0].mxu0
        %4521 = vmatprep.mubr.f32.mxu0 0.0
        %4522 = vmatmul.mubr.f32.gmra.mrb[0].mxu0 %v2906
        %v4523 = vpop.f32.mrb[0].mxu0
        %v4524 = vadd.f32 %v2200, %v4523
        %v4525 = vpop.f32.mrb[0].mxu0
        %4526 = vmatprep.mubr.f32.mxu0 0.0
        %4527 = vmatmul.mubr.f32.gmra.mrb[0].mxu0 %v2909
        %v4528 = vpop.f32.mrb[0].mxu0
        %v4529 = vadd.f32 %v2200, %v4528
        %v4530 = vpop.f32.mrb[0].mxu0
        %4531 = vmatprep.mubr.f32.mxu0 0.0
        %4532 = vmatmul.mubr.f32.gmra.mrb[0].mxu0 %v2912
        %v4533 = vpop.f32.mrb[0].mxu0
        %v4534 = vadd.f32 %v2200, %v4533
        %v4535 = vpop.f32.mrb[0].mxu0
        %4536 = vmatprep.mubr.f32.mxu0 0.0
        %4537 = vmatmul.mubr.f32.gmra.mrb[0].mxu0 %v2915
        %v4538 = vpop.f32.mrb[0].mxu0
        %v4539 = vadd.f32 %v2200, %v4538
        %v4540 = vpop.f32.mrb[0].mxu0
        %4541 = vmatprep.mubr.f32.mxu0 0.0
        %4542 = vmatmul.mubr.f32.gmra.mrb[0].mxu0 %v2918
        %v4543 = vpop.f32.mrb[0].mxu0
        %v4544 = vadd.f32 %v2200, %v4543
        %v4545 = vpop.f32.mrb[0].mxu0
        %4546 = vmatprep.mubr.f32.mxu0 0.0
        %4547 = vmatmul.mubr.f32.gmra.mrb[0].mxu0 %v2921
        %v4548 = vpop.f32.mrb[0].mxu0
        %v4549 = vadd.f32 %v2200, %v4548
        %v4550 = vpop.f32.mrb[0].mxu0
        %4551 = vmatprep.mubr.f32.mxu0 0.0
        %4552 = vmatmul.mubr.f32.gmra.mrb[0].mxu0 %v2924
        %v4553 = vpop.f32.mrb[0].mxu0
        %v4554 = vadd.f32 %v2200, %v4553
        %v4555 = vpop.f32.mrb[0].mxu0
        %4556 = vmatprep.mubr.f32.mxu0 0.0
        %4557 = vmatmul.mubr.f32.gmra.mrb[0].mxu0 %v2927
        %v4558 = vpop.f32.mrb[0].mxu0
        %v4559 = vadd.f32 %v2200, %v4558
        %v4560 = vpop.f32.mrb[0].mxu0
        %4561 = vmatprep.mubr.f32.mxu0 0.0
        %4562 = vmatmul.mubr.f32.gmra.mrb[0].mxu0 %v2930
        %v4563 = vpop.f32.mrb[0].mxu0
        %v4564 = vadd.f32 %v2200, %v4563
        %v4565 = vpop.f32.mrb[0].mxu0
        %4566 = vmatprep.mubr.f32.mxu0 0.0
        %4567 = vmatmul.mubr.f32.gmra.mrb[0].mxu0 %v2933
        %v4568 = vpop.f32.mrb[0].mxu0
        %v4569 = vadd.f32 %v2200, %v4568
        %v4570 = vpop.f32.mrb[0].mxu0
        %4571 = vmatprep.mubr.f32.mxu0 0.0
        %4572 = vmatmul.mubr.f32.gmra.mrb[0].mxu0 %v2936
        %v4573 = vpop.f32.mrb[0].mxu0
        %v4574 = vadd.f32 %v2200, %v4573
        %v4575 = vpop.f32.mrb[0].mxu0
        %4576 = vmatprep.mubr.f32.mxu0 0.0
        %4577 = vmatmul.mubr.f32.gmra.mrb[0].mxu0 %v2939
        %v4578 = vpop.f32.mrb[0].mxu0
        %v4579 = vadd.f32 %v2200, %v4578
        %v4580 = vpop.f32.mrb[0].mxu0
        %4581 = vmatprep.mubr.f32.mxu0 0.0
        %4582 = vmatmul.mubr.f32.gmra.mrb[0].mxu0 %v2942
        %v4583 = vpop.f32.mrb[0].mxu0
        %v4584 = vadd.f32 %v2200, %v4583
        %v4585 = vpop.f32.mrb[0].mxu0
        %4586 = vmatprep.mubr.f32.mxu0 0.0
        %4587 = vmatmul.mubr.f32.gmra.mrb[0].mxu0 %v2945
        %v4588 = vpop.f32.mrb[0].mxu0
        %v4589 = vadd.f32 %v2200, %v4588
        %v4590 = vpop.f32.mrb[0].mxu0
        %4591 = vmatprep.mubr.f32.mxu0 0.0
        %4592 = vmatmul.mubr.f32.gmra.mrb[0].mxu0 %v2948
        %v4593 = vpop.f32.mrb[0].mxu0
        %v4594 = vadd.f32 %v2200, %v4593
        %v4595 = vpop.f32.mrb[0].mxu0
        %4596 = vmatprep.mubr.f32.mxu0 0.0
        %4597 = vmatmul.mubr.f32.gmra.mrb[0].mxu0 %v2951
        %v4598 = vpop.f32.mrb[0].mxu0
        %v4599 = vadd.f32 %v2200, %v4598
        %v4600 = vpop.f32.mrb[0].mxu0
        %4601 = vmatprep.mubr.f32.mxu0 0.0
        %4602 = vmatmul.mubr.f32.gmra.mrb[0].mxu0 %v2954
        %v4603 = vpop.f32.mrb[0].mxu0
        %v4604 = vadd.f32 %v2200, %v4603
        %v4605 = vpop.f32.mrb[0].mxu0
        %4606 = vmatprep.mubr.f32.mxu0 0.0
        %4607 = vmatmul.mubr.f32.gmra.mrb[0].mxu0 %v2957
        %v4608 = vpop.f32.mrb[0].mxu0
        %v4609 = vadd.f32 %v2200, %v4608
        %v4610 = vpop.f32.mrb[0].mxu0
        %4611 = vmatprep.mubr.f32.mxu0 0.0
        %4612 = vmatmul.mubr.f32.gmra.mrb[0].mxu0 %v2960
        %v4613 = vpop.f32.mrb[0].mxu0
        %v4614 = vadd.f32 %v2200, %v4613
        %v4615 = vpop.f32.mrb[0].mxu0
        %4616 = vmatprep.mubr.f32.mxu0 0.0
        %4617 = vmatmul.mubr.f32.gmra.mrb[0].mxu0 %v2963
        %v4618 = vpop.f32.mrb[0].mxu0
        %v4619 = vadd.f32 %v2200, %v4618
        %v4620 = vpop.f32.mrb[0].mxu0
        %4621 = vmatprep.mubr.f32.mxu0 0.0
        %4622 = vmatmul.mubr.f32.gmra.mrb[0].mxu0 %v2966
        %v4623 = vpop.f32.mrb[0].mxu0
        %v4624 = vadd.f32 %v2200, %v4623
        %v4625 = vpop.f32.mrb[0].mxu0
        %4626 = vmatprep.mubr.f32.mxu0 0.0
        %4627 = vmatmul.mubr.f32.gmra.mrb[0].mxu0 %v2969
        %v4628 = vpop.f32.mrb[0].mxu0
        %v4629 = vadd.f32 %v2200, %v4628
        %v4630 = vpop.f32.mrb[0].mxu0
        %4631 = vmatprep.mubr.f32.mxu0 0.0
        %4632 = vmatmul.mubr.f32.gmra.mrb[0].mxu0 %v2972
        %v4633 = vpop.f32.mrb[0].mxu0
        %v4634 = vadd.f32 %v2200, %v4633
        %v4635 = vpop.f32.mrb[0].mxu0
        %4636 = vmatprep.mubr.f32.mxu0 0.0
        %4637 = vmatmul.mubr.f32.gmra.mrb[0].mxu0 %v2975
        %v4638 = vpop.f32.mrb[0].mxu0
        %v4639 = vadd.f32 %v2200, %v4638
        %v4640 = vpop.f32.mrb[0].mxu0
        %4641 = vmatprep.mubr.f32.mxu0 0.0
        %4642 = vmatmul.mubr.f32.gmra.mrb[0].mxu0 %v2978
        %v4643 = vpop.f32.mrb[0].mxu0
        %v4644 = vadd.f32 %v2200, %v4643
        %v4645 = vpop.f32.mrb[0].mxu0
        %4646 = vmatprep.mubr.f32.mxu0 0.0
        %4647 = vmatmul.mubr.f32.gmra.mrb[0].mxu0 %v2981
        %v4648 = vpop.f32.mrb[0].mxu0
        %v4649 = vadd.f32 %v2200, %v4648
        %v4650 = vpop.f32.mrb[0].mxu0
        %4651 = vmatprep.mubr.f32.mxu0 0.0
        %4652 = vmatmul.mubr.f32.gmra.mrb[0].mxu0 %v2984
        %v4653 = vpop.f32.mrb[0].mxu0
        %v4654 = vadd.f32 %v2200, %v4653
        %v4655 = vpop.f32.mrb[0].mxu0
        %4656 = vmatprep.mubr.f32.mxu0 0.0
        %4657 = vmatmul.mubr.f32.gmra.mrb[0].mxu0 %v2987
        %v4658 = vpop.f32.mrb[0].mxu0
        %v4659 = vadd.f32 %v2200, %v4658
        %v4660 = vpop.f32.mrb[0].mxu0
        %4661 = vmatprep.mubr.f32.mxu0 0.0
        %4662 = vmatmul.mubr.f32.gmra.mrb[0].mxu0 %v2990
        %v4663 = vpop.f32.mrb[0].mxu0
        %v4664 = vadd.f32 %v2200, %v4663
        %v4665 = vpop.f32.mrb[0].mxu0
        %4666 = vmatprep.mubr.f32.mxu0 0.0
        %4667 = vmatmul.mubr.f32.gmra.mrb[0].mxu0 %v2993
        %v4668 = vpop.f32.mrb[0].mxu0
        %v4669 = vadd.f32 %v2200, %v4668
        %v4670 = vpop.f32.mrb[0].mxu0
        %4671 = vmatprep.mubr.f32.mxu0 0.0
        %4672 = vmatmul.mubr.f32.gmra.mrb[0].mxu0 %v2996
        %v4673 = vpop.f32.mrb[0].mxu0
        %v4674 = vadd.f32 %v2200, %v4673
        %v4675 = vpop.f32.mrb[0].mxu0
        %4676 = vmatprep.mubr.f32.mxu0 0.0
        %4677 = vmatmul.mubr.f32.gmra.mrb[0].mxu0 %v2999
        %v4678 = vpop.f32.mrb[0].mxu0
        %v4679 = vadd.f32 %v2200, %v4678
        %v4680 = vpop.f32.mrb[0].mxu0
        %4681 = vmatprep.mubr.f32.mxu0 0.0
        %4682 = vmatmul.mubr.f32.gmra.mrb[0].mxu0 %v3002
        %v4683 = vpop.f32.mrb[0].mxu0
        %v4684 = vadd.f32 %v2200, %v4683
        %v4685 = vpop.f32.mrb[0].mxu0
        %4686 = vmatprep.mubr.f32.mxu0 0.0
        %4687 = vmatmul.mubr.f32.gmra.mrb[0].mxu0 %v3005
        %v4688 = vpop.f32.mrb[0].mxu0
        %v4689 = vadd.f32 %v2200, %v4688
        %v4690 = vpop.f32.mrb[0].mxu0
        %4691 = vmatprep.mubr.f32.mxu0 0.0
        %4692 = vmatmul.mubr.f32.gmra.mrb[0].mxu0 %v3008
        %v4693 = vpop.f32.mrb[0].mxu0
        %v4694 = vadd.f32 %v2200, %v4693
        %v4695 = vpop.f32.mrb[0].mxu0
        %4696 = vmatprep.mubr.f32.mxu0 0.0
        %4697 = vmatmul.mubr.f32.gmra.mrb[0].mxu0 %v3011
        %v4698 = vpop.f32.mrb[0].mxu0
        %v4699 = vadd.f32 %v2200, %v4698
        %v4700 = vpop.f32.mrb[0].mxu0
        %4701 = vmatprep.mubr.f32.mxu0 0.0
        %4702 = vmatmul.mubr.f32.gmra.mrb[0].mxu0 %v3014
        %v4703 = vpop.f32.mrb[0].mxu0
        %v4704 = vadd.f32 %v2200, %v4703
        %v4705 = vpop.f32.mrb[0].mxu0
        %4706 = vmatprep.mubr.f32.mxu0 0.0
        %4707 = vmatmul.mubr.f32.gmra.mrb[0].mxu0 %v3017
        %v4708 = vpop.f32.mrb[0].mxu0
        %v4709 = vadd.f32 %v2200, %v4708
        %v4710 = vpop.f32.mrb[0].mxu0
        %4711 = vmatprep.mubr.f32.mxu0 0.0
        %4712 = vmatmul.mubr.f32.gmra.mrb[0].mxu0 %v3020
        %v4713 = vpop.f32.mrb[0].mxu0
        %v4714 = vadd.f32 %v2200, %v4713
        %v4715 = vpop.f32.mrb[0].mxu0
        %4716 = vmatprep.mubr.f32.mxu0 0.0
        %4717 = vmatmul.mubr.f32.gmra.mrb[0].mxu0 %v3023
        %v4718 = vpop.f32.mrb[0].mxu0
        %v4719 = vadd.f32 %v2200, %v4718
        %v4720 = vpop.f32.mrb[0].mxu0
        %4721 = vmatprep.mubr.f32.mxu0 0.0
        %4722 = vmatmul.mubr.f32.gmra.mrb[0].mxu0 %v3026
        %v4723 = vpop.f32.mrb[0].mxu0
        %v4724 = vadd.f32 %v2200, %v4723
        %v4725 = vpop.f32.mrb[0].mxu0
        %4726 = vmatprep.mubr.f32.mxu0 0.0
        %4727 = vmatmul.mubr.f32.gmra.mrb[0].mxu0 %v3029
        %v4728 = vpop.f32.mrb[0].mxu0
        %v4729 = vadd.f32 %v2200, %v4728
        %v4730 = vpop.f32.mrb[0].mxu0
        %4731 = vmatprep.mubr.f32.mxu0 0.0
        %4732 = vmatmul.mubr.f32.gmra.mrb[0].mxu0 %v3032
        %v4733 = vpop.f32.mrb[0].mxu0
        %v4734 = vadd.f32 %v2200, %v4733
        %v4735 = vpop.f32.mrb[0].mxu0
        %4736 = vmatprep.mubr.f32.mxu0 0.0
        %4737 = vmatmul.mubr.f32.gmra.mrb[0].mxu0 %v3035
        %v4738 = vpop.f32.mrb[0].mxu0
        %v4739 = vadd.f32 %v2200, %v4738
        %v4740 = vpop.f32.mrb[0].mxu0
        %4741 = vmatprep.mubr.f32.mxu0 0.0
        %4742 = vmatmul.mubr.f32.gmra.mrb[0].mxu0 %v3038
        %v4743 = vpop.f32.mrb[0].mxu0
        %v4744 = vadd.f32 %v2200, %v4743
        %v4745 = vpop.f32.mrb[0].mxu0
        %4746 = vmatprep.mubr.f32.mxu0 0.0
        %4747 = vmatmul.mubr.f32.gmra.mrb[0].mxu0 %v3041
        %v4748 = vpop.f32.mrb[0].mxu0
        %v4749 = vadd.f32 %v2200, %v4748
        %v4750 = vpop.f32.mrb[0].mxu0
        %4751 = vmatprep.mubr.f32.mxu0 0.0
        %4752 = vmatmul.mubr.f32.gmra.mrb[0].mxu0 %v3044
        %v4753 = vpop.f32.mrb[0].mxu0
        %v4754 = vadd.f32 %v2200, %v4753
        %v4755 = vpop.f32.mrb[0].mxu0
        %4756 = vmatprep.mubr.f32.mxu0 0.0
        %4757 = vmatmul.mubr.f32.gmra.mrb[0].mxu0 %v3047
        %v4758 = vpop.f32.mrb[0].mxu0
        %v4759 = vadd.f32 %v2200, %v4758
        %v4760 = vpop.f32.mrb[0].mxu0
        %4761 = vmatprep.mubr.f32.mxu0 0.0
        %4762 = vmatmul.mubr.f32.gmra.mrb[0].mxu0 %v3050
        %v4763 = vpop.f32.mrb[0].mxu0
        %v4764 = vadd.f32 %v2200, %v4763
        %v4765 = vpop.f32.mrb[0].mxu0
        %4766 = vmatprep.mubr.f32.mxu0 0.0
        %4767 = vmatmul.mubr.f32.gmra.mrb[0].mxu0 %v3053
        %v4768 = vpop.f32.mrb[0].mxu0
        %v4769 = vadd.f32 %v2200, %v4768
        %v4770 = vpop.f32.mrb[0].mxu0
        %4771 = vmatprep.mubr.f32.mxu0 0.0
        %4772 = vmatmul.mubr.f32.gmra.mrb[0].mxu0 %v3056
        %v4773 = vpop.f32.mrb[0].mxu0
        %v4774 = vadd.f32 %v2200, %v4773
        %v4775 = vpop.f32.mrb[0].mxu0
        %4776 = vmatprep.mubr.f32.mxu0 0.0
        %4777 = vmatmul.mubr.f32.gmra.mrb[0].mxu0 %v3059
        %v4778 = vpop.f32.mrb[0].mxu0
        %v4779 = vadd.f32 %v2200, %v4778
        %v4780 = vpop.f32.mrb[0].mxu0
        %4781 = vmatprep.mubr.f32.mxu0 0.0
        %4782 = vmatmul.mubr.f32.gmra.mrb[0].mxu0 %v3062
        %v4783 = vpop.f32.mrb[0].mxu0
        %v4784 = vadd.f32 %v2200, %v4783
        %v4785 = vpop.f32.mrb[0].mxu0
        %4786 = vmatprep.mubr.f32.mxu0 0.0
        %4787 = vmatmul.mubr.f32.gmra.mrb[0].mxu0 %v3065
        %v4788 = vpop.f32.mrb[0].mxu0
        %v4789 = vadd.f32 %v2200, %v4788
        %v4790 = vpop.f32.mrb[0].mxu0
        %4791 = vmatprep.mubr.f32.mxu0 0.0
        %4792 = vmatmul.mubr.f32.gmra.mrb[0].mxu0 %v3068
        %v4793 = vpop.f32.mrb[0].mxu0
        %v4794 = vadd.f32 %v2200, %v4793
        %v4795 = vpop.f32.mrb[0].mxu0
        %4796 = vmatprep.mubr.f32.mxu0 0.0
        %4797 = vmatmul.mubr.f32.gmra.mrb[0].mxu0 %v3071
        %v4798 = vpop.f32.mrb[0].mxu0
        %v4799 = vadd.f32 %v2200, %v4798
        %v4800 = vpop.f32.mrb[0].mxu0
        %4801 = vmatprep.mubr.f32.mxu0 0.0
        %4802 = vmatmul.mubr.f32.gmra.mrb[0].mxu0 %v3074
        %v4803 = vpop.f32.mrb[0].mxu0
        %v4804 = vadd.f32 %v2200, %v4803
        %v4805 = vpop.f32.mrb[0].mxu0
        %4806 = vmatprep.mubr.f32.mxu0 0.0
        %4807 = vmatmul.mubr.f32.gmra.mrb[0].mxu0 %v3077
        %v4808 = vpop.f32.mrb[0].mxu0
        %v4809 = vadd.f32 %v2200, %v4808
        %v4810 = vpop.f32.mrb[0].mxu0
        %4811 = vmatprep.mubr.f32.mxu0 0.0
        %4812 = vmatmul.mubr.f32.gmra.mrb[0].mxu0 %v3080
        %v4813 = vpop.f32.mrb[0].mxu0
        %v4814 = vadd.f32 %v2200, %v4813
        %v4815 = vpop.f32.mrb[0].mxu0
        %4816 = vmatprep.mubr.f32.mxu0 0.0
        %4817 = vmatmul.mubr.f32.gmra.mrb[0].mxu0 %v3083
        %v4818 = vpop.f32.mrb[0].mxu0
        %v4819 = vadd.f32 %v2200, %v4818
        %v4820 = vpop.f32.mrb[0].mxu0
        %4821 = vmatprep.mubr.f32.mxu0 0.0
        %4822 = vmatmul.mubr.f32.gmra.mrb[0].mxu0 %v3086
        %v4823 = vpop.f32.mrb[0].mxu0
        %v4824 = vadd.f32 %v2200, %v4823
        %v4825 = vpop.f32.mrb[0].mxu0
        %4826 = vmatprep.mubr.f32.mxu0 0.0
        %4827 = vmatmul.mubr.f32.gmra.mrb[0].mxu0 %v3089
        %v4828 = vpop.f32.mrb[0].mxu0
        %v4829 = vadd.f32 %v2200, %v4828
        %v4830 = vpop.f32.mrb[0].mxu0
        %4831 = vmatprep.mubr.f32.mxu0 0.0
        %4832 = vmatmul.mubr.f32.gmra.mrb[0].mxu0 %v3092
        %v4833 = vpop.f32.mrb[0].mxu0
        %v4834 = vadd.f32 %v2200, %v4833
        %v4835 = vpop.f32.mrb[0].mxu0
        %4836 = vmatprep.mubr.f32.mxu0 0.0
        %4837 = vmatmul.mubr.f32.gmra.mrb[0].mxu0 %v3095
        %v4838 = vpop.f32.mrb[0].mxu0
        %v4839 = vadd.f32 %v2200, %v4838
        %v4840 = vpop.f32.mrb[0].mxu0
        %4841 = vmatprep.mubr.f32.mxu0 0.0
        %4842 = vmatmul.mubr.f32.gmra.mrb[0].mxu0 %v3098
        %v4843 = vpop.f32.mrb[0].mxu0
        %v4844 = vadd.f32 %v2200, %v4843
        %v4845 = vpop.f32.mrb[0].mxu0
        %4846 = vmatprep.mubr.f32.mxu0 0.0
        %4847 = vmatmul.mubr.f32.gmra.mrb[0].mxu0 %v3101
        %v4848 = vpop.f32.mrb[0].mxu0
        %v4849 = vadd.f32 %v2200, %v4848
        %v4850 = vpop.f32.mrb[0].mxu0
        %4851 = vmatprep.mubr.f32.mxu0 0.0
        %4852 = vmatmul.mubr.f32.gmra.mrb[0].mxu0 %v3104
        %v4853 = vpop.f32.mrb[0].mxu0
        %v4854 = vadd.f32 %v2200, %v4853
        %v4855 = vpop.f32.mrb[0].mxu0
        %4856 = vmatprep.mubr.f32.mxu0 0.0
        %4857 = vmatmul.mubr.f32.gmra.mrb[0].mxu0 %v3107
        %v4858 = vpop.f32.mrb[0].mxu0
        %v4859 = vadd.f32 %v2200, %v4858
        %v4860 = vpop.f32.mrb[0].mxu0
        %4861 = vmatprep.mubr.f32.mxu0 0.0
        %4862 = vmatmul.mubr.f32.gmra.mrb[0].mxu0 %v3110
        %v4863 = vpop.f32.mrb[0].mxu0
        %v4864 = vadd.f32 %v2200, %v4863
        %v4865 = vpop.f32.mrb[0].mxu0
        %4866 = vmatprep.mubr.f32.mxu0 0.0
        %4867 = vmatmul.mubr.f32.gmra.mrb[0].mxu0 %v3113
        %v4868 = vpop.f32.mrb[0].mxu0
        %v4869 = vadd.f32 %v2200, %v4868
        %v4870 = vpop.f32.mrb[0].mxu0
        %4871 = vmatprep.mubr.f32.mxu0 0.0
        %4872 = vmatmul.mubr.f32.gmra.mrb[0].mxu0 %v3116
        %v4873 = vpop.f32.mrb[0].mxu0
        %v4874 = vadd.f32 %v2200, %v4873
        %v4875 = vpop.f32.mrb[0].mxu0
        %4876 = vmatprep.mubr.f32.mxu0 0.0
        %4877 = vmatmul.mubr.f32.gmra.mrb[0].mxu0 %v3119
        %v4878 = vpop.f32.mrb[0].mxu0
        %v4879 = vadd.f32 %v2200, %v4878
        %v4880 = vpop.f32.mrb[0].mxu0
        %4881 = vmatprep.mubr.f32.mxu0 0.0
        %4882 = vmatmul.mubr.f32.gmra.mrb[0].mxu0 %v3122
        %v4883 = vpop.f32.mrb[0].mxu0
        %v4884 = vadd.f32 %v2200, %v4883
        %v4885 = vpop.f32.mrb[0].mxu0
        %4886 = vmatprep.mubr.f32.mxu0 0.0
        %4887 = vmatmul.mubr.f32.gmra.mrb[0].mxu0 %v3125
        %v4888 = vpop.f32.mrb[0].mxu0
        %v4889 = vadd.f32 %v2200, %v4888
        %v4890 = vpop.f32.mrb[0].mxu0
        %4891 = vmatprep.mubr.f32.mxu0 0.0
        %4892 = vmatmul.mubr.f32.gmra.mrb[0].mxu0 %v3128
        %v4893 = vpop.f32.mrb[0].mxu0
        %v4894 = vadd.f32 %v2200, %v4893
        %v4895 = vpop.f32.mrb[0].mxu0
        %4896 = vmatprep.mubr.f32.mxu0 0.0
        %4897 = vmatmul.mubr.f32.gmra.mrb[0].mxu0 %v3131
        %v4898 = vpop.f32.mrb[0].mxu0
        %v4899 = vadd.f32 %v2200, %v4898
        %v4900 = vpop.f32.mrb[0].mxu0
        %4901 = vmatprep.mubr.f32.mxu0 0.0
        %4902 = vmatmul.mubr.f32.gmra.mrb[0].mxu0 %v3134
        %v4903 = vpop.f32.mrb[0].mxu0
        %v4904 = vadd.f32 %v2200, %v4903
        %v4905 = vpop.f32.mrb[0].mxu0
        %4906 = vmatprep.mubr.f32.mxu0 0.0
        %4907 = vmatmul.mubr.f32.gmra.mrb[0].mxu0 %v3137
        %v4908 = vpop.f32.mrb[0].mxu0
        %v4909 = vadd.f32 %v2200, %v4908
        %v4910 = vpop.f32.mrb[0].mxu0
        %4911 = vmatprep.mubr.f32.mxu0 0.0
        %4912 = vmatmul.mubr.f32.gmra.mrb[0].mxu0 %v3140
        %v4913 = vpop.f32.mrb[0].mxu0
        %v4914 = vadd.f32 %v2200, %v4913
        %v4915 = vpop.f32.mrb[0].mxu0
        %4916 = vmatprep.mubr.f32.mxu0 0.0
        %4917 = vmatmul.mubr.f32.gmra.mrb[0].mxu0 %v3143
        %v4918 = vpop.f32.mrb[0].mxu0
        %v4919 = vadd.f32 %v2200, %v4918
        %v4920 = vpop.f32.mrb[0].mxu0
        %4921 = vmatprep.mubr.f32.mxu0 0.0
        %4922 = vmatmul.mubr.f32.gmra.mrb[0].mxu0 %v3146
        %v4923 = vpop.f32.mrb[0].mxu0
        %v4924 = vadd.f32 %v2200, %v4923
        %v4925 = vpop.f32.mrb[0].mxu0
        %4926 = vmatprep.mubr.f32.mxu0 0.0
        %4927 = vmatmul.mubr.f32.gmra.mrb[0].mxu0 %v3149
        %v4928 = vpop.f32.mrb[0].mxu0
        %v4929 = vadd.f32 %v2200, %v4928
        %v4930 = vpop.f32.mrb[0].mxu0
        %4931 = vmatprep.mubr.f32.mxu0 0.0
        %4932 = vmatmul.mubr.f32.gmra.mrb[0].mxu0 %v3152
        %v4933 = vpop.f32.mrb[0].mxu0
        %v4934 = vadd.f32 %v2200, %v4933
        %v4935 = vpop.f32.mrb[0].mxu0
        %4936 = vmatprep.mubr.f32.mxu0 0.0
        %4937 = vmatmul.mubr.f32.gmra.mrb[0].mxu0 %v3155
        %v4938 = vpop.f32.mrb[0].mxu0
        %v4939 = vadd.f32 %v2200, %v4938
        %v4940 = vpop.f32.mrb[0].mxu0
        %4941 = vmatprep.mubr.f32.mxu0 0.0
        %4942 = vmatmul.mubr.f32.gmra.mrb[0].mxu0 %v3158
        %v4943 = vpop.f32.mrb[0].mxu0
        %v4944 = vadd.f32 %v2200, %v4943
        %v4945 = vpop.f32.mrb[0].mxu0
        %4946 = vmatprep.mubr.f32.mxu0 0.0
        %4947 = vmatmul.mubr.f32.gmra.mrb[0].mxu0 %v3161
        %v4948 = vpop.f32.mrb[0].mxu0
        %v4949 = vadd.f32 %v2200, %v4948
        %v4950 = vpop.f32.mrb[0].mxu0
        %4951 = vmatprep.mubr.f32.mxu0 0.0
        %4952 = vmatmul.mubr.f32.gmra.mrb[0].mxu0 %v3164
        %v4953 = vpop.f32.mrb[0].mxu0
        %v4954 = vadd.f32 %v2200, %v4953
        %v4955 = vpop.f32.mrb[0].mxu0
        %4956 = vmatprep.mubr.f32.mxu0 0.0
        %4957 = vmatmul.mubr.f32.gmra.mrb[0].mxu0 %v3167
        %v4958 = vpop.f32.mrb[0].mxu0
        %v4959 = vadd.f32 %v2200, %v4958
        %v4960 = vpop.f32.mrb[0].mxu0
        %4961 = vmatprep.mubr.f32.mxu0 0.0
        %4962 = vmatmul.mubr.f32.gmra.mrb[0].mxu0 %v3170
        %v4963 = vpop.f32.mrb[0].mxu0
        %v4964 = vadd.f32 %v2200, %v4963
        %v4965 = vpop.f32.mrb[0].mxu0
        %4966 = vmatprep.mubr.f32.mxu0 0.0
        %4967 = vmatmul.mubr.f32.gmra.mrb[0].mxu0 %v3173
        %v4968 = vpop.f32.mrb[0].mxu0
        %v4969 = vadd.f32 %v2200, %v4968
        %v4970 = vpop.f32.mrb[0].mxu0
        %4971 = vmatprep.mubr.f32.mxu0 0.0
        %4972 = vmatmul.mubr.f32.gmra.mrb[0].mxu0 %v3176
        %v4973 = vpop.f32.mrb[0].mxu0
        %v4974 = vadd.f32 %v2200, %v4973
        %v4975 = vpop.f32.mrb[0].mxu0
        %4976 = vmatprep.mubr.f32.mxu0 0.0
        %4977 = vmatmul.mubr.f32.gmra.mrb[0].mxu0 %v3179
        %v4978 = vpop.f32.mrb[0].mxu0
        %v4979 = vadd.f32 %v2200, %v4978
        %v4980 = vpop.f32.mrb[0].mxu0
        %4981 = vmatprep.mubr.f32.mxu0 0.0
        %4982 = vmatmul.mubr.f32.gmra.mrb[0].mxu0 %v3182
        %v4983 = vpop.f32.mrb[0].mxu0
        %v4984 = vadd.f32 %v2200, %v4983
        %v4985 = vpop.f32.mrb[0].mxu0
        %4986 = vmatprep.mubr.f32.mxu0 0.0
        %4987 = vmatmul.mubr.f32.gmra.mrb[0].mxu0 %v3185
        %v4988 = vpop.f32.mrb[0].mxu0
        %v4989 = vadd.f32 %v2200, %v4988
        %v4990 = vpop.f32.mrb[0].mxu0
        %4991 = vmatprep.mubr.f32.mxu0 0.0
        %4992 = vmatmul.mubr.f32.gmra.mrb[0].mxu0 %v3188
        %v4993 = vpop.f32.mrb[0].mxu0
        %v4994 = vadd.f32 %v2200, %v4993
        %v4995 = vpop.f32.mrb[0].mxu0
        %4996 = vmatprep.mubr.f32.mxu0 0.0
        %4997 = vmatmul.mubr.f32.gmra.mrb[0].mxu0 %v3191
        %v4998 = vpop.f32.mrb[0].mxu0
        %v4999 = vadd.f32 %v2200, %v4998
        %v5000 = vpop.f32.mrb[0].mxu0
        %5001 = vmatprep.mubr.f32.mxu0 0.0
        %5002 = vmatmul.mubr.f32.gmra.mrb[0].mxu0 %v3194
        %v5003 = vpop.f32.mrb[0].mxu0
        %v5004 = vadd.f32 %v2200, %v5003
        %v5005 = vpop.f32.mrb[0].mxu0
        %5006 = vmatprep.mubr.f32.mxu0 0.0
        %5007 = vmatmul.mubr.f32.gmra.mrb[0].mxu0 %v3197
        %v5008 = vpop.f32.mrb[0].mxu0
        %v5009 = vadd.f32 %v2200, %v5008
        %v5010 = vpop.f32.mrb[0].mxu0
        %5011 = vmatprep.mubr.f32.mxu0 0.0
        %5012 = vmatmul.mubr.f32.gmra.mrb[0].mxu0 %v3200
        %v5013 = vpop.f32.mrb[0].mxu0
        %v5014 = vadd.f32 %v2200, %v5013
        %v5015 = vpop.f32.mrb[0].mxu0
        %5016 = vmatprep.mubr.f32.mxu0 0.0
        %5017 = vmatmul.mubr.f32.gmra.mrb[0].mxu0 %v3203
        %v5018 = vpop.f32.mrb[0].mxu0
        %v5019 = vadd.f32 %v2200, %v5018
        %v5020 = vpop.f32.mrb[0].mxu0
        %5021 = vmatprep.mubr.f32.mxu0 0.0
        %5022 = vmatmul.mubr.f32.gmra.mrb[0].mxu0 %v3206
        %v5023 = vpop.f32.mrb[0].mxu0
        %v5024 = vadd.f32 %v2200, %v5023
        %v5025 = vpop.f32.mrb[0].mxu0
        %5026 = vmatprep.mubr.f32.mxu0 0.0
        %5027 = vmatmul.mubr.f32.gmra.mrb[0].mxu0 %v3209
        %v5028 = vpop.f32.mrb[0].mxu0
        %v5029 = vadd.f32 %v2200, %v5028
        %v5030 = vpop.f32.mrb[0].mxu0
        %5031 = vmatprep.mubr.f32.mxu0 0.0
        %5032 = vmatmul.mubr.f32.gmra.mrb[0].mxu0 %v3212
        %v5033 = vpop.f32.mrb[0].mxu0
        %v5034 = vadd.f32 %v2200, %v5033
        %v5035 = vpop.f32.mrb[0].mxu0
        %5036 = vmatprep.mubr.f32.mxu0 0.0
        %5037 = vmatmul.mubr.f32.gmra.mrb[0].mxu0 %v3215
        %v5038 = vpop.f32.mrb[0].mxu0
        %v5039 = vadd.f32 %v2200, %v5038
        %v5040 = vpop.f32.mrb[0].mxu0
        %5041 = vmatprep.mubr.f32.mxu0 0.0
        %5042 = vmatmul.mubr.f32.gmra.mrb[0].mxu0 %v3218
        %v5043 = vpop.f32.mrb[0].mxu0
        %v5044 = vadd.f32 %v2200, %v5043
        %v5045 = vpop.f32.mrb[0].mxu0
        %5046 = vmatprep.mubr.f32.mxu0 0.0
        %5047 = vmatmul.mubr.f32.gmra.mrb[0].mxu0 %v3221
        %v5048 = vpop.f32.mrb[0].mxu0
        %v5049 = vadd.f32 %v2200, %v5048
        %v5050 = vpop.f32.mrb[0].mxu0
        %5051 = vmatprep.mubr.f32.mxu0 0.0
        %5052 = vmatmul.mubr.f32.gmra.mrb[0].mxu0 %v3224
        %v5053 = vpop.f32.mrb[0].mxu0
        %v5054 = vadd.f32 %v2200, %v5053
        %v5055 = vpop.f32.mrb[0].mxu0
        %5056 = vmatprep.mubr.f32.mxu0 0.0
        %5057 = vmatmul.mubr.f32.gmra.mrb[0].mxu0 %v3227
        %v5058 = vpop.f32.mrb[0].mxu0
        %v5059 = vadd.f32 %v2200, %v5058
        %v5060 = vpop.f32.mrb[0].mxu0
        %5061 = vmatprep.mubr.f32.mxu0 0.0
        %5062 = vmatmul.mubr.f32.gmra.mrb[0].mxu0 %v3230
        %v5063 = vpop.f32.mrb[0].mxu0
        %v5064 = vadd.f32 %v2200, %v5063
        %v5065 = vpop.f32.mrb[0].mxu0
        %5066 = vmatprep.mubr.f32.mxu0 0.0
        %5067 = vmatmul.mubr.f32.gmra.mrb[0].mxu0 %v3233
        %v5068 = vpop.f32.mrb[0].mxu0
        %v5069 = vadd.f32 %v2200, %v5068
        %v5070 = vpop.f32.mrb[0].mxu0
        %5071 = vmatprep.mubr.f32.mxu0 0.0
        %5072 = vmatmul.mubr.f32.gmra.mrb[0].mxu0 %v3236
        %v5073 = vpop.f32.mrb[0].mxu0
        %v5074 = vadd.f32 %v2200, %v5073
        %v5075 = vpop.f32.mrb[0].mxu0
        %5076 = vmatprep.mubr.f32.mxu0 0.0
        %5077 = vmatmul.mubr.f32.gmra.mrb[0].mxu0 %v3239
        %v5078 = vpop.f32.mrb[0].mxu0
        %v5079 = vadd.f32 %v2200, %v5078
        %v5080 = vpop.f32.mrb[0].mxu0
        %5081 = vmatprep.mubr.f32.mxu0 0.0
        %5082 = vmatmul.mubr.f32.gmra.mrb[0].mxu0 %v3242
        %v5083 = vpop.f32.mrb[0].mxu0
        %v5084 = vadd.f32 %v2200, %v5083
        %v5085 = vpop.f32.mrb[0].mxu0
        %5086 = vmatprep.mubr.f32.mxu0 0.0
        %5087 = vmatmul.mubr.f32.gmra.mrb[0].mxu0 %v3245
        %v5088 = vpop.f32.mrb[0].mxu0
        %v5089 = vadd.f32 %v2200, %v5088
        %v5090 = vpop.f32.mrb[0].mxu0
        %5091 = vmatprep.mubr.f32.mxu0 0.0
        %5092 = vmatmul.mubr.f32.gmra.mrb[0].mxu0 %v3248
        %v5093 = vpop.f32.mrb[0].mxu0
        %v5094 = vadd.f32 %v2200, %v5093
        %v5095 = vpop.f32.mrb[0].mxu0
        %5096 = vmatprep.mubr.f32.mxu0 0.0
        %5097 = vmatmul.mubr.f32.gmra.mrb[0].mxu0 %v3251
        %v5098 = vpop.f32.mrb[0].mxu0
        %v5099 = vadd.f32 %v2200, %v5098
        %v5100 = vpop.f32.mrb[0].mxu0
        %5101 = vmatprep.mubr.f32.mxu0 0.0
        %5102 = vmatmul.mubr.f32.gmra.mrb[0].mxu0 %v3254
        %v5103 = vpop.f32.mrb[0].mxu0
        %v5104 = vadd.f32 %v2200, %v5103
        %v5105 = vpop.f32.mrb[0].mxu0
        %5106 = vmatprep.mubr.f32.mxu0 0.0
        %5107 = vmatmul.mubr.f32.gmra.mrb[0].mxu0 %v3257
        %v5108 = vpop.f32.mrb[0].mxu0
        %v5109 = vadd.f32 %v2200, %v5108
        %v5110 = vpop.f32.mrb[0].mxu0
        %5111 = vmatprep.mubr.f32.mxu0 0.0
        %5112 = vmatmul.mubr.f32.gmra.mrb[0].mxu0 %v3260
        %v5113 = vpop.f32.mrb[0].mxu0
        %v5114 = vadd.f32 %v2200, %v5113
        %v5115 = vpop.f32.mrb[0].mxu0
        %5116 = vmatprep.mubr.f32.mxu0 0.0
        %5117 = vmatmul.mubr.f32.gmra.mrb[0].mxu0 %v3263
        %v5118 = vpop.f32.mrb[0].mxu0
        %v5119 = vadd.f32 %v2200, %v5118
        %v5120 = vpop.f32.mrb[0].mxu0
        %5121 = vmatprep.mubr.f32.mxu0 0.0
        %5122 = vmatmul.mubr.f32.gmra.mrb[0].mxu0 %v3266
        %v5123 = vpop.f32.mrb[0].mxu0
        %v5124 = vadd.f32 %v2200, %v5123
        %v5125 = vpop.f32.mrb[0].mxu0
        %5126 = vmatprep.mubr.f32.mxu0 0.0
        %5127 = vmatmul.mubr.f32.gmra.mrb[0].mxu0 %v3269
        %v5128 = vpop.f32.mrb[0].mxu0
        %v5129 = vadd.f32 %v2200, %v5128
        %v5130 = vpop.f32.mrb[0].mxu0
        %5131 = vmatprep.mubr.f32.mxu0 0.0
        %5132 = vmatmul.mubr.f32.gmra.mrb[0].mxu0 %v3272
        %v5133 = vpop.f32.mrb[0].mxu0
        %v5134 = vadd.f32 %v2200, %v5133
        %v5135 = vpop.f32.mrb[0].mxu0
        %5136 = vmatprep.mubr.f32.mxu0 0.0
        %5137 = vmatmul.mubr.f32.gmra.mrb[0].mxu0 %v3275
        %v5138 = vpop.f32.mrb[0].mxu0
        %v5139 = vadd.f32 %v2200, %v5138
        %v5140 = vpop.f32.mrb[0].mxu0
        %5141 = vmatprep.mubr.f32.mxu0 0.0
        %5142 = vmatmul.mubr.f32.gmra.mrb[0].mxu0 %v3278
        %v5143 = vpop.f32.mrb[0].mxu0
        %v5144 = vadd.f32 %v2200, %v5143
        %v5145 = vpop.f32.mrb[0].mxu0
        %5146 = vmatprep.mubr.f32.mxu0 0.0
        %5147 = vmatmul.mubr.f32.gmra.mrb[0].mxu0 %v3281
        %v5148 = vpop.f32.mrb[0].mxu0
        %v5149 = vadd.f32 %v2200, %v5148
        %v5150 = vpop.f32.mrb[0].mxu0
        %5151 = vdwg.mxu0
        %v5152 = vmax.f32 %v3354, 0.0
        %v5153 = vmax.f32 %v3359, 0.0
        %v5154 = vmax.f32 %v3364, 0.0
        %v5155 = vmax.f32 %v3369, 0.0
        %v5156 = vmax.f32 %v3374, 0.0
        %v5157 = vmax.f32 %v3379, 0.0
        %v5158 = vmax.f32 %v3384, 0.0
        %v5159 = vmax.f32 %v3389, 0.0
        %v5160 = vmax.f32 %v3394, 0.0
        %v5161 = vmax.f32 %v3399, 0.0
        %v5162 = vmax.f32 %v3404, 0.0
        %v5163 = vmax.f32 %v3409, 0.0
        %v5164 = vmax.f32 %v3414, 0.0
        %v5165 = vmax.f32 %v3419, 0.0
        %v5166 = vmax.f32 %v3424, 0.0
        %v5167 = vmax.f32 %v3429, 0.0
        %v5168 = vmax.f32 %v3434, 0.0
        %v5169 = vmax.f32 %v3439, 0.0
        %v5170 = vmax.f32 %v3444, 0.0
        %v5171 = vmax.f32 %v3449, 0.0
        %v5172 = vmax.f32 %v3454, 0.0
        %v5173 = vmax.f32 %v3459, 0.0
        %v5174 = vmax.f32 %v3464, 0.0
        %v5175 = vmax.f32 %v3469, 0.0
        %v5176 = vmax.f32 %v3474, 0.0
        %v5177 = vmax.f32 %v3479, 0.0
        %v5178 = vmax.f32 %v3484, 0.0
        %v5179 = vmax.f32 %v3489, 0.0
        %v5180 = vmax.f32 %v3494, 0.0
        %v5181 = vmax.f32 %v3499, 0.0
        %v5182 = vmax.f32 %v3504, 0.0
        %v5183 = vmax.f32 %v3509, 0.0
        %v5184 = vmax.f32 %v3514, 0.0
        %v5185 = vmax.f32 %v3519, 0.0
        %v5186 = vmax.f32 %v3524, 0.0
        %v5187 = vmax.f32 %v3529, 0.0
        %v5188 = vmax.f32 %v3534, 0.0
        %v5189 = vmax.f32 %v3539, 0.0
        %v5190 = vmax.f32 %v3544, 0.0
        %v5191 = vmax.f32 %v3549, 0.0
        %v5192 = vmax.f32 %v3554, 0.0
        %v5193 = vmax.f32 %v3559, 0.0
        %v5194 = vmax.f32 %v3564, 0.0
        %v5195 = vmax.f32 %v3569, 0.0
        %v5196 = vmax.f32 %v3574, 0.0
        %v5197 = vmax.f32 %v3579, 0.0
        %v5198 = vmax.f32 %v3584, 0.0
        %v5199 = vmax.f32 %v3589, 0.0
        %v5200 = vmax.f32 %v3594, 0.0
        %v5201 = vmax.f32 %v3599, 0.0
        %v5202 = vmax.f32 %v3604, 0.0
        %v5203 = vmax.f32 %v3609, 0.0
        %v5204 = vmax.f32 %v3614, 0.0
        %v5205 = vmax.f32 %v3619, 0.0
        %v5206 = vmax.f32 %v3624, 0.0
        %v5207 = vmax.f32 %v3629, 0.0
        %v5208 = vmax.f32 %v3634, 0.0
        %v5209 = vmax.f32 %v3639, 0.0
        %v5210 = vmax.f32 %v3644, 0.0
        %v5211 = vmax.f32 %v3649, 0.0
        %v5212 = vmax.f32 %v3654, 0.0
        %v5213 = vmax.f32 %v3659, 0.0
        %v5214 = vmax.f32 %v3664, 0.0
        %v5215 = vmax.f32 %v3669, 0.0
        %v5216 = vmax.f32 %v3674, 0.0
        %v5217 = vmax.f32 %v3679, 0.0
        %v5218 = vmax.f32 %v3684, 0.0
        %v5219 = vmax.f32 %v3689, 0.0
        %v5220 = vmax.f32 %v3694, 0.0
        %v5221 = vmax.f32 %v3699, 0.0
        %v5222 = vmax.f32 %v3704, 0.0
        %v5223 = vmax.f32 %v3709, 0.0
        %v5224 = vmax.f32 %v3714, 0.0
        %v5225 = vmax.f32 %v3719, 0.0
        %v5226 = vmax.f32 %v3724, 0.0
        %v5227 = vmax.f32 %v3729, 0.0
        %v5228 = vmax.f32 %v3734, 0.0
        %v5229 = vmax.f32 %v3739, 0.0
        %v5230 = vmax.f32 %v3744, 0.0
        %v5231 = vmax.f32 %v3749, 0.0
        %v5232 = vmax.f32 %v3754, 0.0
        %v5233 = vmax.f32 %v3759, 0.0
        %v5234 = vmax.f32 %v3764, 0.0
        %v5235 = vmax.f32 %v3769, 0.0
        %v5236 = vmax.f32 %v3774, 0.0
        %v5237 = vmax.f32 %v3779, 0.0
        %v5238 = vmax.f32 %v3784, 0.0
        %v5239 = vmax.f32 %v3789, 0.0
        %v5240 = vmax.f32 %v3794, 0.0
        %v5241 = vmax.f32 %v3799, 0.0
        %v5242 = vmax.f32 %v3804, 0.0
        %v5243 = vmax.f32 %v3809, 0.0
        %v5244 = vmax.f32 %v3814, 0.0
        %v5245 = vmax.f32 %v3819, 0.0
        %v5246 = vmax.f32 %v3824, 0.0
        %v5247 = vmax.f32 %v3829, 0.0
        %v5248 = vmax.f32 %v3834, 0.0
        %v5249 = vmax.f32 %v3839, 0.0
        %v5250 = vmax.f32 %v3844, 0.0
        %v5251 = vmax.f32 %v3849, 0.0
        %v5252 = vmax.f32 %v3854, 0.0
        %v5253 = vmax.f32 %v3859, 0.0
        %v5254 = vmax.f32 %v3864, 0.0
        %v5255 = vmax.f32 %v3869, 0.0
        %v5256 = vmax.f32 %v3874, 0.0
        %v5257 = vmax.f32 %v3879, 0.0
        %v5258 = vmax.f32 %v3884, 0.0
        %v5259 = vmax.f32 %v3889, 0.0
        %v5260 = vmax.f32 %v3894, 0.0
        %v5261 = vmax.f32 %v3899, 0.0
        %v5262 = vmax.f32 %v3904, 0.0
        %v5263 = vmax.f32 %v3909, 0.0
        %v5264 = vmax.f32 %v3914, 0.0
        %v5265 = vmax.f32 %v3919, 0.0
        %v5266 = vmax.f32 %v3924, 0.0
        %v5267 = vmax.f32 %v3929, 0.0
        %v5268 = vmax.f32 %v3934, 0.0
        %v5269 = vmax.f32 %v3939, 0.0
        %v5270 = vmax.f32 %v3944, 0.0
        %v5271 = vmax.f32 %v3949, 0.0
        %v5272 = vmax.f32 %v3954, 0.0
        %v5273 = vmax.f32 %v3959, 0.0
        %v5274 = vmax.f32 %v3964, 0.0
        %v5275 = vmax.f32 %v3969, 0.0
        %v5276 = vmax.f32 %v3974, 0.0
        %v5277 = vmax.f32 %v3979, 0.0
        %v5278 = vmax.f32 %v3984, 0.0
        %v5279 = vmax.f32 %v3989, 0.0
        %v5280 = vmax.f32 %v3994, 0.0
        %v5281 = vmax.f32 %v3999, 0.0
        %v5282 = vmax.f32 %v4004, 0.0
        %v5283 = vmax.f32 %v4009, 0.0
        %v5284 = vmax.f32 %v4014, 0.0
        %v5285 = vmax.f32 %v4019, 0.0
        %v5286 = vmax.f32 %v4024, 0.0
        %v5287 = vmax.f32 %v4029, 0.0
        %v5288 = vmax.f32 %v4034, 0.0
        %v5289 = vmax.f32 %v4039, 0.0
        %v5290 = vmax.f32 %v4044, 0.0
        %v5291 = vmax.f32 %v4049, 0.0
        %v5292 = vmax.f32 %v4054, 0.0
        %v5293 = vmax.f32 %v4059, 0.0
        %v5294 = vmax.f32 %v4064, 0.0
        %v5295 = vmax.f32 %v4069, 0.0
        %v5296 = vmax.f32 %v4074, 0.0
        %v5297 = vmax.f32 %v4079, 0.0
        %v5298 = vmax.f32 %v4084, 0.0
        %v5299 = vmax.f32 %v4089, 0.0
        %v5300 = vmax.f32 %v4094, 0.0
        %v5301 = vmax.f32 %v4099, 0.0
        %v5302 = vmax.f32 %v4104, 0.0
        %v5303 = vmax.f32 %v4109, 0.0
        %v5304 = vmax.f32 %v4114, 0.0
        %v5305 = vmax.f32 %v4119, 0.0
        %v5306 = vmax.f32 %v4124, 0.0
        %v5307 = vmax.f32 %v4129, 0.0
        %v5308 = vmax.f32 %v4134, 0.0
        %v5309 = vmax.f32 %v4139, 0.0
        %v5310 = vmax.f32 %v4144, 0.0
        %v5311 = vmax.f32 %v4149, 0.0
        %v5312 = vmax.f32 %v4154, 0.0
        %v5313 = vmax.f32 %v4159, 0.0
        %v5314 = vmax.f32 %v4164, 0.0
        %v5315 = vmax.f32 %v4169, 0.0
        %v5316 = vmax.f32 %v4174, 0.0
        %v5317 = vmax.f32 %v4179, 0.0
        %v5318 = vmax.f32 %v4184, 0.0
        %v5319 = vmax.f32 %v4189, 0.0
        %v5320 = vmax.f32 %v4194, 0.0
        %v5321 = vmax.f32 %v4199, 0.0
        %v5322 = vmax.f32 %v4204, 0.0
        %v5323 = vmax.f32 %v4209, 0.0
        %v5324 = vmax.f32 %v4214, 0.0
        %v5325 = vmax.f32 %v4219, 0.0
        %v5326 = vmax.f32 %v4224, 0.0
        %v5327 = vmax.f32 %v4229, 0.0
        %v5328 = vmax.f32 %v4234, 0.0
        %v5329 = vmax.f32 %v4239, 0.0
        %v5330 = vmax.f32 %v4244, 0.0
        %v5331 = vmax.f32 %v4249, 0.0
        %v5332 = vmax.f32 %v4254, 0.0
        %v5333 = vmax.f32 %v4259, 0.0
        %v5334 = vmax.f32 %v4264, 0.0
        %v5335 = vmax.f32 %v4269, 0.0
        %v5336 = vmax.f32 %v4274, 0.0
        %v5337 = vmax.f32 %v4279, 0.0
        %v5338 = vmax.f32 %v4284, 0.0
        %v5339 = vmax.f32 %v4289, 0.0
        %v5340 = vmax.f32 %v4294, 0.0
        %v5341 = vmax.f32 %v4299, 0.0
        %v5342 = vmax.f32 %v4304, 0.0
        %v5343 = vmax.f32 %v4309, 0.0
        %v5344 = vmax.f32 %v4314, 0.0
        %v5345 = vmax.f32 %v4319, 0.0
        %v5346 = vmax.f32 %v4324, 0.0
        %v5347 = vmax.f32 %v4329, 0.0
        %v5348 = vmax.f32 %v4334, 0.0
        %v5349 = vmax.f32 %v4339, 0.0
        %v5350 = vmax.f32 %v4344, 0.0
        %v5351 = vmax.f32 %v4349, 0.0
        %v5352 = vmax.f32 %v4354, 0.0
        %v5353 = vmax.f32 %v4359, 0.0
        %v5354 = vmax.f32 %v4364, 0.0
        %v5355 = vmax.f32 %v4369, 0.0
        %v5356 = vmax.f32 %v4374, 0.0
        %v5357 = vmax.f32 %v4379, 0.0
        %v5358 = vmax.f32 %v4384, 0.0
        %v5359 = vmax.f32 %v4389, 0.0
        %v5360 = vmax.f32 %v4394, 0.0
        %v5361 = vmax.f32 %v4399, 0.0
        %v5362 = vmax.f32 %v4404, 0.0
        %v5363 = vmax.f32 %v4409, 0.0
        %v5364 = vmax.f32 %v4414, 0.0
        %v5365 = vmax.f32 %v4419, 0.0
        %v5366 = vmax.f32 %v4424, 0.0
        %v5367 = vmax.f32 %v4429, 0.0
        %v5368 = vmax.f32 %v4434, 0.0
        %v5369 = vmax.f32 %v4439, 0.0
        %v5370 = vmax.f32 %v4444, 0.0
        %v5371 = vmax.f32 %v4449, 0.0
        %v5372 = vmax.f32 %v4454, 0.0
        %v5373 = vmax.f32 %v4459, 0.0
        %v5374 = vmax.f32 %v4464, 0.0
        %v5375 = vmax.f32 %v4469, 0.0
        %v5376 = vmax.f32 %v4474, 0.0
        %v5377 = vmax.f32 %v4479, 0.0
        %v5378 = vmax.f32 %v4484, 0.0
        %v5379 = vmax.f32 %v4489, 0.0
        %v5380 = vmax.f32 %v4494, 0.0
        %v5381 = vmax.f32 %v4499, 0.0
        %v5382 = vmax.f32 %v4504, 0.0
        %v5383 = vmax.f32 %v4509, 0.0
        %v5384 = vmax.f32 %v4514, 0.0
        %v5385 = vmax.f32 %v4519, 0.0
        %v5386 = vmax.f32 %v4524, 0.0
        %v5387 = vmax.f32 %v4529, 0.0
        %v5388 = vmax.f32 %v4534, 0.0
        %v5389 = vmax.f32 %v4539, 0.0
        %v5390 = vmax.f32 %v4544, 0.0
        %v5391 = vmax.f32 %v4549, 0.0
        %v5392 = vmax.f32 %v4554, 0.0
        %v5393 = vmax.f32 %v4559, 0.0
        %v5394 = vmax.f32 %v4564, 0.0
        %v5395 = vmax.f32 %v4569, 0.0
        %v5396 = vmax.f32 %v4574, 0.0
        %v5397 = vmax.f32 %v4579, 0.0
        %v5398 = vmax.f32 %v4584, 0.0
        %v5399 = vmax.f32 %v4589, 0.0
        %v5400 = vmax.f32 %v4594, 0.0
        %v5401 = vmax.f32 %v4599, 0.0
        %v5402 = vmax.f32 %v4604, 0.0
        %v5403 = vmax.f32 %v4609, 0.0
        %v5404 = vmax.f32 %v4614, 0.0
        %v5405 = vmax.f32 %v4619, 0.0
        %v5406 = vmax.f32 %v4624, 0.0
        %v5407 = vmax.f32 %v4629, 0.0
        %v5408 = vmax.f32 %v4634, 0.0
        %v5409 = vmax.f32 %v4639, 0.0
        %v5410 = vmax.f32 %v4644, 0.0
        %v5411 = vmax.f32 %v4649, 0.0
        %v5412 = vmax.f32 %v4654, 0.0
        %v5413 = vmax.f32 %v4659, 0.0
        %v5414 = vmax.f32 %v4664, 0.0
        %v5415 = vmax.f32 %v4669, 0.0
        %v5416 = vmax.f32 %v4674, 0.0
        %v5417 = vmax.f32 %v4679, 0.0
        %v5418 = vmax.f32 %v4684, 0.0
        %v5419 = vmax.f32 %v4689, 0.0
        %v5420 = vmax.f32 %v4694, 0.0
        %v5421 = vmax.f32 %v4699, 0.0
        %v5422 = vmax.f32 %v4704, 0.0
        %v5423 = vmax.f32 %v4709, 0.0
        %v5424 = vmax.f32 %v4714, 0.0
        %v5425 = vmax.f32 %v4719, 0.0
        %v5426 = vmax.f32 %v4724, 0.0
        %v5427 = vmax.f32 %v4729, 0.0
        %v5428 = vmax.f32 %v4734, 0.0
        %v5429 = vmax.f32 %v4739, 0.0
        %v5430 = vmax.f32 %v4744, 0.0
        %v5431 = vmax.f32 %v4749, 0.0
        %v5432 = vmax.f32 %v4754, 0.0
        %v5433 = vmax.f32 %v4759, 0.0
        %v5434 = vmax.f32 %v4764, 0.0
        %v5435 = vmax.f32 %v4769, 0.0
        %v5436 = vmax.f32 %v4774, 0.0
        %v5437 = vmax.f32 %v4779, 0.0
        %v5438 = vmax.f32 %v4784, 0.0
        %v5439 = vmax.f32 %v4789, 0.0
        %v5440 = vmax.f32 %v4794, 0.0
        %v5441 = vmax.f32 %v4799, 0.0
        %v5442 = vmax.f32 %v4804, 0.0
        %v5443 = vmax.f32 %v4809, 0.0
        %v5444 = vmax.f32 %v4814, 0.0
        %v5445 = vmax.f32 %v4819, 0.0
        %v5446 = vmax.f32 %v4824, 0.0
        %v5447 = vmax.f32 %v4829, 0.0
        %v5448 = vmax.f32 %v4834, 0.0
        %v5449 = vmax.f32 %v4839, 0.0
        %v5450 = vmax.f32 %v4844, 0.0
        %v5451 = vmax.f32 %v4849, 0.0
        %v5452 = vmax.f32 %v4854, 0.0
        %v5453 = vmax.f32 %v4859, 0.0
        %v5454 = vmax.f32 %v4864, 0.0
        %v5455 = vmax.f32 %v4869, 0.0
        %v5456 = vmax.f32 %v4874, 0.0
        %v5457 = vmax.f32 %v4879, 0.0
        %v5458 = vmax.f32 %v4884, 0.0
        %v5459 = vmax.f32 %v4889, 0.0
        %v5460 = vmax.f32 %v4894, 0.0
        %v5461 = vmax.f32 %v4899, 0.0
        %v5462 = vmax.f32 %v4904, 0.0
        %v5463 = vmax.f32 %v4909, 0.0
        %v5464 = vmax.f32 %v4914, 0.0
        %v5465 = vmax.f32 %v4919, 0.0
        %v5466 = vmax.f32 %v4924, 0.0
        %v5467 = vmax.f32 %v4929, 0.0
        %v5468 = vmax.f32 %v4934, 0.0
        %v5469 = vmax.f32 %v4939, 0.0
        %v5470 = vmax.f32 %v4944, 0.0
        %v5471 = vmax.f32 %v4949, 0.0
        %v5472 = vmax.f32 %v4954, 0.0
        %v5473 = vmax.f32 %v4959, 0.0
        %v5474 = vmax.f32 %v4964, 0.0
        %v5475 = vmax.f32 %v4969, 0.0
        %v5476 = vmax.f32 %v4974, 0.0
        %v5477 = vmax.f32 %v4979, 0.0
        %v5478 = vmax.f32 %v4984, 0.0
        %v5479 = vmax.f32 %v4989, 0.0
        %v5480 = vmax.f32 %v4994, 0.0
        %v5481 = vmax.f32 %v4999, 0.0
        %v5482 = vmax.f32 %v5004, 0.0
        %v5483 = vmax.f32 %v5009, 0.0
        %v5484 = vmax.f32 %v5014, 0.0
        %v5485 = vmax.f32 %v5019, 0.0
        %v5486 = vmax.f32 %v5024, 0.0
        %v5487 = vmax.f32 %v5029, 0.0
        %v5488 = vmax.f32 %v5034, 0.0
        %v5489 = vmax.f32 %v5039, 0.0
        %v5490 = vmax.f32 %v5044, 0.0
        %v5491 = vmax.f32 %v5049, 0.0
        %v5492 = vmax.f32 %v5054, 0.0
        %v5493 = vmax.f32 %v5059, 0.0
        %v5494 = vmax.f32 %v5064, 0.0
        %v5495 = vmax.f32 %v5069, 0.0
        %v5496 = vmax.f32 %v5074, 0.0
        %v5497 = vmax.f32 %v5079, 0.0
        %v5498 = vmax.f32 %v5084, 0.0
        %v5499 = vmax.f32 %v5089, 0.0
        %v5500 = vmax.f32 %v5094, 0.0
        %v5501 = vmax.f32 %v5099, 0.0
        %v5502 = vmax.f32 %v5104, 0.0
        %v5503 = vmax.f32 %v5109, 0.0
        %v5504 = vmax.f32 %v5114, 0.0
        %v5505 = vmax.f32 %v5119, 0.0
        %v5506 = vmax.f32 %v5124, 0.0
        %v5507 = vmax.f32 %v5129, 0.0
        %v5508 = vmax.f32 %v5134, 0.0
        %v5509 = vmax.f32 %v5139, 0.0
        %v5510 = vmax.f32 %v5144, 0.0
        %v5511 = vmax.f32 %v5149, 0.0
        %v5512 = vmax.f32 %v5152, %v5192
        %v5513 = vmax.f32 %v5512, %v5232
        %v5514 = vmax.f32 %v5513, %v5272
        %v5515 = vmax.f32 %v5514, %v5312
        %v5516 = vmax.f32 %v5515, %v5352
        %v5517 = vmax.f32 %v5516, %v5392
        %v5518 = vmax.f32 %v5517, %v5432
        %v5519 = vmax.f32 %v5518, %v5472
        %v5520 = vmax.f32 %v5153, %v5193
        %v5521 = vmax.f32 %v5520, %v5233
        %v5522 = vmax.f32 %v5521, %v5273
        %v5523 = vmax.f32 %v5522, %v5313
        %v5524 = vmax.f32 %v5523, %v5353
        %v5525 = vmax.f32 %v5524, %v5393
        %v5526 = vmax.f32 %v5525, %v5433
        %v5527 = vmax.f32 %v5526, %v5473
        %v5528 = vmax.f32 %v5154, %v5194
        %v5529 = vmax.f32 %v5528, %v5234
        %v5530 = vmax.f32 %v5529, %v5274
        %v5531 = vmax.f32 %v5530, %v5314
        %v5532 = vmax.f32 %v5531, %v5354
        %v5533 = vmax.f32 %v5532, %v5394
        %v5534 = vmax.f32 %v5533, %v5434
        %v5535 = vmax.f32 %v5534, %v5474
        %v5536 = vmax.f32 %v5155, %v5195
        %v5537 = vmax.f32 %v5536, %v5235
        %v5538 = vmax.f32 %v5537, %v5275
        %v5539 = vmax.f32 %v5538, %v5315
        %v5540 = vmax.f32 %v5539, %v5355
        %v5541 = vmax.f32 %v5540, %v5395
        %v5542 = vmax.f32 %v5541, %v5435
        %v5543 = vmax.f32 %v5542, %v5475
        %v5544 = vmax.f32 %v5156, %v5196
        %v5545 = vmax.f32 %v5544, %v5236
        %v5546 = vmax.f32 %v5545, %v5276
        %v5547 = vmax.f32 %v5546, %v5316
        %v5548 = vmax.f32 %v5547, %v5356
        %v5549 = vmax.f32 %v5548, %v5396
        %v5550 = vmax.f32 %v5549, %v5436
        %v5551 = vmax.f32 %v5550, %v5476
        %v5552 = vmax.f32 %v5157, %v5197
        %v5553 = vmax.f32 %v5552, %v5237
        %v5554 = vmax.f32 %v5553, %v5277
        %v5555 = vmax.f32 %v5554, %v5317
        %v5556 = vmax.f32 %v5555, %v5357
        %v5557 = vmax.f32 %v5556, %v5397
        %v5558 = vmax.f32 %v5557, %v5437
        %v5559 = vmax.f32 %v5558, %v5477
        %v5560 = vmax.f32 %v5158, %v5198
        %v5561 = vmax.f32 %v5560, %v5238
        %v5562 = vmax.f32 %v5561, %v5278
        %v5563 = vmax.f32 %v5562, %v5318
        %v5564 = vmax.f32 %v5563, %v5358
        %v5565 = vmax.f32 %v5564, %v5398
        %v5566 = vmax.f32 %v5565, %v5438
        %v5567 = vmax.f32 %v5566, %v5478
        %v5568 = vmax.f32 %v5159, %v5199
        %v5569 = vmax.f32 %v5568, %v5239
        %v5570 = vmax.f32 %v5569, %v5279
        %v5571 = vmax.f32 %v5570, %v5319
        %v5572 = vmax.f32 %v5571, %v5359
        %v5573 = vmax.f32 %v5572, %v5399
        %v5574 = vmax.f32 %v5573, %v5439
        %v5575 = vmax.f32 %v5574, %v5479
        %v5576 = vmax.f32 %v5160, %v5200
        %v5577 = vmax.f32 %v5576, %v5240
        %v5578 = vmax.f32 %v5577, %v5280
        %v5579 = vmax.f32 %v5578, %v5320
        %v5580 = vmax.f32 %v5579, %v5360
        %v5581 = vmax.f32 %v5580, %v5400
        %v5582 = vmax.f32 %v5581, %v5440
        %v5583 = vmax.f32 %v5582, %v5480
        %v5584 = vmax.f32 %v5161, %v5201
        %v5585 = vmax.f32 %v5584, %v5241
        %v5586 = vmax.f32 %v5585, %v5281
        %v5587 = vmax.f32 %v5586, %v5321
        %v5588 = vmax.f32 %v5587, %v5361
        %v5589 = vmax.f32 %v5588, %v5401
        %v5590 = vmax.f32 %v5589, %v5441
        %v5591 = vmax.f32 %v5590, %v5481
        %v5592 = vmax.f32 %v5162, %v5202
        %v5593 = vmax.f32 %v5592, %v5242
        %v5594 = vmax.f32 %v5593, %v5282
        %v5595 = vmax.f32 %v5594, %v5322
        %v5596 = vmax.f32 %v5595, %v5362
        %v5597 = vmax.f32 %v5596, %v5402
        %v5598 = vmax.f32 %v5597, %v5442
        %v5599 = vmax.f32 %v5598, %v5482
        %v5600 = vmax.f32 %v5163, %v5203
        %v5601 = vmax.f32 %v5600, %v5243
        %v5602 = vmax.f32 %v5601, %v5283
        %v5603 = vmax.f32 %v5602, %v5323
        %v5604 = vmax.f32 %v5603, %v5363
        %v5605 = vmax.f32 %v5604, %v5403
        %v5606 = vmax.f32 %v5605, %v5443
        %v5607 = vmax.f32 %v5606, %v5483
        %v5608 = vmax.f32 %v5164, %v5204
        %v5609 = vmax.f32 %v5608, %v5244
        %v5610 = vmax.f32 %v5609, %v5284
        %v5611 = vmax.f32 %v5610, %v5324
        %v5612 = vmax.f32 %v5611, %v5364
        %v5613 = vmax.f32 %v5612, %v5404
        %v5614 = vmax.f32 %v5613, %v5444
        %v5615 = vmax.f32 %v5614, %v5484
        %v5616 = vmax.f32 %v5165, %v5205
        %v5617 = vmax.f32 %v5616, %v5245
        %v5618 = vmax.f32 %v5617, %v5285
        %v5619 = vmax.f32 %v5618, %v5325
        %v5620 = vmax.f32 %v5619, %v5365
        %v5621 = vmax.f32 %v5620, %v5405
        %v5622 = vmax.f32 %v5621, %v5445
        %v5623 = vmax.f32 %v5622, %v5485
        %v5624 = vmax.f32 %v5166, %v5206
        %v5625 = vmax.f32 %v5624, %v5246
        %v5626 = vmax.f32 %v5625, %v5286
        %v5627 = vmax.f32 %v5626, %v5326
        %v5628 = vmax.f32 %v5627, %v5366
        %v5629 = vmax.f32 %v5628, %v5406
        %v5630 = vmax.f32 %v5629, %v5446
        %v5631 = vmax.f32 %v5630, %v5486
        %v5632 = vmax.f32 %v5167, %v5207
        %v5633 = vmax.f32 %v5632, %v5247
        %v5634 = vmax.f32 %v5633, %v5287
        %v5635 = vmax.f32 %v5634, %v5327
        %v5636 = vmax.f32 %v5635, %v5367
        %v5637 = vmax.f32 %v5636, %v5407
        %v5638 = vmax.f32 %v5637, %v5447
        %v5639 = vmax.f32 %v5638, %v5487
        %v5640 = vmax.f32 %v5168, %v5208
        %v5641 = vmax.f32 %v5640, %v5248
        %v5642 = vmax.f32 %v5641, %v5288
        %v5643 = vmax.f32 %v5642, %v5328
        %v5644 = vmax.f32 %v5643, %v5368
        %v5645 = vmax.f32 %v5644, %v5408
        %v5646 = vmax.f32 %v5645, %v5448
        %v5647 = vmax.f32 %v5646, %v5488
        %v5648 = vmax.f32 %v5169, %v5209
        %v5649 = vmax.f32 %v5648, %v5249
        %v5650 = vmax.f32 %v5649, %v5289
        %v5651 = vmax.f32 %v5650, %v5329
        %v5652 = vmax.f32 %v5651, %v5369
        %v5653 = vmax.f32 %v5652, %v5409
        %v5654 = vmax.f32 %v5653, %v5449
        %v5655 = vmax.f32 %v5654, %v5489
        %v5656 = vmax.f32 %v5170, %v5210
        %v5657 = vmax.f32 %v5656, %v5250
        %v5658 = vmax.f32 %v5657, %v5290
        %v5659 = vmax.f32 %v5658, %v5330
        %v5660 = vmax.f32 %v5659, %v5370
        %v5661 = vmax.f32 %v5660, %v5410
        %v5662 = vmax.f32 %v5661, %v5450
        %v5663 = vmax.f32 %v5662, %v5490
        %v5664 = vmax.f32 %v5171, %v5211
        %v5665 = vmax.f32 %v5664, %v5251
        %v5666 = vmax.f32 %v5665, %v5291
        %v5667 = vmax.f32 %v5666, %v5331
        %v5668 = vmax.f32 %v5667, %v5371
        %v5669 = vmax.f32 %v5668, %v5411
        %v5670 = vmax.f32 %v5669, %v5451
        %v5671 = vmax.f32 %v5670, %v5491
        %v5672 = vmax.f32 %v5172, %v5212
        %v5673 = vmax.f32 %v5672, %v5252
        %v5674 = vmax.f32 %v5673, %v5292
        %v5675 = vmax.f32 %v5674, %v5332
        %v5676 = vmax.f32 %v5675, %v5372
        %v5677 = vmax.f32 %v5676, %v5412
        %v5678 = vmax.f32 %v5677, %v5452
        %v5679 = vmax.f32 %v5678, %v5492
        %v5680 = vmax.f32 %v5173, %v5213
        %v5681 = vmax.f32 %v5680, %v5253
        %v5682 = vmax.f32 %v5681, %v5293
        %v5683 = vmax.f32 %v5682, %v5333
        %v5684 = vmax.f32 %v5683, %v5373
        %v5685 = vmax.f32 %v5684, %v5413
        %v5686 = vmax.f32 %v5685, %v5453
        %v5687 = vmax.f32 %v5686, %v5493
        %v5688 = vmax.f32 %v5174, %v5214
        %v5689 = vmax.f32 %v5688, %v5254
        %v5690 = vmax.f32 %v5689, %v5294
        %v5691 = vmax.f32 %v5690, %v5334
        %v5692 = vmax.f32 %v5691, %v5374
        %v5693 = vmax.f32 %v5692, %v5414
        %v5694 = vmax.f32 %v5693, %v5454
        %v5695 = vmax.f32 %v5694, %v5494
        %v5696 = vmax.f32 %v5175, %v5215
        %v5697 = vmax.f32 %v5696, %v5255
        %v5698 = vmax.f32 %v5697, %v5295
        %v5699 = vmax.f32 %v5698, %v5335
        %v5700 = vmax.f32 %v5699, %v5375
        %v5701 = vmax.f32 %v5700, %v5415
        %v5702 = vmax.f32 %v5701, %v5455
        %v5703 = vmax.f32 %v5702, %v5495
        %v5704 = vmax.f32 %v5176, %v5216
        %v5705 = vmax.f32 %v5704, %v5256
        %v5706 = vmax.f32 %v5705, %v5296
        %v5707 = vmax.f32 %v5706, %v5336
        %v5708 = vmax.f32 %v5707, %v5376
        %v5709 = vmax.f32 %v5708, %v5416
        %v5710 = vmax.f32 %v5709, %v5456
        %v5711 = vmax.f32 %v5710, %v5496
        %v5712 = vmax.f32 %v5177, %v5217
        %v5713 = vmax.f32 %v5712, %v5257
        %v5714 = vmax.f32 %v5713, %v5297
        %v5715 = vmax.f32 %v5714, %v5337
        %v5716 = vmax.f32 %v5715, %v5377
        %v5717 = vmax.f32 %v5716, %v5417
        %v5718 = vmax.f32 %v5717, %v5457
        %v5719 = vmax.f32 %v5718, %v5497
        %v5720 = vmax.f32 %v5178, %v5218
        %v5721 = vmax.f32 %v5720, %v5258
        %v5722 = vmax.f32 %v5721, %v5298
        %v5723 = vmax.f32 %v5722, %v5338
        %v5724 = vmax.f32 %v5723, %v5378
        %v5725 = vmax.f32 %v5724, %v5418
        %v5726 = vmax.f32 %v5725, %v5458
        %v5727 = vmax.f32 %v5726, %v5498
        %v5728 = vmax.f32 %v5179, %v5219
        %v5729 = vmax.f32 %v5728, %v5259
        %v5730 = vmax.f32 %v5729, %v5299
        %v5731 = vmax.f32 %v5730, %v5339
        %v5732 = vmax.f32 %v5731, %v5379
        %v5733 = vmax.f32 %v5732, %v5419
        %v5734 = vmax.f32 %v5733, %v5459
        %v5735 = vmax.f32 %v5734, %v5499
        %v5736 = vmax.f32 %v5180, %v5220
        %v5737 = vmax.f32 %v5736, %v5260
        %v5738 = vmax.f32 %v5737, %v5300
        %v5739 = vmax.f32 %v5738, %v5340
        %v5740 = vmax.f32 %v5739, %v5380
        %v5741 = vmax.f32 %v5740, %v5420
        %v5742 = vmax.f32 %v5741, %v5460
        %v5743 = vmax.f32 %v5742, %v5500
        %v5744 = vmax.f32 %v5181, %v5221
        %v5745 = vmax.f32 %v5744, %v5261
        %v5746 = vmax.f32 %v5745, %v5301
        %v5747 = vmax.f32 %v5746, %v5341
        %v5748 = vmax.f32 %v5747, %v5381
        %v5749 = vmax.f32 %v5748, %v5421
        %v5750 = vmax.f32 %v5749, %v5461
        %v5751 = vmax.f32 %v5750, %v5501
        %v5752 = vmax.f32 %v5182, %v5222
        %v5753 = vmax.f32 %v5752, %v5262
        %v5754 = vmax.f32 %v5753, %v5302
        %v5755 = vmax.f32 %v5754, %v5342
        %v5756 = vmax.f32 %v5755, %v5382
        %v5757 = vmax.f32 %v5756, %v5422
        %v5758 = vmax.f32 %v5757, %v5462
        %v5759 = vmax.f32 %v5758, %v5502
        %v5760 = vmax.f32 %v5183, %v5223
        %v5761 = vmax.f32 %v5760, %v5263
        %v5762 = vmax.f32 %v5761, %v5303
        %v5763 = vmax.f32 %v5762, %v5343
        %v5764 = vmax.f32 %v5763, %v5383
        %v5765 = vmax.f32 %v5764, %v5423
        %v5766 = vmax.f32 %v5765, %v5463
        %v5767 = vmax.f32 %v5766, %v5503
        %v5768 = vmax.f32 %v5184, %v5224
        %v5769 = vmax.f32 %v5768, %v5264
        %v5770 = vmax.f32 %v5769, %v5304
        %v5771 = vmax.f32 %v5770, %v5344
        %v5772 = vmax.f32 %v5771, %v5384
        %v5773 = vmax.f32 %v5772, %v5424
        %v5774 = vmax.f32 %v5773, %v5464
        %v5775 = vmax.f32 %v5774, %v5504
        %v5776 = vmax.f32 %v5185, %v5225
        %v5777 = vmax.f32 %v5776, %v5265
        %v5778 = vmax.f32 %v5777, %v5305
        %v5779 = vmax.f32 %v5778, %v5345
        %v5780 = vmax.f32 %v5779, %v5385
        %v5781 = vmax.f32 %v5780, %v5425
        %v5782 = vmax.f32 %v5781, %v5465
        %v5783 = vmax.f32 %v5782, %v5505
        %v5784 = vmax.f32 %v5186, %v5226
        %v5785 = vmax.f32 %v5784, %v5266
        %v5786 = vmax.f32 %v5785, %v5306
        %v5787 = vmax.f32 %v5786, %v5346
        %v5788 = vmax.f32 %v5787, %v5386
        %v5789 = vmax.f32 %v5788, %v5426
        %v5790 = vmax.f32 %v5789, %v5466
        %v5791 = vmax.f32 %v5790, %v5506
        %v5792 = vmax.f32 %v5187, %v5227
        %v5793 = vmax.f32 %v5792, %v5267
        %v5794 = vmax.f32 %v5793, %v5307
        %v5795 = vmax.f32 %v5794, %v5347
        %v5796 = vmax.f32 %v5795, %v5387
        %v5797 = vmax.f32 %v5796, %v5427
        %v5798 = vmax.f32 %v5797, %v5467
        %v5799 = vmax.f32 %v5798, %v5507
        %v5800 = vmax.f32 %v5188, %v5228
        %v5801 = vmax.f32 %v5800, %v5268
        %v5802 = vmax.f32 %v5801, %v5308
        %v5803 = vmax.f32 %v5802, %v5348
        %v5804 = vmax.f32 %v5803, %v5388
        %v5805 = vmax.f32 %v5804, %v5428
        %v5806 = vmax.f32 %v5805, %v5468
        %v5807 = vmax.f32 %v5806, %v5508
        %v5808 = vmax.f32 %v5189, %v5229
        %v5809 = vmax.f32 %v5808, %v5269
        %v5810 = vmax.f32 %v5809, %v5309
        %v5811 = vmax.f32 %v5810, %v5349
        %v5812 = vmax.f32 %v5811, %v5389
        %v5813 = vmax.f32 %v5812, %v5429
        %v5814 = vmax.f32 %v5813, %v5469
        %v5815 = vmax.f32 %v5814, %v5509
        %v5816 = vmax.f32 %v5190, %v5230
        %v5817 = vmax.f32 %v5816, %v5270
        %v5818 = vmax.f32 %v5817, %v5310
        %v5819 = vmax.f32 %v5818, %v5350
        %v5820 = vmax.f32 %v5819, %v5390
        %v5821 = vmax.f32 %v5820, %v5430
        %v5822 = vmax.f32 %v5821, %v5470
        %v5823 = vmax.f32 %v5822, %v5510
        %v5824 = vmax.f32 %v5191, %v5231
        %v5825 = vmax.f32 %v5824, %v5271
        %v5826 = vmax.f32 %v5825, %v5311
        %v5827 = vmax.f32 %v5826, %v5351
        %v5828 = vmax.f32 %v5827, %v5391
        %v5829 = vmax.f32 %v5828, %v5431
        %v5830 = vmax.f32 %v5829, %v5471
        %v5831 = vmax.f32 %v5830, %v5511
        %v5832 = vld [vmem:[%s1] sm:$0xff]
        %v5833 = vld [vmem:[%s1 + $0x8] sm:$0xff]
        %v5834 = vld [vmem:[%s1 + $0x10] sm:$0xff]
        %v5835 = vld [vmem:[%s1 + $0x18] sm:$0xff]
        %v5836 = vld [vmem:[%s1 + $0x20] sm:$0xff]
        %v5837 = vld [vmem:[%s1 + $0x28] sm:$0xff]
        %v5838 = vld [vmem:[%s1 + $0x30] sm:$0xff]
        %v5839 = vld [vmem:[%s1 + $0x38] sm:$0xff]
        %v5840 = vld [vmem:[%s1 + $0x40] sm:$0xff]
        %v5841 = vld [vmem:[%s1 + $0x48] sm:$0xff]
        %v5842 = vld [vmem:[%s1 + $0x50] sm:$0xff]
        %v5843 = vld [vmem:[%s1 + $0x58] sm:$0xff]
        %v5844 = vld [vmem:[%s1 + $0x60] sm:$0xff]
        %v5845 = vld [vmem:[%s1 + $0x68] sm:$0xff]
        %v5846 = vld [vmem:[%s1 + $0x70] sm:$0xff]
        %v5847 = vld [vmem:[%s1 + $0x78] sm:$0xff]
        %v5848 = vld [vmem:[%s1 + $0x80] sm:$0xff]
        %v5849 = vld [vmem:[%s1 + $0x88] sm:$0xff]
        %v5850 = vld [vmem:[%s1 + $0x90] sm:$0xff]
        %v5851 = vld [vmem:[%s1 + $0x98] sm:$0xff]
        %v5852 = vld [vmem:[%s1 + $0xa0] sm:$0xff]
        %v5853 = vld [vmem:[%s1 + $0xa8] sm:$0xff]
        %v5854 = vld [vmem:[%s1 + $0xb0] sm:$0xff]
        %v5855 = vld [vmem:[%s1 + $0xb8] sm:$0xff]
        %v5856 = vld [vmem:[%s1 + $0xc0] sm:$0xff]
        %v5857 = vld [vmem:[%s1 + $0xc8] sm:$0xff]
        %v5858 = vld [vmem:[%s1 + $0xd0] sm:$0xff]
        %v5859 = vld [vmem:[%s1 + $0xd8] sm:$0xff]
        %v5860 = vld [vmem:[%s1 + $0xe0] sm:$0xff]
        %v5861 = vld [vmem:[%s1 + $0xe8] sm:$0xff]
        %v5862 = vld [vmem:[%s1 + $0xf0] sm:$0xff]
        %v5863 = vld [vmem:[%s1 + $0xf8] sm:$0xff]
        %v5864 = vld [vmem:[%s1 + $0x100] sm:$0xff]
        %v5865 = vld [vmem:[%s1 + $0x108] sm:$0xff]
        %v5866 = vld [vmem:[%s1 + $0x110] sm:$0xff]
        %v5867 = vld [vmem:[%s1 + $0x118] sm:$0xff]
        %v5868 = vld [vmem:[%s1 + $0x120] sm:$0xff]
        %v5869 = vld [vmem:[%s1 + $0x128] sm:$0xff]
        %v5870 = vld [vmem:[%s1 + $0x130] sm:$0xff]
        %v5871 = vld [vmem:[%s1 + $0x138] sm:$0xff]
        %v5872 = vld [vmem:[%s1 + $0x140] sm:$0xff]
        %v5873 = vld [vmem:[%s1 + $0x148] sm:$0xff]
        %v5874 = vld [vmem:[%s1 + $0x150] sm:$0xff]
        %v5875 = vld [vmem:[%s1 + $0x158] sm:$0xff]
        %v5876 = vld [vmem:[%s1 + $0x160] sm:$0xff]
        %v5877 = vld [vmem:[%s1 + $0x168] sm:$0xff]
        %v5878 = vld [vmem:[%s1 + $0x170] sm:$0xff]
        %v5879 = vld [vmem:[%s1 + $0x178] sm:$0xff]
        %v5880 = vld [vmem:[%s1 + $0x180] sm:$0xff]
        %v5881 = vld [vmem:[%s1 + $0x188] sm:$0xff]
        %v5882 = vld [vmem:[%s1 + $0x190] sm:$0xff]
        %v5883 = vld [vmem:[%s1 + $0x198] sm:$0xff]
        %v5884 = vld [vmem:[%s1 + $0x1a0] sm:$0xff]
        %v5885 = vld [vmem:[%s1 + $0x1a8] sm:$0xff]
        %v5886 = vld [vmem:[%s1 + $0x1b0] sm:$0xff]
        %v5887 = vld [vmem:[%s1 + $0x1b8] sm:$0xff]
        %v5888 = vld [vmem:[%s1 + $0x1c0] sm:$0xff]
        %v5889 = vld [vmem:[%s1 + $0x1c8] sm:$0xff]
        %v5890 = vld [vmem:[%s1 + $0x1d0] sm:$0xff]
        %v5891 = vld [vmem:[%s1 + $0x1d8] sm:$0xff]
        %v5892 = vld [vmem:[%s1 + $0x1e0] sm:$0xff]
        %v5893 = vld [vmem:[%s1 + $0x1e8] sm:$0xff]
        %v5894 = vld [vmem:[%s1 + $0x1f0] sm:$0xff]
        %v5895 = vld [vmem:[%s1 + $0x1f8] sm:$0xff]
        %v5896 = vld [vmem:[%s1 + $0x200] sm:$0xff]
        %v5897 = vld [vmem:[%s1 + $0x208] sm:$0xff]
        %v5898 = vld [vmem:[%s1 + $0x210] sm:$0xff]
        %v5899 = vld [vmem:[%s1 + $0x218] sm:$0xff]
        %v5900 = vld [vmem:[%s1 + $0x220] sm:$0xff]
        %v5901 = vld [vmem:[%s1 + $0x228] sm:$0xff]
        %v5902 = vld [vmem:[%s1 + $0x230] sm:$0xff]
        %v5903 = vld [vmem:[%s1 + $0x238] sm:$0xff]
        %v5904 = vld [vmem:[%s1 + $0x240] sm:$0xff]
        %v5905 = vld [vmem:[%s1 + $0x248] sm:$0xff]
        %v5906 = vld [vmem:[%s1 + $0x250] sm:$0xff]
        %v5907 = vld [vmem:[%s1 + $0x258] sm:$0xff]
        %v5908 = vld [vmem:[%s1 + $0x260] sm:$0xff]
        %v5909 = vld [vmem:[%s1 + $0x268] sm:$0xff]
        %v5910 = vld [vmem:[%s1 + $0x270] sm:$0xff]
        %v5911 = vld [vmem:[%s1 + $0x278] sm:$0xff]
        %v5912 = vld [vmem:[%s1 + $0x280] sm:$0xff]
        %v5913 = vld [vmem:[%s1 + $0x288] sm:$0xff]
        %v5914 = vld [vmem:[%s1 + $0x290] sm:$0xff]
        %v5915 = vld [vmem:[%s1 + $0x298] sm:$0xff]
        %v5916 = vld [vmem:[%s1 + $0x2a0] sm:$0xff]
        %v5917 = vld [vmem:[%s1 + $0x2a8] sm:$0xff]
        %v5918 = vld [vmem:[%s1 + $0x2b0] sm:$0xff]
        %v5919 = vld [vmem:[%s1 + $0x2b8] sm:$0xff]
        %v5920 = vld [vmem:[%s1 + $0x2c0] sm:$0xff]
        %v5921 = vld [vmem:[%s1 + $0x2c8] sm:$0xff]
        %v5922 = vld [vmem:[%s1 + $0x2d0] sm:$0xff]
        %v5923 = vld [vmem:[%s1 + $0x2d8] sm:$0xff]
        %v5924 = vld [vmem:[%s1 + $0x2e0] sm:$0xff]
        %v5925 = vld [vmem:[%s1 + $0x2e8] sm:$0xff]
        %v5926 = vld [vmem:[%s1 + $0x2f0] sm:$0xff]
        %v5927 = vld [vmem:[%s1 + $0x2f8] sm:$0xff]
        %v5928 = vld [vmem:[%s1 + $0x300] sm:$0xff]
        %v5929 = vld [vmem:[%s1 + $0x308] sm:$0xff]
        %v5930 = vld [vmem:[%s1 + $0x310] sm:$0xff]
        %v5931 = vld [vmem:[%s1 + $0x318] sm:$0xff]
        %v5932 = vld [vmem:[%s1 + $0x320] sm:$0xff]
        %v5933 = vld [vmem:[%s1 + $0x328] sm:$0xff]
        %v5934 = vld [vmem:[%s1 + $0x330] sm:$0xff]
        %v5935 = vld [vmem:[%s1 + $0x338] sm:$0xff]
        %v5936 = vld [vmem:[%s1 + $0x340] sm:$0xff]
        %v5937 = vld [vmem:[%s1 + $0x348] sm:$0xff]
        %v5938 = vld [vmem:[%s1 + $0x350] sm:$0xff]
        %v5939 = vld [vmem:[%s1 + $0x358] sm:$0xff]
        %v5940 = vld [vmem:[%s1 + $0x360] sm:$0xff]
        %v5941 = vld [vmem:[%s1 + $0x368] sm:$0xff]
        %v5942 = vld [vmem:[%s1 + $0x370] sm:$0xff]
        %v5943 = vld [vmem:[%s1 + $0x378] sm:$0xff]
        %v5944 = vld [vmem:[%s1 + $0x380] sm:$0xff]
        %v5945 = vld [vmem:[%s1 + $0x388] sm:$0xff]
        %v5946 = vld [vmem:[%s1 + $0x390] sm:$0xff]
        %v5947 = vld [vmem:[%s1 + $0x398] sm:$0xff]
        %v5948 = vld [vmem:[%s1 + $0x3a0] sm:$0xff]
        %v5949 = vld [vmem:[%s1 + $0x3a8] sm:$0xff]
        %v5950 = vld [vmem:[%s1 + $0x3b0] sm:$0xff]
        %v5951 = vld [vmem:[%s1 + $0x3b8] sm:$0xff]
        %v5952 = vld [vmem:[%s1 + $0x3c0] sm:$0xff]
        %v5953 = vld [vmem:[%s1 + $0x3c8] sm:$0xff]
        %v5954 = vld [vmem:[%s1 + $0x3d0] sm:$0xff]
        %v5955 = vld [vmem:[%s1 + $0x3d8] sm:$0xff]
        %v5956 = vld [vmem:[%s1 + $0x3e0] sm:$0xff]
        %v5957 = vld [vmem:[%s1 + $0x3e8] sm:$0xff]
        %v5958 = vld [vmem:[%s1 + $0x3f0] sm:$0xff]
        %v5959 = vld [vmem:[%s1 + $0x3f8] sm:$0xff]
        %v5960 = vld [vmem:[%s1 + $0x400] sm:$0xff]
        %v5961 = vld [vmem:[%s1 + $0x408] sm:$0xff]
        %v5962 = vld [vmem:[%s1 + $0x410] sm:$0xff]
        %v5963 = vld [vmem:[%s1 + $0x418] sm:$0xff]
        %v5964 = vld [vmem:[%s1 + $0x420] sm:$0xff]
        %v5965 = vld [vmem:[%s1 + $0x428] sm:$0xff]
        %v5966 = vld [vmem:[%s1 + $0x430] sm:$0xff]
        %v5967 = vld [vmem:[%s1 + $0x438] sm:$0xff]
        %v5968 = vld [vmem:[%s1 + $0x440] sm:$0xff]
        %v5969 = vld [vmem:[%s1 + $0x448] sm:$0xff]
        %v5970 = vld [vmem:[%s1 + $0x450] sm:$0xff]
        %v5971 = vld [vmem:[%s1 + $0x458] sm:$0xff]
        %v5972 = vld [vmem:[%s1 + $0x460] sm:$0xff]
        %v5973 = vld [vmem:[%s1 + $0x468] sm:$0xff]
        %v5974 = vld [vmem:[%s1 + $0x470] sm:$0xff]
        %v5975 = vld [vmem:[%s1 + $0x478] sm:$0xff]
        %v5976 = vld [vmem:[%s1 + $0x480] sm:$0xff]
        %v5977 = vld [vmem:[%s1 + $0x488] sm:$0xff]
        %v5978 = vld [vmem:[%s1 + $0x490] sm:$0xff]
        %v5979 = vld [vmem:[%s1 + $0x498] sm:$0xff]
        %v5980 = vld [vmem:[%s1 + $0x4a0] sm:$0xff]
        %v5981 = vld [vmem:[%s1 + $0x4a8] sm:$0xff]
        %v5982 = vld [vmem:[%s1 + $0x4b0] sm:$0xff]
        %v5983 = vld [vmem:[%s1 + $0x4b8] sm:$0xff]
        %v5984 = vld [vmem:[%s1 + $0x4c0] sm:$0xff]
        %v5985 = vld [vmem:[%s1 + $0x4c8] sm:$0xff]
        %v5986 = vld [vmem:[%s1 + $0x4d0] sm:$0xff]
        %v5987 = vld [vmem:[%s1 + $0x4d8] sm:$0xff]
        %v5988 = vld [vmem:[%s1 + $0x4e0] sm:$0xff]
        %v5989 = vld [vmem:[%s1 + $0x4e8] sm:$0xff]
        %v5990 = vld [vmem:[%s1 + $0x4f0] sm:$0xff]
        %v5991 = vld [vmem:[%s1 + $0x4f8] sm:$0xff]
        %v5992 = vld [vmem:[%s1 + $0x500] sm:$0xff]
        %v5993 = vld [vmem:[%s1 + $0x508] sm:$0xff]
        %v5994 = vld [vmem:[%s1 + $0x510] sm:$0xff]
        %v5995 = vld [vmem:[%s1 + $0x518] sm:$0xff]
        %v5996 = vld [vmem:[%s1 + $0x520] sm:$0xff]
        %v5997 = vld [vmem:[%s1 + $0x528] sm:$0xff]
        %v5998 = vld [vmem:[%s1 + $0x530] sm:$0xff]
        %v5999 = vld [vmem:[%s1 + $0x538] sm:$0xff]
        %v6000 = vld [vmem:[%s1 + $0x540] sm:$0xff]
        %v6001 = vld [vmem:[%s1 + $0x548] sm:$0xff]
        %v6002 = vld [vmem:[%s1 + $0x550] sm:$0xff]
        %v6003 = vld [vmem:[%s1 + $0x558] sm:$0xff]
        %v6004 = vld [vmem:[%s1 + $0x560] sm:$0xff]
        %v6005 = vld [vmem:[%s1 + $0x568] sm:$0xff]
        %v6006 = vld [vmem:[%s1 + $0x570] sm:$0xff]
        %v6007 = vld [vmem:[%s1 + $0x578] sm:$0xff]
        %v6008 = vld [vmem:[%s1 + $0x580] sm:$0xff]
        %v6009 = vld [vmem:[%s1 + $0x588] sm:$0xff]
        %v6010 = vld [vmem:[%s1 + $0x590] sm:$0xff]
        %v6011 = vld [vmem:[%s1 + $0x598] sm:$0xff]
        %v6012 = vld [vmem:[%s1 + $0x5a0] sm:$0xff]
        %v6013 = vld [vmem:[%s1 + $0x5a8] sm:$0xff]
        %v6014 = vld [vmem:[%s1 + $0x5b0] sm:$0xff]
        %v6015 = vld [vmem:[%s1 + $0x5b8] sm:$0xff]
        %v6016 = vld [vmem:[%s1 + $0x5c0] sm:$0xff]
        %v6017 = vld [vmem:[%s1 + $0x5c8] sm:$0xff]
        %v6018 = vld [vmem:[%s1 + $0x5d0] sm:$0xff]
        %v6019 = vld [vmem:[%s1 + $0x5d8] sm:$0xff]
        %v6020 = vld [vmem:[%s1 + $0x5e0] sm:$0xff]
        %v6021 = vld [vmem:[%s1 + $0x5e8] sm:$0xff]
        %v6022 = vld [vmem:[%s1 + $0x5f0] sm:$0xff]
        %v6023 = vld [vmem:[%s1 + $0x5f8] sm:$0xff]
        %v6024 = vld [vmem:[%s1 + $0x600] sm:$0xff]
        %v6025 = vld [vmem:[%s1 + $0x608] sm:$0xff]
        %v6026 = vld [vmem:[%s1 + $0x610] sm:$0xff]
        %v6027 = vld [vmem:[%s1 + $0x618] sm:$0xff]
        %v6028 = vld [vmem:[%s1 + $0x620] sm:$0xff]
        %v6029 = vld [vmem:[%s1 + $0x628] sm:$0xff]
        %v6030 = vld [vmem:[%s1 + $0x630] sm:$0xff]
        %v6031 = vld [vmem:[%s1 + $0x638] sm:$0xff]
        %v6032 = vld [vmem:[%s1 + $0x640] sm:$0xff]
        %v6033 = vld [vmem:[%s1 + $0x648] sm:$0xff]
        %v6034 = vld [vmem:[%s1 + $0x650] sm:$0xff]
        %v6035 = vld [vmem:[%s1 + $0x658] sm:$0xff]
        %v6036 = vld [vmem:[%s1 + $0x660] sm:$0xff]
        %v6037 = vld [vmem:[%s1 + $0x668] sm:$0xff]
        %v6038 = vld [vmem:[%s1 + $0x670] sm:$0xff]
        %v6039 = vld [vmem:[%s1 + $0x678] sm:$0xff]
        %v6040 = vld [vmem:[%s1 + $0x680] sm:$0xff]
        %v6041 = vld [vmem:[%s1 + $0x688] sm:$0xff]
        %v6042 = vld [vmem:[%s1 + $0x690] sm:$0xff]
        %v6043 = vld [vmem:[%s1 + $0x698] sm:$0xff]
        %v6044 = vld [vmem:[%s1 + $0x6a0] sm:$0xff]
        %v6045 = vld [vmem:[%s1 + $0x6a8] sm:$0xff]
        %v6046 = vld [vmem:[%s1 + $0x6b0] sm:$0xff]
        %v6047 = vld [vmem:[%s1 + $0x6b8] sm:$0xff]
        %v6048 = vld [vmem:[%s1 + $0x6c0] sm:$0xff]
        %v6049 = vld [vmem:[%s1 + $0x6c8] sm:$0xff]
        %v6050 = vld [vmem:[%s1 + $0x6d0] sm:$0xff]
        %v6051 = vld [vmem:[%s1 + $0x6d8] sm:$0xff]
        %v6052 = vld [vmem:[%s1 + $0x6e0] sm:$0xff]
        %v6053 = vld [vmem:[%s1 + $0x6e8] sm:$0xff]
        %v6054 = vld [vmem:[%s1 + $0x6f0] sm:$0xff]
        %v6055 = vld [vmem:[%s1 + $0x6f8] sm:$0xff]
        %v6056 = vld [vmem:[%s1 + $0x700] sm:$0xff]
        %v6057 = vld [vmem:[%s1 + $0x708] sm:$0xff]
        %v6058 = vld [vmem:[%s1 + $0x710] sm:$0xff]
        %v6059 = vld [vmem:[%s1 + $0x718] sm:$0xff]
        %v6060 = vld [vmem:[%s1 + $0x720] sm:$0xff]
        %v6061 = vld [vmem:[%s1 + $0x728] sm:$0xff]
        %v6062 = vld [vmem:[%s1 + $0x730] sm:$0xff]
        %v6063 = vld [vmem:[%s1 + $0x738] sm:$0xff]
        %v6064 = vld [vmem:[%s1 + $0x740] sm:$0xff]
        %v6065 = vld [vmem:[%s1 + $0x748] sm:$0xff]
        %v6066 = vld [vmem:[%s1 + $0x750] sm:$0xff]
        %v6067 = vld [vmem:[%s1 + $0x758] sm:$0xff]
        %v6068 = vld [vmem:[%s1 + $0x760] sm:$0xff]
        %v6069 = vld [vmem:[%s1 + $0x768] sm:$0xff]
        %v6070 = vld [vmem:[%s1 + $0x770] sm:$0xff]
        %v6071 = vld [vmem:[%s1 + $0x778] sm:$0xff]
        %v6072 = vld [vmem:[%s1 + $0x780] sm:$0xff]
        %v6073 = vld [vmem:[%s1 + $0x788] sm:$0xff]
        %v6074 = vld [vmem:[%s1 + $0x790] sm:$0xff]
        %v6075 = vld [vmem:[%s1 + $0x798] sm:$0xff]
        %v6076 = vld [vmem:[%s1 + $0x7a0] sm:$0xff]
        %v6077 = vld [vmem:[%s1 + $0x7a8] sm:$0xff]
        %v6078 = vld [vmem:[%s1 + $0x7b0] sm:$0xff]
        %v6079 = vld [vmem:[%s1 + $0x7b8] sm:$0xff]
        %v6080 = vld [vmem:[%s1 + $0x7c0] sm:$0xff]
        %v6081 = vld [vmem:[%s1 + $0x7c8] sm:$0xff]
        %v6082 = vld [vmem:[%s1 + $0x7d0] sm:$0xff]
        %v6083 = vld [vmem:[%s1 + $0x7d8] sm:$0xff]
        %v6084 = vld [vmem:[%s1 + $0x7e0] sm:$0xff]
        %v6085 = vld [vmem:[%s1 + $0x7e8] sm:$0xff]
        %v6086 = vld [vmem:[%s1 + $0x7f0] sm:$0xff]
        %v6087 = vld [vmem:[%s1 + $0x7f8] sm:$0xff]
        %v6088 = vld [vmem:[%s1 + $0x800] sm:$0xff]
        %v6089 = vld [vmem:[%s1 + $0x808] sm:$0xff]
        %v6090 = vld [vmem:[%s1 + $0x810] sm:$0xff]
        %v6091 = vld [vmem:[%s1 + $0x818] sm:$0xff]
        %v6092 = vld [vmem:[%s1 + $0x820] sm:$0xff]
        %v6093 = vld [vmem:[%s1 + $0x828] sm:$0xff]
        %v6094 = vld [vmem:[%s1 + $0x830] sm:$0xff]
        %v6095 = vld [vmem:[%s1 + $0x838] sm:$0xff]
        %v6096 = vld [vmem:[%s1 + $0x840] sm:$0xff]
        %v6097 = vld [vmem:[%s1 + $0x848] sm:$0xff]
        %v6098 = vld [vmem:[%s1 + $0x850] sm:$0xff]
        %v6099 = vld [vmem:[%s1 + $0x858] sm:$0xff]
        %v6100 = vld [vmem:[%s1 + $0x860] sm:$0xff]
        %v6101 = vld [vmem:[%s1 + $0x868] sm:$0xff]
        %v6102 = vld [vmem:[%s1 + $0x870] sm:$0xff]
        %v6103 = vld [vmem:[%s1 + $0x878] sm:$0xff]
        %v6104 = vld [vmem:[%s1 + $0x880] sm:$0xff]
        %v6105 = vld [vmem:[%s1 + $0x888] sm:$0xff]
        %v6106 = vld [vmem:[%s1 + $0x890] sm:$0xff]
        %v6107 = vld [vmem:[%s1 + $0x898] sm:$0xff]
        %v6108 = vld [vmem:[%s1 + $0x8a0] sm:$0xff]
        %v6109 = vld [vmem:[%s1 + $0x8a8] sm:$0xff]
        %v6110 = vld [vmem:[%s1 + $0x8b0] sm:$0xff]
        %v6111 = vld [vmem:[%s1 + $0x8b8] sm:$0xff]
        %v6112 = vld [vmem:[%s1 + $0x8c0] sm:$0xff]
        %v6113 = vld [vmem:[%s1 + $0x8c8] sm:$0xff]
        %v6114 = vld [vmem:[%s1 + $0x8d0] sm:$0xff]
        %v6115 = vld [vmem:[%s1 + $0x8d8] sm:$0xff]
        %v6116 = vld [vmem:[%s1 + $0x8e0] sm:$0xff]
        %v6117 = vld [vmem:[%s1 + $0x8e8] sm:$0xff]
        %v6118 = vld [vmem:[%s1 + $0x8f0] sm:$0xff]
        %v6119 = vld [vmem:[%s1 + $0x8f8] sm:$0xff]
        %v6120 = vld [vmem:[%s1 + $0x900] sm:$0xff]
        %v6121 = vld [vmem:[%s1 + $0x908] sm:$0xff]
        %v6122 = vld [vmem:[%s1 + $0x910] sm:$0xff]
        %v6123 = vld [vmem:[%s1 + $0x918] sm:$0xff]
        %v6124 = vld [vmem:[%s1 + $0x920] sm:$0xff]
        %v6125 = vld [vmem:[%s1 + $0x928] sm:$0xff]
        %v6126 = vld [vmem:[%s1 + $0x930] sm:$0xff]
        %v6127 = vld [vmem:[%s1 + $0x938] sm:$0xff]
        %v6128 = vld [vmem:[%s1 + $0x940] sm:$0xff]
        %v6129 = vld [vmem:[%s1 + $0x948] sm:$0xff]
        %v6130 = vld [vmem:[%s1 + $0x950] sm:$0xff]
        %v6131 = vld [vmem:[%s1 + $0x958] sm:$0xff]
        %v6132 = vld [vmem:[%s1 + $0x960] sm:$0xff]
        %v6133 = vld [vmem:[%s1 + $0x968] sm:$0xff]
        %v6134 = vld [vmem:[%s1 + $0x970] sm:$0xff]
        %v6135 = vld [vmem:[%s1 + $0x978] sm:$0xff]
        %v6136 = vld [vmem:[%s1 + $0x980] sm:$0xff]
        %v6137 = vld [vmem:[%s1 + $0x988] sm:$0xff]
        %v6138 = vld [vmem:[%s1 + $0x990] sm:$0xff]
        %v6139 = vld [vmem:[%s1 + $0x998] sm:$0xff]
        %v6140 = vld [vmem:[%s1 + $0x9a0] sm:$0xff]
        %v6141 = vld [vmem:[%s1 + $0x9a8] sm:$0xff]
        %v6142 = vld [vmem:[%s1 + $0x9b0] sm:$0xff]
        %v6143 = vld [vmem:[%s1 + $0x9b8] sm:$0xff]
        %v6144 = vld [vmem:[%s1 + $0x9c0] sm:$0xff]
        %v6145 = vld [vmem:[%s1 + $0x9c8] sm:$0xff]
        %v6146 = vld [vmem:[%s1 + $0x9d0] sm:$0xff]
        %v6147 = vld [vmem:[%s1 + $0x9d8] sm:$0xff]
        %v6148 = vld [vmem:[%s1 + $0x9e0] sm:$0xff]
        %v6149 = vld [vmem:[%s1 + $0x9e8] sm:$0xff]
        %v6150 = vld [vmem:[%s1 + $0x9f0] sm:$0xff]
        %v6151 = vld [vmem:[%s1 + $0x9f8] sm:$0xff]
        %v6152 = vld [vmem:[%s1 + $0xa00] sm:$0xff]
        %v6153 = vld [vmem:[%s1 + $0xa08] sm:$0xff]
        %v6154 = vld [vmem:[%s1 + $0xa10] sm:$0xff]
        %v6155 = vld [vmem:[%s1 + $0xa18] sm:$0xff]
        %v6156 = vld [vmem:[%s1 + $0xa20] sm:$0xff]
        %v6157 = vld [vmem:[%s1 + $0xa28] sm:$0xff]
        %v6158 = vld [vmem:[%s1 + $0xa30] sm:$0xff]
        %v6159 = vld [vmem:[%s1 + $0xa38] sm:$0xff]
        %v6160 = vld [vmem:[%s1 + $0xa40] sm:$0xff]
        %v6161 = vld [vmem:[%s1 + $0xa48] sm:$0xff]
        %v6162 = vld [vmem:[%s1 + $0xa50] sm:$0xff]
        %v6163 = vld [vmem:[%s1 + $0xa58] sm:$0xff]
        %v6164 = vld [vmem:[%s1 + $0xa60] sm:$0xff]
        %v6165 = vld [vmem:[%s1 + $0xa68] sm:$0xff]
        %v6166 = vld [vmem:[%s1 + $0xa70] sm:$0xff]
        %v6167 = vld [vmem:[%s1 + $0xa78] sm:$0xff]
        %v6168 = vld [vmem:[%s1 + $0xa80] sm:$0xff]
        %v6169 = vld [vmem:[%s1 + $0xa88] sm:$0xff]
        %v6170 = vld [vmem:[%s1 + $0xa90] sm:$0xff]
        %v6171 = vld [vmem:[%s1 + $0xa98] sm:$0xff]
        %v6172 = vld [vmem:[%s1 + $0xaa0] sm:$0xff]
        %v6173 = vld [vmem:[%s1 + $0xaa8] sm:$0xff]
        %v6174 = vld [vmem:[%s1 + $0xab0] sm:$0xff]
        %v6175 = vld [vmem:[%s1 + $0xab8] sm:$0xff]
        %v6176 = vld [vmem:[%s1 + $0xac0] sm:$0xff]
        %v6177 = vld [vmem:[%s1 + $0xac8] sm:$0xff]
        %v6178 = vld [vmem:[%s1 + $0xad0] sm:$0xff]
        %v6179 = vld [vmem:[%s1 + $0xad8] sm:$0xff]
        %v6180 = vld [vmem:[%s1 + $0xae0] sm:$0xff]
        %v6181 = vld [vmem:[%s1 + $0xae8] sm:$0xff]
        %v6182 = vld [vmem:[%s1 + $0xaf0] sm:$0xff]
        %v6183 = vld [vmem:[%s1 + $0xaf8] sm:$0xff]
        %v6184 = vld [vmem:[%s1 + $0xb00] sm:$0xff]
        %v6185 = vld [vmem:[%s1 + $0xb08] sm:$0xff]
        %v6186 = vld [vmem:[%s1 + $0xb10] sm:$0xff]
        %v6187 = vld [vmem:[%s1 + $0xb18] sm:$0xff]
        %v6188 = vld [vmem:[%s1 + $0xb20] sm:$0xff]
        %v6189 = vld [vmem:[%s1 + $0xb28] sm:$0xff]
        %v6190 = vld [vmem:[%s1 + $0xb30] sm:$0xff]
        %v6191 = vld [vmem:[%s1 + $0xb38] sm:$0xff]
        %v6192 = vld [vmem:[%s1 + $0xb40] sm:$0xff]
        %v6193 = vld [vmem:[%s1 + $0xb48] sm:$0xff]
        %v6194 = vld [vmem:[%s1 + $0xb50] sm:$0xff]
        %v6195 = vld [vmem:[%s1 + $0xb58] sm:$0xff]
        %v6196 = vld [vmem:[%s1 + $0xb60] sm:$0xff]
        %v6197 = vld [vmem:[%s1 + $0xb68] sm:$0xff]
        %v6198 = vld [vmem:[%s1 + $0xb70] sm:$0xff]
        %v6199 = vld [vmem:[%s1 + $0xb78] sm:$0xff]
        %v6200 = vld [vmem:[%s1 + $0xb80] sm:$0xff]
        %v6201 = vld [vmem:[%s1 + $0xb88] sm:$0xff]
        %v6202 = vld [vmem:[%s1 + $0xb90] sm:$0xff]
        %v6203 = vld [vmem:[%s1 + $0xb98] sm:$0xff]
        %v6204 = vld [vmem:[%s1 + $0xba0] sm:$0xff]
        %v6205 = vld [vmem:[%s1 + $0xba8] sm:$0xff]
        %v6206 = vld [vmem:[%s1 + $0xbb0] sm:$0xff]
        %v6207 = vld [vmem:[%s1 + $0xbb8] sm:$0xff]
        %v6208 = vld [vmem:[%s1 + $0xbc0] sm:$0xff]
        %v6209 = vld [vmem:[%s1 + $0xbc8] sm:$0xff]
        %v6210 = vld [vmem:[%s1 + $0xbd0] sm:$0xff]
        %v6211 = vld [vmem:[%s1 + $0xbd8] sm:$0xff]
        %v6212 = vld [vmem:[%s1 + $0xbe0] sm:$0xff]
        %v6213 = vld [vmem:[%s1 + $0xbe8] sm:$0xff]
        %v6214 = vld [vmem:[%s1 + $0xbf0] sm:$0xff]
        %v6215 = vld [vmem:[%s1 + $0xbf8] sm:$0xff]
        %v6216 = vld [vmem:[%s1 + $0xc00] sm:$0xff]
        %v6217 = vld [vmem:[%s1 + $0xc08] sm:$0xff]
        %v6218 = vld [vmem:[%s1 + $0xc10] sm:$0xff]
        %v6219 = vld [vmem:[%s1 + $0xc18] sm:$0xff]
        %v6220 = vld [vmem:[%s1 + $0xc20] sm:$0xff]
        %v6221 = vld [vmem:[%s1 + $0xc28] sm:$0xff]
        %v6222 = vld [vmem:[%s1 + $0xc30] sm:$0xff]
        %v6223 = vld [vmem:[%s1 + $0xc38] sm:$0xff]
        %v6224 = vld [vmem:[%s1 + $0xc40] sm:$0xff]
        %v6225 = vld [vmem:[%s1 + $0xc48] sm:$0xff]
        %v6226 = vld [vmem:[%s1 + $0xc50] sm:$0xff]
        %v6227 = vld [vmem:[%s1 + $0xc58] sm:$0xff]
        %v6228 = vld [vmem:[%s1 + $0xc60] sm:$0xff]
        %v6229 = vld [vmem:[%s1 + $0xc68] sm:$0xff]
        %v6230 = vld [vmem:[%s1 + $0xc70] sm:$0xff]
        %v6231 = vld [vmem:[%s1 + $0xc78] sm:$0xff]
        %v6232 = vld [vmem:[%s1 + $0xc80] sm:$0xff]
        %v6233 = vld [vmem:[%s1 + $0xc88] sm:$0xff]
        %v6234 = vld [vmem:[%s1 + $0xc90] sm:$0xff]
        %v6235 = vld [vmem:[%s1 + $0xc98] sm:$0xff]
        %v6236 = vld [vmem:[%s1 + $0xca0] sm:$0xff]
        %v6237 = vld [vmem:[%s1 + $0xca8] sm:$0xff]
        %v6238 = vld [vmem:[%s1 + $0xcb0] sm:$0xff]
        %v6239 = vld [vmem:[%s1 + $0xcb8] sm:$0xff]
        %v6240 = vld [vmem:[%s1 + $0xcc0] sm:$0xff]
        %v6241 = vld [vmem:[%s1 + $0xcc8] sm:$0xff]
        %v6242 = vld [vmem:[%s1 + $0xcd0] sm:$0xff]
        %v6243 = vld [vmem:[%s1 + $0xcd8] sm:$0xff]
        %v6244 = vld [vmem:[%s1 + $0xce0] sm:$0xff]
        %v6245 = vld [vmem:[%s1 + $0xce8] sm:$0xff]
        %v6246 = vld [vmem:[%s1 + $0xcf0] sm:$0xff]
        %v6247 = vld [vmem:[%s1 + $0xcf8] sm:$0xff]
        %v6248 = vld [vmem:[%s1 + $0xd00] sm:$0xff]
        %v6249 = vld [vmem:[%s1 + $0xd08] sm:$0xff]
        %v6250 = vld [vmem:[%s1 + $0xd10] sm:$0xff]
        %v6251 = vld [vmem:[%s1 + $0xd18] sm:$0xff]
        %v6252 = vld [vmem:[%s1 + $0xd20] sm:$0xff]
        %v6253 = vld [vmem:[%s1 + $0xd28] sm:$0xff]
        %v6254 = vld [vmem:[%s1 + $0xd30] sm:$0xff]
        %v6255 = vld [vmem:[%s1 + $0xd38] sm:$0xff]
        %v6256 = vld [vmem:[%s1 + $0xd40] sm:$0xff]
        %v6257 = vld [vmem:[%s1 + $0xd48] sm:$0xff]
        %v6258 = vld [vmem:[%s1 + $0xd50] sm:$0xff]
        %v6259 = vld [vmem:[%s1 + $0xd58] sm:$0xff]
        %v6260 = vld [vmem:[%s1 + $0xd60] sm:$0xff]
        %v6261 = vld [vmem:[%s1 + $0xd68] sm:$0xff]
        %v6262 = vld [vmem:[%s1 + $0xd70] sm:$0xff]
        %v6263 = vld [vmem:[%s1 + $0xd78] sm:$0xff]
        %vm6264 = vcmask 523264
        %v6266 = vsel %vm6264, %v5834, 0
        %v6269 = vsel %vm6264, %v5837, 0
        %v6272 = vsel %vm6264, %v5840, 0
        %v6275 = vsel %vm6264, %v5843, 0
        %v6278 = vsel %vm6264, %v5846, 0
        %v6281 = vsel %vm6264, %v5849, 0
        %v6284 = vsel %vm6264, %v5852, 0
        %v6287 = vsel %vm6264, %v5855, 0
        %v6290 = vsel %vm6264, %v5858, 0
        %v6293 = vsel %vm6264, %v5861, 0
        %v6296 = vsel %vm6264, %v5864, 0
        %v6299 = vsel %vm6264, %v5867, 0
        %v6302 = vsel %vm6264, %v5870, 0
        %v6305 = vsel %vm6264, %v5873, 0
        %v6308 = vsel %vm6264, %v5876, 0
        %v6311 = vsel %vm6264, %v5879, 0
        %v6314 = vsel %vm6264, %v5882, 0
        %v6317 = vsel %vm6264, %v5885, 0
        %v6320 = vsel %vm6264, %v5888, 0
        %v6323 = vsel %vm6264, %v5891, 0
        %v6326 = vsel %vm6264, %v5894, 0
        %v6329 = vsel %vm6264, %v5897, 0
        %v6332 = vsel %vm6264, %v5900, 0
        %v6335 = vsel %vm6264, %v5903, 0
        %v6338 = vsel %vm6264, %v5906, 0
        %v6341 = vsel %vm6264, %v5909, 0
        %v6344 = vsel %vm6264, %v5912, 0
        %v6347 = vsel %vm6264, %v5915, 0
        %v6350 = vsel %vm6264, %v5918, 0
        %v6353 = vsel %vm6264, %v5921, 0
        %v6356 = vsel %vm6264, %v5924, 0
        %v6359 = vsel %vm6264, %v5927, 0
        %v6362 = vsel %vm6264, %v5930, 0
        %v6365 = vsel %vm6264, %v5933, 0
        %v6368 = vsel %vm6264, %v5936, 0
        %v6371 = vsel %vm6264, %v5939, 0
        %v6374 = vsel %vm6264, %v5942, 0
        %v6377 = vsel %vm6264, %v5945, 0
        %v6380 = vsel %vm6264, %v5948, 0
        %v6383 = vsel %vm6264, %v5951, 0
        %v6386 = vsel %vm6264, %v5954, 0
        %v6389 = vsel %vm6264, %v5957, 0
        %v6392 = vsel %vm6264, %v5960, 0
        %v6395 = vsel %vm6264, %v5963, 0
        %v6398 = vsel %vm6264, %v5966, 0
        %v6401 = vsel %vm6264, %v5969, 0
        %v6404 = vsel %vm6264, %v5972, 0
        %v6407 = vsel %vm6264, %v5975, 0
        %v6410 = vsel %vm6264, %v5978, 0
        %v6413 = vsel %vm6264, %v5981, 0
        %v6416 = vsel %vm6264, %v5984, 0
        %v6419 = vsel %vm6264, %v5987, 0
        %v6422 = vsel %vm6264, %v5990, 0
        %v6425 = vsel %vm6264, %v5993, 0
        %v6428 = vsel %vm6264, %v5996, 0
        %v6431 = vsel %vm6264, %v5999, 0
        %v6434 = vsel %vm6264, %v6002, 0
        %v6437 = vsel %vm6264, %v6005, 0
        %v6440 = vsel %vm6264, %v6008, 0
        %v6443 = vsel %vm6264, %v6011, 0
        %v6446 = vsel %vm6264, %v6014, 0
        %v6449 = vsel %vm6264, %v6017, 0
        %v6452 = vsel %vm6264, %v6020, 0
        %v6455 = vsel %vm6264, %v6023, 0
        %v6458 = vsel %vm6264, %v6026, 0
        %v6461 = vsel %vm6264, %v6029, 0
        %v6464 = vsel %vm6264, %v6032, 0
        %v6467 = vsel %vm6264, %v6035, 0
        %v6470 = vsel %vm6264, %v6038, 0
        %v6473 = vsel %vm6264, %v6041, 0
        %v6476 = vsel %vm6264, %v6044, 0
        %v6479 = vsel %vm6264, %v6047, 0
        %v6482 = vsel %vm6264, %v6050, 0
        %v6485 = vsel %vm6264, %v6053, 0
        %v6488 = vsel %vm6264, %v6056, 0
        %v6491 = vsel %vm6264, %v6059, 0
        %v6494 = vsel %vm6264, %v6062, 0
        %v6497 = vsel %vm6264, %v6065, 0
        %v6500 = vsel %vm6264, %v6068, 0
        %v6503 = vsel %vm6264, %v6071, 0
        %v6506 = vsel %vm6264, %v6074, 0
        %v6509 = vsel %vm6264, %v6077, 0
        %v6512 = vsel %vm6264, %v6080, 0
        %v6515 = vsel %vm6264, %v6083, 0
        %v6518 = vsel %vm6264, %v6086, 0
        %v6521 = vsel %vm6264, %v6089, 0
        %v6524 = vsel %vm6264, %v6092, 0
        %v6527 = vsel %vm6264, %v6095, 0
        %v6530 = vsel %vm6264, %v6098, 0
        %v6533 = vsel %vm6264, %v6101, 0
        %v6536 = vsel %vm6264, %v6104, 0
        %v6539 = vsel %vm6264, %v6107, 0
        %v6542 = vsel %vm6264, %v6110, 0
        %v6545 = vsel %vm6264, %v6113, 0
        %v6548 = vsel %vm6264, %v6116, 0
        %v6551 = vsel %vm6264, %v6119, 0
        %v6554 = vsel %vm6264, %v6122, 0
        %v6557 = vsel %vm6264, %v6125, 0
        %v6560 = vsel %vm6264, %v6128, 0
        %v6563 = vsel %vm6264, %v6131, 0
        %v6566 = vsel %vm6264, %v6134, 0
        %v6569 = vsel %vm6264, %v6137, 0
        %v6572 = vsel %vm6264, %v6140, 0
        %v6575 = vsel %vm6264, %v6143, 0
        %v6578 = vsel %vm6264, %v6146, 0
        %v6581 = vsel %vm6264, %v6149, 0
        %v6584 = vsel %vm6264, %v6152, 0
        %v6587 = vsel %vm6264, %v6155, 0
        %v6590 = vsel %vm6264, %v6158, 0
        %v6593 = vsel %vm6264, %v6161, 0
        %v6596 = vsel %vm6264, %v6164, 0
        %v6599 = vsel %vm6264, %v6167, 0
        %v6602 = vsel %vm6264, %v6170, 0
        %v6605 = vsel %vm6264, %v6173, 0
        %v6608 = vsel %vm6264, %v6176, 0
        %v6611 = vsel %vm6264, %v6179, 0
        %v6614 = vsel %vm6264, %v6182, 0
        %v6617 = vsel %vm6264, %v6185, 0
        %v6620 = vsel %vm6264, %v6188, 0
        %v6623 = vsel %vm6264, %v6191, 0
        %v6626 = vsel %vm6264, %v6194, 0
        %v6629 = vsel %vm6264, %v6197, 0
        %v6632 = vsel %vm6264, %v6200, 0
        %v6635 = vsel %vm6264, %v6203, 0
        %v6638 = vsel %vm6264, %v6206, 0
        %v6641 = vsel %vm6264, %v6209, 0
        %v6644 = vsel %vm6264, %v6212, 0
        %v6647 = vsel %vm6264, %v6215, 0
        %v6650 = vsel %vm6264, %v6218, 0
        %v6653 = vsel %vm6264, %v6221, 0
        %v6656 = vsel %vm6264, %v6224, 0
        %v6659 = vsel %vm6264, %v6227, 0
        %v6662 = vsel %vm6264, %v6230, 0
        %v6665 = vsel %vm6264, %v6233, 0
        %v6668 = vsel %vm6264, %v6236, 0
        %v6671 = vsel %vm6264, %v6239, 0
        %v6674 = vsel %vm6264, %v6242, 0
        %v6677 = vsel %vm6264, %v6245, 0
        %v6680 = vsel %vm6264, %v6248, 0
        %v6683 = vsel %vm6264, %v6251, 0
        %v6686 = vsel %vm6264, %v6254, 0
        %v6689 = vsel %vm6264, %v6257, 0
        %v6692 = vsel %vm6264, %v6260, 0
        %v6695 = vsel %vm6264, %v6263, 0
        %6697 = vmatprep.subr.mxu0 0.0
        %6698 = vmatpush1.msra.mxu0 %v5519
        %6699 = vmatprep.subr.mxu0 0.0
        %6700 = vmatpush1.msra.mxu0 %v5527
        %6701 = vmatprep.subr.mxu0 0.0
        %6702 = vmatpush1.msra.mxu0 %v5535
        %6703 = vmatprep.subr.mxu0 0.0
        %6704 = vmatpush1.msra.mxu0 %v5543
        %6705 = vmatprep.subr.mxu0 0.0
        %6706 = vmatpush1.msra.mxu0 %v5551
        %6707 = vmatprep.subr.mxu0 0.0
        %6708 = vmatpush1.msra.mxu0 %v5559
        %6709 = vmatprep.subr.mxu0 0.0
        %6710 = vmatpush1.msra.mxu0 %v5567
        %6711 = vmatprep.subr.mxu0 0.0
        %6712 = vmatpush1.msra.mxu0 %v5575
        %6713 = vmatprep.subr.mxu0 0.0
        %6714 = vmatpush1.msra.mxu0 %v5583
        %6715 = vmatprep.subr.mxu0 0.0
        %6716 = vmatpush1.msra.mxu0 %v5591
        %6717 = vmatprep.subr.mxu0 0.0
        %6718 = vmatpush1.msra.mxu0 %v5599
        %6719 = vmatprep.subr.mxu0 0.0
        %6720 = vmatpush1.msra.mxu0 %v5607
        %6721 = vmatprep.subr.mxu0 0.0
        %6722 = vmatpush1.msra.mxu0 %v5615
        %6723 = vmatprep.subr.mxu0 0.0
        %6724 = vmatpush1.msra.mxu0 %v5623
        %6725 = vmatprep.subr.mxu0 0.0
        %6726 = vmatpush1.msra.mxu0 %v5631
        %6727 = vmatprep.subr.mxu0 0.0
        %6728 = vmatpush1.msra.mxu0 %v5639
        %6729 = vmatprep.subr.mxu0 0.0
        %6730 = vmatpush1.msra.mxu0 %v5647
        %6731 = vmatprep.subr.mxu0 0.0
        %6732 = vmatpush1.msra.mxu0 %v5655
        %6733 = vmatprep.subr.mxu0 0.0
        %6734 = vmatpush1.msra.mxu0 %v5663
        %6735 = vmatprep.subr.mxu0 0.0
        %6736 = vmatpush1.msra.mxu0 %v5671
        %6737 = vmatprep.subr.mxu0 0.0
        %6738 = vmatpush1.msra.mxu0 %v5679
        %6739 = vmatprep.subr.mxu0 0.0
        %6740 = vmatpush1.msra.mxu0 %v5687
        %6741 = vmatprep.subr.mxu0 0.0
        %6742 = vmatpush1.msra.mxu0 %v5695
        %6743 = vmatprep.subr.mxu0 0.0
        %6744 = vmatpush1.msra.mxu0 %v5703
        %6745 = vmatprep.subr.mxu0 0.0
        %6746 = vmatpush1.msra.mxu0 %v5711
        %6747 = vmatprep.subr.mxu0 0.0
        %6748 = vmatpush1.msra.mxu0 %v5719
        %6749 = vmatprep.subr.mxu0 0.0
        %6750 = vmatpush1.msra.mxu0 %v5727
        %6751 = vmatprep.subr.mxu0 0.0
        %6752 = vmatpush1.msra.mxu0 %v5735
        %6753 = vmatprep.subr.mxu0 0.0
        %6754 = vmatpush1.msra.mxu0 %v5743
        %6755 = vmatprep.subr.mxu0 0.0
        %6756 = vmatpush1.msra.mxu0 %v5751
        %6757 = vmatprep.subr.mxu0 0.0
        %6758 = vmatpush1.msra.mxu0 %v5759
        %6759 = vmatprep.subr.mxu0 0.0
        %6760 = vmatpush1.msra.mxu0 %v5767
        %6761 = vmatprep.mubr.f32.mxu0 %v5833
        %6762 = vmatmul.mubr.f32.gmra.mrb[0].mxu0 %v5832
        %v6763 = vpop.f32.mrb[0].mxu0
        %v6764 = vadd.f32 0.0, %v6763
        %v6765 = vpop.f32.mrb[0].mxu0
        %6766 = vmatprep.mubr.f32.mxu0 %v5836
        %6767 = vmatmul.mubr.f32.gmra.mrb[0].mxu0 %v5835
        %v6768 = vpop.f32.mrb[0].mxu0
        %v6769 = vadd.f32 0.0, %v6768
        %v6770 = vpop.f32.mrb[0].mxu0
        %6771 = vmatprep.mubr.f32.mxu0 %v5839
        %6772 = vmatmul.mubr.f32.gmra.mrb[0].mxu0 %v5838
        %v6773 = vpop.f32.mrb[0].mxu0
        %v6774 = vadd.f32 0.0, %v6773
        %v6775 = vpop.f32.mrb[0].mxu0
        %6776 = vmatprep.mubr.f32.mxu0 %v5842
        %6777 = vmatmul.mubr.f32.gmra.mrb[0].mxu0 %v5841
        %v6778 = vpop.f32.mrb[0].mxu0
        %v6779 = vadd.f32 0.0, %v6778
        %v6780 = vpop.f32.mrb[0].mxu0
        %6781 = vmatprep.mubr.f32.mxu0 %v5845
        %6782 = vmatmul.mubr.f32.gmra.mrb[0].mxu0 %v5844
        %v6783 = vpop.f32.mrb[0].mxu0
        %v6784 = vadd.f32 0.0, %v6783
        %v6785 = vpop.f32.mrb[0].mxu0
        %6786 = vmatprep.mubr.f32.mxu0 %v5848
        %6787 = vmatmul.mubr.f32.gmra.mrb[0].mxu0 %v5847
        %v6788 = vpop.f32.mrb[0].mxu0
        %v6789 = vadd.f32 0.0, %v6788
        %v6790 = vpop.f32.mrb[0].mxu0
        %6791 = vmatprep.mubr.f32.mxu0 %v5851
        %6792 = vmatmul.mubr.f32.gmra.mrb[0].mxu0 %v5850
        %v6793 = vpop.f32.mrb[0].mxu0
        %v6794 = vadd.f32 0.0, %v6793
        %v6795 = vpop.f32.mrb[0].mxu0
        %6796 = vmatprep.mubr.f32.mxu0 %v5854
        %6797 = vmatmul.mubr.f32.gmra.mrb[0].mxu0 %v5853
        %v6798 = vpop.f32.mrb[0].mxu0
        %v6799 = vadd.f32 0.0, %v6798
        %v6800 = vpop.f32.mrb[0].mxu0
        %6801 = vmatprep.mubr.f32.mxu0 %v5857
        %6802 = vmatmul.mubr.f32.gmra.mrb[0].mxu0 %v5856
        %v6803 = vpop.f32.mrb[0].mxu0
        %v6804 = vadd.f32 0.0, %v6803
        %v6805 = vpop.f32.mrb[0].mxu0
        %6806 = vmatprep.mubr.f32.mxu0 %v5860
        %6807 = vmatmul.mubr.f32.gmra.mrb[0].mxu0 %v5859
        %v6808 = vpop.f32.mrb[0].mxu0
        %v6809 = vadd.f32 0.0, %v6808
        %v6810 = vpop.f32.mrb[0].mxu0
        %6811 = vmatprep.mubr.f32.mxu0 %v5863
        %6812 = vmatmul.mubr.f32.gmra.mrb[0].mxu0 %v5862
        %v6813 = vpop.f32.mrb[0].mxu0
        %v6814 = vadd.f32 0.0, %v6813
        %v6815 = vpop.f32.mrb[0].mxu0
        %6816 = vmatprep.mubr.f32.mxu0 %v5866
        %6817 = vmatmul.mubr.f32.gmra.mrb[0].mxu0 %v5865
        %v6818 = vpop.f32.mrb[0].mxu0
        %v6819 = vadd.f32 0.0, %v6818
        %v6820 = vpop.f32.mrb[0].mxu0
        %6821 = vmatprep.mubr.f32.mxu0 %v5869
        %6822 = vmatmul.mubr.f32.gmra.mrb[0].mxu0 %v5868
        %v6823 = vpop.f32.mrb[0].mxu0
        %v6824 = vadd.f32 0.0, %v6823
        %v6825 = vpop.f32.mrb[0].mxu0
        %6826 = vmatprep.mubr.f32.mxu0 %v5872
        %6827 = vmatmul.mubr.f32.gmra.mrb[0].mxu0 %v5871
        %v6828 = vpop.f32.mrb[0].mxu0
        %v6829 = vadd.f32 0.0, %v6828
        %v6830 = vpop.f32.mrb[0].mxu0
        %6831 = vmatprep.mubr.f32.mxu0 %v5875
        %6832 = vmatmul.mubr.f32.gmra.mrb[0].mxu0 %v5874
        %v6833 = vpop.f32.mrb[0].mxu0
        %v6834 = vadd.f32 0.0, %v6833
        %v6835 = vpop.f32.mrb[0].mxu0
        %6836 = vmatprep.mubr.f32.mxu0 %v5878
        %6837 = vmatmul.mubr.f32.gmra.mrb[0].mxu0 %v5877
        %v6838 = vpop.f32.mrb[0].mxu0
        %v6839 = vadd.f32 0.0, %v6838
        %v6840 = vpop.f32.mrb[0].mxu0
        %6841 = vmatprep.mubr.f32.mxu0 %v5881
        %6842 = vmatmul.mubr.f32.gmra.mrb[0].mxu0 %v5880
        %v6843 = vpop.f32.mrb[0].mxu0
        %v6844 = vadd.f32 0.0, %v6843
        %v6845 = vpop.f32.mrb[0].mxu0
        %6846 = vmatprep.mubr.f32.mxu0 %v5884
        %6847 = vmatmul.mubr.f32.gmra.mrb[0].mxu0 %v5883
        %v6848 = vpop.f32.mrb[0].mxu0
        %v6849 = vadd.f32 0.0, %v6848
        %v6850 = vpop.f32.mrb[0].mxu0
        %6851 = vmatprep.mubr.f32.mxu0 %v5887
        %6852 = vmatmul.mubr.f32.gmra.mrb[0].mxu0 %v5886
        %v6853 = vpop.f32.mrb[0].mxu0
        %v6854 = vadd.f32 0.0, %v6853
        %v6855 = vpop.f32.mrb[0].mxu0
        %6856 = vmatprep.mubr.f32.mxu0 %v5890
        %6857 = vmatmul.mubr.f32.gmra.mrb[0].mxu0 %v5889
        %v6858 = vpop.f32.mrb[0].mxu0
        %v6859 = vadd.f32 0.0, %v6858
        %v6860 = vpop.f32.mrb[0].mxu0
        %6861 = vmatprep.mubr.f32.mxu0 %v5893
        %6862 = vmatmul.mubr.f32.gmra.mrb[0].mxu0 %v5892
        %v6863 = vpop.f32.mrb[0].mxu0
        %v6864 = vadd.f32 0.0, %v6863
        %v6865 = vpop.f32.mrb[0].mxu0
        %6866 = vmatprep.mubr.f32.mxu0 %v5896
        %6867 = vmatmul.mubr.f32.gmra.mrb[0].mxu0 %v5895
        %v6868 = vpop.f32.mrb[0].mxu0
        %v6869 = vadd.f32 0.0, %v6868
        %v6870 = vpop.f32.mrb[0].mxu0
        %6871 = vmatprep.mubr.f32.mxu0 %v5899
        %6872 = vmatmul.mubr.f32.gmra.mrb[0].mxu0 %v5898
        %v6873 = vpop.f32.mrb[0].mxu0
        %v6874 = vadd.f32 0.0, %v6873
        %v6875 = vpop.f32.mrb[0].mxu0
        %6876 = vmatprep.mubr.f32.mxu0 %v5902
        %6877 = vmatmul.mubr.f32.gmra.mrb[0].mxu0 %v5901
        %v6878 = vpop.f32.mrb[0].mxu0
        %v6879 = vadd.f32 0.0, %v6878
        %v6880 = vpop.f32.mrb[0].mxu0
        %6881 = vmatprep.mubr.f32.mxu0 %v5905
        %6882 = vmatmul.mubr.f32.gmra.mrb[0].mxu0 %v5904
        %v6883 = vpop.f32.mrb[0].mxu0
        %v6884 = vadd.f32 0.0, %v6883
        %v6885 = vpop.f32.mrb[0].mxu0
        %6886 = vmatprep.mubr.f32.mxu0 %v5908
        %6887 = vmatmul.mubr.f32.gmra.mrb[0].mxu0 %v5907
        %v6888 = vpop.f32.mrb[0].mxu0
        %v6889 = vadd.f32 0.0, %v6888
        %v6890 = vpop.f32.mrb[0].mxu0
        %6891 = vmatprep.mubr.f32.mxu0 %v5911
        %6892 = vmatmul.mubr.f32.gmra.mrb[0].mxu0 %v5910
        %v6893 = vpop.f32.mrb[0].mxu0
        %v6894 = vadd.f32 0.0, %v6893
        %v6895 = vpop.f32.mrb[0].mxu0
        %6896 = vmatprep.mubr.f32.mxu0 %v5914
        %6897 = vmatmul.mubr.f32.gmra.mrb[0].mxu0 %v5913
        %v6898 = vpop.f32.mrb[0].mxu0
        %v6899 = vadd.f32 0.0, %v6898
        %v6900 = vpop.f32.mrb[0].mxu0
        %6901 = vmatprep.mubr.f32.mxu0 %v5917
        %6902 = vmatmul.mubr.f32.gmra.mrb[0].mxu0 %v5916
        %v6903 = vpop.f32.mrb[0].mxu0
        %v6904 = vadd.f32 0.0, %v6903
        %v6905 = vpop.f32.mrb[0].mxu0
        %6906 = vmatprep.mubr.f32.mxu0 %v5920
        %6907 = vmatmul.mubr.f32.gmra.mrb[0].mxu0 %v5919
        %v6908 = vpop.f32.mrb[0].mxu0
        %v6909 = vadd.f32 0.0, %v6908
        %v6910 = vpop.f32.mrb[0].mxu0
        %6911 = vmatprep.mubr.f32.mxu0 %v5923
        %6912 = vmatmul.mubr.f32.gmra.mrb[0].mxu0 %v5922
        %v6913 = vpop.f32.mrb[0].mxu0
        %v6914 = vadd.f32 0.0, %v6913
        %v6915 = vpop.f32.mrb[0].mxu0
        %6916 = vmatprep.mubr.f32.mxu0 %v5926
        %6917 = vmatmul.mubr.f32.gmra.mrb[0].mxu0 %v5925
        %v6918 = vpop.f32.mrb[0].mxu0
        %v6919 = vadd.f32 0.0, %v6918
        %v6920 = vpop.f32.mrb[0].mxu0
        %6921 = vmatprep.mubr.f32.mxu0 %v5929
        %6922 = vmatmul.mubr.f32.gmra.mrb[0].mxu0 %v5928
        %v6923 = vpop.f32.mrb[0].mxu0
        %v6924 = vadd.f32 0.0, %v6923
        %v6925 = vpop.f32.mrb[0].mxu0
        %6926 = vmatprep.mubr.f32.mxu0 %v5932
        %6927 = vmatmul.mubr.f32.gmra.mrb[0].mxu0 %v5931
        %v6928 = vpop.f32.mrb[0].mxu0
        %v6929 = vadd.f32 0.0, %v6928
        %v6930 = vpop.f32.mrb[0].mxu0
        %6931 = vmatprep.mubr.f32.mxu0 %v5935
        %6932 = vmatmul.mubr.f32.gmra.mrb[0].mxu0 %v5934
        %v6933 = vpop.f32.mrb[0].mxu0
        %v6934 = vadd.f32 0.0, %v6933
        %v6935 = vpop.f32.mrb[0].mxu0
        %6936 = vmatprep.mubr.f32.mxu0 %v5938
        %6937 = vmatmul.mubr.f32.gmra.mrb[0].mxu0 %v5937
        %v6938 = vpop.f32.mrb[0].mxu0
        %v6939 = vadd.f32 0.0, %v6938
        %v6940 = vpop.f32.mrb[0].mxu0
        %6941 = vmatprep.mubr.f32.mxu0 %v5941
        %6942 = vmatmul.mubr.f32.gmra.mrb[0].mxu0 %v5940
        %v6943 = vpop.f32.mrb[0].mxu0
        %v6944 = vadd.f32 0.0, %v6943
        %v6945 = vpop.f32.mrb[0].mxu0
        %6946 = vmatprep.mubr.f32.mxu0 %v5944
        %6947 = vmatmul.mubr.f32.gmra.mrb[0].mxu0 %v5943
        %v6948 = vpop.f32.mrb[0].mxu0
        %v6949 = vadd.f32 0.0, %v6948
        %v6950 = vpop.f32.mrb[0].mxu0
        %6951 = vmatprep.mubr.f32.mxu0 %v5947
        %6952 = vmatmul.mubr.f32.gmra.mrb[0].mxu0 %v5946
        %v6953 = vpop.f32.mrb[0].mxu0
        %v6954 = vadd.f32 0.0, %v6953
        %v6955 = vpop.f32.mrb[0].mxu0
        %6956 = vmatprep.mubr.f32.mxu0 %v5950
        %6957 = vmatmul.mubr.f32.gmra.mrb[0].mxu0 %v5949
        %v6958 = vpop.f32.mrb[0].mxu0
        %v6959 = vadd.f32 0.0, %v6958
        %v6960 = vpop.f32.mrb[0].mxu0
        %6961 = vmatprep.mubr.f32.mxu0 %v5953
        %6962 = vmatmul.mubr.f32.gmra.mrb[0].mxu0 %v5952
        %v6963 = vpop.f32.mrb[0].mxu0
        %v6964 = vadd.f32 0.0, %v6963
        %v6965 = vpop.f32.mrb[0].mxu0
        %6966 = vmatprep.mubr.f32.mxu0 %v5956
        %6967 = vmatmul.mubr.f32.gmra.mrb[0].mxu0 %v5955
        %v6968 = vpop.f32.mrb[0].mxu0
        %v6969 = vadd.f32 0.0, %v6968
        %v6970 = vpop.f32.mrb[0].mxu0
        %6971 = vmatprep.mubr.f32.mxu0 %v5959
        %6972 = vmatmul.mubr.f32.gmra.mrb[0].mxu0 %v5958
        %v6973 = vpop.f32.mrb[0].mxu0
        %v6974 = vadd.f32 0.0, %v6973
        %v6975 = vpop.f32.mrb[0].mxu0
        %6976 = vmatprep.mubr.f32.mxu0 %v5962
        %6977 = vmatmul.mubr.f32.gmra.mrb[0].mxu0 %v5961
        %v6978 = vpop.f32.mrb[0].mxu0
        %v6979 = vadd.f32 0.0, %v6978
        %v6980 = vpop.f32.mrb[0].mxu0
        %6981 = vmatprep.mubr.f32.mxu0 %v5965
        %6982 = vmatmul.mubr.f32.gmra.mrb[0].mxu0 %v5964
        %v6983 = vpop.f32.mrb[0].mxu0
        %v6984 = vadd.f32 0.0, %v6983
        %v6985 = vpop.f32.mrb[0].mxu0
        %6986 = vmatprep.mubr.f32.mxu0 %v5968
        %6987 = vmatmul.mubr.f32.gmra.mrb[0].mxu0 %v5967
        %v6988 = vpop.f32.mrb[0].mxu0
        %v6989 = vadd.f32 0.0, %v6988
        %v6990 = vpop.f32.mrb[0].mxu0
        %6991 = vmatprep.mubr.f32.mxu0 %v5971
        %6992 = vmatmul.mubr.f32.gmra.mrb[0].mxu0 %v5970
        %v6993 = vpop.f32.mrb[0].mxu0
        %v6994 = vadd.f32 0.0, %v6993
        %v6995 = vpop.f32.mrb[0].mxu0
        %6996 = vmatprep.mubr.f32.mxu0 %v5974
        %6997 = vmatmul.mubr.f32.gmra.mrb[0].mxu0 %v5973
        %v6998 = vpop.f32.mrb[0].mxu0
        %v6999 = vadd.f32 0.0, %v6998
        %v7000 = vpop.f32.mrb[0].mxu0
        %7001 = vmatprep.mubr.f32.mxu0 %v5977
        %7002 = vmatmul.mubr.f32.gmra.mrb[0].mxu0 %v5976
        %v7003 = vpop.f32.mrb[0].mxu0
        %v7004 = vadd.f32 0.0, %v7003
        %v7005 = vpop.f32.mrb[0].mxu0
        %7006 = vmatprep.mubr.f32.mxu0 %v5980
        %7007 = vmatmul.mubr.f32.gmra.mrb[0].mxu0 %v5979
        %v7008 = vpop.f32.mrb[0].mxu0
        %v7009 = vadd.f32 0.0, %v7008
        %v7010 = vpop.f32.mrb[0].mxu0
        %7011 = vmatprep.mubr.f32.mxu0 %v5983
        %7012 = vmatmul.mubr.f32.gmra.mrb[0].mxu0 %v5982
        %v7013 = vpop.f32.mrb[0].mxu0
        %v7014 = vadd.f32 0.0, %v7013
        %v7015 = vpop.f32.mrb[0].mxu0
        %7016 = vmatprep.mubr.f32.mxu0 %v5986
        %7017 = vmatmul.mubr.f32.gmra.mrb[0].mxu0 %v5985
        %v7018 = vpop.f32.mrb[0].mxu0
        %v7019 = vadd.f32 0.0, %v7018
        %v7020 = vpop.f32.mrb[0].mxu0
        %7021 = vmatprep.mubr.f32.mxu0 %v5989
        %7022 = vmatmul.mubr.f32.gmra.mrb[0].mxu0 %v5988
        %v7023 = vpop.f32.mrb[0].mxu0
        %v7024 = vadd.f32 0.0, %v7023
        %v7025 = vpop.f32.mrb[0].mxu0
        %7026 = vmatprep.mubr.f32.mxu0 %v5992
        %7027 = vmatmul.mubr.f32.gmra.mrb[0].mxu0 %v5991
        %v7028 = vpop.f32.mrb[0].mxu0
        %v7029 = vadd.f32 0.0, %v7028
        %v7030 = vpop.f32.mrb[0].mxu0
        %7031 = vmatprep.mubr.f32.mxu0 %v5995
        %7032 = vmatmul.mubr.f32.gmra.mrb[0].mxu0 %v5994
        %v7033 = vpop.f32.mrb[0].mxu0
        %v7034 = vadd.f32 0.0, %v7033
        %v7035 = vpop.f32.mrb[0].mxu0
        %7036 = vmatprep.mubr.f32.mxu0 %v5998
        %7037 = vmatmul.mubr.f32.gmra.mrb[0].mxu0 %v5997
        %v7038 = vpop.f32.mrb[0].mxu0
        %v7039 = vadd.f32 0.0, %v7038
        %v7040 = vpop.f32.mrb[0].mxu0
        %7041 = vmatprep.mubr.f32.mxu0 %v6001
        %7042 = vmatmul.mubr.f32.gmra.mrb[0].mxu0 %v6000
        %v7043 = vpop.f32.mrb[0].mxu0
        %v7044 = vadd.f32 0.0, %v7043
        %v7045 = vpop.f32.mrb[0].mxu0
        %7046 = vmatprep.mubr.f32.mxu0 %v6004
        %7047 = vmatmul.mubr.f32.gmra.mrb[0].mxu0 %v6003
        %v7048 = vpop.f32.mrb[0].mxu0
        %v7049 = vadd.f32 0.0, %v7048
        %v7050 = vpop.f32.mrb[0].mxu0
        %7051 = vmatprep.mubr.f32.mxu0 %v6007
        %7052 = vmatmul.mubr.f32.gmra.mrb[0].mxu0 %v6006
        %v7053 = vpop.f32.mrb[0].mxu0
        %v7054 = vadd.f32 0.0, %v7053
        %v7055 = vpop.f32.mrb[0].mxu0
        %7056 = vmatprep.mubr.f32.mxu0 %v6010
        %7057 = vmatmul.mubr.f32.gmra.mrb[0].mxu0 %v6009
        %v7058 = vpop.f32.mrb[0].mxu0
        %v7059 = vadd.f32 0.0, %v7058
        %v7060 = vpop.f32.mrb[0].mxu0
        %7061 = vmatprep.mubr.f32.mxu0 %v6013
        %7062 = vmatmul.mubr.f32.gmra.mrb[0].mxu0 %v6012
        %v7063 = vpop.f32.mrb[0].mxu0
        %v7064 = vadd.f32 0.0, %v7063
        %v7065 = vpop.f32.mrb[0].mxu0
        %7066 = vmatprep.mubr.f32.mxu0 %v6016
        %7067 = vmatmul.mubr.f32.gmra.mrb[0].mxu0 %v6015
        %v7068 = vpop.f32.mrb[0].mxu0
        %v7069 = vadd.f32 0.0, %v7068
        %v7070 = vpop.f32.mrb[0].mxu0
        %7071 = vmatprep.mubr.f32.mxu0 %v6019
        %7072 = vmatmul.mubr.f32.gmra.mrb[0].mxu0 %v6018
        %v7073 = vpop.f32.mrb[0].mxu0
        %v7074 = vadd.f32 0.0, %v7073
        %v7075 = vpop.f32.mrb[0].mxu0
        %7076 = vmatprep.mubr.f32.mxu0 %v6022
        %7077 = vmatmul.mubr.f32.gmra.mrb[0].mxu0 %v6021
        %v7078 = vpop.f32.mrb[0].mxu0
        %v7079 = vadd.f32 0.0, %v7078
        %v7080 = vpop.f32.mrb[0].mxu0
        %7081 = vmatprep.mubr.f32.mxu0 %v6025
        %7082 = vmatmul.mubr.f32.gmra.mrb[0].mxu0 %v6024
        %v7083 = vpop.f32.mrb[0].mxu0
        %v7084 = vadd.f32 0.0, %v7083
        %v7085 = vpop.f32.mrb[0].mxu0
        %7086 = vmatprep.mubr.f32.mxu0 %v6028
        %7087 = vmatmul.mubr.f32.gmra.mrb[0].mxu0 %v6027
        %v7088 = vpop.f32.mrb[0].mxu0
        %v7089 = vadd.f32 0.0, %v7088
        %v7090 = vpop.f32.mrb[0].mxu0
        %7091 = vmatprep.mubr.f32.mxu0 %v6031
        %7092 = vmatmul.mubr.f32.gmra.mrb[0].mxu0 %v6030
        %v7093 = vpop.f32.mrb[0].mxu0
        %v7094 = vadd.f32 0.0, %v7093
        %v7095 = vpop.f32.mrb[0].mxu0
        %7096 = vmatprep.mubr.f32.mxu0 %v6034
        %7097 = vmatmul.mubr.f32.gmra.mrb[0].mxu0 %v6033
        %v7098 = vpop.f32.mrb[0].mxu0
        %v7099 = vadd.f32 0.0, %v7098
        %v7100 = vpop.f32.mrb[0].mxu0
        %7101 = vmatprep.mubr.f32.mxu0 %v6037
        %7102 = vmatmul.mubr.f32.gmra.mrb[0].mxu0 %v6036
        %v7103 = vpop.f32.mrb[0].mxu0
        %v7104 = vadd.f32 0.0, %v7103
        %v7105 = vpop.f32.mrb[0].mxu0
        %7106 = vmatprep.mubr.f32.mxu0 %v6040
        %7107 = vmatmul.mubr.f32.gmra.mrb[0].mxu0 %v6039
        %v7108 = vpop.f32.mrb[0].mxu0
        %v7109 = vadd.f32 0.0, %v7108
        %v7110 = vpop.f32.mrb[0].mxu0
        %7111 = vmatprep.mubr.f32.mxu0 %v6043
        %7112 = vmatmul.mubr.f32.gmra.mrb[0].mxu0 %v6042
        %v7113 = vpop.f32.mrb[0].mxu0
        %v7114 = vadd.f32 0.0, %v7113
        %v7115 = vpop.f32.mrb[0].mxu0
        %7116 = vmatprep.mubr.f32.mxu0 %v6046
        %7117 = vmatmul.mubr.f32.gmra.mrb[0].mxu0 %v6045
        %v7118 = vpop.f32.mrb[0].mxu0
        %v7119 = vadd.f32 0.0, %v7118
        %v7120 = vpop.f32.mrb[0].mxu0
        %7121 = vmatprep.mubr.f32.mxu0 %v6049
        %7122 = vmatmul.mubr.f32.gmra.mrb[0].mxu0 %v6048
        %v7123 = vpop.f32.mrb[0].mxu0
        %v7124 = vadd.f32 0.0, %v7123
        %v7125 = vpop.f32.mrb[0].mxu0
        %7126 = vmatprep.mubr.f32.mxu0 %v6052
        %7127 = vmatmul.mubr.f32.gmra.mrb[0].mxu0 %v6051
        %v7128 = vpop.f32.mrb[0].mxu0
        %v7129 = vadd.f32 0.0, %v7128
        %v7130 = vpop.f32.mrb[0].mxu0
        %7131 = vmatprep.mubr.f32.mxu0 %v6055
        %7132 = vmatmul.mubr.f32.gmra.mrb[0].mxu0 %v6054
        %v7133 = vpop.f32.mrb[0].mxu0
        %v7134 = vadd.f32 0.0, %v7133
        %v7135 = vpop.f32.mrb[0].mxu0
        %7136 = vmatprep.mubr.f32.mxu0 %v6058
        %7137 = vmatmul.mubr.f32.gmra.mrb[0].mxu0 %v6057
        %v7138 = vpop.f32.mrb[0].mxu0
        %v7139 = vadd.f32 0.0, %v7138
        %v7140 = vpop.f32.mrb[0].mxu0
        %7141 = vmatprep.mubr.f32.mxu0 %v6061
        %7142 = vmatmul.mubr.f32.gmra.mrb[0].mxu0 %v6060
        %v7143 = vpop.f32.mrb[0].mxu0
        %v7144 = vadd.f32 0.0, %v7143
        %v7145 = vpop.f32.mrb[0].mxu0
        %7146 = vmatprep.mubr.f32.mxu0 %v6064
        %7147 = vmatmul.mubr.f32.gmra.mrb[0].mxu0 %v6063
        %v7148 = vpop.f32.mrb[0].mxu0
        %v7149 = vadd.f32 0.0, %v7148
        %v7150 = vpop.f32.mrb[0].mxu0
        %7151 = vmatprep.mubr.f32.mxu0 %v6067
        %7152 = vmatmul.mubr.f32.gmra.mrb[0].mxu0 %v6066
        %v7153 = vpop.f32.mrb[0].mxu0
        %v7154 = vadd.f32 0.0, %v7153
        %v7155 = vpop.f32.mrb[0].mxu0
        %7156 = vmatprep.mubr.f32.mxu0 %v6070
        %7157 = vmatmul.mubr.f32.gmra.mrb[0].mxu0 %v6069
        %v7158 = vpop.f32.mrb[0].mxu0
        %v7159 = vadd.f32 0.0, %v7158
        %v7160 = vpop.f32.mrb[0].mxu0
        %7161 = vmatprep.mubr.f32.mxu0 %v6073
        %7162 = vmatmul.mubr.f32.gmra.mrb[0].mxu0 %v6072
        %v7163 = vpop.f32.mrb[0].mxu0
        %v7164 = vadd.f32 0.0, %v7163
        %v7165 = vpop.f32.mrb[0].mxu0
        %7166 = vmatprep.mubr.f32.mxu0 %v6076
        %7167 = vmatmul.mubr.f32.gmra.mrb[0].mxu0 %v6075
        %v7168 = vpop.f32.mrb[0].mxu0
        %v7169 = vadd.f32 0.0, %v7168
        %v7170 = vpop.f32.mrb[0].mxu0
        %7171 = vmatprep.mubr.f32.mxu0 %v6079
        %7172 = vmatmul.mubr.f32.gmra.mrb[0].mxu0 %v6078
        %v7173 = vpop.f32.mrb[0].mxu0
        %v7174 = vadd.f32 0.0, %v7173
        %v7175 = vpop.f32.mrb[0].mxu0
        %7176 = vmatprep.mubr.f32.mxu0 %v6082
        %7177 = vmatmul.mubr.f32.gmra.mrb[0].mxu0 %v6081
        %v7178 = vpop.f32.mrb[0].mxu0
        %v7179 = vadd.f32 0.0, %v7178
        %v7180 = vpop.f32.mrb[0].mxu0
        %7181 = vmatprep.mubr.f32.mxu0 %v6085
        %7182 = vmatmul.mubr.f32.gmra.mrb[0].mxu0 %v6084
        %v7183 = vpop.f32.mrb[0].mxu0
        %v7184 = vadd.f32 0.0, %v7183
        %v7185 = vpop.f32.mrb[0].mxu0
        %7186 = vmatprep.mubr.f32.mxu0 %v6088
        %7187 = vmatmul.mubr.f32.gmra.mrb[0].mxu0 %v6087
        %v7188 = vpop.f32.mrb[0].mxu0
        %v7189 = vadd.f32 0.0, %v7188
        %v7190 = vpop.f32.mrb[0].mxu0
        %7191 = vmatprep.mubr.f32.mxu0 %v6091
        %7192 = vmatmul.mubr.f32.gmra.mrb[0].mxu0 %v6090
        %v7193 = vpop.f32.mrb[0].mxu0
        %v7194 = vadd.f32 0.0, %v7193
        %v7195 = vpop.f32.mrb[0].mxu0
        %7196 = vmatprep.mubr.f32.mxu0 %v6094
        %7197 = vmatmul.mubr.f32.gmra.mrb[0].mxu0 %v6093
        %v7198 = vpop.f32.mrb[0].mxu0
        %v7199 = vadd.f32 0.0, %v7198
        %v7200 = vpop.f32.mrb[0].mxu0
        %7201 = vmatprep.mubr.f32.mxu0 %v6097
        %7202 = vmatmul.mubr.f32.gmra.mrb[0].mxu0 %v6096
        %v7203 = vpop.f32.mrb[0].mxu0
        %v7204 = vadd.f32 0.0, %v7203
        %v7205 = vpop.f32.mrb[0].mxu0
        %7206 = vmatprep.mubr.f32.mxu0 %v6100
        %7207 = vmatmul.mubr.f32.gmra.mrb[0].mxu0 %v6099
        %v7208 = vpop.f32.mrb[0].mxu0
        %v7209 = vadd.f32 0.0, %v7208
        %v7210 = vpop.f32.mrb[0].mxu0
        %7211 = vmatprep.mubr.f32.mxu0 %v6103
        %7212 = vmatmul.mubr.f32.gmra.mrb[0].mxu0 %v6102
        %v7213 = vpop.f32.mrb[0].mxu0
        %v7214 = vadd.f32 0.0, %v7213
        %v7215 = vpop.f32.mrb[0].mxu0
        %7216 = vmatprep.mubr.f32.mxu0 %v6106
        %7217 = vmatmul.mubr.f32.gmra.mrb[0].mxu0 %v6105
        %v7218 = vpop.f32.mrb[0].mxu0
        %v7219 = vadd.f32 0.0, %v7218
        %v7220 = vpop.f32.mrb[0].mxu0
        %7221 = vmatprep.mubr.f32.mxu0 %v6109
        %7222 = vmatmul.mubr.f32.gmra.mrb[0].mxu0 %v6108
        %v7223 = vpop.f32.mrb[0].mxu0
        %v7224 = vadd.f32 0.0, %v7223
        %v7225 = vpop.f32.mrb[0].mxu0
        %7226 = vmatprep.mubr.f32.mxu0 %v6112
        %7227 = vmatmul.mubr.f32.gmra.mrb[0].mxu0 %v6111
        %v7228 = vpop.f32.mrb[0].mxu0
        %v7229 = vadd.f32 0.0, %v7228
        %v7230 = vpop.f32.mrb[0].mxu0
        %7231 = vmatprep.mubr.f32.mxu0 %v6115
        %7232 = vmatmul.mubr.f32.gmra.mrb[0].mxu0 %v6114
        %v7233 = vpop.f32.mrb[0].mxu0
        %v7234 = vadd.f32 0.0, %v7233
        %v7235 = vpop.f32.mrb[0].mxu0
        %7236 = vmatprep.mubr.f32.mxu0 %v6118
        %7237 = vmatmul.mubr.f32.gmra.mrb[0].mxu0 %v6117
        %v7238 = vpop.f32.mrb[0].mxu0
        %v7239 = vadd.f32 0.0, %v7238
        %v7240 = vpop.f32.mrb[0].mxu0
        %7241 = vmatprep.mubr.f32.mxu0 %v6121
        %7242 = vmatmul.mubr.f32.gmra.mrb[0].mxu0 %v6120
        %v7243 = vpop.f32.mrb[0].mxu0
        %v7244 = vadd.f32 0.0, %v7243
        %v7245 = vpop.f32.mrb[0].mxu0
        %7246 = vmatprep.mubr.f32.mxu0 %v6124
        %7247 = vmatmul.mubr.f32.gmra.mrb[0].mxu0 %v6123
        %v7248 = vpop.f32.mrb[0].mxu0
        %v7249 = vadd.f32 0.0, %v7248
        %v7250 = vpop.f32.mrb[0].mxu0
        %7251 = vmatprep.mubr.f32.mxu0 %v6127
        %7252 = vmatmul.mubr.f32.gmra.mrb[0].mxu0 %v6126
        %v7253 = vpop.f32.mrb[0].mxu0
        %v7254 = vadd.f32 0.0, %v7253
        %v7255 = vpop.f32.mrb[0].mxu0
        %7256 = vmatprep.mubr.f32.mxu0 %v6130
        %7257 = vmatmul.mubr.f32.gmra.mrb[0].mxu0 %v6129
        %v7258 = vpop.f32.mrb[0].mxu0
        %v7259 = vadd.f32 0.0, %v7258
        %v7260 = vpop.f32.mrb[0].mxu0
        %7261 = vmatprep.mubr.f32.mxu0 %v6133
        %7262 = vmatmul.mubr.f32.gmra.mrb[0].mxu0 %v6132
        %v7263 = vpop.f32.mrb[0].mxu0
        %v7264 = vadd.f32 0.0, %v7263
        %v7265 = vpop.f32.mrb[0].mxu0
        %7266 = vmatprep.mubr.f32.mxu0 %v6136
        %7267 = vmatmul.mubr.f32.gmra.mrb[0].mxu0 %v6135
        %v7268 = vpop.f32.mrb[0].mxu0
        %v7269 = vadd.f32 0.0, %v7268
        %v7270 = vpop.f32.mrb[0].mxu0
        %7271 = vmatprep.mubr.f32.mxu0 %v6139
        %7272 = vmatmul.mubr.f32.gmra.mrb[0].mxu0 %v6138
        %v7273 = vpop.f32.mrb[0].mxu0
        %v7274 = vadd.f32 0.0, %v7273
        %v7275 = vpop.f32.mrb[0].mxu0
        %7276 = vmatprep.mubr.f32.mxu0 %v6142
        %7277 = vmatmul.mubr.f32.gmra.mrb[0].mxu0 %v6141
        %v7278 = vpop.f32.mrb[0].mxu0
        %v7279 = vadd.f32 0.0, %v7278
        %v7280 = vpop.f32.mrb[0].mxu0
        %7281 = vmatprep.mubr.f32.mxu0 %v6145
        %7282 = vmatmul.mubr.f32.gmra.mrb[0].mxu0 %v6144
        %v7283 = vpop.f32.mrb[0].mxu0
        %v7284 = vadd.f32 0.0, %v7283
        %v7285 = vpop.f32.mrb[0].mxu0
        %7286 = vmatprep.mubr.f32.mxu0 %v6148
        %7287 = vmatmul.mubr.f32.gmra.mrb[0].mxu0 %v6147
        %v7288 = vpop.f32.mrb[0].mxu0
        %v7289 = vadd.f32 0.0, %v7288
        %v7290 = vpop.f32.mrb[0].mxu0
        %7291 = vmatprep.mubr.f32.mxu0 %v6151
        %7292 = vmatmul.mubr.f32.gmra.mrb[0].mxu0 %v6150
        %v7293 = vpop.f32.mrb[0].mxu0
        %v7294 = vadd.f32 0.0, %v7293
        %v7295 = vpop.f32.mrb[0].mxu0
        %7296 = vmatprep.mubr.f32.mxu0 %v6154
        %7297 = vmatmul.mubr.f32.gmra.mrb[0].mxu0 %v6153
        %v7298 = vpop.f32.mrb[0].mxu0
        %v7299 = vadd.f32 0.0, %v7298
        %v7300 = vpop.f32.mrb[0].mxu0
        %7301 = vmatprep.mubr.f32.mxu0 %v6157
        %7302 = vmatmul.mubr.f32.gmra.mrb[0].mxu0 %v6156
        %v7303 = vpop.f32.mrb[0].mxu0
        %v7304 = vadd.f32 0.0, %v7303
        %v7305 = vpop.f32.mrb[0].mxu0
        %7306 = vmatprep.mubr.f32.mxu0 %v6160
        %7307 = vmatmul.mubr.f32.gmra.mrb[0].mxu0 %v6159
        %v7308 = vpop.f32.mrb[0].mxu0
        %v7309 = vadd.f32 0.0, %v7308
        %v7310 = vpop.f32.mrb[0].mxu0
        %7311 = vmatprep.mubr.f32.mxu0 %v6163
        %7312 = vmatmul.mubr.f32.gmra.mrb[0].mxu0 %v6162
        %v7313 = vpop.f32.mrb[0].mxu0
        %v7314 = vadd.f32 0.0, %v7313
        %v7315 = vpop.f32.mrb[0].mxu0
        %7316 = vmatprep.mubr.f32.mxu0 %v6166
        %7317 = vmatmul.mubr.f32.gmra.mrb[0].mxu0 %v6165
        %v7318 = vpop.f32.mrb[0].mxu0
        %v7319 = vadd.f32 0.0, %v7318
        %v7320 = vpop.f32.mrb[0].mxu0
        %7321 = vmatprep.mubr.f32.mxu0 %v6169
        %7322 = vmatmul.mubr.f32.gmra.mrb[0].mxu0 %v6168
        %v7323 = vpop.f32.mrb[0].mxu0
        %v7324 = vadd.f32 0.0, %v7323
        %v7325 = vpop.f32.mrb[0].mxu0
        %7326 = vmatprep.mubr.f32.mxu0 %v6172
        %7327 = vmatmul.mubr.f32.gmra.mrb[0].mxu0 %v6171
        %v7328 = vpop.f32.mrb[0].mxu0
        %v7329 = vadd.f32 0.0, %v7328
        %v7330 = vpop.f32.mrb[0].mxu0
        %7331 = vmatprep.mubr.f32.mxu0 %v6175
        %7332 = vmatmul.mubr.f32.gmra.mrb[0].mxu0 %v6174
        %v7333 = vpop.f32.mrb[0].mxu0
        %v7334 = vadd.f32 0.0, %v7333
        %v7335 = vpop.f32.mrb[0].mxu0
        %7336 = vmatprep.mubr.f32.mxu0 %v6178
        %7337 = vmatmul.mubr.f32.gmra.mrb[0].mxu0 %v6177
        %v7338 = vpop.f32.mrb[0].mxu0
        %v7339 = vadd.f32 0.0, %v7338
        %v7340 = vpop.f32.mrb[0].mxu0
        %7341 = vmatprep.mubr.f32.mxu0 %v6181
        %7342 = vmatmul.mubr.f32.gmra.mrb[0].mxu0 %v6180
        %v7343 = vpop.f32.mrb[0].mxu0
        %v7344 = vadd.f32 0.0, %v7343
        %v7345 = vpop.f32.mrb[0].mxu0
        %7346 = vmatprep.mubr.f32.mxu0 %v6184
        %7347 = vmatmul.mubr.f32.gmra.mrb[0].mxu0 %v6183
        %v7348 = vpop.f32.mrb[0].mxu0
        %v7349 = vadd.f32 0.0, %v7348
        %v7350 = vpop.f32.mrb[0].mxu0
        %7351 = vmatprep.mubr.f32.mxu0 %v6187
        %7352 = vmatmul.mubr.f32.gmra.mrb[0].mxu0 %v6186
        %v7353 = vpop.f32.mrb[0].mxu0
        %v7354 = vadd.f32 0.0, %v7353
        %v7355 = vpop.f32.mrb[0].mxu0
        %7356 = vmatprep.mubr.f32.mxu0 %v6190
        %7357 = vmatmul.mubr.f32.gmra.mrb[0].mxu0 %v6189
        %v7358 = vpop.f32.mrb[0].mxu0
        %v7359 = vadd.f32 0.0, %v7358
        %v7360 = vpop.f32.mrb[0].mxu0
        %7361 = vmatprep.mubr.f32.mxu0 %v6193
        %7362 = vmatmul.mubr.f32.gmra.mrb[0].mxu0 %v6192
        %v7363 = vpop.f32.mrb[0].mxu0
        %v7364 = vadd.f32 0.0, %v7363
        %v7365 = vpop.f32.mrb[0].mxu0
        %7366 = vmatprep.mubr.f32.mxu0 %v6196
        %7367 = vmatmul.mubr.f32.gmra.mrb[0].mxu0 %v6195
        %v7368 = vpop.f32.mrb[0].mxu0
        %v7369 = vadd.f32 0.0, %v7368
        %v7370 = vpop.f32.mrb[0].mxu0
        %7371 = vmatprep.mubr.f32.mxu0 %v6199
        %7372 = vmatmul.mubr.f32.gmra.mrb[0].mxu0 %v6198
        %v7373 = vpop.f32.mrb[0].mxu0
        %v7374 = vadd.f32 0.0, %v7373
        %v7375 = vpop.f32.mrb[0].mxu0
        %7376 = vmatprep.mubr.f32.mxu0 %v6202
        %7377 = vmatmul.mubr.f32.gmra.mrb[0].mxu0 %v6201
        %v7378 = vpop.f32.mrb[0].mxu0
        %v7379 = vadd.f32 0.0, %v7378
        %v7380 = vpop.f32.mrb[0].mxu0
        %7381 = vmatprep.mubr.f32.mxu0 %v6205
        %7382 = vmatmul.mubr.f32.gmra.mrb[0].mxu0 %v6204
        %v7383 = vpop.f32.mrb[0].mxu0
        %v7384 = vadd.f32 0.0, %v7383
        %v7385 = vpop.f32.mrb[0].mxu0
        %7386 = vmatprep.mubr.f32.mxu0 %v6208
        %7387 = vmatmul.mubr.f32.gmra.mrb[0].mxu0 %v6207
        %v7388 = vpop.f32.mrb[0].mxu0
        %v7389 = vadd.f32 0.0, %v7388
        %v7390 = vpop.f32.mrb[0].mxu0
        %7391 = vmatprep.mubr.f32.mxu0 %v6211
        %7392 = vmatmul.mubr.f32.gmra.mrb[0].mxu0 %v6210
        %v7393 = vpop.f32.mrb[0].mxu0
        %v7394 = vadd.f32 0.0, %v7393
        %v7395 = vpop.f32.mrb[0].mxu0
        %7396 = vmatprep.mubr.f32.mxu0 %v6214
        %7397 = vmatmul.mubr.f32.gmra.mrb[0].mxu0 %v6213
        %v7398 = vpop.f32.mrb[0].mxu0
        %v7399 = vadd.f32 0.0, %v7398
        %v7400 = vpop.f32.mrb[0].mxu0
        %7401 = vmatprep.mubr.f32.mxu0 %v6217
        %7402 = vmatmul.mubr.f32.gmra.mrb[0].mxu0 %v6216
        %v7403 = vpop.f32.mrb[0].mxu0
        %v7404 = vadd.f32 0.0, %v7403
        %v7405 = vpop.f32.mrb[0].mxu0
        %7406 = vmatprep.mubr.f32.mxu0 %v6220
        %7407 = vmatmul.mubr.f32.gmra.mrb[0].mxu0 %v6219
        %v7408 = vpop.f32.mrb[0].mxu0
        %v7409 = vadd.f32 0.0, %v7408
        %v7410 = vpop.f32.mrb[0].mxu0
        %7411 = vmatprep.mubr.f32.mxu0 %v6223
        %7412 = vmatmul.mubr.f32.gmra.mrb[0].mxu0 %v6222
        %v7413 = vpop.f32.mrb[0].mxu0
        %v7414 = vadd.f32 0.0, %v7413
        %v7415 = vpop.f32.mrb[0].mxu0
        %7416 = vmatprep.mubr.f32.mxu0 %v6226
        %7417 = vmatmul.mubr.f32.gmra.mrb[0].mxu0 %v6225
        %v7418 = vpop.f32.mrb[0].mxu0
        %v7419 = vadd.f32 0.0, %v7418
        %v7420 = vpop.f32.mrb[0].mxu0
        %7421 = vmatprep.mubr.f32.mxu0 %v6229
        %7422 = vmatmul.mubr.f32.gmra.mrb[0].mxu0 %v6228
        %v7423 = vpop.f32.mrb[0].mxu0
        %v7424 = vadd.f32 0.0, %v7423
        %v7425 = vpop.f32.mrb[0].mxu0
        %7426 = vmatprep.mubr.f32.mxu0 %v6232
        %7427 = vmatmul.mubr.f32.gmra.mrb[0].mxu0 %v6231
        %v7428 = vpop.f32.mrb[0].mxu0
        %v7429 = vadd.f32 0.0, %v7428
        %v7430 = vpop.f32.mrb[0].mxu0
        %7431 = vmatprep.mubr.f32.mxu0 %v6235
        %7432 = vmatmul.mubr.f32.gmra.mrb[0].mxu0 %v6234
        %v7433 = vpop.f32.mrb[0].mxu0
        %v7434 = vadd.f32 0.0, %v7433
        %v7435 = vpop.f32.mrb[0].mxu0
        %7436 = vmatprep.mubr.f32.mxu0 %v6238
        %7437 = vmatmul.mubr.f32.gmra.mrb[0].mxu0 %v6237
        %v7438 = vpop.f32.mrb[0].mxu0
        %v7439 = vadd.f32 0.0, %v7438
        %v7440 = vpop.f32.mrb[0].mxu0
        %7441 = vmatprep.mubr.f32.mxu0 %v6241
        %7442 = vmatmul.mubr.f32.gmra.mrb[0].mxu0 %v6240
        %v7443 = vpop.f32.mrb[0].mxu0
        %v7444 = vadd.f32 0.0, %v7443
        %v7445 = vpop.f32.mrb[0].mxu0
        %7446 = vmatprep.mubr.f32.mxu0 %v6244
        %7447 = vmatmul.mubr.f32.gmra.mrb[0].mxu0 %v6243
        %v7448 = vpop.f32.mrb[0].mxu0
        %v7449 = vadd.f32 0.0, %v7448
        %v7450 = vpop.f32.mrb[0].mxu0
        %7451 = vmatprep.mubr.f32.mxu0 %v6247
        %7452 = vmatmul.mubr.f32.gmra.mrb[0].mxu0 %v6246
        %v7453 = vpop.f32.mrb[0].mxu0
        %v7454 = vadd.f32 0.0, %v7453
        %v7455 = vpop.f32.mrb[0].mxu0
        %7456 = vmatprep.mubr.f32.mxu0 %v6250
        %7457 = vmatmul.mubr.f32.gmra.mrb[0].mxu0 %v6249
        %v7458 = vpop.f32.mrb[0].mxu0
        %v7459 = vadd.f32 0.0, %v7458
        %v7460 = vpop.f32.mrb[0].mxu0
        %7461 = vmatprep.mubr.f32.mxu0 %v6253
        %7462 = vmatmul.mubr.f32.gmra.mrb[0].mxu0 %v6252
        %v7463 = vpop.f32.mrb[0].mxu0
        %v7464 = vadd.f32 0.0, %v7463
        %v7465 = vpop.f32.mrb[0].mxu0
        %7466 = vmatprep.mubr.f32.mxu0 %v6256
        %7467 = vmatmul.mubr.f32.gmra.mrb[0].mxu0 %v6255
        %v7468 = vpop.f32.mrb[0].mxu0
        %v7469 = vadd.f32 0.0, %v7468
        %v7470 = vpop.f32.mrb[0].mxu0
        %7471 = vmatprep.mubr.f32.mxu0 %v6259
        %7472 = vmatmul.mubr.f32.gmra.mrb[0].mxu0 %v6258
        %v7473 = vpop.f32.mrb[0].mxu0
        %v7474 = vadd.f32 0.0, %v7473
        %v7475 = vpop.f32.mrb[0].mxu0
        %7476 = vmatprep.mubr.f32.mxu0 %v6262
        %7477 = vmatmul.mubr.f32.gmra.mrb[0].mxu0 %v6261
        %v7478 = vpop.f32.mrb[0].mxu0
        %v7479 = vadd.f32 0.0, %v7478
        %v7480 = vpop.f32.mrb[0].mxu0
        %7481 = vdwg.mxu0
        %7482 = vmatprep.subr.mxu0 0.0
        %7483 = vmatpush1.msra.mxu0 %v5775
        %7484 = vmatprep.subr.mxu0 0.0
        %7485 = vmatpush1.msra.mxu0 %v5783
        %7486 = vmatprep.subr.mxu0 0.0
        %7487 = vmatpush1.msra.mxu0 %v5791
        %7488 = vmatprep.subr.mxu0 0.0
        %7489 = vmatpush1.msra.mxu0 %v5799
        %7490 = vmatprep.subr.mxu0 0.0
        %7491 = vmatpush1.msra.mxu0 %v5807
        %7492 = vmatprep.subr.mxu0 0.0
        %7493 = vmatpush1.msra.mxu0 %v5815
        %7494 = vmatprep.subr.mxu0 0.0
        %7495 = vmatpush1.msra.mxu0 %v5823
        %7496 = vmatprep.subr.mxu0 0.0
        %7497 = vmatpush1.msra.mxu0 %v5831
        %7498 = vmatprep.subr.mxu0 0.0
        %7499 = vmatpush1.msra.mxu0 0.0
        %7500 = vmatprep.subr.mxu0 0.0
        %7501 = vmatpush1.msra.mxu0 0.0
        %7502 = vmatprep.subr.mxu0 0.0
        %7503 = vmatpush1.msra.mxu0 0.0
        %7504 = vmatprep.subr.mxu0 0.0
        %7505 = vmatpush1.msra.mxu0 0.0
        %7506 = vmatprep.subr.mxu0 0.0
        %7507 = vmatpush1.msra.mxu0 0.0
        %7508 = vmatprep.subr.mxu0 0.0
        %7509 = vmatpush1.msra.mxu0 0.0
        %7510 = vmatprep.subr.mxu0 0.0
        %7511 = vmatpush1.msra.mxu0 0.0
        %7512 = vmatprep.subr.mxu0 0.0
        %7513 = vmatpush1.msra.mxu0 0.0
        %7514 = vmatprep.subr.mxu0 0.0
        %7515 = vmatpush1.msra.mxu0 0.0
        %7516 = vmatprep.subr.mxu0 0.0
        %7517 = vmatpush1.msra.mxu0 0.0
        %7518 = vmatprep.subr.mxu0 0.0
        %7519 = vmatpush1.msra.mxu0 0.0
        %7520 = vmatprep.subr.mxu0 0.0
        %7521 = vmatpush1.msra.mxu0 0.0
        %7522 = vmatprep.subr.mxu0 0.0
        %7523 = vmatpush1.msra.mxu0 0.0
        %7524 = vmatprep.subr.mxu0 0.0
        %7525 = vmatpush1.msra.mxu0 0.0
        %7526 = vmatprep.subr.mxu0 0.0
        %7527 = vmatpush1.msra.mxu0 0.0
        %7528 = vmatprep.subr.mxu0 0.0
        %7529 = vmatpush1.msra.mxu0 0.0
        %7530 = vmatprep.subr.mxu0 0.0
        %7531 = vmatpush1.msra.mxu0 0.0
        %7532 = vmatprep.subr.mxu0 0.0
        %7533 = vmatpush1.msra.mxu0 0.0
        %7534 = vmatprep.subr.mxu0 0.0
        %7535 = vmatpush1.msra.mxu0 0.0
        %7536 = vmatprep.subr.mxu0 0.0
        %7537 = vmatpush1.msra.mxu0 0.0
        %7538 = vmatprep.subr.mxu0 0.0
        %7539 = vmatpush1.msra.mxu0 0.0
        %7540 = vmatprep.subr.mxu0 0.0
        %7541 = vmatpush1.msra.mxu0 0.0
        %7542 = vmatprep.subr.mxu0 0.0
        %7543 = vmatpush1.msra.mxu0 0.0
        %7544 = vmatprep.subr.mxu0 0.0
        %7545 = vmatpush1.msra.mxu0 0.0
        %7546 = vmatprep.mubr.f32.mxu0 0.0
        %7547 = vmatmul.mubr.f32.gmra.mrb[0].mxu0 %v6266
        %v7548 = vpop.f32.mrb[0].mxu0
        %v7549 = vadd.f32 %v6764, %v7548
        %v7550 = vpop.f32.mrb[0].mxu0
        %7551 = vmatprep.mubr.f32.mxu0 0.0
        %7552 = vmatmul.mubr.f32.gmra.mrb[0].mxu0 %v6269
        %v7553 = vpop.f32.mrb[0].mxu0
        %v7554 = vadd.f32 %v6769, %v7553
        %v7555 = vpop.f32.mrb[0].mxu0
        %7556 = vmatprep.mubr.f32.mxu0 0.0
        %7557 = vmatmul.mubr.f32.gmra.mrb[0].mxu0 %v6272
        %v7558 = vpop.f32.mrb[0].mxu0
        %v7559 = vadd.f32 %v6774, %v7558
        %v7560 = vpop.f32.mrb[0].mxu0
        %7561 = vmatprep.mubr.f32.mxu0 0.0
        %7562 = vmatmul.mubr.f32.gmra.mrb[0].mxu0 %v6275
        %v7563 = vpop.f32.mrb[0].mxu0
        %v7564 = vadd.f32 %v6779, %v7563
        %v7565 = vpop.f32.mrb[0].mxu0
        %7566 = vmatprep.mubr.f32.mxu0 0.0
        %7567 = vmatmul.mubr.f32.gmra.mrb[0].mxu0 %v6278
        %v7568 = vpop.f32.mrb[0].mxu0
        %v7569 = vadd.f32 %v6784, %v7568
        %v7570 = vpop.f32.mrb[0].mxu0
        %7571 = vmatprep.mubr.f32.mxu0 0.0
        %7572 = vmatmul.mubr.f32.gmra.mrb[0].mxu0 %v6281
        %v7573 = vpop.f32.mrb[0].mxu0
        %v7574 = vadd.f32 %v6789, %v7573
        %v7575 = vpop.f32.mrb[0].mxu0
        %7576 = vmatprep.mubr.f32.mxu0 0.0
        %7577 = vmatmul.mubr.f32.gmra.mrb[0].mxu0 %v6284
        %v7578 = vpop.f32.mrb[0].mxu0
        %v7579 = vadd.f32 %v6794, %v7578
        %v7580 = vpop.f32.mrb[0].mxu0
        %7581 = vmatprep.mubr.f32.mxu0 0.0
        %7582 = vmatmul.mubr.f32.gmra.mrb[0].mxu0 %v6287
        %v7583 = vpop.f32.mrb[0].mxu0
        %v7584 = vadd.f32 %v6799, %v7583
        %v7585 = vpop.f32.mrb[0].mxu0
        %7586 = vmatprep.mubr.f32.mxu0 0.0
        %7587 = vmatmul.mubr.f32.gmra.mrb[0].mxu0 %v6290
        %v7588 = vpop.f32.mrb[0].mxu0
        %v7589 = vadd.f32 %v6804, %v7588
        %v7590 = vpop.f32.mrb[0].mxu0
        %7591 = vmatprep.mubr.f32.mxu0 0.0
        %7592 = vmatmul.mubr.f32.gmra.mrb[0].mxu0 %v6293
        %v7593 = vpop.f32.mrb[0].mxu0
        %v7594 = vadd.f32 %v6809, %v7593
        %v7595 = vpop.f32.mrb[0].mxu0
        %7596 = vmatprep.mubr.f32.mxu0 0.0
        %7597 = vmatmul.mubr.f32.gmra.mrb[0].mxu0 %v6296
        %v7598 = vpop.f32.mrb[0].mxu0
        %v7599 = vadd.f32 %v6814, %v7598
        %v7600 = vpop.f32.mrb[0].mxu0
        %7601 = vmatprep.mubr.f32.mxu0 0.0
        %7602 = vmatmul.mubr.f32.gmra.mrb[0].mxu0 %v6299
        %v7603 = vpop.f32.mrb[0].mxu0
        %v7604 = vadd.f32 %v6819, %v7603
        %v7605 = vpop.f32.mrb[0].mxu0
        %7606 = vmatprep.mubr.f32.mxu0 0.0
        %7607 = vmatmul.mubr.f32.gmra.mrb[0].mxu0 %v6302
        %v7608 = vpop.f32.mrb[0].mxu0
        %v7609 = vadd.f32 %v6824, %v7608
        %v7610 = vpop.f32.mrb[0].mxu0
        %7611 = vmatprep.mubr.f32.mxu0 0.0
        %7612 = vmatmul.mubr.f32.gmra.mrb[0].mxu0 %v6305
        %v7613 = vpop.f32.mrb[0].mxu0
        %v7614 = vadd.f32 %v6829, %v7613
        %v7615 = vpop.f32.mrb[0].mxu0
        %7616 = vmatprep.mubr.f32.mxu0 0.0
        %7617 = vmatmul.mubr.f32.gmra.mrb[0].mxu0 %v6308
        %v7618 = vpop.f32.mrb[0].mxu0
        %v7619 = vadd.f32 %v6834, %v7618
        %v7620 = vpop.f32.mrb[0].mxu0
        %7621 = vmatprep.mubr.f32.mxu0 0.0
        %7622 = vmatmul.mubr.f32.gmra.mrb[0].mxu0 %v6311
        %v7623 = vpop.f32.mrb[0].mxu0
        %v7624 = vadd.f32 %v6839, %v7623
        %v7625 = vpop.f32.mrb[0].mxu0
        %7626 = vmatprep.mubr.f32.mxu0 0.0
        %7627 = vmatmul.mubr.f32.gmra.mrb[0].mxu0 %v6314
        %v7628 = vpop.f32.mrb[0].mxu0
        %v7629 = vadd.f32 %v6844, %v7628
        %v7630 = vpop.f32.mrb[0].mxu0
        %7631 = vmatprep.mubr.f32.mxu0 0.0
        %7632 = vmatmul.mubr.f32.gmra.mrb[0].mxu0 %v6317
        %v7633 = vpop.f32.mrb[0].mxu0
        %v7634 = vadd.f32 %v6849, %v7633
        %v7635 = vpop.f32.mrb[0].mxu0
        %7636 = vmatprep.mubr.f32.mxu0 0.0
        %7637 = vmatmul.mubr.f32.gmra.mrb[0].mxu0 %v6320
        %v7638 = vpop.f32.mrb[0].mxu0
        %v7639 = vadd.f32 %v6854, %v7638
        %v7640 = vpop.f32.mrb[0].mxu0
        %7641 = vmatprep.mubr.f32.mxu0 0.0
        %7642 = vmatmul.mubr.f32.gmra.mrb[0].mxu0 %v6323
        %v7643 = vpop.f32.mrb[0].mxu0
        %v7644 = vadd.f32 %v6859, %v7643
        %v7645 = vpop.f32.mrb[0].mxu0
        %7646 = vmatprep.mubr.f32.mxu0 0.0
        %7647 = vmatmul.mubr.f32.gmra.mrb[0].mxu0 %v6326
        %v7648 = vpop.f32.mrb[0].mxu0
        %v7649 = vadd.f32 %v6864, %v7648
        %v7650 = vpop.f32.mrb[0].mxu0
        %7651 = vmatprep.mubr.f32.mxu0 0.0
        %7652 = vmatmul.mubr.f32.gmra.mrb[0].mxu0 %v6329
        %v7653 = vpop.f32.mrb[0].mxu0
        %v7654 = vadd.f32 %v6869, %v7653
        %v7655 = vpop.f32.mrb[0].mxu0
        %7656 = vmatprep.mubr.f32.mxu0 0.0
        %7657 = vmatmul.mubr.f32.gmra.mrb[0].mxu0 %v6332
        %v7658 = vpop.f32.mrb[0].mxu0
        %v7659 = vadd.f32 %v6874, %v7658
        %v7660 = vpop.f32.mrb[0].mxu0
        %7661 = vmatprep.mubr.f32.mxu0 0.0
        %7662 = vmatmul.mubr.f32.gmra.mrb[0].mxu0 %v6335
        %v7663 = vpop.f32.mrb[0].mxu0
        %v7664 = vadd.f32 %v6879, %v7663
        %v7665 = vpop.f32.mrb[0].mxu0
        %7666 = vmatprep.mubr.f32.mxu0 0.0
        %7667 = vmatmul.mubr.f32.gmra.mrb[0].mxu0 %v6338
        %v7668 = vpop.f32.mrb[0].mxu0
        %v7669 = vadd.f32 %v6884, %v7668
        %v7670 = vpop.f32.mrb[0].mxu0
        %7671 = vmatprep.mubr.f32.mxu0 0.0
        %7672 = vmatmul.mubr.f32.gmra.mrb[0].mxu0 %v6341
        %v7673 = vpop.f32.mrb[0].mxu0
        %v7674 = vadd.f32 %v6889, %v7673
        %v7675 = vpop.f32.mrb[0].mxu0
        %7676 = vmatprep.mubr.f32.mxu0 0.0
        %7677 = vmatmul.mubr.f32.gmra.mrb[0].mxu0 %v6344
        %v7678 = vpop.f32.mrb[0].mxu0
        %v7679 = vadd.f32 %v6894, %v7678
        %v7680 = vpop.f32.mrb[0].mxu0
        %7681 = vmatprep.mubr.f32.mxu0 0.0
        %7682 = vmatmul.mubr.f32.gmra.mrb[0].mxu0 %v6347
        %v7683 = vpop.f32.mrb[0].mxu0
        %v7684 = vadd.f32 %v6899, %v7683
        %v7685 = vpop.f32.mrb[0].mxu0
        %7686 = vmatprep.mubr.f32.mxu0 0.0
        %7687 = vmatmul.mubr.f32.gmra.mrb[0].mxu0 %v6350
        %v7688 = vpop.f32.mrb[0].mxu0
        %v7689 = vadd.f32 %v6904, %v7688
        %v7690 = vpop.f32.mrb[0].mxu0
        %7691 = vmatprep.mubr.f32.mxu0 0.0
        %7692 = vmatmul.mubr.f32.gmra.mrb[0].mxu0 %v6353
        %v7693 = vpop.f32.mrb[0].mxu0
        %v7694 = vadd.f32 %v6909, %v7693
        %v7695 = vpop.f32.mrb[0].mxu0
        %7696 = vmatprep.mubr.f32.mxu0 0.0
        %7697 = vmatmul.mubr.f32.gmra.mrb[0].mxu0 %v6356
        %v7698 = vpop.f32.mrb[0].mxu0
        %v7699 = vadd.f32 %v6914, %v7698
        %v7700 = vpop.f32.mrb[0].mxu0
        %7701 = vmatprep.mubr.f32.mxu0 0.0
        %7702 = vmatmul.mubr.f32.gmra.mrb[0].mxu0 %v6359
        %v7703 = vpop.f32.mrb[0].mxu0
        %v7704 = vadd.f32 %v6919, %v7703
        %v7705 = vpop.f32.mrb[0].mxu0
        %7706 = vmatprep.mubr.f32.mxu0 0.0
        %7707 = vmatmul.mubr.f32.gmra.mrb[0].mxu0 %v6362
        %v7708 = vpop.f32.mrb[0].mxu0
        %v7709 = vadd.f32 %v6924, %v7708
        %v7710 = vpop.f32.mrb[0].mxu0
        %7711 = vmatprep.mubr.f32.mxu0 0.0
        %7712 = vmatmul.mubr.f32.gmra.mrb[0].mxu0 %v6365
        %v7713 = vpop.f32.mrb[0].mxu0
        %v7714 = vadd.f32 %v6929, %v7713
        %v7715 = vpop.f32.mrb[0].mxu0
        %7716 = vmatprep.mubr.f32.mxu0 0.0
        %7717 = vmatmul.mubr.f32.gmra.mrb[0].mxu0 %v6368
        %v7718 = vpop.f32.mrb[0].mxu0
        %v7719 = vadd.f32 %v6934, %v7718
        %v7720 = vpop.f32.mrb[0].mxu0
        %7721 = vmatprep.mubr.f32.mxu0 0.0
        %7722 = vmatmul.mubr.f32.gmra.mrb[0].mxu0 %v6371
        %v7723 = vpop.f32.mrb[0].mxu0
        %v7724 = vadd.f32 %v6939, %v7723
        %v7725 = vpop.f32.mrb[0].mxu0
        %7726 = vmatprep.mubr.f32.mxu0 0.0
        %7727 = vmatmul.mubr.f32.gmra.mrb[0].mxu0 %v6374
        %v7728 = vpop.f32.mrb[0].mxu0
        %v7729 = vadd.f32 %v6944, %v7728
        %v7730 = vpop.f32.mrb[0].mxu0
        %7731 = vmatprep.mubr.f32.mxu0 0.0
        %7732 = vmatmul.mubr.f32.gmra.mrb[0].mxu0 %v6377
        %v7733 = vpop.f32.mrb[0].mxu0
        %v7734 = vadd.f32 %v6949, %v7733
        %v7735 = vpop.f32.mrb[0].mxu0
        %7736 = vmatprep.mubr.f32.mxu0 0.0
        %7737 = vmatmul.mubr.f32.gmra.mrb[0].mxu0 %v6380
        %v7738 = vpop.f32.mrb[0].mxu0
        %v7739 = vadd.f32 %v6954, %v7738
        %v7740 = vpop.f32.mrb[0].mxu0
        %7741 = vmatprep.mubr.f32.mxu0 0.0
        %7742 = vmatmul.mubr.f32.gmra.mrb[0].mxu0 %v6383
        %v7743 = vpop.f32.mrb[0].mxu0
        %v7744 = vadd.f32 %v6959, %v7743
        %v7745 = vpop.f32.mrb[0].mxu0
        %7746 = vmatprep.mubr.f32.mxu0 0.0
        %7747 = vmatmul.mubr.f32.gmra.mrb[0].mxu0 %v6386
        %v7748 = vpop.f32.mrb[0].mxu0
        %v7749 = vadd.f32 %v6964, %v7748
        %v7750 = vpop.f32.mrb[0].mxu0
        %7751 = vmatprep.mubr.f32.mxu0 0.0
        %7752 = vmatmul.mubr.f32.gmra.mrb[0].mxu0 %v6389
        %v7753 = vpop.f32.mrb[0].mxu0
        %v7754 = vadd.f32 %v6969, %v7753
        %v7755 = vpop.f32.mrb[0].mxu0
        %7756 = vmatprep.mubr.f32.mxu0 0.0
        %7757 = vmatmul.mubr.f32.gmra.mrb[0].mxu0 %v6392
        %v7758 = vpop.f32.mrb[0].mxu0
        %v7759 = vadd.f32 %v6974, %v7758
        %v7760 = vpop.f32.mrb[0].mxu0
        %7761 = vmatprep.mubr.f32.mxu0 0.0
        %7762 = vmatmul.mubr.f32.gmra.mrb[0].mxu0 %v6395
        %v7763 = vpop.f32.mrb[0].mxu0
        %v7764 = vadd.f32 %v6979, %v7763
        %v7765 = vpop.f32.mrb[0].mxu0
        %7766 = vmatprep.mubr.f32.mxu0 0.0
        %7767 = vmatmul.mubr.f32.gmra.mrb[0].mxu0 %v6398
        %v7768 = vpop.f32.mrb[0].mxu0
        %v7769 = vadd.f32 %v6984, %v7768
        %v7770 = vpop.f32.mrb[0].mxu0
        %7771 = vmatprep.mubr.f32.mxu0 0.0
        %7772 = vmatmul.mubr.f32.gmra.mrb[0].mxu0 %v6401
        %v7773 = vpop.f32.mrb[0].mxu0
        %v7774 = vadd.f32 %v6989, %v7773
        %v7775 = vpop.f32.mrb[0].mxu0
        %7776 = vmatprep.mubr.f32.mxu0 0.0
        %7777 = vmatmul.mubr.f32.gmra.mrb[0].mxu0 %v6404
        %v7778 = vpop.f32.mrb[0].mxu0
        %v7779 = vadd.f32 %v6994, %v7778
        %v7780 = vpop.f32.mrb[0].mxu0
        %7781 = vmatprep.mubr.f32.mxu0 0.0
        %7782 = vmatmul.mubr.f32.gmra.mrb[0].mxu0 %v6407
        %v7783 = vpop.f32.mrb[0].mxu0
        %v7784 = vadd.f32 %v6999, %v7783
        %v7785 = vpop.f32.mrb[0].mxu0
        %7786 = vmatprep.mubr.f32.mxu0 0.0
        %7787 = vmatmul.mubr.f32.gmra.mrb[0].mxu0 %v6410
        %v7788 = vpop.f32.mrb[0].mxu0
        %v7789 = vadd.f32 %v7004, %v7788
        %v7790 = vpop.f32.mrb[0].mxu0
        %7791 = vmatprep.mubr.f32.mxu0 0.0
        %7792 = vmatmul.mubr.f32.gmra.mrb[0].mxu0 %v6413
        %v7793 = vpop.f32.mrb[0].mxu0
        %v7794 = vadd.f32 %v7009, %v7793
        %v7795 = vpop.f32.mrb[0].mxu0
        %7796 = vmatprep.mubr.f32.mxu0 0.0
        %7797 = vmatmul.mubr.f32.gmra.mrb[0].mxu0 %v6416
        %v7798 = vpop.f32.mrb[0].mxu0
        %v7799 = vadd.f32 %v7014, %v7798
        %v7800 = vpop.f32.mrb[0].mxu0
        %7801 = vmatprep.mubr.f32.mxu0 0.0
        %7802 = vmatmul.mubr.f32.gmra.mrb[0].mxu0 %v6419
        %v7803 = vpop.f32.mrb[0].mxu0
        %v7804 = vadd.f32 %v7019, %v7803
        %v7805 = vpop.f32.mrb[0].mxu0
        %7806 = vmatprep.mubr.f32.mxu0 0.0
        %7807 = vmatmul.mubr.f32.gmra.mrb[0].mxu0 %v6422
        %v7808 = vpop.f32.mrb[0].mxu0
        %v7809 = vadd.f32 %v7024, %v7808
        %v7810 = vpop.f32.mrb[0].mxu0
        %7811 = vmatprep.mubr.f32.mxu0 0.0
        %7812 = vmatmul.mubr.f32.gmra.mrb[0].mxu0 %v6425
        %v7813 = vpop.f32.mrb[0].mxu0
        %v7814 = vadd.f32 %v7029, %v7813
        %v7815 = vpop.f32.mrb[0].mxu0
        %7816 = vmatprep.mubr.f32.mxu0 0.0
        %7817 = vmatmul.mubr.f32.gmra.mrb[0].mxu0 %v6428
        %v7818 = vpop.f32.mrb[0].mxu0
        %v7819 = vadd.f32 %v7034, %v7818
        %v7820 = vpop.f32.mrb[0].mxu0
        %7821 = vmatprep.mubr.f32.mxu0 0.0
        %7822 = vmatmul.mubr.f32.gmra.mrb[0].mxu0 %v6431
        %v7823 = vpop.f32.mrb[0].mxu0
        %v7824 = vadd.f32 %v7039, %v7823
        %v7825 = vpop.f32.mrb[0].mxu0
        %7826 = vmatprep.mubr.f32.mxu0 0.0
        %7827 = vmatmul.mubr.f32.gmra.mrb[0].mxu0 %v6434
        %v7828 = vpop.f32.mrb[0].mxu0
        %v7829 = vadd.f32 %v7044, %v7828
        %v7830 = vpop.f32.mrb[0].mxu0
        %7831 = vmatprep.mubr.f32.mxu0 0.0
        %7832 = vmatmul.mubr.f32.gmra.mrb[0].mxu0 %v6437
        %v7833 = vpop.f32.mrb[0].mxu0
        %v7834 = vadd.f32 %v7049, %v7833
        %v7835 = vpop.f32.mrb[0].mxu0
        %7836 = vmatprep.mubr.f32.mxu0 0.0
        %7837 = vmatmul.mubr.f32.gmra.mrb[0].mxu0 %v6440
        %v7838 = vpop.f32.mrb[0].mxu0
        %v7839 = vadd.f32 %v7054, %v7838
        %v7840 = vpop.f32.mrb[0].mxu0
        %7841 = vmatprep.mubr.f32.mxu0 0.0
        %7842 = vmatmul.mubr.f32.gmra.mrb[0].mxu0 %v6443
        %v7843 = vpop.f32.mrb[0].mxu0
        %v7844 = vadd.f32 %v7059, %v7843
        %v7845 = vpop.f32.mrb[0].mxu0
        %7846 = vmatprep.mubr.f32.mxu0 0.0
        %7847 = vmatmul.mubr.f32.gmra.mrb[0].mxu0 %v6446
        %v7848 = vpop.f32.mrb[0].mxu0
        %v7849 = vadd.f32 %v7064, %v7848
        %v7850 = vpop.f32.mrb[0].mxu0
        %7851 = vmatprep.mubr.f32.mxu0 0.0
        %7852 = vmatmul.mubr.f32.gmra.mrb[0].mxu0 %v6449
        %v7853 = vpop.f32.mrb[0].mxu0
        %v7854 = vadd.f32 %v7069, %v7853
        %v7855 = vpop.f32.mrb[0].mxu0
        %7856 = vmatprep.mubr.f32.mxu0 0.0
        %7857 = vmatmul.mubr.f32.gmra.mrb[0].mxu0 %v6452
        %v7858 = vpop.f32.mrb[0].mxu0
        %v7859 = vadd.f32 %v7074, %v7858
        %v7860 = vpop.f32.mrb[0].mxu0
        %7861 = vmatprep.mubr.f32.mxu0 0.0
        %7862 = vmatmul.mubr.f32.gmra.mrb[0].mxu0 %v6455
        %v7863 = vpop.f32.mrb[0].mxu0
        %v7864 = vadd.f32 %v7079, %v7863
        %v7865 = vpop.f32.mrb[0].mxu0
        %7866 = vmatprep.mubr.f32.mxu0 0.0
        %7867 = vmatmul.mubr.f32.gmra.mrb[0].mxu0 %v6458
        %v7868 = vpop.f32.mrb[0].mxu0
        %v7869 = vadd.f32 %v7084, %v7868
        %v7870 = vpop.f32.mrb[0].mxu0
        %7871 = vmatprep.mubr.f32.mxu0 0.0
        %7872 = vmatmul.mubr.f32.gmra.mrb[0].mxu0 %v6461
        %v7873 = vpop.f32.mrb[0].mxu0
        %v7874 = vadd.f32 %v7089, %v7873
        %v7875 = vpop.f32.mrb[0].mxu0
        %7876 = vmatprep.mubr.f32.mxu0 0.0
        %7877 = vmatmul.mubr.f32.gmra.mrb[0].mxu0 %v6464
        %v7878 = vpop.f32.mrb[0].mxu0
        %v7879 = vadd.f32 %v7094, %v7878
        %v7880 = vpop.f32.mrb[0].mxu0
        %7881 = vmatprep.mubr.f32.mxu0 0.0
        %7882 = vmatmul.mubr.f32.gmra.mrb[0].mxu0 %v6467
        %v7883 = vpop.f32.mrb[0].mxu0
        %v7884 = vadd.f32 %v7099, %v7883
        %v7885 = vpop.f32.mrb[0].mxu0
        %7886 = vmatprep.mubr.f32.mxu0 0.0
        %7887 = vmatmul.mubr.f32.gmra.mrb[0].mxu0 %v6470
        %v7888 = vpop.f32.mrb[0].mxu0
        %v7889 = vadd.f32 %v7104, %v7888
        %v7890 = vpop.f32.mrb[0].mxu0
        %7891 = vmatprep.mubr.f32.mxu0 0.0
        %7892 = vmatmul.mubr.f32.gmra.mrb[0].mxu0 %v6473
        %v7893 = vpop.f32.mrb[0].mxu0
        %v7894 = vadd.f32 %v7109, %v7893
        %v7895 = vpop.f32.mrb[0].mxu0
        %7896 = vmatprep.mubr.f32.mxu0 0.0
        %7897 = vmatmul.mubr.f32.gmra.mrb[0].mxu0 %v6476
        %v7898 = vpop.f32.mrb[0].mxu0
        %v7899 = vadd.f32 %v7114, %v7898
        %v7900 = vpop.f32.mrb[0].mxu0
        %7901 = vmatprep.mubr.f32.mxu0 0.0
        %7902 = vmatmul.mubr.f32.gmra.mrb[0].mxu0 %v6479
        %v7903 = vpop.f32.mrb[0].mxu0
        %v7904 = vadd.f32 %v7119, %v7903
        %v7905 = vpop.f32.mrb[0].mxu0
        %7906 = vmatprep.mubr.f32.mxu0 0.0
        %7907 = vmatmul.mubr.f32.gmra.mrb[0].mxu0 %v6482
        %v7908 = vpop.f32.mrb[0].mxu0
        %v7909 = vadd.f32 %v7124, %v7908
        %v7910 = vpop.f32.mrb[0].mxu0
        %7911 = vmatprep.mubr.f32.mxu0 0.0
        %7912 = vmatmul.mubr.f32.gmra.mrb[0].mxu0 %v6485
        %v7913 = vpop.f32.mrb[0].mxu0
        %v7914 = vadd.f32 %v7129, %v7913
        %v7915 = vpop.f32.mrb[0].mxu0
        %7916 = vmatprep.mubr.f32.mxu0 0.0
        %7917 = vmatmul.mubr.f32.gmra.mrb[0].mxu0 %v6488
        %v7918 = vpop.f32.mrb[0].mxu0
        %v7919 = vadd.f32 %v7134, %v7918
        %v7920 = vpop.f32.mrb[0].mxu0
        %7921 = vmatprep.mubr.f32.mxu0 0.0
        %7922 = vmatmul.mubr.f32.gmra.mrb[0].mxu0 %v6491
        %v7923 = vpop.f32.mrb[0].mxu0
        %v7924 = vadd.f32 %v7139, %v7923
        %v7925 = vpop.f32.mrb[0].mxu0
        %7926 = vmatprep.mubr.f32.mxu0 0.0
        %7927 = vmatmul.mubr.f32.gmra.mrb[0].mxu0 %v6494
        %v7928 = vpop.f32.mrb[0].mxu0
        %v7929 = vadd.f32 %v7144, %v7928
        %v7930 = vpop.f32.mrb[0].mxu0
        %7931 = vmatprep.mubr.f32.mxu0 0.0
        %7932 = vmatmul.mubr.f32.gmra.mrb[0].mxu0 %v6497
        %v7933 = vpop.f32.mrb[0].mxu0
        %v7934 = vadd.f32 %v7149, %v7933
        %v7935 = vpop.f32.mrb[0].mxu0
        %7936 = vmatprep.mubr.f32.mxu0 0.0
        %7937 = vmatmul.mubr.f32.gmra.mrb[0].mxu0 %v6500
        %v7938 = vpop.f32.mrb[0].mxu0
        %v7939 = vadd.f32 %v7154, %v7938
        %v7940 = vpop.f32.mrb[0].mxu0
        %7941 = vmatprep.mubr.f32.mxu0 0.0
        %7942 = vmatmul.mubr.f32.gmra.mrb[0].mxu0 %v6503
        %v7943 = vpop.f32.mrb[0].mxu0
        %v7944 = vadd.f32 %v7159, %v7943
        %v7945 = vpop.f32.mrb[0].mxu0
        %7946 = vmatprep.mubr.f32.mxu0 0.0
        %7947 = vmatmul.mubr.f32.gmra.mrb[0].mxu0 %v6506
        %v7948 = vpop.f32.mrb[0].mxu0
        %v7949 = vadd.f32 %v7164, %v7948
        %v7950 = vpop.f32.mrb[0].mxu0
        %7951 = vmatprep.mubr.f32.mxu0 0.0
        %7952 = vmatmul.mubr.f32.gmra.mrb[0].mxu0 %v6509
        %v7953 = vpop.f32.mrb[0].mxu0
        %v7954 = vadd.f32 %v7169, %v7953
        %v7955 = vpop.f32.mrb[0].mxu0
        %7956 = vmatprep.mubr.f32.mxu0 0.0
        %7957 = vmatmul.mubr.f32.gmra.mrb[0].mxu0 %v6512
        %v7958 = vpop.f32.mrb[0].mxu0
        %v7959 = vadd.f32 %v7174, %v7958
        %v7960 = vpop.f32.mrb[0].mxu0
        %7961 = vmatprep.mubr.f32.mxu0 0.0
        %7962 = vmatmul.mubr.f32.gmra.mrb[0].mxu0 %v6515
        %v7963 = vpop.f32.mrb[0].mxu0
        %v7964 = vadd.f32 %v7179, %v7963
        %v7965 = vpop.f32.mrb[0].mxu0
        %7966 = vmatprep.mubr.f32.mxu0 0.0
        %7967 = vmatmul.mubr.f32.gmra.mrb[0].mxu0 %v6518
        %v7968 = vpop.f32.mrb[0].mxu0
        %v7969 = vadd.f32 %v7184, %v7968
        %v7970 = vpop.f32.mrb[0].mxu0
        %7971 = vmatprep.mubr.f32.mxu0 0.0
        %7972 = vmatmul.mubr.f32.gmra.mrb[0].mxu0 %v6521
        %v7973 = vpop.f32.mrb[0].mxu0
        %v7974 = vadd.f32 %v7189, %v7973
        %v7975 = vpop.f32.mrb[0].mxu0
        %7976 = vmatprep.mubr.f32.mxu0 0.0
        %7977 = vmatmul.mubr.f32.gmra.mrb[0].mxu0 %v6524
        %v7978 = vpop.f32.mrb[0].mxu0
        %v7979 = vadd.f32 %v7194, %v7978
        %v7980 = vpop.f32.mrb[0].mxu0
        %7981 = vmatprep.mubr.f32.mxu0 0.0
        %7982 = vmatmul.mubr.f32.gmra.mrb[0].mxu0 %v6527
        %v7983 = vpop.f32.mrb[0].mxu0
        %v7984 = vadd.f32 %v7199, %v7983
        %v7985 = vpop.f32.mrb[0].mxu0
        %7986 = vmatprep.mubr.f32.mxu0 0.0
        %7987 = vmatmul.mubr.f32.gmra.mrb[0].mxu0 %v6530
        %v7988 = vpop.f32.mrb[0].mxu0
        %v7989 = vadd.f32 %v7204, %v7988
        %v7990 = vpop.f32.mrb[0].mxu0
        %7991 = vmatprep.mubr.f32.mxu0 0.0
        %7992 = vmatmul.mubr.f32.gmra.mrb[0].mxu0 %v6533
        %v7993 = vpop.f32.mrb[0].mxu0
        %v7994 = vadd.f32 %v7209, %v7993
        %v7995 = vpop.f32.mrb[0].mxu0
        %7996 = vmatprep.mubr.f32.mxu0 0.0
        %7997 = vmatmul.mubr.f32.gmra.mrb[0].mxu0 %v6536
        %v7998 = vpop.f32.mrb[0].mxu0
        %v7999 = vadd.f32 %v7214, %v7998
        %v8000 = vpop.f32.mrb[0].mxu0
        %8001 = vmatprep.mubr.f32.mxu0 0.0
        %8002 = vmatmul.mubr.f32.gmra.mrb[0].mxu0 %v6539
        %v8003 = vpop.f32.mrb[0].mxu0
        %v8004 = vadd.f32 %v7219, %v8003
        %v8005 = vpop.f32.mrb[0].mxu0
        %8006 = vmatprep.mubr.f32.mxu0 0.0
        %8007 = vmatmul.mubr.f32.gmra.mrb[0].mxu0 %v6542
        %v8008 = vpop.f32.mrb[0].mxu0
        %v8009 = vadd.f32 %v7224, %v8008
        %v8010 = vpop.f32.mrb[0].mxu0
        %8011 = vmatprep.mubr.f32.mxu0 0.0
        %8012 = vmatmul.mubr.f32.gmra.mrb[0].mxu0 %v6545
        %v8013 = vpop.f32.mrb[0].mxu0
        %v8014 = vadd.f32 %v7229, %v8013
        %v8015 = vpop.f32.mrb[0].mxu0
        %8016 = vmatprep.mubr.f32.mxu0 0.0
        %8017 = vmatmul.mubr.f32.gmra.mrb[0].mxu0 %v6548
        %v8018 = vpop.f32.mrb[0].mxu0
        %v8019 = vadd.f32 %v7234, %v8018
        %v8020 = vpop.f32.mrb[0].mxu0
        %8021 = vmatprep.mubr.f32.mxu0 0.0
        %8022 = vmatmul.mubr.f32.gmra.mrb[0].mxu0 %v6551
        %v8023 = vpop.f32.mrb[0].mxu0
        %v8024 = vadd.f32 %v7239, %v8023
        %v8025 = vpop.f32.mrb[0].mxu0
        %8026 = vmatprep.mubr.f32.mxu0 0.0
        %8027 = vmatmul.mubr.f32.gmra.mrb[0].mxu0 %v6554
        %v8028 = vpop.f32.mrb[0].mxu0
        %v8029 = vadd.f32 %v7244, %v8028
        %v8030 = vpop.f32.mrb[0].mxu0
        %8031 = vmatprep.mubr.f32.mxu0 0.0
        %8032 = vmatmul.mubr.f32.gmra.mrb[0].mxu0 %v6557
        %v8033 = vpop.f32.mrb[0].mxu0
        %v8034 = vadd.f32 %v7249, %v8033
        %v8035 = vpop.f32.mrb[0].mxu0
        %8036 = vmatprep.mubr.f32.mxu0 0.0
        %8037 = vmatmul.mubr.f32.gmra.mrb[0].mxu0 %v6560
        %v8038 = vpop.f32.mrb[0].mxu0
        %v8039 = vadd.f32 %v7254, %v8038
        %v8040 = vpop.f32.mrb[0].mxu0
        %8041 = vmatprep.mubr.f32.mxu0 0.0
        %8042 = vmatmul.mubr.f32.gmra.mrb[0].mxu0 %v6563
        %v8043 = vpop.f32.mrb[0].mxu0
        %v8044 = vadd.f32 %v7259, %v8043
        %v8045 = vpop.f32.mrb[0].mxu0
        %8046 = vmatprep.mubr.f32.mxu0 0.0
        %8047 = vmatmul.mubr.f32.gmra.mrb[0].mxu0 %v6566
        %v8048 = vpop.f32.mrb[0].mxu0
        %v8049 = vadd.f32 %v7264, %v8048
        %v8050 = vpop.f32.mrb[0].mxu0
        %8051 = vmatprep.mubr.f32.mxu0 0.0
        %8052 = vmatmul.mubr.f32.gmra.mrb[0].mxu0 %v6569
        %v8053 = vpop.f32.mrb[0].mxu0
        %v8054 = vadd.f32 %v7269, %v8053
        %v8055 = vpop.f32.mrb[0].mxu0
        %8056 = vmatprep.mubr.f32.mxu0 0.0
        %8057 = vmatmul.mubr.f32.gmra.mrb[0].mxu0 %v6572
        %v8058 = vpop.f32.mrb[0].mxu0
        %v8059 = vadd.f32 %v7274, %v8058
        %v8060 = vpop.f32.mrb[0].mxu0
        %8061 = vmatprep.mubr.f32.mxu0 0.0
        %8062 = vmatmul.mubr.f32.gmra.mrb[0].mxu0 %v6575
        %v8063 = vpop.f32.mrb[0].mxu0
        %v8064 = vadd.f32 %v7279, %v8063
        %v8065 = vpop.f32.mrb[0].mxu0
        %8066 = vmatprep.mubr.f32.mxu0 0.0
        %8067 = vmatmul.mubr.f32.gmra.mrb[0].mxu0 %v6578
        %v8068 = vpop.f32.mrb[0].mxu0
        %v8069 = vadd.f32 %v7284, %v8068
        %v8070 = vpop.f32.mrb[0].mxu0
        %8071 = vmatprep.mubr.f32.mxu0 0.0
        %8072 = vmatmul.mubr.f32.gmra.mrb[0].mxu0 %v6581
        %v8073 = vpop.f32.mrb[0].mxu0
        %v8074 = vadd.f32 %v7289, %v8073
        %v8075 = vpop.f32.mrb[0].mxu0
        %8076 = vmatprep.mubr.f32.mxu0 0.0
        %8077 = vmatmul.mubr.f32.gmra.mrb[0].mxu0 %v6584
        %v8078 = vpop.f32.mrb[0].mxu0
        %v8079 = vadd.f32 %v7294, %v8078
        %v8080 = vpop.f32.mrb[0].mxu0
        %8081 = vmatprep.mubr.f32.mxu0 0.0
        %8082 = vmatmul.mubr.f32.gmra.mrb[0].mxu0 %v6587
        %v8083 = vpop.f32.mrb[0].mxu0
        %v8084 = vadd.f32 %v7299, %v8083
        %v8085 = vpop.f32.mrb[0].mxu0
        %8086 = vmatprep.mubr.f32.mxu0 0.0
        %8087 = vmatmul.mubr.f32.gmra.mrb[0].mxu0 %v6590
        %v8088 = vpop.f32.mrb[0].mxu0
        %v8089 = vadd.f32 %v7304, %v8088
        %v8090 = vpop.f32.mrb[0].mxu0
        %8091 = vmatprep.mubr.f32.mxu0 0.0
        %8092 = vmatmul.mubr.f32.gmra.mrb[0].mxu0 %v6593
        %v8093 = vpop.f32.mrb[0].mxu0
        %v8094 = vadd.f32 %v7309, %v8093
        %v8095 = vpop.f32.mrb[0].mxu0
        %8096 = vmatprep.mubr.f32.mxu0 0.0
        %8097 = vmatmul.mubr.f32.gmra.mrb[0].mxu0 %v6596
        %v8098 = vpop.f32.mrb[0].mxu0
        %v8099 = vadd.f32 %v7314, %v8098
        %v8100 = vpop.f32.mrb[0].mxu0
        %8101 = vmatprep.mubr.f32.mxu0 0.0
        %8102 = vmatmul.mubr.f32.gmra.mrb[0].mxu0 %v6599
        %v8103 = vpop.f32.mrb[0].mxu0
        %v8104 = vadd.f32 %v7319, %v8103
        %v8105 = vpop.f32.mrb[0].mxu0
        %8106 = vmatprep.mubr.f32.mxu0 0.0
        %8107 = vmatmul.mubr.f32.gmra.mrb[0].mxu0 %v6602
        %v8108 = vpop.f32.mrb[0].mxu0
        %v8109 = vadd.f32 %v7324, %v8108
        %v8110 = vpop.f32.mrb[0].mxu0
        %8111 = vmatprep.mubr.f32.mxu0 0.0
        %8112 = vmatmul.mubr.f32.gmra.mrb[0].mxu0 %v6605
        %v8113 = vpop.f32.mrb[0].mxu0
        %v8114 = vadd.f32 %v7329, %v8113
        %v8115 = vpop.f32.mrb[0].mxu0
        %8116 = vmatprep.mubr.f32.mxu0 0.0
        %8117 = vmatmul.mubr.f32.gmra.mrb[0].mxu0 %v6608
        %v8118 = vpop.f32.mrb[0].mxu0
        %v8119 = vadd.f32 %v7334, %v8118
        %v8120 = vpop.f32.mrb[0].mxu0
        %8121 = vmatprep.mubr.f32.mxu0 0.0
        %8122 = vmatmul.mubr.f32.gmra.mrb[0].mxu0 %v6611
        %v8123 = vpop.f32.mrb[0].mxu0
        %v8124 = vadd.f32 %v7339, %v8123
        %v8125 = vpop.f32.mrb[0].mxu0
        %8126 = vmatprep.mubr.f32.mxu0 0.0
        %8127 = vmatmul.mubr.f32.gmra.mrb[0].mxu0 %v6614
        %v8128 = vpop.f32.mrb[0].mxu0
        %v8129 = vadd.f32 %v7344, %v8128
        %v8130 = vpop.f32.mrb[0].mxu0
        %8131 = vmatprep.mubr.f32.mxu0 0.0
        %8132 = vmatmul.mubr.f32.gmra.mrb[0].mxu0 %v6617
        %v8133 = vpop.f32.mrb[0].mxu0
        %v8134 = vadd.f32 %v7349, %v8133
        %v8135 = vpop.f32.mrb[0].mxu0
        %8136 = vmatprep.mubr.f32.mxu0 0.0
        %8137 = vmatmul.mubr.f32.gmra.mrb[0].mxu0 %v6620
        %v8138 = vpop.f32.mrb[0].mxu0
        %v8139 = vadd.f32 %v7354, %v8138
        %v8140 = vpop.f32.mrb[0].mxu0
        %8141 = vmatprep.mubr.f32.mxu0 0.0
        %8142 = vmatmul.mubr.f32.gmra.mrb[0].mxu0 %v6623
        %v8143 = vpop.f32.mrb[0].mxu0
        %v8144 = vadd.f32 %v7359, %v8143
        %v8145 = vpop.f32.mrb[0].mxu0
        %8146 = vmatprep.mubr.f32.mxu0 0.0
        %8147 = vmatmul.mubr.f32.gmra.mrb[0].mxu0 %v6626
        %v8148 = vpop.f32.mrb[0].mxu0
        %v8149 = vadd.f32 %v7364, %v8148
        %v8150 = vpop.f32.mrb[0].mxu0
        %8151 = vmatprep.mubr.f32.mxu0 0.0
        %8152 = vmatmul.mubr.f32.gmra.mrb[0].mxu0 %v6629
        %v8153 = vpop.f32.mrb[0].mxu0
        %v8154 = vadd.f32 %v7369, %v8153
        %v8155 = vpop.f32.mrb[0].mxu0
        %8156 = vmatprep.mubr.f32.mxu0 0.0
        %8157 = vmatmul.mubr.f32.gmra.mrb[0].mxu0 %v6632
        %v8158 = vpop.f32.mrb[0].mxu0
        %v8159 = vadd.f32 %v7374, %v8158
        %v8160 = vpop.f32.mrb[0].mxu0
        %8161 = vmatprep.mubr.f32.mxu0 0.0
        %8162 = vmatmul.mubr.f32.gmra.mrb[0].mxu0 %v6635
        %v8163 = vpop.f32.mrb[0].mxu0
        %v8164 = vadd.f32 %v7379, %v8163
        %v8165 = vpop.f32.mrb[0].mxu0
        %8166 = vmatprep.mubr.f32.mxu0 0.0
        %8167 = vmatmul.mubr.f32.gmra.mrb[0].mxu0 %v6638
        %v8168 = vpop.f32.mrb[0].mxu0
        %v8169 = vadd.f32 %v7384, %v8168
        %v8170 = vpop.f32.mrb[0].mxu0
        %8171 = vmatprep.mubr.f32.mxu0 0.0
        %8172 = vmatmul.mubr.f32.gmra.mrb[0].mxu0 %v6641
        %v8173 = vpop.f32.mrb[0].mxu0
        %v8174 = vadd.f32 %v7389, %v8173
        %v8175 = vpop.f32.mrb[0].mxu0
        %8176 = vmatprep.mubr.f32.mxu0 0.0
        %8177 = vmatmul.mubr.f32.gmra.mrb[0].mxu0 %v6644
        %v8178 = vpop.f32.mrb[0].mxu0
        %v8179 = vadd.f32 %v7394, %v8178
        %v8180 = vpop.f32.mrb[0].mxu0
        %8181 = vmatprep.mubr.f32.mxu0 0.0
        %8182 = vmatmul.mubr.f32.gmra.mrb[0].mxu0 %v6647
        %v8183 = vpop.f32.mrb[0].mxu0
        %v8184 = vadd.f32 %v7399, %v8183
        %v8185 = vpop.f32.mrb[0].mxu0
        %8186 = vmatprep.mubr.f32.mxu0 0.0
        %8187 = vmatmul.mubr.f32.gmra.mrb[0].mxu0 %v6650
        %v8188 = vpop.f32.mrb[0].mxu0
        %v8189 = vadd.f32 %v7404, %v8188
        %v8190 = vpop.f32.mrb[0].mxu0
        %8191 = vmatprep.mubr.f32.mxu0 0.0
        %8192 = vmatmul.mubr.f32.gmra.mrb[0].mxu0 %v6653
        %v8193 = vpop.f32.mrb[0].mxu0
        %v8194 = vadd.f32 %v7409, %v8193
        %v8195 = vpop.f32.mrb[0].mxu0
        %8196 = vmatprep.mubr.f32.mxu0 0.0
        %8197 = vmatmul.mubr.f32.gmra.mrb[0].mxu0 %v6656
        %v8198 = vpop.f32.mrb[0].mxu0
        %v8199 = vadd.f32 %v7414, %v8198
        %v8200 = vpop.f32.mrb[0].mxu0
        %8201 = vmatprep.mubr.f32.mxu0 0.0
        %8202 = vmatmul.mubr.f32.gmra.mrb[0].mxu0 %v6659
        %v8203 = vpop.f32.mrb[0].mxu0
        %v8204 = vadd.f32 %v7419, %v8203
        %v8205 = vpop.f32.mrb[0].mxu0
        %8206 = vmatprep.mubr.f32.mxu0 0.0
        %8207 = vmatmul.mubr.f32.gmra.mrb[0].mxu0 %v6662
        %v8208 = vpop.f32.mrb[0].mxu0
        %v8209 = vadd.f32 %v7424, %v8208
        %v8210 = vpop.f32.mrb[0].mxu0
        %8211 = vmatprep.mubr.f32.mxu0 0.0
        %8212 = vmatmul.mubr.f32.gmra.mrb[0].mxu0 %v6665
        %v8213 = vpop.f32.mrb[0].mxu0
        %v8214 = vadd.f32 %v7429, %v8213
        %v8215 = vpop.f32.mrb[0].mxu0
        %8216 = vmatprep.mubr.f32.mxu0 0.0
        %8217 = vmatmul.mubr.f32.gmra.mrb[0].mxu0 %v6668
        %v8218 = vpop.f32.mrb[0].mxu0
        %v8219 = vadd.f32 %v7434, %v8218
        %v8220 = vpop.f32.mrb[0].mxu0
        %8221 = vmatprep.mubr.f32.mxu0 0.0
        %8222 = vmatmul.mubr.f32.gmra.mrb[0].mxu0 %v6671
        %v8223 = vpop.f32.mrb[0].mxu0
        %v8224 = vadd.f32 %v7439, %v8223
        %v8225 = vpop.f32.mrb[0].mxu0
        %8226 = vmatprep.mubr.f32.mxu0 0.0
        %8227 = vmatmul.mubr.f32.gmra.mrb[0].mxu0 %v6674
        %v8228 = vpop.f32.mrb[0].mxu0
        %v8229 = vadd.f32 %v7444, %v8228
        %v8230 = vpop.f32.mrb[0].mxu0
        %8231 = vmatprep.mubr.f32.mxu0 0.0
        %8232 = vmatmul.mubr.f32.gmra.mrb[0].mxu0 %v6677
        %v8233 = vpop.f32.mrb[0].mxu0
        %v8234 = vadd.f32 %v7449, %v8233
        %v8235 = vpop.f32.mrb[0].mxu0
        %8236 = vmatprep.mubr.f32.mxu0 0.0
        %8237 = vmatmul.mubr.f32.gmra.mrb[0].mxu0 %v6680
        %v8238 = vpop.f32.mrb[0].mxu0
        %v8239 = vadd.f32 %v7454, %v8238
        %v8240 = vpop.f32.mrb[0].mxu0
        %8241 = vmatprep.mubr.f32.mxu0 0.0
        %8242 = vmatmul.mubr.f32.gmra.mrb[0].mxu0 %v6683
        %v8243 = vpop.f32.mrb[0].mxu0
        %v8244 = vadd.f32 %v7459, %v8243
        %v8245 = vpop.f32.mrb[0].mxu0
        %8246 = vmatprep.mubr.f32.mxu0 0.0
        %8247 = vmatmul.mubr.f32.gmra.mrb[0].mxu0 %v6686
        %v8248 = vpop.f32.mrb[0].mxu0
        %v8249 = vadd.f32 %v7464, %v8248
        %v8250 = vpop.f32.mrb[0].mxu0
        %8251 = vmatprep.mubr.f32.mxu0 0.0
        %8252 = vmatmul.mubr.f32.gmra.mrb[0].mxu0 %v6689
        %v8253 = vpop.f32.mrb[0].mxu0
        %v8254 = vadd.f32 %v7469, %v8253
        %v8255 = vpop.f32.mrb[0].mxu0
        %8256 = vmatprep.mubr.f32.mxu0 0.0
        %8257 = vmatmul.mubr.f32.gmra.mrb[0].mxu0 %v6692
        %v8258 = vpop.f32.mrb[0].mxu0
        %v8259 = vadd.f32 %v7474, %v8258
        %v8260 = vpop.f32.mrb[0].mxu0
        %8261 = vmatprep.mubr.f32.mxu0 0.0
        %8262 = vmatmul.mubr.f32.gmra.mrb[0].mxu0 %v6695
        %v8263 = vpop.f32.mrb[0].mxu0
        %v8264 = vadd.f32 %v7479, %v8263
        %v8265 = vpop.f32.mrb[0].mxu0
        %8266 = vdwg.mxu0
        %v8267 = vld [vmem:[%s4] sm:$0xff]
        %v8268 = vld [vmem:[%s4 + $0x8] sm:$0xff]
        %v8269 = vld [vmem:[%s4 + $0x10] sm:$0xff]
        %v8270 = vld [vmem:[%s4 + $0x18] sm:$0xff]
        %v8271 = vld [vmem:[%s4 + $0x20] sm:$0xff]
        %v8272 = vld [vmem:[%s4 + $0x28] sm:$0xff]
        %v8273 = vld [vmem:[%s4 + $0x30] sm:$0xff]
        %v8274 = vld [vmem:[%s4 + $0x38] sm:$0xff]
        %v8275 = vld [vmem:[%s4 + $0x40] sm:$0xff]
        %v8276 = vld [vmem:[%s4 + $0x48] sm:$0xff]
        %v8277 = vld [vmem:[%s4 + $0x50] sm:$0xff]
        %v8278 = vld [vmem:[%s4 + $0x58] sm:$0xff]
        %v8279 = vld [vmem:[%s4 + $0x60] sm:$0xff]
        %v8280 = vld [vmem:[%s4 + $0x68] sm:$0xff]
        %v8281 = vld [vmem:[%s4 + $0x70] sm:$0xff]
        %v8282 = vld [vmem:[%s4 + $0x78] sm:$0xff]
        %s8283 = scalar_lea.vmem %s4, 128
        %v8284 = vld [vmem:[%s8283] sm:$0xff]
        %v8285 = vld [vmem:[%s8283 + $0x8] sm:$0xff]
        %v8286 = vld [vmem:[%s8283 + $0x10] sm:$0xff]
        %v8287 = vld [vmem:[%s8283 + $0x18] sm:$0xff]
        %v8288 = vld [vmem:[%s8283 + $0x20] sm:$0xff]
        %v8289 = vld [vmem:[%s8283 + $0x28] sm:$0xff]
        %v8290 = vld [vmem:[%s8283 + $0x30] sm:$0xff]
        %v8291 = vld [vmem:[%s8283 + $0x38] sm:$0xff]
        %v8292 = vld [vmem:[%s8283 + $0x40] sm:$0xff]
        %v8293 = vld [vmem:[%s8283 + $0x48] sm:$0xff]
        %v8294 = vld [vmem:[%s8283 + $0x50] sm:$0xff]
        %v8295 = vld [vmem:[%s8283 + $0x58] sm:$0xff]
        %v8296 = vld [vmem:[%s8283 + $0x60] sm:$0xff]
        %v8297 = vld [vmem:[%s8283 + $0x68] sm:$0xff]
        %v8298 = vld [vmem:[%s8283 + $0x70] sm:$0xff]
        %v8299 = vld [vmem:[%s8283 + $0x78] sm:$0xff]
        %8300 = vmatprep.subr.mxu0 0.0
        %8301 = vmatpush1.msra.mxu0 %v8284
        %8302 = vmatprep.subr.mxu0 0.0
        %8303 = vmatpush1.msra.mxu0 %v8285
        %8304 = vmatprep.subr.mxu0 0.0
        %8305 = vmatpush1.msra.mxu0 %v8286
        %8306 = vmatprep.subr.mxu0 0.0
        %8307 = vmatpush1.msra.mxu0 %v8287
        %8308 = vmatprep.subr.mxu0 0.0
        %8309 = vmatpush1.msra.mxu0 %v8288
        %8310 = vmatprep.subr.mxu0 0.0
        %8311 = vmatpush1.msra.mxu0 %v8289
        %8312 = vmatprep.subr.mxu0 0.0
        %8313 = vmatpush1.msra.mxu0 %v8290
        %8314 = vmatprep.subr.mxu0 0.0
        %8315 = vmatpush1.msra.mxu0 %v8291
        %8316 = vmatprep.subr.mxu0 0.0
        %8317 = vmatpush1.msra.mxu0 %v8292
        %8318 = vmatprep.subr.mxu0 0.0
        %8319 = vmatpush1.msra.mxu0 %v8293
        %8320 = vmatprep.subr.mxu0 0.0
        %8321 = vmatpush1.msra.mxu0 %v8294
        %8322 = vmatprep.subr.mxu0 0.0
        %8323 = vmatpush1.msra.mxu0 %v8295
        %8324 = vmatprep.subr.mxu0 0.0
        %8325 = vmatpush1.msra.mxu0 %v8296
        %8326 = vmatprep.subr.mxu0 0.0
        %8327 = vmatpush1.msra.mxu0 %v8297
        %8328 = vmatprep.subr.mxu0 0.0
        %8329 = vmatpush1.msra.mxu0 %v8298
        %8330 = vmatprep.subr.mxu0 0.0
        %8331 = vmatpush1.msra.mxu0 %v8299
        %8332 = vmatprep.subr.mxu0 0.0
        %8333 = vmatpush1.msra.mxu0 0.0
        %8334 = vmatprep.subr.mxu0 0.0
        %8335 = vmatpush1.msra.mxu0 0.0
        %8336 = vmatprep.subr.mxu0 0.0
        %8337 = vmatpush1.msra.mxu0 0.0
        %8338 = vmatprep.subr.mxu0 0.0
        %8339 = vmatpush1.msra.mxu0 0.0
        %8340 = vmatprep.subr.mxu0 0.0
        %8341 = vmatpush1.msra.mxu0 0.0
        %8342 = vmatprep.subr.mxu0 0.0
        %8343 = vmatpush1.msra.mxu0 0.0
        %8344 = vmatprep.subr.mxu0 0.0
        %8345 = vmatpush1.msra.mxu0 0.0
        %8346 = vmatprep.subr.mxu0 0.0
        %8347 = vmatpush1.msra.mxu0 0.0
        %8348 = vmatprep.subr.mxu0 0.0
        %8349 = vmatpush1.msra.mxu0 0.0
        %8350 = vmatprep.subr.mxu0 0.0
        %8351 = vmatpush1.msra.mxu0 0.0
        %8352 = vmatprep.subr.mxu0 0.0
        %8353 = vmatpush1.msra.mxu0 0.0
        %8354 = vmatprep.subr.mxu0 0.0
        %8355 = vmatpush1.msra.mxu0 0.0
        %8356 = vmatprep.subr.mxu0 0.0
        %8357 = vmatpush1.msra.mxu0 0.0
        %8358 = vmatprep.subr.mxu0 0.0
        %8359 = vmatpush1.msra.mxu0 0.0
        %8360 = vmatprep.subr.mxu0 0.0
        %8361 = vmatpush1.msra.mxu0 0.0
        %8362 = vmatprep.subr.mxu0 0.0
        %8363 = vmatpush1.msra.mxu0 0.0
        %8364 = vmatprep.mubr.f32.mxu0 0.0
        %8365 = vmatmul.mubr.f32.gmra.mrb[0].mxu0 %v7629
        %v8366 = vpop.f32.mrb[0].mxu0
        %v8367 = vadd.f32 0.0, %v8366
        %v8368 = vpop.f32.mrb[0].mxu0
        %8369 = vmatprep.mubr.f32.mxu0 0.0
        %8370 = vmatmul.mubr.f32.gmra.mrb[0].mxu0 %v7634
        %v8371 = vpop.f32.mrb[0].mxu0
        %v8372 = vadd.f32 0.0, %v8371
        %v8373 = vpop.f32.mrb[0].mxu0
        %8374 = vmatprep.mubr.f32.mxu0 0.0
        %8375 = vmatmul.mubr.f32.gmra.mrb[0].mxu0 %v7639
        %v8376 = vpop.f32.mrb[0].mxu0
        %v8377 = vadd.f32 0.0, %v8376
        %v8378 = vpop.f32.mrb[0].mxu0
        %8379 = vmatprep.mubr.f32.mxu0 0.0
        %8380 = vmatmul.mubr.f32.gmra.mrb[0].mxu0 %v7644
        %v8381 = vpop.f32.mrb[0].mxu0
        %v8382 = vadd.f32 0.0, %v8381
        %v8383 = vpop.f32.mrb[0].mxu0
        %8384 = vmatprep.mubr.f32.mxu0 0.0
        %8385 = vmatmul.mubr.f32.gmra.mrb[0].mxu0 %v7649
        %v8386 = vpop.f32.mrb[0].mxu0
        %v8387 = vadd.f32 0.0, %v8386
        %v8388 = vpop.f32.mrb[0].mxu0
        %8389 = vmatprep.mubr.f32.mxu0 0.0
        %8390 = vmatmul.mubr.f32.gmra.mrb[0].mxu0 %v7654
        %v8391 = vpop.f32.mrb[0].mxu0
        %v8392 = vadd.f32 0.0, %v8391
        %v8393 = vpop.f32.mrb[0].mxu0
        %8394 = vmatprep.mubr.f32.mxu0 0.0
        %8395 = vmatmul.mubr.f32.gmra.mrb[0].mxu0 %v7659
        %v8396 = vpop.f32.mrb[0].mxu0
        %v8397 = vadd.f32 0.0, %v8396
        %v8398 = vpop.f32.mrb[0].mxu0
        %8399 = vmatprep.mubr.f32.mxu0 0.0
        %8400 = vmatmul.mubr.f32.gmra.mrb[0].mxu0 %v7664
        %v8401 = vpop.f32.mrb[0].mxu0
        %v8402 = vadd.f32 0.0, %v8401
        %v8403 = vpop.f32.mrb[0].mxu0
        %8404 = vmatprep.mubr.f32.mxu0 0.0
        %8405 = vmatmul.mubr.f32.gmra.mrb[0].mxu0 %v7669
        %v8406 = vpop.f32.mrb[0].mxu0
        %v8407 = vadd.f32 0.0, %v8406
        %v8408 = vpop.f32.mrb[0].mxu0
        %8409 = vmatprep.mubr.f32.mxu0 0.0
        %8410 = vmatmul.mubr.f32.gmra.mrb[0].mxu0 %v7674
        %v8411 = vpop.f32.mrb[0].mxu0
        %v8412 = vadd.f32 0.0, %v8411
        %v8413 = vpop.f32.mrb[0].mxu0
        %8414 = vmatprep.mubr.f32.mxu0 0.0
        %8415 = vmatmul.mubr.f32.gmra.mrb[0].mxu0 %v7679
        %v8416 = vpop.f32.mrb[0].mxu0
        %v8417 = vadd.f32 0.0, %v8416
        %v8418 = vpop.f32.mrb[0].mxu0
        %8419 = vmatprep.mubr.f32.mxu0 0.0
        %8420 = vmatmul.mubr.f32.gmra.mrb[0].mxu0 %v7684
        %v8421 = vpop.f32.mrb[0].mxu0
        %v8422 = vadd.f32 0.0, %v8421
        %v8423 = vpop.f32.mrb[0].mxu0
        %8424 = vmatprep.mubr.f32.mxu0 0.0
        %8425 = vmatmul.mubr.f32.gmra.mrb[0].mxu0 %v7689
        %v8426 = vpop.f32.mrb[0].mxu0
        %v8427 = vadd.f32 0.0, %v8426
        %v8428 = vpop.f32.mrb[0].mxu0
        %8429 = vmatprep.mubr.f32.mxu0 0.0
        %8430 = vmatmul.mubr.f32.gmra.mrb[0].mxu0 %v7694
        %v8431 = vpop.f32.mrb[0].mxu0
        %v8432 = vadd.f32 0.0, %v8431
        %v8433 = vpop.f32.mrb[0].mxu0
        %8434 = vmatprep.mubr.f32.mxu0 0.0
        %8435 = vmatmul.mubr.f32.gmra.mrb[0].mxu0 %v7699
        %v8436 = vpop.f32.mrb[0].mxu0
        %v8437 = vadd.f32 0.0, %v8436
        %v8438 = vpop.f32.mrb[0].mxu0
        %8439 = vmatprep.mubr.f32.mxu0 0.0
        %8440 = vmatmul.mubr.f32.gmra.mrb[0].mxu0 %v7704
        %v8441 = vpop.f32.mrb[0].mxu0
        %v8442 = vadd.f32 0.0, %v8441
        %v8443 = vpop.f32.mrb[0].mxu0
        %8444 = vdwg.mxu0
        %8445 = vmatprep.subr.mxu0 0.0
        %8446 = vmatpush1.msra.mxu0 %v8267
        %8447 = vmatprep.subr.mxu0 0.0
        %8448 = vmatpush1.msra.mxu0 %v8268
        %8449 = vmatprep.subr.mxu0 0.0
        %8450 = vmatpush1.msra.mxu0 %v8269
        %8451 = vmatprep.subr.mxu0 0.0
        %8452 = vmatpush1.msra.mxu0 %v8270
        %8453 = vmatprep.subr.mxu0 0.0
        %8454 = vmatpush1.msra.mxu0 %v8271
        %8455 = vmatprep.subr.mxu0 0.0
        %8456 = vmatpush1.msra.mxu0 %v8272
        %8457 = vmatprep.subr.mxu0 0.0
        %8458 = vmatpush1.msra.mxu0 %v8273
        %8459 = vmatprep.subr.mxu0 0.0
        %8460 = vmatpush1.msra.mxu0 %v8274
        %8461 = vmatprep.subr.mxu0 0.0
        %8462 = vmatpush1.msra.mxu0 %v8275
        %8463 = vmatprep.subr.mxu0 0.0
        %8464 = vmatpush1.msra.mxu0 %v8276
        %8465 = vmatprep.subr.mxu0 0.0
        %8466 = vmatpush1.msra.mxu0 %v8277
        %8467 = vmatprep.subr.mxu0 0.0
        %8468 = vmatpush1.msra.mxu0 %v8278
        %8469 = vmatprep.subr.mxu0 0.0
        %8470 = vmatpush1.msra.mxu0 %v8279
        %8471 = vmatprep.subr.mxu0 0.0
        %8472 = vmatpush1.msra.mxu0 %v8280
        %8473 = vmatprep.subr.mxu0 0.0
        %8474 = vmatpush1.msra.mxu0 %v8281
        %8475 = vmatprep.subr.mxu0 0.0
        %8476 = vmatpush1.msra.mxu0 %v8282
        %8477 = vmatprep.subr.mxu0 0.0
        %8478 = vmatpush1.msra.mxu0 0.0
        %8479 = vmatprep.subr.mxu0 0.0
        %8480 = vmatpush1.msra.mxu0 0.0
        %8481 = vmatprep.subr.mxu0 0.0
        %8482 = vmatpush1.msra.mxu0 0.0
        %8483 = vmatprep.subr.mxu0 0.0
        %8484 = vmatpush1.msra.mxu0 0.0
        %8485 = vmatprep.subr.mxu0 0.0
        %8486 = vmatpush1.msra.mxu0 0.0
        %8487 = vmatprep.subr.mxu0 0.0
        %8488 = vmatpush1.msra.mxu0 0.0
        %8489 = vmatprep.subr.mxu0 0.0
        %8490 = vmatpush1.msra.mxu0 0.0
        %8491 = vmatprep.subr.mxu0 0.0
        %8492 = vmatpush1.msra.mxu0 0.0
        %8493 = vmatprep.subr.mxu0 0.0
        %8494 = vmatpush1.msra.mxu0 0.0
        %8495 = vmatprep.subr.mxu0 0.0
        %8496 = vmatpush1.msra.mxu0 0.0
        %8497 = vmatprep.subr.mxu0 0.0
        %8498 = vmatpush1.msra.mxu0 0.0
        %8499 = vmatprep.subr.mxu0 0.0
        %8500 = vmatpush1.msra.mxu0 0.0
        %8501 = vmatprep.subr.mxu0 0.0
        %8502 = vmatpush1.msra.mxu0 0.0
        %8503 = vmatprep.subr.mxu0 0.0
        %8504 = vmatpush1.msra.mxu0 0.0
        %8505 = vmatprep.subr.mxu0 0.0
        %8506 = vmatpush1.msra.mxu0 0.0
        %8507 = vmatprep.subr.mxu0 0.0
        %8508 = vmatpush1.msra.mxu0 0.0
        %8509 = vmatprep.mubr.f32.mxu0 0.0
        %8510 = vmatmul.mubr.f32.gmra.mrb[0].mxu0 %v7549
        %v8511 = vpop.f32.mrb[0].mxu0
        %v8512 = vadd.f32 %v8367, %v8511
        %v8513 = vpop.f32.mrb[0].mxu0
        %8514 = vmatprep.mubr.f32.mxu0 0.0
        %8515 = vmatmul.mubr.f32.gmra.mrb[0].mxu0 %v7554
        %v8516 = vpop.f32.mrb[0].mxu0
        %v8517 = vadd.f32 %v8372, %v8516
        %v8518 = vpop.f32.mrb[0].mxu0
        %8519 = vmatprep.mubr.f32.mxu0 0.0
        %8520 = vmatmul.mubr.f32.gmra.mrb[0].mxu0 %v7559
        %v8521 = vpop.f32.mrb[0].mxu0
        %v8522 = vadd.f32 %v8377, %v8521
        %v8523 = vpop.f32.mrb[0].mxu0
        %8524 = vmatprep.mubr.f32.mxu0 0.0
        %8525 = vmatmul.mubr.f32.gmra.mrb[0].mxu0 %v7564
        %v8526 = vpop.f32.mrb[0].mxu0
        %v8527 = vadd.f32 %v8382, %v8526
        %v8528 = vpop.f32.mrb[0].mxu0
        %8529 = vmatprep.mubr.f32.mxu0 0.0
        %8530 = vmatmul.mubr.f32.gmra.mrb[0].mxu0 %v7569
        %v8531 = vpop.f32.mrb[0].mxu0
        %v8532 = vadd.f32 %v8387, %v8531
        %v8533 = vpop.f32.mrb[0].mxu0
        %8534 = vmatprep.mubr.f32.mxu0 0.0
        %8535 = vmatmul.mubr.f32.gmra.mrb[0].mxu0 %v7574
        %v8536 = vpop.f32.mrb[0].mxu0
        %v8537 = vadd.f32 %v8392, %v8536
        %v8538 = vpop.f32.mrb[0].mxu0
        %8539 = vmatprep.mubr.f32.mxu0 0.0
        %8540 = vmatmul.mubr.f32.gmra.mrb[0].mxu0 %v7579
        %v8541 = vpop.f32.mrb[0].mxu0
        %v8542 = vadd.f32 %v8397, %v8541
        %v8543 = vpop.f32.mrb[0].mxu0
        %8544 = vmatprep.mubr.f32.mxu0 0.0
        %8545 = vmatmul.mubr.f32.gmra.mrb[0].mxu0 %v7584
        %v8546 = vpop.f32.mrb[0].mxu0
        %v8547 = vadd.f32 %v8402, %v8546
        %v8548 = vpop.f32.mrb[0].mxu0
        %8549 = vmatprep.mubr.f32.mxu0 0.0
        %8550 = vmatmul.mubr.f32.gmra.mrb[0].mxu0 %v7589
        %v8551 = vpop.f32.mrb[0].mxu0
        %v8552 = vadd.f32 %v8407, %v8551
        %v8553 = vpop.f32.mrb[0].mxu0
        %8554 = vmatprep.mubr.f32.mxu0 0.0
        %8555 = vmatmul.mubr.f32.gmra.mrb[0].mxu0 %v7594
        %v8556 = vpop.f32.mrb[0].mxu0
        %v8557 = vadd.f32 %v8412, %v8556
        %v8558 = vpop.f32.mrb[0].mxu0
        %8559 = vmatprep.mubr.f32.mxu0 0.0
        %8560 = vmatmul.mubr.f32.gmra.mrb[0].mxu0 %v7599
        %v8561 = vpop.f32.mrb[0].mxu0
        %v8562 = vadd.f32 %v8417, %v8561
        %v8563 = vpop.f32.mrb[0].mxu0
        %8564 = vmatprep.mubr.f32.mxu0 0.0
        %8565 = vmatmul.mubr.f32.gmra.mrb[0].mxu0 %v7604
        %v8566 = vpop.f32.mrb[0].mxu0
        %v8567 = vadd.f32 %v8422, %v8566
        %v8568 = vpop.f32.mrb[0].mxu0
        %8569 = vmatprep.mubr.f32.mxu0 0.0
        %8570 = vmatmul.mubr.f32.gmra.mrb[0].mxu0 %v7609
        %v8571 = vpop.f32.mrb[0].mxu0
        %v8572 = vadd.f32 %v8427, %v8571
        %v8573 = vpop.f32.mrb[0].mxu0
        %8574 = vmatprep.mubr.f32.mxu0 0.0
        %8575 = vmatmul.mubr.f32.gmra.mrb[0].mxu0 %v7614
        %v8576 = vpop.f32.mrb[0].mxu0
        %v8577 = vadd.f32 %v8432, %v8576
        %v8578 = vpop.f32.mrb[0].mxu0
        %8579 = vmatprep.mubr.f32.mxu0 0.0
        %8580 = vmatmul.mubr.f32.gmra.mrb[0].mxu0 %v7619
        %v8581 = vpop.f32.mrb[0].mxu0
        %v8582 = vadd.f32 %v8437, %v8581
        %v8583 = vpop.f32.mrb[0].mxu0
        %8584 = vmatprep.mubr.f32.mxu0 0.0
        %8585 = vmatmul.mubr.f32.gmra.mrb[0].mxu0 %v7624
        %v8586 = vpop.f32.mrb[0].mxu0
        %v8587 = vadd.f32 %v8442, %v8586
        %v8588 = vpop.f32.mrb[0].mxu0
        %8589 = vdwg.mxu0
        %s8590 = scalar_lea.vmem %s4, 256
        %v8591 = vld [vmem:[%s8590] sm:$0xff]
        %v8592 = vld [vmem:[%s8590 + $0x8] sm:$0xff]
        %v8593 = vld [vmem:[%s8590 + $0x10] sm:$0xff]
        %v8594 = vld [vmem:[%s8590 + $0x18] sm:$0xff]
        %v8595 = vld [vmem:[%s8590 + $0x20] sm:$0xff]
        %v8596 = vld [vmem:[%s8590 + $0x28] sm:$0xff]
        %v8597 = vld [vmem:[%s8590 + $0x30] sm:$0xff]
        %v8598 = vld [vmem:[%s8590 + $0x38] sm:$0xff]
        %v8599 = vld [vmem:[%s8590 + $0x40] sm:$0xff]
        %v8600 = vld [vmem:[%s8590 + $0x48] sm:$0xff]
        %v8601 = vld [vmem:[%s8590 + $0x50] sm:$0xff]
        %v8602 = vld [vmem:[%s8590 + $0x58] sm:$0xff]
        %v8603 = vld [vmem:[%s8590 + $0x60] sm:$0xff]
        %v8604 = vld [vmem:[%s8590 + $0x68] sm:$0xff]
        %v8605 = vld [vmem:[%s8590 + $0x70] sm:$0xff]
        %v8606 = vld [vmem:[%s8590 + $0x78] sm:$0xff]
        %8607 = vmatprep.subr.mxu0 0.0
        %8608 = vmatpush1.msra.mxu0 %v8591
        %8609 = vmatprep.subr.mxu0 0.0
        %8610 = vmatpush1.msra.mxu0 %v8592
        %8611 = vmatprep.subr.mxu0 0.0
        %8612 = vmatpush1.msra.mxu0 %v8593
        %8613 = vmatprep.subr.mxu0 0.0
        %8614 = vmatpush1.msra.mxu0 %v8594
        %8615 = vmatprep.subr.mxu0 0.0
        %8616 = vmatpush1.msra.mxu0 %v8595
        %8617 = vmatprep.subr.mxu0 0.0
        %8618 = vmatpush1.msra.mxu0 %v8596
        %8619 = vmatprep.subr.mxu0 0.0
        %8620 = vmatpush1.msra.mxu0 %v8597
        %8621 = vmatprep.subr.mxu0 0.0
        %8622 = vmatpush1.msra.mxu0 %v8598
        %8623 = vmatprep.subr.mxu0 0.0
        %8624 = vmatpush1.msra.mxu0 %v8599
        %8625 = vmatprep.subr.mxu0 0.0
        %8626 = vmatpush1.msra.mxu0 %v8600
        %8627 = vmatprep.subr.mxu0 0.0
        %8628 = vmatpush1.msra.mxu0 %v8601
        %8629 = vmatprep.subr.mxu0 0.0
        %8630 = vmatpush1.msra.mxu0 %v8602
        %8631 = vmatprep.subr.mxu0 0.0
        %8632 = vmatpush1.msra.mxu0 %v8603
        %8633 = vmatprep.subr.mxu0 0.0
        %8634 = vmatpush1.msra.mxu0 %v8604
        %8635 = vmatprep.subr.mxu0 0.0
        %8636 = vmatpush1.msra.mxu0 %v8605
        %8637 = vmatprep.subr.mxu0 0.0
        %8638 = vmatpush1.msra.mxu0 %v8606
        %8639 = vmatprep.subr.mxu0 0.0
        %8640 = vmatpush1.msra.mxu0 0.0
        %8641 = vmatprep.subr.mxu0 0.0
        %8642 = vmatpush1.msra.mxu0 0.0
        %8643 = vmatprep.subr.mxu0 0.0
        %8644 = vmatpush1.msra.mxu0 0.0
        %8645 = vmatprep.subr.mxu0 0.0
        %8646 = vmatpush1.msra.mxu0 0.0
        %8647 = vmatprep.subr.mxu0 0.0
        %8648 = vmatpush1.msra.mxu0 0.0
        %8649 = vmatprep.subr.mxu0 0.0
        %8650 = vmatpush1.msra.mxu0 0.0
        %8651 = vmatprep.subr.mxu0 0.0
        %8652 = vmatpush1.msra.mxu0 0.0
        %8653 = vmatprep.subr.mxu0 0.0
        %8654 = vmatpush1.msra.mxu0 0.0
        %8655 = vmatprep.subr.mxu0 0.0
        %8656 = vmatpush1.msra.mxu0 0.0
        %8657 = vmatprep.subr.mxu0 0.0
        %8658 = vmatpush1.msra.mxu0 0.0
        %8659 = vmatprep.subr.mxu0 0.0
        %8660 = vmatpush1.msra.mxu0 0.0
        %8661 = vmatprep.subr.mxu0 0.0
        %8662 = vmatpush1.msra.mxu0 0.0
        %8663 = vmatprep.subr.mxu0 0.0
        %8664 = vmatpush1.msra.mxu0 0.0
        %8665 = vmatprep.subr.mxu0 0.0
        %8666 = vmatpush1.msra.mxu0 0.0
        %8667 = vmatprep.subr.mxu0 0.0
        %8668 = vmatpush1.msra.mxu0 0.0
        %8669 = vmatprep.subr.mxu0 0.0
        %8670 = vmatpush1.msra.mxu0 0.0
        %8671 = vmatprep.mubr.f32.mxu0 0.0
        %8672 = vmatmul.mubr.f32.gmra.mrb[0].mxu0 %v7709
        %v8673 = vpop.f32.mrb[0].mxu0
        %v8674 = vadd.f32 0.0, %v8673
        %v8675 = vpop.f32.mrb[0].mxu0
        %8676 = vmatprep.mubr.f32.mxu0 0.0
        %8677 = vmatmul.mubr.f32.gmra.mrb[0].mxu0 %v7714
        %v8678 = vpop.f32.mrb[0].mxu0
        %v8679 = vadd.f32 0.0, %v8678
        %v8680 = vpop.f32.mrb[0].mxu0
        %8681 = vmatprep.mubr.f32.mxu0 0.0
        %8682 = vmatmul.mubr.f32.gmra.mrb[0].mxu0 %v7719
        %v8683 = vpop.f32.mrb[0].mxu0
        %v8684 = vadd.f32 0.0, %v8683
        %v8685 = vpop.f32.mrb[0].mxu0
        %8686 = vmatprep.mubr.f32.mxu0 0.0
        %8687 = vmatmul.mubr.f32.gmra.mrb[0].mxu0 %v7724
        %v8688 = vpop.f32.mrb[0].mxu0
        %v8689 = vadd.f32 0.0, %v8688
        %v8690 = vpop.f32.mrb[0].mxu0
        %8691 = vmatprep.mubr.f32.mxu0 0.0
        %8692 = vmatmul.mubr.f32.gmra.mrb[0].mxu0 %v7729
        %v8693 = vpop.f32.mrb[0].mxu0
        %v8694 = vadd.f32 0.0, %v8693
        %v8695 = vpop.f32.mrb[0].mxu0
        %8696 = vmatprep.mubr.f32.mxu0 0.0
        %8697 = vmatmul.mubr.f32.gmra.mrb[0].mxu0 %v7734
        %v8698 = vpop.f32.mrb[0].mxu0
        %v8699 = vadd.f32 0.0, %v8698
        %v8700 = vpop.f32.mrb[0].mxu0
        %8701 = vmatprep.mubr.f32.mxu0 0.0
        %8702 = vmatmul.mubr.f32.gmra.mrb[0].mxu0 %v7739
        %v8703 = vpop.f32.mrb[0].mxu0
        %v8704 = vadd.f32 0.0, %v8703
        %v8705 = vpop.f32.mrb[0].mxu0
        %8706 = vmatprep.mubr.f32.mxu0 0.0
        %8707 = vmatmul.mubr.f32.gmra.mrb[0].mxu0 %v7744
        %v8708 = vpop.f32.mrb[0].mxu0
        %v8709 = vadd.f32 0.0, %v8708
        %v8710 = vpop.f32.mrb[0].mxu0
        %8711 = vmatprep.mubr.f32.mxu0 0.0
        %8712 = vmatmul.mubr.f32.gmra.mrb[0].mxu0 %v7749
        %v8713 = vpop.f32.mrb[0].mxu0
        %v8714 = vadd.f32 0.0, %v8713
        %v8715 = vpop.f32.mrb[0].mxu0
        %8716 = vmatprep.mubr.f32.mxu0 0.0
        %8717 = vmatmul.mubr.f32.gmra.mrb[0].mxu0 %v7754
        %v8718 = vpop.f32.mrb[0].mxu0
        %v8719 = vadd.f32 0.0, %v8718
        %v8720 = vpop.f32.mrb[0].mxu0
        %8721 = vmatprep.mubr.f32.mxu0 0.0
        %8722 = vmatmul.mubr.f32.gmra.mrb[0].mxu0 %v7759
        %v8723 = vpop.f32.mrb[0].mxu0
        %v8724 = vadd.f32 0.0, %v8723
        %v8725 = vpop.f32.mrb[0].mxu0
        %8726 = vmatprep.mubr.f32.mxu0 0.0
        %8727 = vmatmul.mubr.f32.gmra.mrb[0].mxu0 %v7764
        %v8728 = vpop.f32.mrb[0].mxu0
        %v8729 = vadd.f32 0.0, %v8728
        %v8730 = vpop.f32.mrb[0].mxu0
        %8731 = vmatprep.mubr.f32.mxu0 0.0
        %8732 = vmatmul.mubr.f32.gmra.mrb[0].mxu0 %v7769
        %v8733 = vpop.f32.mrb[0].mxu0
        %v8734 = vadd.f32 0.0, %v8733
        %v8735 = vpop.f32.mrb[0].mxu0
        %8736 = vmatprep.mubr.f32.mxu0 0.0
        %8737 = vmatmul.mubr.f32.gmra.mrb[0].mxu0 %v7774
        %v8738 = vpop.f32.mrb[0].mxu0
        %v8739 = vadd.f32 0.0, %v8738
        %v8740 = vpop.f32.mrb[0].mxu0
        %8741 = vmatprep.mubr.f32.mxu0 0.0
        %8742 = vmatmul.mubr.f32.gmra.mrb[0].mxu0 %v7779
        %v8743 = vpop.f32.mrb[0].mxu0
        %v8744 = vadd.f32 0.0, %v8743
        %v8745 = vpop.f32.mrb[0].mxu0
        %8746 = vmatprep.mubr.f32.mxu0 0.0
        %8747 = vmatmul.mubr.f32.gmra.mrb[0].mxu0 %v7784
        %v8748 = vpop.f32.mrb[0].mxu0
        %v8749 = vadd.f32 0.0, %v8748
        %v8750 = vpop.f32.mrb[0].mxu0
        %8751 = vdwg.mxu0
        %v8752 = vadd.f32 %v8512, %v8674
        %v8753 = vadd.f32 %v8517, %v8679
        %v8754 = vadd.f32 %v8522, %v8684
        %v8755 = vadd.f32 %v8527, %v8689
        %v8756 = vadd.f32 %v8532, %v8694
        %v8757 = vadd.f32 %v8537, %v8699
        %v8758 = vadd.f32 %v8542, %v8704
        %v8759 = vadd.f32 %v8547, %v8709
        %v8760 = vadd.f32 %v8552, %v8714
        %v8761 = vadd.f32 %v8557, %v8719
        %v8762 = vadd.f32 %v8562, %v8724
        %v8763 = vadd.f32 %v8567, %v8729
        %v8764 = vadd.f32 %v8572, %v8734
        %v8765 = vadd.f32 %v8577, %v8739
        %v8766 = vadd.f32 %v8582, %v8744
        %v8767 = vadd.f32 %v8587, %v8749
        %s8768 = scalar_lea.vmem %s4, 384
        %v8769 = vld [vmem:[%s8768] sm:$0xff]
        %v8770 = vld [vmem:[%s8768 + $0x8] sm:$0xff]
        %v8771 = vld [vmem:[%s8768 + $0x10] sm:$0xff]
        %v8772 = vld [vmem:[%s8768 + $0x18] sm:$0xff]
        %v8773 = vld [vmem:[%s8768 + $0x20] sm:$0xff]
        %v8774 = vld [vmem:[%s8768 + $0x28] sm:$0xff]
        %v8775 = vld [vmem:[%s8768 + $0x30] sm:$0xff]
        %v8776 = vld [vmem:[%s8768 + $0x38] sm:$0xff]
        %v8777 = vld [vmem:[%s8768 + $0x40] sm:$0xff]
        %v8778 = vld [vmem:[%s8768 + $0x48] sm:$0xff]
        %v8779 = vld [vmem:[%s8768 + $0x50] sm:$0xff]
        %v8780 = vld [vmem:[%s8768 + $0x58] sm:$0xff]
        %v8781 = vld [vmem:[%s8768 + $0x60] sm:$0xff]
        %v8782 = vld [vmem:[%s8768 + $0x68] sm:$0xff]
        %v8783 = vld [vmem:[%s8768 + $0x70] sm:$0xff]
        %v8784 = vld [vmem:[%s8768 + $0x78] sm:$0xff]
        %8785 = vmatprep.subr.mxu0 0.0
        %8786 = vmatpush1.msra.mxu0 %v8769
        %8787 = vmatprep.subr.mxu0 0.0
        %8788 = vmatpush1.msra.mxu0 %v8770
        %8789 = vmatprep.subr.mxu0 0.0
        %8790 = vmatpush1.msra.mxu0 %v8771
        %8791 = vmatprep.subr.mxu0 0.0
        %8792 = vmatpush1.msra.mxu0 %v8772
        %8793 = vmatprep.subr.mxu0 0.0
        %8794 = vmatpush1.msra.mxu0 %v8773
        %8795 = vmatprep.subr.mxu0 0.0
        %8796 = vmatpush1.msra.mxu0 %v8774
        %8797 = vmatprep.subr.mxu0 0.0
        %8798 = vmatpush1.msra.mxu0 %v8775
        %8799 = vmatprep.subr.mxu0 0.0
        %8800 = vmatpush1.msra.mxu0 %v8776
        %8801 = vmatprep.subr.mxu0 0.0
        %8802 = vmatpush1.msra.mxu0 %v8777
        %8803 = vmatprep.subr.mxu0 0.0
        %8804 = vmatpush1.msra.mxu0 %v8778
        %8805 = vmatprep.subr.mxu0 0.0
        %8806 = vmatpush1.msra.mxu0 %v8779
        %8807 = vmatprep.subr.mxu0 0.0
        %8808 = vmatpush1.msra.mxu0 %v8780
        %8809 = vmatprep.subr.mxu0 0.0
        %8810 = vmatpush1.msra.mxu0 %v8781
        %8811 = vmatprep.subr.mxu0 0.0
        %8812 = vmatpush1.msra.mxu0 %v8782
        %8813 = vmatprep.subr.mxu0 0.0
        %8814 = vmatpush1.msra.mxu0 %v8783
        %8815 = vmatprep.subr.mxu0 0.0
        %8816 = vmatpush1.msra.mxu0 %v8784
        %8817 = vmatprep.subr.mxu0 0.0
        %8818 = vmatpush1.msra.mxu0 0.0
        %8819 = vmatprep.subr.mxu0 0.0
        %8820 = vmatpush1.msra.mxu0 0.0
        %8821 = vmatprep.subr.mxu0 0.0
        %8822 = vmatpush1.msra.mxu0 0.0
        %8823 = vmatprep.subr.mxu0 0.0
        %8824 = vmatpush1.msra.mxu0 0.0
        %8825 = vmatprep.subr.mxu0 0.0
        %8826 = vmatpush1.msra.mxu0 0.0
        %8827 = vmatprep.subr.mxu0 0.0
        %8828 = vmatpush1.msra.mxu0 0.0
        %8829 = vmatprep.subr.mxu0 0.0
        %8830 = vmatpush1.msra.mxu0 0.0
        %8831 = vmatprep.subr.mxu0 0.0
        %8832 = vmatpush1.msra.mxu0 0.0
        %8833 = vmatprep.subr.mxu0 0.0
        %8834 = vmatpush1.msra.mxu0 0.0
        %8835 = vmatprep.subr.mxu0 0.0
        %8836 = vmatpush1.msra.mxu0 0.0
        %8837 = vmatprep.subr.mxu0 0.0
        %8838 = vmatpush1.msra.mxu0 0.0
        %8839 = vmatprep.subr.mxu0 0.0
        %8840 = vmatpush1.msra.mxu0 0.0
        %8841 = vmatprep.subr.mxu0 0.0
        %8842 = vmatpush1.msra.mxu0 0.0
        %8843 = vmatprep.subr.mxu0 0.0
        %8844 = vmatpush1.msra.mxu0 0.0
        %8845 = vmatprep.subr.mxu0 0.0
        %8846 = vmatpush1.msra.mxu0 0.0
        %8847 = vmatprep.subr.mxu0 0.0
        %8848 = vmatpush1.msra.mxu0 0.0
        %8849 = vmatprep.mubr.f32.mxu0 0.0
        %8850 = vmatmul.mubr.f32.gmra.mrb[0].mxu0 %v7789
        %v8851 = vpop.f32.mrb[0].mxu0
        %v8852 = vadd.f32 0.0, %v8851
        %v8853 = vpop.f32.mrb[0].mxu0
        %8854 = vmatprep.mubr.f32.mxu0 0.0
        %8855 = vmatmul.mubr.f32.gmra.mrb[0].mxu0 %v7794
        %v8856 = vpop.f32.mrb[0].mxu0
        %v8857 = vadd.f32 0.0, %v8856
        %v8858 = vpop.f32.mrb[0].mxu0
        %8859 = vmatprep.mubr.f32.mxu0 0.0
        %8860 = vmatmul.mubr.f32.gmra.mrb[0].mxu0 %v7799
        %v8861 = vpop.f32.mrb[0].mxu0
        %v8862 = vadd.f32 0.0, %v8861
        %v8863 = vpop.f32.mrb[0].mxu0
        %8864 = vmatprep.mubr.f32.mxu0 0.0
        %8865 = vmatmul.mubr.f32.gmra.mrb[0].mxu0 %v7804
        %v8866 = vpop.f32.mrb[0].mxu0
        %v8867 = vadd.f32 0.0, %v8866
        %v8868 = vpop.f32.mrb[0].mxu0
        %8869 = vmatprep.mubr.f32.mxu0 0.0
        %8870 = vmatmul.mubr.f32.gmra.mrb[0].mxu0 %v7809
        %v8871 = vpop.f32.mrb[0].mxu0
        %v8872 = vadd.f32 0.0, %v8871
        %v8873 = vpop.f32.mrb[0].mxu0
        %8874 = vmatprep.mubr.f32.mxu0 0.0
        %8875 = vmatmul.mubr.f32.gmra.mrb[0].mxu0 %v7814
        %v8876 = vpop.f32.mrb[0].mxu0
        %v8877 = vadd.f32 0.0, %v8876
        %v8878 = vpop.f32.mrb[0].mxu0
        %8879 = vmatprep.mubr.f32.mxu0 0.0
        %8880 = vmatmul.mubr.f32.gmra.mrb[0].mxu0 %v7819
        %v8881 = vpop.f32.mrb[0].mxu0
        %v8882 = vadd.f32 0.0, %v8881
        %v8883 = vpop.f32.mrb[0].mxu0
        %8884 = vmatprep.mubr.f32.mxu0 0.0
        %8885 = vmatmul.mubr.f32.gmra.mrb[0].mxu0 %v7824
        %v8886 = vpop.f32.mrb[0].mxu0
        %v8887 = vadd.f32 0.0, %v8886
        %v8888 = vpop.f32.mrb[0].mxu0
        %8889 = vmatprep.mubr.f32.mxu0 0.0
        %8890 = vmatmul.mubr.f32.gmra.mrb[0].mxu0 %v7829
        %v8891 = vpop.f32.mrb[0].mxu0
        %v8892 = vadd.f32 0.0, %v8891
        %v8893 = vpop.f32.mrb[0].mxu0
        %8894 = vmatprep.mubr.f32.mxu0 0.0
        %8895 = vmatmul.mubr.f32.gmra.mrb[0].mxu0 %v7834
        %v8896 = vpop.f32.mrb[0].mxu0
        %v8897 = vadd.f32 0.0, %v8896
        %v8898 = vpop.f32.mrb[0].mxu0
        %8899 = vmatprep.mubr.f32.mxu0 0.0
        %8900 = vmatmul.mubr.f32.gmra.mrb[0].mxu0 %v7839
        %v8901 = vpop.f32.mrb[0].mxu0
        %v8902 = vadd.f32 0.0, %v8901
        %v8903 = vpop.f32.mrb[0].mxu0
        %8904 = vmatprep.mubr.f32.mxu0 0.0
        %8905 = vmatmul.mubr.f32.gmra.mrb[0].mxu0 %v7844
        %v8906 = vpop.f32.mrb[0].mxu0
        %v8907 = vadd.f32 0.0, %v8906
        %v8908 = vpop.f32.mrb[0].mxu0
        %8909 = vmatprep.mubr.f32.mxu0 0.0
        %8910 = vmatmul.mubr.f32.gmra.mrb[0].mxu0 %v7849
        %v8911 = vpop.f32.mrb[0].mxu0
        %v8912 = vadd.f32 0.0, %v8911
        %v8913 = vpop.f32.mrb[0].mxu0
        %8914 = vmatprep.mubr.f32.mxu0 0.0
        %8915 = vmatmul.mubr.f32.gmra.mrb[0].mxu0 %v7854
        %v8916 = vpop.f32.mrb[0].mxu0
        %v8917 = vadd.f32 0.0, %v8916
        %v8918 = vpop.f32.mrb[0].mxu0
        %8919 = vmatprep.mubr.f32.mxu0 0.0
        %8920 = vmatmul.mubr.f32.gmra.mrb[0].mxu0 %v7859
        %v8921 = vpop.f32.mrb[0].mxu0
        %v8922 = vadd.f32 0.0, %v8921
        %v8923 = vpop.f32.mrb[0].mxu0
        %8924 = vmatprep.mubr.f32.mxu0 0.0
        %8925 = vmatmul.mubr.f32.gmra.mrb[0].mxu0 %v7864
        %v8926 = vpop.f32.mrb[0].mxu0
        %v8927 = vadd.f32 0.0, %v8926
        %v8928 = vpop.f32.mrb[0].mxu0
        %8929 = vdwg.mxu0
        %v8930 = vadd.f32 %v8752, %v8852
        %v8931 = vadd.f32 %v8753, %v8857
        %v8932 = vadd.f32 %v8754, %v8862
        %v8933 = vadd.f32 %v8755, %v8867
        %v8934 = vadd.f32 %v8756, %v8872
        %v8935 = vadd.f32 %v8757, %v8877
        %v8936 = vadd.f32 %v8758, %v8882
        %v8937 = vadd.f32 %v8759, %v8887
        %v8938 = vadd.f32 %v8760, %v8892
        %v8939 = vadd.f32 %v8761, %v8897
        %v8940 = vadd.f32 %v8762, %v8902
        %v8941 = vadd.f32 %v8763, %v8907
        %v8942 = vadd.f32 %v8764, %v8912
        %v8943 = vadd.f32 %v8765, %v8917
        %v8944 = vadd.f32 %v8766, %v8922
        %v8945 = vadd.f32 %v8767, %v8927
        %s8946 = scalar_lea.vmem %s4, 512
        %v8947 = vld [vmem:[%s8946] sm:$0xff]
        %v8948 = vld [vmem:[%s8946 + $0x8] sm:$0xff]
        %v8949 = vld [vmem:[%s8946 + $0x10] sm:$0xff]
        %v8950 = vld [vmem:[%s8946 + $0x18] sm:$0xff]
        %v8951 = vld [vmem:[%s8946 + $0x20] sm:$0xff]
        %v8952 = vld [vmem:[%s8946 + $0x28] sm:$0xff]
        %v8953 = vld [vmem:[%s8946 + $0x30] sm:$0xff]
        %v8954 = vld [vmem:[%s8946 + $0x38] sm:$0xff]
        %v8955 = vld [vmem:[%s8946 + $0x40] sm:$0xff]
        %v8956 = vld [vmem:[%s8946 + $0x48] sm:$0xff]
        %v8957 = vld [vmem:[%s8946 + $0x50] sm:$0xff]
        %v8958 = vld [vmem:[%s8946 + $0x58] sm:$0xff]
        %v8959 = vld [vmem:[%s8946 + $0x60] sm:$0xff]
        %v8960 = vld [vmem:[%s8946 + $0x68] sm:$0xff]
        %v8961 = vld [vmem:[%s8946 + $0x70] sm:$0xff]
        %v8962 = vld [vmem:[%s8946 + $0x78] sm:$0xff]
        %8963 = vmatprep.subr.mxu0 0.0
        %8964 = vmatpush1.msra.mxu0 %v8947
        %8965 = vmatprep.subr.mxu0 0.0
        %8966 = vmatpush1.msra.mxu0 %v8948
        %8967 = vmatprep.subr.mxu0 0.0
        %8968 = vmatpush1.msra.mxu0 %v8949
        %8969 = vmatprep.subr.mxu0 0.0
        %8970 = vmatpush1.msra.mxu0 %v8950
        %8971 = vmatprep.subr.mxu0 0.0
        %8972 = vmatpush1.msra.mxu0 %v8951
        %8973 = vmatprep.subr.mxu0 0.0
        %8974 = vmatpush1.msra.mxu0 %v8952
        %8975 = vmatprep.subr.mxu0 0.0
        %8976 = vmatpush1.msra.mxu0 %v8953
        %8977 = vmatprep.subr.mxu0 0.0
        %8978 = vmatpush1.msra.mxu0 %v8954
        %8979 = vmatprep.subr.mxu0 0.0
        %8980 = vmatpush1.msra.mxu0 %v8955
        %8981 = vmatprep.subr.mxu0 0.0
        %8982 = vmatpush1.msra.mxu0 %v8956
        %8983 = vmatprep.subr.mxu0 0.0
        %8984 = vmatpush1.msra.mxu0 %v8957
        %8985 = vmatprep.subr.mxu0 0.0
        %8986 = vmatpush1.msra.mxu0 %v8958
        %8987 = vmatprep.subr.mxu0 0.0
        %8988 = vmatpush1.msra.mxu0 %v8959
        %8989 = vmatprep.subr.mxu0 0.0
        %8990 = vmatpush1.msra.mxu0 %v8960
        %8991 = vmatprep.subr.mxu0 0.0
        %8992 = vmatpush1.msra.mxu0 %v8961
        %8993 = vmatprep.subr.mxu0 0.0
        %8994 = vmatpush1.msra.mxu0 %v8962
        %8995 = vmatprep.subr.mxu0 0.0
        %8996 = vmatpush1.msra.mxu0 0.0
        %8997 = vmatprep.subr.mxu0 0.0
        %8998 = vmatpush1.msra.mxu0 0.0
        %8999 = vmatprep.subr.mxu0 0.0
        %9000 = vmatpush1.msra.mxu0 0.0
        %9001 = vmatprep.subr.mxu0 0.0
        %9002 = vmatpush1.msra.mxu0 0.0
        %9003 = vmatprep.subr.mxu0 0.0
        %9004 = vmatpush1.msra.mxu0 0.0
        %9005 = vmatprep.subr.mxu0 0.0
        %9006 = vmatpush1.msra.mxu0 0.0
        %9007 = vmatprep.subr.mxu0 0.0
        %9008 = vmatpush1.msra.mxu0 0.0
        %9009 = vmatprep.subr.mxu0 0.0
        %9010 = vmatpush1.msra.mxu0 0.0
        %9011 = vmatprep.subr.mxu0 0.0
        %9012 = vmatpush1.msra.mxu0 0.0
        %9013 = vmatprep.subr.mxu0 0.0
        %9014 = vmatpush1.msra.mxu0 0.0
        %9015 = vmatprep.subr.mxu0 0.0
        %9016 = vmatpush1.msra.mxu0 0.0
        %9017 = vmatprep.subr.mxu0 0.0
        %9018 = vmatpush1.msra.mxu0 0.0
        %9019 = vmatprep.subr.mxu0 0.0
        %9020 = vmatpush1.msra.mxu0 0.0
        %9021 = vmatprep.subr.mxu0 0.0
        %9022 = vmatpush1.msra.mxu0 0.0
        %9023 = vmatprep.subr.mxu0 0.0
        %9024 = vmatpush1.msra.mxu0 0.0
        %9025 = vmatprep.subr.mxu0 0.0
        %9026 = vmatpush1.msra.mxu0 0.0
        %9027 = vmatprep.mubr.f32.mxu0 0.0
        %9028 = vmatmul.mubr.f32.gmra.mrb[0].mxu0 %v7869
        %v9029 = vpop.f32.mrb[0].mxu0
        %v9030 = vadd.f32 0.0, %v9029
        %v9031 = vpop.f32.mrb[0].mxu0
        %9032 = vmatprep.mubr.f32.mxu0 0.0
        %9033 = vmatmul.mubr.f32.gmra.mrb[0].mxu0 %v7874
        %v9034 = vpop.f32.mrb[0].mxu0
        %v9035 = vadd.f32 0.0, %v9034
        %v9036 = vpop.f32.mrb[0].mxu0
        %9037 = vmatprep.mubr.f32.mxu0 0.0
        %9038 = vmatmul.mubr.f32.gmra.mrb[0].mxu0 %v7879
        %v9039 = vpop.f32.mrb[0].mxu0
        %v9040 = vadd.f32 0.0, %v9039
        %v9041 = vpop.f32.mrb[0].mxu0
        %9042 = vmatprep.mubr.f32.mxu0 0.0
        %9043 = vmatmul.mubr.f32.gmra.mrb[0].mxu0 %v7884
        %v9044 = vpop.f32.mrb[0].mxu0
        %v9045 = vadd.f32 0.0, %v9044
        %v9046 = vpop.f32.mrb[0].mxu0
        %9047 = vmatprep.mubr.f32.mxu0 0.0
        %9048 = vmatmul.mubr.f32.gmra.mrb[0].mxu0 %v7889
        %v9049 = vpop.f32.mrb[0].mxu0
        %v9050 = vadd.f32 0.0, %v9049
        %v9051 = vpop.f32.mrb[0].mxu0
        %9052 = vmatprep.mubr.f32.mxu0 0.0
        %9053 = vmatmul.mubr.f32.gmra.mrb[0].mxu0 %v7894
        %v9054 = vpop.f32.mrb[0].mxu0
        %v9055 = vadd.f32 0.0, %v9054
        %v9056 = vpop.f32.mrb[0].mxu0
        %9057 = vmatprep.mubr.f32.mxu0 0.0
        %9058 = vmatmul.mubr.f32.gmra.mrb[0].mxu0 %v7899
        %v9059 = vpop.f32.mrb[0].mxu0
        %v9060 = vadd.f32 0.0, %v9059
        %v9061 = vpop.f32.mrb[0].mxu0
        %9062 = vmatprep.mubr.f32.mxu0 0.0
        %9063 = vmatmul.mubr.f32.gmra.mrb[0].mxu0 %v7904
        %v9064 = vpop.f32.mrb[0].mxu0
        %v9065 = vadd.f32 0.0, %v9064
        %v9066 = vpop.f32.mrb[0].mxu0
        %9067 = vmatprep.mubr.f32.mxu0 0.0
        %9068 = vmatmul.mubr.f32.gmra.mrb[0].mxu0 %v7909
        %v9069 = vpop.f32.mrb[0].mxu0
        %v9070 = vadd.f32 0.0, %v9069
        %v9071 = vpop.f32.mrb[0].mxu0
        %9072 = vmatprep.mubr.f32.mxu0 0.0
        %9073 = vmatmul.mubr.f32.gmra.mrb[0].mxu0 %v7914
        %v9074 = vpop.f32.mrb[0].mxu0
        %v9075 = vadd.f32 0.0, %v9074
        %v9076 = vpop.f32.mrb[0].mxu0
        %9077 = vmatprep.mubr.f32.mxu0 0.0
        %9078 = vmatmul.mubr.f32.gmra.mrb[0].mxu0 %v7919
        %v9079 = vpop.f32.mrb[0].mxu0
        %v9080 = vadd.f32 0.0, %v9079
        %v9081 = vpop.f32.mrb[0].mxu0
        %9082 = vmatprep.mubr.f32.mxu0 0.0
        %9083 = vmatmul.mubr.f32.gmra.mrb[0].mxu0 %v7924
        %v9084 = vpop.f32.mrb[0].mxu0
        %v9085 = vadd.f32 0.0, %v9084
        %v9086 = vpop.f32.mrb[0].mxu0
        %9087 = vmatprep.mubr.f32.mxu0 0.0
        %9088 = vmatmul.mubr.f32.gmra.mrb[0].mxu0 %v7929
        %v9089 = vpop.f32.mrb[0].mxu0
        %v9090 = vadd.f32 0.0, %v9089
        %v9091 = vpop.f32.mrb[0].mxu0
        %9092 = vmatprep.mubr.f32.mxu0 0.0
        %9093 = vmatmul.mubr.f32.gmra.mrb[0].mxu0 %v7934
        %v9094 = vpop.f32.mrb[0].mxu0
        %v9095 = vadd.f32 0.0, %v9094
        %v9096 = vpop.f32.mrb[0].mxu0
        %9097 = vmatprep.mubr.f32.mxu0 0.0
        %9098 = vmatmul.mubr.f32.gmra.mrb[0].mxu0 %v7939
        %v9099 = vpop.f32.mrb[0].mxu0
        %v9100 = vadd.f32 0.0, %v9099
        %v9101 = vpop.f32.mrb[0].mxu0
        %9102 = vmatprep.mubr.f32.mxu0 0.0
        %9103 = vmatmul.mubr.f32.gmra.mrb[0].mxu0 %v7944
        %v9104 = vpop.f32.mrb[0].mxu0
        %v9105 = vadd.f32 0.0, %v9104
        %v9106 = vpop.f32.mrb[0].mxu0
        %9107 = vdwg.mxu0
        %v9108 = vadd.f32 %v8930, %v9030
        %v9109 = vadd.f32 %v8931, %v9035
        %v9110 = vadd.f32 %v8932, %v9040
        %v9111 = vadd.f32 %v8933, %v9045
        %v9112 = vadd.f32 %v8934, %v9050
        %v9113 = vadd.f32 %v8935, %v9055
        %v9114 = vadd.f32 %v8936, %v9060
        %v9115 = vadd.f32 %v8937, %v9065
        %v9116 = vadd.f32 %v8938, %v9070
        %v9117 = vadd.f32 %v8939, %v9075
        %v9118 = vadd.f32 %v8940, %v9080
        %v9119 = vadd.f32 %v8941, %v9085
        %v9120 = vadd.f32 %v8942, %v9090
        %v9121 = vadd.f32 %v8943, %v9095
        %v9122 = vadd.f32 %v8944, %v9100
        %v9123 = vadd.f32 %v8945, %v9105
        %s9124 = scalar_lea.vmem %s4, 640
        %v9125 = vld [vmem:[%s9124] sm:$0xff]
        %v9126 = vld [vmem:[%s9124 + $0x8] sm:$0xff]
        %v9127 = vld [vmem:[%s9124 + $0x10] sm:$0xff]
        %v9128 = vld [vmem:[%s9124 + $0x18] sm:$0xff]
        %v9129 = vld [vmem:[%s9124 + $0x20] sm:$0xff]
        %v9130 = vld [vmem:[%s9124 + $0x28] sm:$0xff]
        %v9131 = vld [vmem:[%s9124 + $0x30] sm:$0xff]
        %v9132 = vld [vmem:[%s9124 + $0x38] sm:$0xff]
        %v9133 = vld [vmem:[%s9124 + $0x40] sm:$0xff]
        %v9134 = vld [vmem:[%s9124 + $0x48] sm:$0xff]
        %v9135 = vld [vmem:[%s9124 + $0x50] sm:$0xff]
        %v9136 = vld [vmem:[%s9124 + $0x58] sm:$0xff]
        %v9137 = vld [vmem:[%s9124 + $0x60] sm:$0xff]
        %v9138 = vld [vmem:[%s9124 + $0x68] sm:$0xff]
        %v9139 = vld [vmem:[%s9124 + $0x70] sm:$0xff]
        %v9140 = vld [vmem:[%s9124 + $0x78] sm:$0xff]
        %9141 = vmatprep.subr.mxu0 0.0
        %9142 = vmatpush1.msra.mxu0 %v9125
        %9143 = vmatprep.subr.mxu0 0.0
        %9144 = vmatpush1.msra.mxu0 %v9126
        %9145 = vmatprep.subr.mxu0 0.0
        %9146 = vmatpush1.msra.mxu0 %v9127
        %9147 = vmatprep.subr.mxu0 0.0
        %9148 = vmatpush1.msra.mxu0 %v9128
        %9149 = vmatprep.subr.mxu0 0.0
        %9150 = vmatpush1.msra.mxu0 %v9129
        %9151 = vmatprep.subr.mxu0 0.0
        %9152 = vmatpush1.msra.mxu0 %v9130
        %9153 = vmatprep.subr.mxu0 0.0
        %9154 = vmatpush1.msra.mxu0 %v9131
        %9155 = vmatprep.subr.mxu0 0.0
        %9156 = vmatpush1.msra.mxu0 %v9132
        %9157 = vmatprep.subr.mxu0 0.0
        %9158 = vmatpush1.msra.mxu0 %v9133
        %9159 = vmatprep.subr.mxu0 0.0
        %9160 = vmatpush1.msra.mxu0 %v9134
        %9161 = vmatprep.subr.mxu0 0.0
        %9162 = vmatpush1.msra.mxu0 %v9135
        %9163 = vmatprep.subr.mxu0 0.0
        %9164 = vmatpush1.msra.mxu0 %v9136
        %9165 = vmatprep.subr.mxu0 0.0
        %9166 = vmatpush1.msra.mxu0 %v9137
        %9167 = vmatprep.subr.mxu0 0.0
        %9168 = vmatpush1.msra.mxu0 %v9138
        %9169 = vmatprep.subr.mxu0 0.0
        %9170 = vmatpush1.msra.mxu0 %v9139
        %9171 = vmatprep.subr.mxu0 0.0
        %9172 = vmatpush1.msra.mxu0 %v9140
        %9173 = vmatprep.subr.mxu0 0.0
        %9174 = vmatpush1.msra.mxu0 0.0
        %9175 = vmatprep.subr.mxu0 0.0
        %9176 = vmatpush1.msra.mxu0 0.0
        %9177 = vmatprep.subr.mxu0 0.0
        %9178 = vmatpush1.msra.mxu0 0.0
        %9179 = vmatprep.subr.mxu0 0.0
        %9180 = vmatpush1.msra.mxu0 0.0
        %9181 = vmatprep.subr.mxu0 0.0
        %9182 = vmatpush1.msra.mxu0 0.0
        %9183 = vmatprep.subr.mxu0 0.0
        %9184 = vmatpush1.msra.mxu0 0.0
        %9185 = vmatprep.subr.mxu0 0.0
        %9186 = vmatpush1.msra.mxu0 0.0
        %9187 = vmatprep.subr.mxu0 0.0
        %9188 = vmatpush1.msra.mxu0 0.0
        %9189 = vmatprep.subr.mxu0 0.0
        %9190 = vmatpush1.msra.mxu0 0.0
        %9191 = vmatprep.subr.mxu0 0.0
        %9192 = vmatpush1.msra.mxu0 0.0
        %9193 = vmatprep.subr.mxu0 0.0
        %9194 = vmatpush1.msra.mxu0 0.0
        %9195 = vmatprep.subr.mxu0 0.0
        %9196 = vmatpush1.msra.mxu0 0.0
        %9197 = vmatprep.subr.mxu0 0.0
        %9198 = vmatpush1.msra.mxu0 0.0
        %9199 = vmatprep.subr.mxu0 0.0
        %9200 = vmatpush1.msra.mxu0 0.0
        %9201 = vmatprep.subr.mxu0 0.0
        %9202 = vmatpush1.msra.mxu0 0.0
        %9203 = vmatprep.subr.mxu0 0.0
        %9204 = vmatpush1.msra.mxu0 0.0
        %9205 = vmatprep.mubr.f32.mxu0 0.0
        %9206 = vmatmul.mubr.f32.gmra.mrb[0].mxu0 %v7949
        %v9207 = vpop.f32.mrb[0].mxu0
        %v9208 = vadd.f32 0.0, %v9207
        %v9209 = vpop.f32.mrb[0].mxu0
        %9210 = vmatprep.mubr.f32.mxu0 0.0
        %9211 = vmatmul.mubr.f32.gmra.mrb[0].mxu0 %v7954
        %v9212 = vpop.f32.mrb[0].mxu0
        %v9213 = vadd.f32 0.0, %v9212
        %v9214 = vpop.f32.mrb[0].mxu0
        %9215 = vmatprep.mubr.f32.mxu0 0.0
        %9216 = vmatmul.mubr.f32.gmra.mrb[0].mxu0 %v7959
        %v9217 = vpop.f32.mrb[0].mxu0
        %v9218 = vadd.f32 0.0, %v9217
        %v9219 = vpop.f32.mrb[0].mxu0
        %9220 = vmatprep.mubr.f32.mxu0 0.0
        %9221 = vmatmul.mubr.f32.gmra.mrb[0].mxu0 %v7964
        %v9222 = vpop.f32.mrb[0].mxu0
        %v9223 = vadd.f32 0.0, %v9222
        %v9224 = vpop.f32.mrb[0].mxu0
        %9225 = vmatprep.mubr.f32.mxu0 0.0
        %9226 = vmatmul.mubr.f32.gmra.mrb[0].mxu0 %v7969
        %v9227 = vpop.f32.mrb[0].mxu0
        %v9228 = vadd.f32 0.0, %v9227
        %v9229 = vpop.f32.mrb[0].mxu0
        %9230 = vmatprep.mubr.f32.mxu0 0.0
        %9231 = vmatmul.mubr.f32.gmra.mrb[0].mxu0 %v7974
        %v9232 = vpop.f32.mrb[0].mxu0
        %v9233 = vadd.f32 0.0, %v9232
        %v9234 = vpop.f32.mrb[0].mxu0
        %9235 = vmatprep.mubr.f32.mxu0 0.0
        %9236 = vmatmul.mubr.f32.gmra.mrb[0].mxu0 %v7979
        %v9237 = vpop.f32.mrb[0].mxu0
        %v9238 = vadd.f32 0.0, %v9237
        %v9239 = vpop.f32.mrb[0].mxu0
        %9240 = vmatprep.mubr.f32.mxu0 0.0
        %9241 = vmatmul.mubr.f32.gmra.mrb[0].mxu0 %v7984
        %v9242 = vpop.f32.mrb[0].mxu0
        %v9243 = vadd.f32 0.0, %v9242
        %v9244 = vpop.f32.mrb[0].mxu0
        %9245 = vmatprep.mubr.f32.mxu0 0.0
        %9246 = vmatmul.mubr.f32.gmra.mrb[0].mxu0 %v7989
        %v9247 = vpop.f32.mrb[0].mxu0
        %v9248 = vadd.f32 0.0, %v9247
        %v9249 = vpop.f32.mrb[0].mxu0
        %9250 = vmatprep.mubr.f32.mxu0 0.0
        %9251 = vmatmul.mubr.f32.gmra.mrb[0].mxu0 %v7994
        %v9252 = vpop.f32.mrb[0].mxu0
        %v9253 = vadd.f32 0.0, %v9252
        %v9254 = vpop.f32.mrb[0].mxu0
        %9255 = vmatprep.mubr.f32.mxu0 0.0
        %9256 = vmatmul.mubr.f32.gmra.mrb[0].mxu0 %v7999
        %v9257 = vpop.f32.mrb[0].mxu0
        %v9258 = vadd.f32 0.0, %v9257
        %v9259 = vpop.f32.mrb[0].mxu0
        %9260 = vmatprep.mubr.f32.mxu0 0.0
        %9261 = vmatmul.mubr.f32.gmra.mrb[0].mxu0 %v8004
        %v9262 = vpop.f32.mrb[0].mxu0
        %v9263 = vadd.f32 0.0, %v9262
        %v9264 = vpop.f32.mrb[0].mxu0
        %9265 = vmatprep.mubr.f32.mxu0 0.0
        %9266 = vmatmul.mubr.f32.gmra.mrb[0].mxu0 %v8009
        %v9267 = vpop.f32.mrb[0].mxu0
        %v9268 = vadd.f32 0.0, %v9267
        %v9269 = vpop.f32.mrb[0].mxu0
        %9270 = vmatprep.mubr.f32.mxu0 0.0
        %9271 = vmatmul.mubr.f32.gmra.mrb[0].mxu0 %v8014
        %v9272 = vpop.f32.mrb[0].mxu0
        %v9273 = vadd.f32 0.0, %v9272
        %v9274 = vpop.f32.mrb[0].mxu0
        %9275 = vmatprep.mubr.f32.mxu0 0.0
        %9276 = vmatmul.mubr.f32.gmra.mrb[0].mxu0 %v8019
        %v9277 = vpop.f32.mrb[0].mxu0
        %v9278 = vadd.f32 0.0, %v9277
        %v9279 = vpop.f32.mrb[0].mxu0
        %9280 = vmatprep.mubr.f32.mxu0 0.0
        %9281 = vmatmul.mubr.f32.gmra.mrb[0].mxu0 %v8024
        %v9282 = vpop.f32.mrb[0].mxu0
        %v9283 = vadd.f32 0.0, %v9282
        %v9284 = vpop.f32.mrb[0].mxu0
        %9285 = vdwg.mxu0
        %v9286 = vadd.f32 %v9108, %v9208
        %v9287 = vadd.f32 %v9109, %v9213
        %v9288 = vadd.f32 %v9110, %v9218
        %v9289 = vadd.f32 %v9111, %v9223
        %v9290 = vadd.f32 %v9112, %v9228
        %v9291 = vadd.f32 %v9113, %v9233
        %v9292 = vadd.f32 %v9114, %v9238
        %v9293 = vadd.f32 %v9115, %v9243
        %v9294 = vadd.f32 %v9116, %v9248
        %v9295 = vadd.f32 %v9117, %v9253
        %v9296 = vadd.f32 %v9118, %v9258
        %v9297 = vadd.f32 %v9119, %v9263
        %v9298 = vadd.f32 %v9120, %v9268
        %v9299 = vadd.f32 %v9121, %v9273
        %v9300 = vadd.f32 %v9122, %v9278
        %v9301 = vadd.f32 %v9123, %v9283
        %s9302 = scalar_lea.vmem %s4, 768
        %v9303 = vld [vmem:[%s9302] sm:$0xff]
        %v9304 = vld [vmem:[%s9302 + $0x8] sm:$0xff]
        %v9305 = vld [vmem:[%s9302 + $0x10] sm:$0xff]
        %v9306 = vld [vmem:[%s9302 + $0x18] sm:$0xff]
        %v9307 = vld [vmem:[%s9302 + $0x20] sm:$0xff]
        %v9308 = vld [vmem:[%s9302 + $0x28] sm:$0xff]
        %v9309 = vld [vmem:[%s9302 + $0x30] sm:$0xff]
        %v9310 = vld [vmem:[%s9302 + $0x38] sm:$0xff]
        %v9311 = vld [vmem:[%s9302 + $0x40] sm:$0xff]
        %v9312 = vld [vmem:[%s9302 + $0x48] sm:$0xff]
        %v9313 = vld [vmem:[%s9302 + $0x50] sm:$0xff]
        %v9314 = vld [vmem:[%s9302 + $0x58] sm:$0xff]
        %v9315 = vld [vmem:[%s9302 + $0x60] sm:$0xff]
        %v9316 = vld [vmem:[%s9302 + $0x68] sm:$0xff]
        %v9317 = vld [vmem:[%s9302 + $0x70] sm:$0xff]
        %v9318 = vld [vmem:[%s9302 + $0x78] sm:$0xff]
        %9319 = vmatprep.subr.mxu0 0.0
        %9320 = vmatpush1.msra.mxu0 %v9303
        %9321 = vmatprep.subr.mxu0 0.0
        %9322 = vmatpush1.msra.mxu0 %v9304
        %9323 = vmatprep.subr.mxu0 0.0
        %9324 = vmatpush1.msra.mxu0 %v9305
        %9325 = vmatprep.subr.mxu0 0.0
        %9326 = vmatpush1.msra.mxu0 %v9306
        %9327 = vmatprep.subr.mxu0 0.0
        %9328 = vmatpush1.msra.mxu0 %v9307
        %9329 = vmatprep.subr.mxu0 0.0
        %9330 = vmatpush1.msra.mxu0 %v9308
        %9331 = vmatprep.subr.mxu0 0.0
        %9332 = vmatpush1.msra.mxu0 %v9309
        %9333 = vmatprep.subr.mxu0 0.0
        %9334 = vmatpush1.msra.mxu0 %v9310
        %9335 = vmatprep.subr.mxu0 0.0
        %9336 = vmatpush1.msra.mxu0 %v9311
        %9337 = vmatprep.subr.mxu0 0.0
        %9338 = vmatpush1.msra.mxu0 %v9312
        %9339 = vmatprep.subr.mxu0 0.0
        %9340 = vmatpush1.msra.mxu0 %v9313
        %9341 = vmatprep.subr.mxu0 0.0
        %9342 = vmatpush1.msra.mxu0 %v9314
        %9343 = vmatprep.subr.mxu0 0.0
        %9344 = vmatpush1.msra.mxu0 %v9315
        %9345 = vmatprep.subr.mxu0 0.0
        %9346 = vmatpush1.msra.mxu0 %v9316
        %9347 = vmatprep.subr.mxu0 0.0
        %9348 = vmatpush1.msra.mxu0 %v9317
        %9349 = vmatprep.subr.mxu0 0.0
        %9350 = vmatpush1.msra.mxu0 %v9318
        %9351 = vmatprep.subr.mxu0 0.0
        %9352 = vmatpush1.msra.mxu0 0.0
        %9353 = vmatprep.subr.mxu0 0.0
        %9354 = vmatpush1.msra.mxu0 0.0
        %9355 = vmatprep.subr.mxu0 0.0
        %9356 = vmatpush1.msra.mxu0 0.0
        %9357 = vmatprep.subr.mxu0 0.0
        %9358 = vmatpush1.msra.mxu0 0.0
        %9359 = vmatprep.subr.mxu0 0.0
        %9360 = vmatpush1.msra.mxu0 0.0
        %9361 = vmatprep.subr.mxu0 0.0
        %9362 = vmatpush1.msra.mxu0 0.0
        %9363 = vmatprep.subr.mxu0 0.0
        %9364 = vmatpush1.msra.mxu0 0.0
        %9365 = vmatprep.subr.mxu0 0.0
        %9366 = vmatpush1.msra.mxu0 0.0
        %9367 = vmatprep.subr.mxu0 0.0
        %9368 = vmatpush1.msra.mxu0 0.0
        %9369 = vmatprep.subr.mxu0 0.0
        %9370 = vmatpush1.msra.mxu0 0.0
        %9371 = vmatprep.subr.mxu0 0.0
        %9372 = vmatpush1.msra.mxu0 0.0
        %9373 = vmatprep.subr.mxu0 0.0
        %9374 = vmatpush1.msra.mxu0 0.0
        %9375 = vmatprep.subr.mxu0 0.0
        %9376 = vmatpush1.msra.mxu0 0.0
        %9377 = vmatprep.subr.mxu0 0.0
        %9378 = vmatpush1.msra.mxu0 0.0
        %9379 = vmatprep.subr.mxu0 0.0
        %9380 = vmatpush1.msra.mxu0 0.0
        %9381 = vmatprep.subr.mxu0 0.0
        %9382 = vmatpush1.msra.mxu0 0.0
        %9383 = vmatprep.mubr.f32.mxu0 0.0
        %9384 = vmatmul.mubr.f32.gmra.mrb[0].mxu0 %v8029
        %v9385 = vpop.f32.mrb[0].mxu0
        %v9386 = vadd.f32 0.0, %v9385
        %v9387 = vpop.f32.mrb[0].mxu0
        %9388 = vmatprep.mubr.f32.mxu0 0.0
        %9389 = vmatmul.mubr.f32.gmra.mrb[0].mxu0 %v8034
        %v9390 = vpop.f32.mrb[0].mxu0
        %v9391 = vadd.f32 0.0, %v9390
        %v9392 = vpop.f32.mrb[0].mxu0
        %9393 = vmatprep.mubr.f32.mxu0 0.0
        %9394 = vmatmul.mubr.f32.gmra.mrb[0].mxu0 %v8039
        %v9395 = vpop.f32.mrb[0].mxu0
        %v9396 = vadd.f32 0.0, %v9395
        %v9397 = vpop.f32.mrb[0].mxu0
        %9398 = vmatprep.mubr.f32.mxu0 0.0
        %9399 = vmatmul.mubr.f32.gmra.mrb[0].mxu0 %v8044
        %v9400 = vpop.f32.mrb[0].mxu0
        %v9401 = vadd.f32 0.0, %v9400
        %v9402 = vpop.f32.mrb[0].mxu0
        %9403 = vmatprep.mubr.f32.mxu0 0.0
        %9404 = vmatmul.mubr.f32.gmra.mrb[0].mxu0 %v8049
        %v9405 = vpop.f32.mrb[0].mxu0
        %v9406 = vadd.f32 0.0, %v9405
        %v9407 = vpop.f32.mrb[0].mxu0
        %9408 = vmatprep.mubr.f32.mxu0 0.0
        %9409 = vmatmul.mubr.f32.gmra.mrb[0].mxu0 %v8054
        %v9410 = vpop.f32.mrb[0].mxu0
        %v9411 = vadd.f32 0.0, %v9410
        %v9412 = vpop.f32.mrb[0].mxu0
        %9413 = vmatprep.mubr.f32.mxu0 0.0
        %9414 = vmatmul.mubr.f32.gmra.mrb[0].mxu0 %v8059
        %v9415 = vpop.f32.mrb[0].mxu0
        %v9416 = vadd.f32 0.0, %v9415
        %v9417 = vpop.f32.mrb[0].mxu0
        %9418 = vmatprep.mubr.f32.mxu0 0.0
        %9419 = vmatmul.mubr.f32.gmra.mrb[0].mxu0 %v8064
        %v9420 = vpop.f32.mrb[0].mxu0
        %v9421 = vadd.f32 0.0, %v9420
        %v9422 = vpop.f32.mrb[0].mxu0
        %9423 = vmatprep.mubr.f32.mxu0 0.0
        %9424 = vmatmul.mubr.f32.gmra.mrb[0].mxu0 %v8069
        %v9425 = vpop.f32.mrb[0].mxu0
        %v9426 = vadd.f32 0.0, %v9425
        %v9427 = vpop.f32.mrb[0].mxu0
        %9428 = vmatprep.mubr.f32.mxu0 0.0
        %9429 = vmatmul.mubr.f32.gmra.mrb[0].mxu0 %v8074
        %v9430 = vpop.f32.mrb[0].mxu0
        %v9431 = vadd.f32 0.0, %v9430
        %v9432 = vpop.f32.mrb[0].mxu0
        %9433 = vmatprep.mubr.f32.mxu0 0.0
        %9434 = vmatmul.mubr.f32.gmra.mrb[0].mxu0 %v8079
        %v9435 = vpop.f32.mrb[0].mxu0
        %v9436 = vadd.f32 0.0, %v9435
        %v9437 = vpop.f32.mrb[0].mxu0
        %9438 = vmatprep.mubr.f32.mxu0 0.0
        %9439 = vmatmul.mubr.f32.gmra.mrb[0].mxu0 %v8084
        %v9440 = vpop.f32.mrb[0].mxu0
        %v9441 = vadd.f32 0.0, %v9440
        %v9442 = vpop.f32.mrb[0].mxu0
        %9443 = vmatprep.mubr.f32.mxu0 0.0
        %9444 = vmatmul.mubr.f32.gmra.mrb[0].mxu0 %v8089
        %v9445 = vpop.f32.mrb[0].mxu0
        %v9446 = vadd.f32 0.0, %v9445
        %v9447 = vpop.f32.mrb[0].mxu0
        %9448 = vmatprep.mubr.f32.mxu0 0.0
        %9449 = vmatmul.mubr.f32.gmra.mrb[0].mxu0 %v8094
        %v9450 = vpop.f32.mrb[0].mxu0
        %v9451 = vadd.f32 0.0, %v9450
        %v9452 = vpop.f32.mrb[0].mxu0
        %9453 = vmatprep.mubr.f32.mxu0 0.0
        %9454 = vmatmul.mubr.f32.gmra.mrb[0].mxu0 %v8099
        %v9455 = vpop.f32.mrb[0].mxu0
        %v9456 = vadd.f32 0.0, %v9455
        %v9457 = vpop.f32.mrb[0].mxu0
        %9458 = vmatprep.mubr.f32.mxu0 0.0
        %9459 = vmatmul.mubr.f32.gmra.mrb[0].mxu0 %v8104
        %v9460 = vpop.f32.mrb[0].mxu0
        %v9461 = vadd.f32 0.0, %v9460
        %v9462 = vpop.f32.mrb[0].mxu0
        %9463 = vdwg.mxu0
        %v9464 = vadd.f32 %v9286, %v9386
        %v9465 = vadd.f32 %v9287, %v9391
        %v9466 = vadd.f32 %v9288, %v9396
        %v9467 = vadd.f32 %v9289, %v9401
        %v9468 = vadd.f32 %v9290, %v9406
        %v9469 = vadd.f32 %v9291, %v9411
        %v9470 = vadd.f32 %v9292, %v9416
        %v9471 = vadd.f32 %v9293, %v9421
        %v9472 = vadd.f32 %v9294, %v9426
        %v9473 = vadd.f32 %v9295, %v9431
        %v9474 = vadd.f32 %v9296, %v9436
        %v9475 = vadd.f32 %v9297, %v9441
        %v9476 = vadd.f32 %v9298, %v9446
        %v9477 = vadd.f32 %v9299, %v9451
        %v9478 = vadd.f32 %v9300, %v9456
        %v9479 = vadd.f32 %v9301, %v9461
        %s9480 = scalar_lea.vmem %s4, 896
        %v9481 = vld [vmem:[%s9480] sm:$0xff]
        %v9482 = vld [vmem:[%s9480 + $0x8] sm:$0xff]
        %v9483 = vld [vmem:[%s9480 + $0x10] sm:$0xff]
        %v9484 = vld [vmem:[%s9480 + $0x18] sm:$0xff]
        %v9485 = vld [vmem:[%s9480 + $0x20] sm:$0xff]
        %v9486 = vld [vmem:[%s9480 + $0x28] sm:$0xff]
        %v9487 = vld [vmem:[%s9480 + $0x30] sm:$0xff]
        %v9488 = vld [vmem:[%s9480 + $0x38] sm:$0xff]
        %v9489 = vld [vmem:[%s9480 + $0x40] sm:$0xff]
        %v9490 = vld [vmem:[%s9480 + $0x48] sm:$0xff]
        %v9491 = vld [vmem:[%s9480 + $0x50] sm:$0xff]
        %v9492 = vld [vmem:[%s9480 + $0x58] sm:$0xff]
        %v9493 = vld [vmem:[%s9480 + $0x60] sm:$0xff]
        %v9494 = vld [vmem:[%s9480 + $0x68] sm:$0xff]
        %v9495 = vld [vmem:[%s9480 + $0x70] sm:$0xff]
        %v9496 = vld [vmem:[%s9480 + $0x78] sm:$0xff]
        %9497 = vmatprep.subr.mxu0 0.0
        %9498 = vmatpush1.msra.mxu0 %v9481
        %9499 = vmatprep.subr.mxu0 0.0
        %9500 = vmatpush1.msra.mxu0 %v9482
        %9501 = vmatprep.subr.mxu0 0.0
        %9502 = vmatpush1.msra.mxu0 %v9483
        %9503 = vmatprep.subr.mxu0 0.0
        %9504 = vmatpush1.msra.mxu0 %v9484
        %9505 = vmatprep.subr.mxu0 0.0
        %9506 = vmatpush1.msra.mxu0 %v9485
        %9507 = vmatprep.subr.mxu0 0.0
        %9508 = vmatpush1.msra.mxu0 %v9486
        %9509 = vmatprep.subr.mxu0 0.0
        %9510 = vmatpush1.msra.mxu0 %v9487
        %9511 = vmatprep.subr.mxu0 0.0
        %9512 = vmatpush1.msra.mxu0 %v9488
        %9513 = vmatprep.subr.mxu0 0.0
        %9514 = vmatpush1.msra.mxu0 %v9489
        %9515 = vmatprep.subr.mxu0 0.0
        %9516 = vmatpush1.msra.mxu0 %v9490
        %9517 = vmatprep.subr.mxu0 0.0
        %9518 = vmatpush1.msra.mxu0 %v9491
        %9519 = vmatprep.subr.mxu0 0.0
        %9520 = vmatpush1.msra.mxu0 %v9492
        %9521 = vmatprep.subr.mxu0 0.0
        %9522 = vmatpush1.msra.mxu0 %v9493
        %9523 = vmatprep.subr.mxu0 0.0
        %9524 = vmatpush1.msra.mxu0 %v9494
        %9525 = vmatprep.subr.mxu0 0.0
        %9526 = vmatpush1.msra.mxu0 %v9495
        %9527 = vmatprep.subr.mxu0 0.0
        %9528 = vmatpush1.msra.mxu0 %v9496
        %9529 = vmatprep.subr.mxu0 0.0
        %9530 = vmatpush1.msra.mxu0 0.0
        %9531 = vmatprep.subr.mxu0 0.0
        %9532 = vmatpush1.msra.mxu0 0.0
        %9533 = vmatprep.subr.mxu0 0.0
        %9534 = vmatpush1.msra.mxu0 0.0
        %9535 = vmatprep.subr.mxu0 0.0
        %9536 = vmatpush1.msra.mxu0 0.0
        %9537 = vmatprep.subr.mxu0 0.0
        %9538 = vmatpush1.msra.mxu0 0.0
        %9539 = vmatprep.subr.mxu0 0.0
        %9540 = vmatpush1.msra.mxu0 0.0
        %9541 = vmatprep.subr.mxu0 0.0
        %9542 = vmatpush1.msra.mxu0 0.0
        %9543 = vmatprep.subr.mxu0 0.0
        %9544 = vmatpush1.msra.mxu0 0.0
        %9545 = vmatprep.subr.mxu0 0.0
        %9546 = vmatpush1.msra.mxu0 0.0
        %9547 = vmatprep.subr.mxu0 0.0
        %9548 = vmatpush1.msra.mxu0 0.0
        %9549 = vmatprep.subr.mxu0 0.0
        %9550 = vmatpush1.msra.mxu0 0.0
        %9551 = vmatprep.subr.mxu0 0.0
        %9552 = vmatpush1.msra.mxu0 0.0
        %9553 = vmatprep.subr.mxu0 0.0
        %9554 = vmatpush1.msra.mxu0 0.0
        %9555 = vmatprep.subr.mxu0 0.0
        %9556 = vmatpush1.msra.mxu0 0.0
        %9557 = vmatprep.subr.mxu0 0.0
        %9558 = vmatpush1.msra.mxu0 0.0
        %9559 = vmatprep.subr.mxu0 0.0
        %9560 = vmatpush1.msra.mxu0 0.0
        %9561 = vmatprep.mubr.f32.mxu0 0.0
        %9562 = vmatmul.mubr.f32.gmra.mrb[0].mxu0 %v8109
        %v9563 = vpop.f32.mrb[0].mxu0
        %v9564 = vadd.f32 0.0, %v9563
        %v9565 = vpop.f32.mrb[0].mxu0
        %9566 = vmatprep.mubr.f32.mxu0 0.0
        %9567 = vmatmul.mubr.f32.gmra.mrb[0].mxu0 %v8114
        %v9568 = vpop.f32.mrb[0].mxu0
        %v9569 = vadd.f32 0.0, %v9568
        %v9570 = vpop.f32.mrb[0].mxu0
        %9571 = vmatprep.mubr.f32.mxu0 0.0
        %9572 = vmatmul.mubr.f32.gmra.mrb[0].mxu0 %v8119
        %v9573 = vpop.f32.mrb[0].mxu0
        %v9574 = vadd.f32 0.0, %v9573
        %v9575 = vpop.f32.mrb[0].mxu0
        %9576 = vmatprep.mubr.f32.mxu0 0.0
        %9577 = vmatmul.mubr.f32.gmra.mrb[0].mxu0 %v8124
        %v9578 = vpop.f32.mrb[0].mxu0
        %v9579 = vadd.f32 0.0, %v9578
        %v9580 = vpop.f32.mrb[0].mxu0
        %9581 = vmatprep.mubr.f32.mxu0 0.0
        %9582 = vmatmul.mubr.f32.gmra.mrb[0].mxu0 %v8129
        %v9583 = vpop.f32.mrb[0].mxu0
        %v9584 = vadd.f32 0.0, %v9583
        %v9585 = vpop.f32.mrb[0].mxu0
        %9586 = vmatprep.mubr.f32.mxu0 0.0
        %9587 = vmatmul.mubr.f32.gmra.mrb[0].mxu0 %v8134
        %v9588 = vpop.f32.mrb[0].mxu0
        %v9589 = vadd.f32 0.0, %v9588
        %v9590 = vpop.f32.mrb[0].mxu0
        %9591 = vmatprep.mubr.f32.mxu0 0.0
        %9592 = vmatmul.mubr.f32.gmra.mrb[0].mxu0 %v8139
        %v9593 = vpop.f32.mrb[0].mxu0
        %v9594 = vadd.f32 0.0, %v9593
        %v9595 = vpop.f32.mrb[0].mxu0
        %9596 = vmatprep.mubr.f32.mxu0 0.0
        %9597 = vmatmul.mubr.f32.gmra.mrb[0].mxu0 %v8144
        %v9598 = vpop.f32.mrb[0].mxu0
        %v9599 = vadd.f32 0.0, %v9598
        %v9600 = vpop.f32.mrb[0].mxu0
        %9601 = vmatprep.mubr.f32.mxu0 0.0
        %9602 = vmatmul.mubr.f32.gmra.mrb[0].mxu0 %v8149
        %v9603 = vpop.f32.mrb[0].mxu0
        %v9604 = vadd.f32 0.0, %v9603
        %v9605 = vpop.f32.mrb[0].mxu0
        %9606 = vmatprep.mubr.f32.mxu0 0.0
        %9607 = vmatmul.mubr.f32.gmra.mrb[0].mxu0 %v8154
        %v9608 = vpop.f32.mrb[0].mxu0
        %v9609 = vadd.f32 0.0, %v9608
        %v9610 = vpop.f32.mrb[0].mxu0
        %9611 = vmatprep.mubr.f32.mxu0 0.0
        %9612 = vmatmul.mubr.f32.gmra.mrb[0].mxu0 %v8159
        %v9613 = vpop.f32.mrb[0].mxu0
        %v9614 = vadd.f32 0.0, %v9613
        %v9615 = vpop.f32.mrb[0].mxu0
        %9616 = vmatprep.mubr.f32.mxu0 0.0
        %9617 = vmatmul.mubr.f32.gmra.mrb[0].mxu0 %v8164
        %v9618 = vpop.f32.mrb[0].mxu0
        %v9619 = vadd.f32 0.0, %v9618
        %v9620 = vpop.f32.mrb[0].mxu0
        %9621 = vmatprep.mubr.f32.mxu0 0.0
        %9622 = vmatmul.mubr.f32.gmra.mrb[0].mxu0 %v8169
        %v9623 = vpop.f32.mrb[0].mxu0
        %v9624 = vadd.f32 0.0, %v9623
        %v9625 = vpop.f32.mrb[0].mxu0
        %9626 = vmatprep.mubr.f32.mxu0 0.0
        %9627 = vmatmul.mubr.f32.gmra.mrb[0].mxu0 %v8174
        %v9628 = vpop.f32.mrb[0].mxu0
        %v9629 = vadd.f32 0.0, %v9628
        %v9630 = vpop.f32.mrb[0].mxu0
        %9631 = vmatprep.mubr.f32.mxu0 0.0
        %9632 = vmatmul.mubr.f32.gmra.mrb[0].mxu0 %v8179
        %v9633 = vpop.f32.mrb[0].mxu0
        %v9634 = vadd.f32 0.0, %v9633
        %v9635 = vpop.f32.mrb[0].mxu0
        %9636 = vmatprep.mubr.f32.mxu0 0.0
        %9637 = vmatmul.mubr.f32.gmra.mrb[0].mxu0 %v8184
        %v9638 = vpop.f32.mrb[0].mxu0
        %v9639 = vadd.f32 0.0, %v9638
        %v9640 = vpop.f32.mrb[0].mxu0
        %9641 = vdwg.mxu0
        %v9642 = vadd.f32 %v9464, %v9564
        %v9643 = vadd.f32 %v9465, %v9569
        %v9644 = vadd.f32 %v9466, %v9574
        %v9645 = vadd.f32 %v9467, %v9579
        %v9646 = vadd.f32 %v9468, %v9584
        %v9647 = vadd.f32 %v9469, %v9589
        %v9648 = vadd.f32 %v9470, %v9594
        %v9649 = vadd.f32 %v9471, %v9599
        %v9650 = vadd.f32 %v9472, %v9604
        %v9651 = vadd.f32 %v9473, %v9609
        %v9652 = vadd.f32 %v9474, %v9614
        %v9653 = vadd.f32 %v9475, %v9619
        %v9654 = vadd.f32 %v9476, %v9624
        %v9655 = vadd.f32 %v9477, %v9629
        %v9656 = vadd.f32 %v9478, %v9634
        %v9657 = vadd.f32 %v9479, %v9639
        %s9658 = scalar_lea.vmem %s4, 1024
        %v9659 = vld [vmem:[%s9658] sm:$0xff]
        %v9660 = vld [vmem:[%s9658 + $0x8] sm:$0xff]
        %v9661 = vld [vmem:[%s9658 + $0x10] sm:$0xff]
        %v9662 = vld [vmem:[%s9658 + $0x18] sm:$0xff]
        %v9663 = vld [vmem:[%s9658 + $0x20] sm:$0xff]
        %v9664 = vld [vmem:[%s9658 + $0x28] sm:$0xff]
        %v9665 = vld [vmem:[%s9658 + $0x30] sm:$0xff]
        %v9666 = vld [vmem:[%s9658 + $0x38] sm:$0xff]
        %v9667 = vld [vmem:[%s9658 + $0x40] sm:$0xff]
        %v9668 = vld [vmem:[%s9658 + $0x48] sm:$0xff]
        %v9669 = vld [vmem:[%s9658 + $0x50] sm:$0xff]
        %v9670 = vld [vmem:[%s9658 + $0x58] sm:$0xff]
        %v9671 = vld [vmem:[%s9658 + $0x60] sm:$0xff]
        %v9672 = vld [vmem:[%s9658 + $0x68] sm:$0xff]
        %v9673 = vld [vmem:[%s9658 + $0x70] sm:$0xff]
        %v9674 = vld [vmem:[%s9658 + $0x78] sm:$0xff]
        %9675 = vmatprep.subr.mxu0 0.0
        %9676 = vmatpush1.msra.mxu0 %v9659
        %9677 = vmatprep.subr.mxu0 0.0
        %9678 = vmatpush1.msra.mxu0 %v9660
        %9679 = vmatprep.subr.mxu0 0.0
        %9680 = vmatpush1.msra.mxu0 %v9661
        %9681 = vmatprep.subr.mxu0 0.0
        %9682 = vmatpush1.msra.mxu0 %v9662
        %9683 = vmatprep.subr.mxu0 0.0
        %9684 = vmatpush1.msra.mxu0 %v9663
        %9685 = vmatprep.subr.mxu0 0.0
        %9686 = vmatpush1.msra.mxu0 %v9664
        %9687 = vmatprep.subr.mxu0 0.0
        %9688 = vmatpush1.msra.mxu0 %v9665
        %9689 = vmatprep.subr.mxu0 0.0
        %9690 = vmatpush1.msra.mxu0 %v9666
        %9691 = vmatprep.subr.mxu0 0.0
        %9692 = vmatpush1.msra.mxu0 %v9667
        %9693 = vmatprep.subr.mxu0 0.0
        %9694 = vmatpush1.msra.mxu0 %v9668
        %9695 = vmatprep.subr.mxu0 0.0
        %9696 = vmatpush1.msra.mxu0 %v9669
        %9697 = vmatprep.subr.mxu0 0.0
        %9698 = vmatpush1.msra.mxu0 %v9670
        %9699 = vmatprep.subr.mxu0 0.0
        %9700 = vmatpush1.msra.mxu0 %v9671
        %9701 = vmatprep.subr.mxu0 0.0
        %9702 = vmatpush1.msra.mxu0 %v9672
        %9703 = vmatprep.subr.mxu0 0.0
        %9704 = vmatpush1.msra.mxu0 %v9673
        %9705 = vmatprep.subr.mxu0 0.0
        %9706 = vmatpush1.msra.mxu0 %v9674
        %9707 = vmatprep.subr.mxu0 0.0
        %9708 = vmatpush1.msra.mxu0 0.0
        %9709 = vmatprep.subr.mxu0 0.0
        %9710 = vmatpush1.msra.mxu0 0.0
        %9711 = vmatprep.subr.mxu0 0.0
        %9712 = vmatpush1.msra.mxu0 0.0
        %9713 = vmatprep.subr.mxu0 0.0
        %9714 = vmatpush1.msra.mxu0 0.0
        %9715 = vmatprep.subr.mxu0 0.0
        %9716 = vmatpush1.msra.mxu0 0.0
        %9717 = vmatprep.subr.mxu0 0.0
        %9718 = vmatpush1.msra.mxu0 0.0
        %9719 = vmatprep.subr.mxu0 0.0
        %9720 = vmatpush1.msra.mxu0 0.0
        %9721 = vmatprep.subr.mxu0 0.0
        %9722 = vmatpush1.msra.mxu0 0.0
        %9723 = vmatprep.subr.mxu0 0.0
        %9724 = vmatpush1.msra.mxu0 0.0
        %9725 = vmatprep.subr.mxu0 0.0
        %9726 = vmatpush1.msra.mxu0 0.0
        %9727 = vmatprep.subr.mxu0 0.0
        %9728 = vmatpush1.msra.mxu0 0.0
        %9729 = vmatprep.subr.mxu0 0.0
        %9730 = vmatpush1.msra.mxu0 0.0
        %9731 = vmatprep.subr.mxu0 0.0
        %9732 = vmatpush1.msra.mxu0 0.0
        %9733 = vmatprep.subr.mxu0 0.0
        %9734 = vmatpush1.msra.mxu0 0.0
        %9735 = vmatprep.subr.mxu0 0.0
        %9736 = vmatpush1.msra.mxu0 0.0
        %9737 = vmatprep.subr.mxu0 0.0
        %9738 = vmatpush1.msra.mxu0 0.0
        %9739 = vmatprep.mubr.f32.mxu0 0.0
        %9740 = vmatmul.mubr.f32.gmra.mrb[0].mxu0 %v8189
        %v9741 = vpop.f32.mrb[0].mxu0
        %v9742 = vadd.f32 0.0, %v9741
        %v9743 = vpop.f32.mrb[0].mxu0
        %9744 = vmatprep.mubr.f32.mxu0 0.0
        %9745 = vmatmul.mubr.f32.gmra.mrb[0].mxu0 %v8194
        %v9746 = vpop.f32.mrb[0].mxu0
        %v9747 = vadd.f32 0.0, %v9746
        %v9748 = vpop.f32.mrb[0].mxu0
        %9749 = vmatprep.mubr.f32.mxu0 0.0
        %9750 = vmatmul.mubr.f32.gmra.mrb[0].mxu0 %v8199
        %v9751 = vpop.f32.mrb[0].mxu0
        %v9752 = vadd.f32 0.0, %v9751
        %v9753 = vpop.f32.mrb[0].mxu0
        %9754 = vmatprep.mubr.f32.mxu0 0.0
        %9755 = vmatmul.mubr.f32.gmra.mrb[0].mxu0 %v8204
        %v9756 = vpop.f32.mrb[0].mxu0
        %v9757 = vadd.f32 0.0, %v9756
        %v9758 = vpop.f32.mrb[0].mxu0
        %9759 = vmatprep.mubr.f32.mxu0 0.0
        %9760 = vmatmul.mubr.f32.gmra.mrb[0].mxu0 %v8209
        %v9761 = vpop.f32.mrb[0].mxu0
        %v9762 = vadd.f32 0.0, %v9761
        %v9763 = vpop.f32.mrb[0].mxu0
        %9764 = vmatprep.mubr.f32.mxu0 0.0
        %9765 = vmatmul.mubr.f32.gmra.mrb[0].mxu0 %v8214
        %v9766 = vpop.f32.mrb[0].mxu0
        %v9767 = vadd.f32 0.0, %v9766
        %v9768 = vpop.f32.mrb[0].mxu0
        %9769 = vmatprep.mubr.f32.mxu0 0.0
        %9770 = vmatmul.mubr.f32.gmra.mrb[0].mxu0 %v8219
        %v9771 = vpop.f32.mrb[0].mxu0
        %v9772 = vadd.f32 0.0, %v9771
        %v9773 = vpop.f32.mrb[0].mxu0
        %9774 = vmatprep.mubr.f32.mxu0 0.0
        %9775 = vmatmul.mubr.f32.gmra.mrb[0].mxu0 %v8224
        %v9776 = vpop.f32.mrb[0].mxu0
        %v9777 = vadd.f32 0.0, %v9776
        %v9778 = vpop.f32.mrb[0].mxu0
        %9779 = vmatprep.mubr.f32.mxu0 0.0
        %9780 = vmatmul.mubr.f32.gmra.mrb[0].mxu0 %v8229
        %v9781 = vpop.f32.mrb[0].mxu0
        %v9782 = vadd.f32 0.0, %v9781
        %v9783 = vpop.f32.mrb[0].mxu0
        %9784 = vmatprep.mubr.f32.mxu0 0.0
        %9785 = vmatmul.mubr.f32.gmra.mrb[0].mxu0 %v8234
        %v9786 = vpop.f32.mrb[0].mxu0
        %v9787 = vadd.f32 0.0, %v9786
        %v9788 = vpop.f32.mrb[0].mxu0
        %9789 = vmatprep.mubr.f32.mxu0 0.0
        %9790 = vmatmul.mubr.f32.gmra.mrb[0].mxu0 %v8239
        %v9791 = vpop.f32.mrb[0].mxu0
        %v9792 = vadd.f32 0.0, %v9791
        %v9793 = vpop.f32.mrb[0].mxu0
        %9794 = vmatprep.mubr.f32.mxu0 0.0
        %9795 = vmatmul.mubr.f32.gmra.mrb[0].mxu0 %v8244
        %v9796 = vpop.f32.mrb[0].mxu0
        %v9797 = vadd.f32 0.0, %v9796
        %v9798 = vpop.f32.mrb[0].mxu0
        %9799 = vmatprep.mubr.f32.mxu0 0.0
        %9800 = vmatmul.mubr.f32.gmra.mrb[0].mxu0 %v8249
        %v9801 = vpop.f32.mrb[0].mxu0
        %v9802 = vadd.f32 0.0, %v9801
        %v9803 = vpop.f32.mrb[0].mxu0
        %9804 = vmatprep.mubr.f32.mxu0 0.0
        %9805 = vmatmul.mubr.f32.gmra.mrb[0].mxu0 %v8254
        %v9806 = vpop.f32.mrb[0].mxu0
        %v9807 = vadd.f32 0.0, %v9806
        %v9808 = vpop.f32.mrb[0].mxu0
        %9809 = vmatprep.mubr.f32.mxu0 0.0
        %9810 = vmatmul.mubr.f32.gmra.mrb[0].mxu0 %v8259
        %v9811 = vpop.f32.mrb[0].mxu0
        %v9812 = vadd.f32 0.0, %v9811
        %v9813 = vpop.f32.mrb[0].mxu0
        %9814 = vmatprep.mubr.f32.mxu0 0.0
        %9815 = vmatmul.mubr.f32.gmra.mrb[0].mxu0 %v8264
        %v9816 = vpop.f32.mrb[0].mxu0
        %v9817 = vadd.f32 0.0, %v9816
        %v9818 = vpop.f32.mrb[0].mxu0
        %9819 = vdwg.mxu0
        %v9820 = vadd.f32 %v9642, %v9742
        %v9821 = vadd.f32 %v9643, %v9747
        %v9822 = vadd.f32 %v9644, %v9752
        %v9823 = vadd.f32 %v9645, %v9757
        %v9824 = vadd.f32 %v9646, %v9762
        %v9825 = vadd.f32 %v9647, %v9767
        %v9826 = vadd.f32 %v9648, %v9772
        %v9827 = vadd.f32 %v9649, %v9777
        %v9828 = vadd.f32 %v9650, %v9782
        %v9829 = vadd.f32 %v9651, %v9787
        %v9830 = vadd.f32 %v9652, %v9792
        %v9831 = vadd.f32 %v9653, %v9797
        %v9832 = vadd.f32 %v9654, %v9802
        %v9833 = vadd.f32 %v9655, %v9807
        %v9834 = vadd.f32 %v9656, %v9812
        %v9835 = vadd.f32 %v9657, %v9817
        %v9836 = vld [vmem:[%s5] sm:$0x1]
        %v9838 = vlaneseq
        %v9839 = vshrl.u32 %v9838, 7
        %v9840 = vsub.s32 0, %v9839
        %v9841 = vrot.slane %v9836, %v9840
        %v9843 = vadd.f32 %v9820, %v9841
        %v9844 = vadd.f32 %v9821, %v9841
        %v9845 = vadd.f32 %v9822, %v9841
        %v9846 = vadd.f32 %v9823, %v9841
        %v9847 = vadd.f32 %v9824, %v9841
        %v9848 = vadd.f32 %v9825, %v9841
        %v9849 = vadd.f32 %v9826, %v9841
        %v9850 = vadd.f32 %v9827, %v9841
        %v9851 = vadd.f32 %v9828, %v9841
        %v9852 = vadd.f32 %v9829, %v9841
        %v9853 = vadd.f32 %v9830, %v9841
        %v9854 = vadd.f32 %v9831, %v9841
        %v9855 = vadd.f32 %v9832, %v9841
        %v9856 = vadd.f32 %v9833, %v9841
        %v9857 = vadd.f32 %v9834, %v9841
        %v9858 = vadd.f32 %v9835, %v9841
        %v9867 = vrot.slane %v9843, 4
        %v9868 = vrot.slane %v9845, 4
        %v9869 = vrot.slane %v9847, 4
        %v9870 = vrot.slane %v9849, 4
        %v9871 = vrot.slane %v9851, 4
        %v9872 = vrot.slane %v9853, 4
        %v9873 = vrot.slane %v9855, 4
        %v9874 = vrot.slane %v9857, 4
        %v9883 = vmax.f32 %v9843, %v9867
        %v9884 = vmax.f32 %v9845, %v9868
        %v9885 = vmax.f32 %v9847, %v9869
        %v9886 = vmax.f32 %v9849, %v9870
        %v9887 = vmax.f32 %v9851, %v9871
        %v9888 = vmax.f32 %v9853, %v9872
        %v9889 = vmax.f32 %v9855, %v9873
        %v9890 = vmax.f32 %v9857, %v9874
        %v9891 = vmax.f32 %v9883, %v9844
        %v9892 = vmax.f32 %v9884, %v9846
        %v9893 = vmax.f32 %v9885, %v9848
        %v9894 = vmax.f32 %v9886, %v9850
        %v9895 = vmax.f32 %v9887, %v9852
        %v9896 = vmax.f32 %v9888, %v9854
        %v9897 = vmax.f32 %v9889, %v9856
        %v9898 = vmax.f32 %v9890, %v9858
        %vm9899 = vcmask 1042432
        %v9900 = vsel %vm9899, %v9891, -inf
        %v9901 = vrot.slane %v9900, 4
        %v9902 = vmax.f32 %v9900, %v9901
        %v9903 = vrot.slane %v9902, 2
        %v9904 = vmax.f32 %v9902, %v9903
        %v9905 = vrot.slane %v9904, 1
        %v9906 = vmax.f32 %v9904, %v9905
        %v9907 = vsel %vm9899, %v9892, -inf
        %v9908 = vrot.slane %v9907, 4
        %v9909 = vmax.f32 %v9907, %v9908
        %v9910 = vrot.slane %v9909, 2
        %v9911 = vmax.f32 %v9909, %v9910
        %v9912 = vrot.slane %v9911, 1
        %v9913 = vmax.f32 %v9911, %v9912
        %v9914 = vsel %vm9899, %v9893, -inf
        %v9915 = vrot.slane %v9914, 4
        %v9916 = vmax.f32 %v9914, %v9915
        %v9917 = vrot.slane %v9916, 2
        %v9918 = vmax.f32 %v9916, %v9917
        %v9919 = vrot.slane %v9918, 1
        %v9920 = vmax.f32 %v9918, %v9919
        %v9921 = vsel %vm9899, %v9894, -inf
        %v9922 = vrot.slane %v9921, 4
        %v9923 = vmax.f32 %v9921, %v9922
        %v9924 = vrot.slane %v9923, 2
        %v9925 = vmax.f32 %v9923, %v9924
        %v9926 = vrot.slane %v9925, 1
        %v9927 = vmax.f32 %v9925, %v9926
        %v9928 = vsel %vm9899, %v9895, -inf
        %v9929 = vrot.slane %v9928, 4
        %v9930 = vmax.f32 %v9928, %v9929
        %v9931 = vrot.slane %v9930, 2
        %v9932 = vmax.f32 %v9930, %v9931
        %v9933 = vrot.slane %v9932, 1
        %v9934 = vmax.f32 %v9932, %v9933
        %v9935 = vsel %vm9899, %v9896, -inf
        %v9936 = vrot.slane %v9935, 4
        %v9937 = vmax.f32 %v9935, %v9936
        %v9938 = vrot.slane %v9937, 2
        %v9939 = vmax.f32 %v9937, %v9938
        %v9940 = vrot.slane %v9939, 1
        %v9941 = vmax.f32 %v9939, %v9940
        %v9942 = vsel %vm9899, %v9897, -inf
        %v9943 = vrot.slane %v9942, 4
        %v9944 = vmax.f32 %v9942, %v9943
        %v9945 = vrot.slane %v9944, 2
        %v9946 = vmax.f32 %v9944, %v9945
        %v9947 = vrot.slane %v9946, 1
        %v9948 = vmax.f32 %v9946, %v9947
        %v9949 = vsel %vm9899, %v9898, -inf
        %v9950 = vrot.slane %v9949, 4
        %v9951 = vmax.f32 %v9949, %v9950
        %v9952 = vrot.slane %v9951, 2
        %v9953 = vmax.f32 %v9951, %v9952
        %v9954 = vrot.slane %v9953, 1
        %v9955 = vmax.f32 %v9953, %v9954
        %v9956 = vld [vmem:[%s6] sm:$0xff]
        %v9957 = vld [vmem:[%s6 + $0x8] sm:$0xff]
        %v9958 = vld [vmem:[%s6 + $0x10] sm:$0xff]
        %v9959 = vld [vmem:[%s6 + $0x18] sm:$0xff]
        %v9960 = vld [vmem:[%s6 + $0x20] sm:$0xff]
        %v9961 = vld [vmem:[%s6 + $0x28] sm:$0xff]
        %v9962 = vld [vmem:[%s6 + $0x30] sm:$0xff]
        %v9963 = vld [vmem:[%s6 + $0x38] sm:$0xff]
        %v9964 = vld [vmem:[%s6 + $0x40] sm:$0xff]
        %v9965 = vld [vmem:[%s6 + $0x48] sm:$0xff]
        %v9966 = vld [vmem:[%s6 + $0x50] sm:$0xff]
        %v9967 = vld [vmem:[%s6 + $0x58] sm:$0xff]
        %v9968 = vld [vmem:[%s6 + $0x60] sm:$0xff]
        %v9969 = vld [vmem:[%s6 + $0x68] sm:$0xff]
        %v9970 = vld [vmem:[%s6 + $0x70] sm:$0xff]
        %v9971 = vld [vmem:[%s6 + $0x78] sm:$0xff]
        %v9972 = vld [vmem:[%s6 + $0x80] sm:$0xff]
        %v9973 = vld [vmem:[%s6 + $0x88] sm:$0xff]
        %v9974 = vld [vmem:[%s6 + $0x90] sm:$0xff]
        %v9975 = vld [vmem:[%s6 + $0x98] sm:$0xff]
        %v9976 = vld [vmem:[%s6 + $0xa0] sm:$0xff]
        %v9977 = vld [vmem:[%s6 + $0xa8] sm:$0xff]
        %v9978 = vld [vmem:[%s6 + $0xb0] sm:$0xff]
        %v9979 = vld [vmem:[%s6 + $0xb8] sm:$0xff]
        %v9980 = vld [vmem:[%s6 + $0xc0] sm:$0xff]
        %v9981 = vld [vmem:[%s6 + $0xc8] sm:$0xff]
        %v9982 = vld [vmem:[%s6 + $0xd0] sm:$0xff]
        %v9983 = vld [vmem:[%s6 + $0xd8] sm:$0xff]
        %v9984 = vld [vmem:[%s6 + $0xe0] sm:$0xff]
        %v9985 = vld [vmem:[%s6 + $0xe8] sm:$0xff]
        %v9986 = vld [vmem:[%s6 + $0xf0] sm:$0xff]
        %v9987 = vld [vmem:[%s6 + $0xf8] sm:$0xff]
        %v9988 = vld [vmem:[%s7] sm:$0x3]
        %v9990 = vlaneseq
        %v9991 = vshrl.u32 %v9990, 7
        %v9992 = vsub.s32 0, %v9991
        %v9993 = vrot.slane %v9988, %v9992
        %v9994 = vlaneseq
        %v9995 = vshrl.u32 %v9994, 7
        %v9996 = vsub.s32 1, %v9995
        %v9997 = vrot.slane %v9988, %v9996
        %vm10008 = vcmask 1041409
        %v10009 = vsel %vm10008, %v9913, %v9906
        %vm10010 = vcmask 1042434
        %v10011 = vsel %vm10010, %v9920, %v10009
        %vm10012 = vcmask 1043459
        %v10013 = vsel %vm10012, %v9927, %v10011
        %vm10014 = vcmask 1044484
        %v10015 = vsel %vm10014, %v9934, %v10013
        %vm10016 = vcmask 1045509
        %v10017 = vsel %vm10016, %v9941, %v10015
        %vm10018 = vcmask 1046534
        %v10019 = vsel %vm10018, %v9948, %v10017
        %vm10020 = vcmask 1047559
        %v10021 = vsel %vm10020, %v9955, %v10019
        %10023 = vmatprep.subr.mxu0 %v9957
        %10024 = vmatpush1.msra.mxu0 %v9956
        %10025 = vmatprep.subr.mxu0 %v9959
        %10026 = vmatpush1.msra.mxu0 %v9958
        %10027 = vmatprep.subr.mxu0 %v9961
        %10028 = vmatpush1.msra.mxu0 %v9960
        %10029 = vmatprep.subr.mxu0 %v9963
        %10030 = vmatpush1.msra.mxu0 %v9962
        %10031 = vmatprep.subr.mxu0 %v9965
        %10032 = vmatpush1.msra.mxu0 %v9964
        %10033 = vmatprep.subr.mxu0 %v9967
        %10034 = vmatpush1.msra.mxu0 %v9966
        %10035 = vmatprep.subr.mxu0 %v9969
        %10036 = vmatpush1.msra.mxu0 %v9968
        %10037 = vmatprep.subr.mxu0 %v9971
        %10038 = vmatpush1.msra.mxu0 %v9970
        %10039 = vmatprep.subr.mxu0 %v9973
        %10040 = vmatpush1.msra.mxu0 %v9972
        %10041 = vmatprep.subr.mxu0 %v9975
        %10042 = vmatpush1.msra.mxu0 %v9974
        %10043 = vmatprep.subr.mxu0 %v9977
        %10044 = vmatpush1.msra.mxu0 %v9976
        %10045 = vmatprep.subr.mxu0 %v9979
        %10046 = vmatpush1.msra.mxu0 %v9978
        %10047 = vmatprep.subr.mxu0 %v9981
        %10048 = vmatpush1.msra.mxu0 %v9980
        %10049 = vmatprep.subr.mxu0 %v9983
        %10050 = vmatpush1.msra.mxu0 %v9982
        %10051 = vmatprep.subr.mxu0 %v9985
        %10052 = vmatpush1.msra.mxu0 %v9984
        %10053 = vmatprep.subr.mxu0 %v9987
        %10054 = vmatpush1.msra.mxu0 %v9986
        %10055 = vmatprep.subr.mxu0 0.0
        %10056 = vmatpush1.msra.mxu0 0.0
        %10057 = vmatprep.subr.mxu0 0.0
        %10058 = vmatpush1.msra.mxu0 0.0
        %10059 = vmatprep.subr.mxu0 0.0
        %10060 = vmatpush1.msra.mxu0 0.0
        %10061 = vmatprep.subr.mxu0 0.0
        %10062 = vmatpush1.msra.mxu0 0.0
        %10063 = vmatprep.subr.mxu0 0.0
        %10064 = vmatpush1.msra.mxu0 0.0
        %10065 = vmatprep.subr.mxu0 0.0
        %10066 = vmatpush1.msra.mxu0 0.0
        %10067 = vmatprep.subr.mxu0 0.0
        %10068 = vmatpush1.msra.mxu0 0.0
        %10069 = vmatprep.subr.mxu0 0.0
        %10070 = vmatpush1.msra.mxu0 0.0
        %10071 = vmatprep.subr.mxu0 0.0
        %10072 = vmatpush1.msra.mxu0 0.0
        %10073 = vmatprep.subr.mxu0 0.0
        %10074 = vmatpush1.msra.mxu0 0.0
        %10075 = vmatprep.subr.mxu0 0.0
        %10076 = vmatpush1.msra.mxu0 0.0
        %10077 = vmatprep.subr.mxu0 0.0
        %10078 = vmatpush1.msra.mxu0 0.0
        %10079 = vmatprep.subr.mxu0 0.0
        %10080 = vmatpush1.msra.mxu0 0.0
        %10081 = vmatprep.subr.mxu0 0.0
        %10082 = vmatpush1.msra.mxu0 0.0
        %10083 = vmatprep.subr.mxu0 0.0
        %10084 = vmatpush1.msra.mxu0 0.0
        %10085 = vmatprep.subr.mxu0 0.0
        %10086 = vmatpush1.msra.mxu0 0.0
        %10087 = vmatprep.mubr.f32.mxu0 0.0
        %10088 = vmatmul.mubr.f32.gmra.mrb[0].mxu0 %v10021
        %v10089 = vpop.f32.mrb[0].mxu0
        %v10090 = vadd.f32 %v9993, %v10089
        %v10091 = vpop.f32.mrb[0].mxu0
        %v10092 = vadd.f32 %v9997, %v10091
        %10093 = vdwg.mxu0
        %v10094 = vmax.f32 %v10090, 0.0
        %v10095 = vmax.f32 %v10092, 0.0
        %v10096 = vld [vmem:[%s8] sm:$0xff]
        %v10097 = vld [vmem:[%s8 + $0x8] sm:$0xff]
        %v10098 = vld [vmem:[%s8 + $0x10] sm:$0xff]
        %v10099 = vld [vmem:[%s8 + $0x18] sm:$0xff]
        %v10100 = vld [vmem:[%s8 + $0x20] sm:$0xff]
        %v10101 = vld [vmem:[%s8 + $0x28] sm:$0xff]
        %v10102 = vld [vmem:[%s8 + $0x30] sm:$0xff]
        %v10103 = vld [vmem:[%s8 + $0x38] sm:$0xff]
        %v10104 = vld [vmem:[%s8 + $0x40] sm:$0xff]
        %v10105 = vld [vmem:[%s8 + $0x48] sm:$0xff]
        %v10106 = vld [vmem:[%s8 + $0x50] sm:$0xff]
        %v10107 = vld [vmem:[%s8 + $0x58] sm:$0xff]
        %v10108 = vld [vmem:[%s8 + $0x60] sm:$0xff]
        %v10109 = vld [vmem:[%s8 + $0x68] sm:$0xff]
        %v10110 = vld [vmem:[%s8 + $0x70] sm:$0xff]
        %v10111 = vld [vmem:[%s8 + $0x78] sm:$0xff]
        %v10112 = vld [vmem:[%s8 + $0x80] sm:$0xff]
        %v10113 = vld [vmem:[%s8 + $0x88] sm:$0xff]
        %v10114 = vld [vmem:[%s8 + $0x90] sm:$0xff]
        %v10115 = vld [vmem:[%s8 + $0x98] sm:$0xff]
        %v10116 = vld [vmem:[%s8 + $0xa0] sm:$0xff]
        %v10117 = vld [vmem:[%s8 + $0xa8] sm:$0xff]
        %v10118 = vld [vmem:[%s8 + $0xb0] sm:$0xff]
        %v10119 = vld [vmem:[%s8 + $0xb8] sm:$0xff]
        %v10120 = vld [vmem:[%s8 + $0xc0] sm:$0xff]
        %v10121 = vld [vmem:[%s8 + $0xc8] sm:$0xff]
        %v10122 = vld [vmem:[%s8 + $0xd0] sm:$0xff]
        %v10123 = vld [vmem:[%s8 + $0xd8] sm:$0xff]
        %v10124 = vld [vmem:[%s8 + $0xe0] sm:$0xff]
        %v10125 = vld [vmem:[%s8 + $0xe8] sm:$0xff]
        %v10126 = vld [vmem:[%s8 + $0xf0] sm:$0xff]
        %v10127 = vld [vmem:[%s8 + $0xf8] sm:$0xff]
        %v10128 = vld [vmem:[%s9] sm:$0x1]
        %v10130 = vlaneseq
        %v10131 = vshrl.u32 %v10130, 7
        %v10132 = vsub.s32 0, %v10131
        %v10133 = vrot.slane %v10128, %v10132
        %10135 = vmatprep.subr.mxu0 0.0
        %10136 = vmatpush1.msra.mxu0 %v10096
        %10137 = vmatprep.subr.mxu0 0.0
        %10138 = vmatpush1.msra.mxu0 %v10097
        %10139 = vmatprep.subr.mxu0 0.0
        %10140 = vmatpush1.msra.mxu0 %v10098
        %10141 = vmatprep.subr.mxu0 0.0
        %10142 = vmatpush1.msra.mxu0 %v10099
        %10143 = vmatprep.subr.mxu0 0.0
        %10144 = vmatpush1.msra.mxu0 %v10100
        %10145 = vmatprep.subr.mxu0 0.0
        %10146 = vmatpush1.msra.mxu0 %v10101
        %10147 = vmatprep.subr.mxu0 0.0
        %10148 = vmatpush1.msra.mxu0 %v10102
        %10149 = vmatprep.subr.mxu0 0.0
        %10150 = vmatpush1.msra.mxu0 %v10103
        %10151 = vmatprep.subr.mxu0 0.0
        %10152 = vmatpush1.msra.mxu0 %v10104
        %10153 = vmatprep.subr.mxu0 0.0
        %10154 = vmatpush1.msra.mxu0 %v10105
        %10155 = vmatprep.subr.mxu0 0.0
        %10156 = vmatpush1.msra.mxu0 %v10106
        %10157 = vmatprep.subr.mxu0 0.0
        %10158 = vmatpush1.msra.mxu0 %v10107
        %10159 = vmatprep.subr.mxu0 0.0
        %10160 = vmatpush1.msra.mxu0 %v10108
        %10161 = vmatprep.subr.mxu0 0.0
        %10162 = vmatpush1.msra.mxu0 %v10109
        %10163 = vmatprep.subr.mxu0 0.0
        %10164 = vmatpush1.msra.mxu0 %v10110
        %10165 = vmatprep.subr.mxu0 0.0
        %10166 = vmatpush1.msra.mxu0 %v10111
        %10167 = vmatprep.subr.mxu0 0.0
        %10168 = vmatpush1.msra.mxu0 %v10112
        %10169 = vmatprep.subr.mxu0 0.0
        %10170 = vmatpush1.msra.mxu0 %v10113
        %10171 = vmatprep.subr.mxu0 0.0
        %10172 = vmatpush1.msra.mxu0 %v10114
        %10173 = vmatprep.subr.mxu0 0.0
        %10174 = vmatpush1.msra.mxu0 %v10115
        %10175 = vmatprep.subr.mxu0 0.0
        %10176 = vmatpush1.msra.mxu0 %v10116
        %10177 = vmatprep.subr.mxu0 0.0
        %10178 = vmatpush1.msra.mxu0 %v10117
        %10179 = vmatprep.subr.mxu0 0.0
        %10180 = vmatpush1.msra.mxu0 %v10118
        %10181 = vmatprep.subr.mxu0 0.0
        %10182 = vmatpush1.msra.mxu0 %v10119
        %10183 = vmatprep.subr.mxu0 0.0
        %10184 = vmatpush1.msra.mxu0 %v10120
        %10185 = vmatprep.subr.mxu0 0.0
        %10186 = vmatpush1.msra.mxu0 %v10121
        %10187 = vmatprep.subr.mxu0 0.0
        %10188 = vmatpush1.msra.mxu0 %v10122
        %10189 = vmatprep.subr.mxu0 0.0
        %10190 = vmatpush1.msra.mxu0 %v10123
        %10191 = vmatprep.subr.mxu0 0.0
        %10192 = vmatpush1.msra.mxu0 %v10124
        %10193 = vmatprep.subr.mxu0 0.0
        %10194 = vmatpush1.msra.mxu0 %v10125
        %10195 = vmatprep.subr.mxu0 0.0
        %10196 = vmatpush1.msra.mxu0 %v10126
        %10197 = vmatprep.subr.mxu0 0.0
        %10198 = vmatpush1.msra.mxu0 %v10127
        %10199 = vmatprep.mubr.f32.mxu0 %v10095
        %10200 = vmatmul.mubr.f32.gmra.mrb[0].mxu0 %v10094
        %v10201 = vpop.f32.mrb[0].mxu0
        %v10202 = vadd.f32 %v10133, %v10201
        %v10203 = vpop.f32.mrb[0].mxu0
        %10204 = vdwg.mxu0
        %vm10205 = vcmp.ge.f32.partialorder %v10202, 0.0
        %v10206 = vmul.f32 %v10202, 0.01
        %v10207 = vsel %vm10205, %v10202, %v10206
        %10208 = vst [vmem:[%s1828] sm:$0xff] %v10207
        %s10209 = sand.u32 %s247, 1
        %s10210 = scalar_lea.sflag [#allocation4], %s10209
        %s10211 = sand.u32 %s247, 1
        %s10212 = smul.addr %s10211, 8
        %s10213 = scalar_lea.vmem [#allocation3], %s10212
        // Predicated region
        $region99: #{_forward_padded.1} parent=93 // pred_check
          %p10214 = pneg %p257
        $region100: #{_forward_padded.1} parent=93 // pred_check_branch
          %10216 = sbr.rel (%p10214) target = $region102
        $region101: #{_forward_padded.1} parent=93 // pred_region
          %s10218 = ssub.s32 128, 128
          %10219 = vsyncadd %s10210, %s10218
          %s10220 = smul.addr %s24, 128
          %s10221 = scalar_lea.hbm %s10, %s10220
          %s10223 = sshll.u32 %s10213, 4
          %s10224 = int_to_ptr.vmem [resolvable:$true] %s10223
          %10226 = dma.vmem_to_hbm [thread:$0]  %s10224, 128, %s10221, %s10210
        $region102: #{_forward_padded.1} parent=93 // pred_fallthru
          _
      $region94: #{_forward_padded.1} parent=5 // pred_fallthru
        _
      %p10227 = scmp.le.s32.totalorder 2, %s19
      // Predicated region
      $region103: #{_forward_padded.1} parent=5 // pred_check
        %p10228 = pneg %p10227
      $region104: #{_forward_padded.1} parent=5 // pred_check_branch
        %10230 = sbr.rel (%p10228) target = $region106
      $region105: #{_forward_padded.1} parent=5 // pred_region
        %s10231 = ssub.s32 %s19, 2
        // Predicated region
        $region107: #{_forward_padded.1} parent=105 // pred_check
          %p10232 = pneg %p263
        $region108: #{_forward_padded.1} parent=105 // pred_check_branch
          %10234 = sbr.rel (%p10232) target = $region110
        $region109: #{_forward_padded.1} parent=105 // pred_region
          %s10235 = sand.u32 %s248, 1
          %s10236 = scalar_lea.sflag [#allocation4], %s10235
          %s10237 = sand.u32 %s248, 1
          %s10238 = smul.addr %s10237, 8
          %s10239 = scalar_lea.vmem [#allocation3], %s10238
          %10240 = dma.done %s10236, 128
        $region110: #{_forward_padded.1} parent=105 // pred_fallthru
          _
      $region106: #{_forward_padded.1} parent=5 // pred_fallthru
        _
    $region6: #{_forward_padded.1} parent=1 // loop_footer
      %s23 = sadd.s32 1, %s19
    $region7: #{_forward_padded.1} parent=1 // loop_footer_branch
      %18 = sbr.rel target = $region3
    $region8: #{_forward_padded.1} parent=1 // loop_exit
      _
    %10241 = vsyncpa [#allocation4], 1
    %s10242 = scalar_lea.sflag [#allocation4], 1
    %10243 = vsyncpa %s10242, 1

</llo_original>
